<compile_context>
chip_gen: v7x
topology: tpu7x:2x2x1
jax: 0.10.0
libtpu: 0.0.40
codegen_flags: <defaults>
</compile_context>

<pallas_src>
import functools
import math

import jax
import jax.numpy as jnp
from jax.experimental import pallas as pl
from jax.experimental.pallas import tpu as pltpu

# ----------------------------- small config ---------------------------------
CONV_DIM = (16, 32)          # feature extractor conv channels
CONV_KERNEL = (4, 2)
CONV_STRIDE = (2, 2)
ASR_HIDDEN = 256             # wav2vec2 hidden size (multiple of 128)
NUM_HEADS = 2
HEAD_DIM = ASR_HIDDEN // NUM_HEADS            # 128 -> lane aligned head slices
FFN_DIM = 512
NUM_LAYERS = 2
POS_CONV_KERNEL = 16
POS_CONV_GROUPS = 4
LLM_HIDDEN = 128             # Mistral hidden size -> n_head = LLM_HIDDEN // 128 = 1
ROTARY_DIM = 128             # Mistral rotary head_dim
VOCAB = 256
ROPE_THETA = 10000.0
LN_EPS = 1e-5
GN_EPS = 1e-5
NEG_INF = -1e9

# Column offsets inside the packed per-layer weight slab (all 128-aligned).
W_QKV = 0
W_O = 3 * ASR_HIDDEN                 # 768
W_F1 = W_O + ASR_HIDDEN              # 1024
W_TOTAL = W_F1 + FFN_DIM             # 1536

# Column offsets inside the packed per-layer small-vector slab (all 128-aligned).
V_BQKV = 0
V_BO = 3 * ASR_HIDDEN                # 768
V_LN1W = V_BO + ASR_HIDDEN           # 1024
V_LN1B = V_LN1W + ASR_HIDDEN         # 1280
V_BF1 = V_LN1B + ASR_HIDDEN          # 1536
V_BF2 = V_BF1 + FFN_DIM              # 2048
V_LN2W = V_BF2 + ASR_HIDDEN          # 2304
V_LN2B = V_LN2W + ASR_HIDDEN         # 2560
V_TOTAL = V_LN2B + ASR_HIDDEN        # 2816


# ============================ in-kernel helpers ==============================
def _layer_norm(x, w, b, eps=LN_EPS):
    mean = jnp.mean(x, axis=-1, keepdims=True)
    var = jnp.mean(jnp.square(x - mean), axis=-1, keepdims=True)
    return (x - mean) * jax.lax.rsqrt(var + eps) * w + b


def _erf_approx(x):
    # Abramowitz & Stegun 7.1.26, max abs error 1.5e-7.
    a1, a2, a3, a4, a5 = 0.254829592, -0.284496736, 1.421413741, -1.453152027, 1.061405429
    p = 0.3275911
    sign = jnp.where(x >= 0.0, 1.0, -1.0)
    ax = jnp.abs(x)
    t = 1.0 / (1.0 + p * ax)
    poly = ((((a5 * t + a4) * t + a3) * t + a2) * t + a1) * t
    return sign * (1.0 - poly * jnp.exp(-ax * ax))


def _gelu_exact(x):
    return 0.5 * x * (1.0 + _erf_approx(x * 0.7071067811865476))


def _full_spec(shape):
    # Full-array block at a constant index; grid has a single step.
    return pl.BlockSpec(shape, lambda i, _n=len(shape): (0,) * _n)


# ============================= Pallas kernels ================================
def _feature_proj_kernel(x_ref, mask_ref, ln_ref, w_ref, b_ref, o_ref):
    """LayerNorm -> Linear(proj) -> zero padded frames, batch flattened to rows."""
    x = x_ref[...]                                          # (BT, Cin) f32
    xn = _layer_norm(x, ln_ref[0:1, :], ln_ref[1:2, :])
    y = jnp.dot(xn.astype(jnp.bfloat16), w_ref[...],
                preferred_element_type=jnp.float32) + b_ref[...]
    o_ref[...] = y * mask_ref[...]                          # (BT, C) * (BT, 1)


def feature_projection(feat_flat, mask_flat, fp_ln, w, b):
    BT, Cin = feat_flat.shape
    C = w.shape[1]
    return pl.pallas_call(
        _feature_proj_kernel,
        grid=(1,),
        in_specs=[
            _full_spec((BT, Cin)),
            _full_spec((BT, 1)),
            _full_spec((2, Cin)),
            _full_spec((Cin, C)),
            _full_spec((1, C)),
        ],
        out_specs=_full_spec((BT, C)),
        out_shape=jax.ShapeDtypeStruct((BT, C), jnp.float32),
        compiler_params=pltpu.CompilerParams(dimension_semantics=("arbitrary",)),
    )(feat_flat, mask_flat, fp_ln, w, b)


def _encoder_head_kernel(x_ref, pos_ref, bias_ref, encln_ref, wmain_ref, wf2_ref,
                         vecs_ref, wad_ref, bad_ref, rope_ref, lm_ref, out_ref,
                         ctx_sc, *, num_layers, num_heads, head_dim, ffn_dim):
    """Fused: (+pos_conv) -> enc LN -> N encoder layers -> adapter -> RoPE -> lm_head.

    All rows are (batch*time) flattened; cross-batch attention and key padding are
    handled by the (BT, BT) additive bias.  Per-head context vectors are written into
    a (BT, C) VMEM scratch at static 128-lane offsets so the output projection is a
    single (BT,C)x(C,C) matmul.
    """
    c = num_heads * head_dim

    x = x_ref[...] + pos_ref[...]                           # (BT, C) f32
    x = _layer_norm(x, encln_ref[0:1, :], encln_ref[1:2, :])
    bias = bias_ref[...]                                    # (BT, BT) additive

    for l in range(num_layers):
        # ---- attention -------------------------------------------------------
        # QKV projection (1/sqrt(head_dim) pre-folded into the Q columns at init).
        qkv = jnp.dot(x.astype(jnp.bfloat16), wmain_ref[l, :, W_QKV:W_QKV + 3 * c],
                      preferred_element_type=jnp.float32)
        qkv = qkv + vecs_ref[l, :, V_BQKV:V_BQKV + 3 * c]
        qkvb = qkv.astype(jnp.bfloat16)                     # single cast of (BT, 3C)

        for h in range(num_heads):
            lo = h * head_dim
            qh = qkvb[:, lo:lo + head_dim]
            kh = qkvb[:, c + lo:c + lo + head_dim]
            vh = qkvb[:, 2 * c + lo:2 * c + lo + head_dim]
            s = jax.lax.dot_general(qh, kh, (((1,), (1,)), ((), ())),
                                    preferred_element_type=jnp.float32)   # (BT, BT)
            s = s + bias
            s = s - jnp.max(s, axis=-1, keepdims=True)
            p = jnp.exp(s)
            p = p * pl.reciprocal(jnp.sum(p, axis=-1, keepdims=True), approx=True)
            ctx_sc[:, lo:lo + head_dim] = jnp.dot(
                p.astype(jnp.bfloat16), vh, preferred_element_type=jnp.float32)

        attn = jnp.dot(ctx_sc[...].astype(jnp.bfloat16), wmain_ref[l, :, W_O:W_O + c],
                       preferred_element_type=jnp.float32)
        attn = attn + vecs_ref[l, :, V_BO:V_BO + c]

        h1 = _layer_norm(x + attn,
                         vecs_ref[l, :, V_LN1W:V_LN1W + c],
                         vecs_ref[l, :, V_LN1B:V_LN1B + c])

        # ---- feed forward ----------------------------------------------------
        ff = jnp.dot(h1.astype(jnp.bfloat16), wmain_ref[l, :, W_F1:W_F1 + ffn_dim],
                     preferred_element_type=jnp.float32)
        ff = ff + vecs_ref[l, :, V_BF1:V_BF1 + ffn_dim]
        ff = _gelu_exact(ff)
        ff = jnp.dot(ff.astype(jnp.bfloat16), wf2_ref[l],
                     preferred_element_type=jnp.float32)
        ff = ff + vecs_ref[l, :, V_BF2:V_BF2 + c]

        x = _layer_norm(h1 + ff,
                        vecs_ref[l, :, V_LN2W:V_LN2W + c],
                        vecs_ref[l, :, V_LN2B:V_LN2B + c])

    # ---- adapter + RoPE(-pos) + lm_head -------------------------------------
    ad = jnp.dot(x.astype(jnp.bfloat16), wad_ref[...],
                 preferred_element_type=jnp.float32) + bad_ref[...]       # (BT, H)
    half = ad.shape[-1] // 2
    cos = rope_ref[0]                                                     # (BT, H/2)
    sin = rope_ref[1]
    x1 = ad[:, :half]
    x2 = ad[:, half:]
    r1 = x1 * cos - x2 * sin
    r2 = x2 * cos + x1 * sin
    out_ref[...] = (jnp.dot(r1.astype(jnp.bfloat16), lm_ref[0:half, :],
                            preferred_element_type=jnp.float32)
                    + jnp.dot(r2.astype(jnp.bfloat16), lm_ref[half:, :],
                              preferred_element_type=jnp.float32))        # (BT, V)


def encoder_and_head(x_flat, pos_flat, attn_bias, enc_ln, w_main, w_f2, vecs,
                     wad, bad, rope, lm):
    BT, C = x_flat.shape
    L = w_main.shape[0]
    H = wad.shape[1]
    V = lm.shape[1]
    kern = functools.partial(_encoder_head_kernel, num_layers=L,
                             num_heads=NUM_HEADS, head_dim=HEAD_DIM, ffn_dim=FFN_DIM)
    return pl.pallas_call(
        kern,
        grid=(1,),
        in_specs=[
            _full_spec((BT, C)),                 # hidden (feature projection)
            _full_spec((BT, C)),                 # positional conv embedding
            _full_spec((BT, BT)),                # block-diag + key-pad additive bias
            _full_spec((2, C)),                  # encoder LN [w; b]
            _full_spec((L, C, W_TOTAL)),         # [Wqkv | Wo | Wf1] bf16
            _full_spec((L, FFN_DIM, C)),         # Wf2 bf16
            _full_spec((L, 1, V_TOTAL)),         # packed per-layer vectors f32
            _full_spec((C, H)),                  # adapter weight bf16
            _full_spec((1, H)),                  # adapter bias
            _full_spec((2, BT, H // 2)),         # [cos; sin] half tables
            _full_spec((H, V)),                  # lm_head bf16
        ],
        out_specs=_full_spec((BT, V)),
        out_shape=jax.ShapeDtypeStruct((BT, V), jnp.float32),
        scratch_shapes=[pltpu.VMEM((BT, C), jnp.float32)],
        compiler_params=pltpu.CompilerParams(dimension_semantics=("arbitrary",)),
    )(x_flat, pos_flat, attn_bias, enc_ln, w_main, w_f2, vecs, wad, bad, rope, lm)


# ============================== JAX glue =====================================
def gelu(x):
    return jax.nn.gelu(x, approximate=False)


def group_norm_per_channel(x, gamma, beta, eps=GN_EPS):
    # GroupNorm(num_groups=C, num_channels=C) on (B, C, T): per-channel over T.
    mean = x.mean(axis=-1, keepdims=True)
    var = ((x - mean) ** 2).mean(axis=-1, keepdims=True)
    xh = (x - mean) / jnp.sqrt(var + eps)
    return xh * gamma[None, :, None] + beta[None, :, None]


def conv1d_xla(x, w, stride, padding=0, groups=1, bias=None):
    """x: (B, C_in, L), w torch layout (C_out, C_in/groups, K)."""
    y = jax.lax.conv_general_dilated(
        x, w, window_strides=(stride,), padding=[(padding, padding)],
        dimension_numbers=("NCH", "OIH", "NCH"), feature_group_count=groups)
    if bias is not None:
        y = y + bias[None, :, None]
    return y


def pos_conv_embed(params, hidden):
    """Wav2Vec2PositionalConvEmbedding: grouped conv1d + same-pad(drop last) + GELU."""
    x = jnp.transpose(hidden, (0, 2, 1))                    # (B, C, T)
    pad = POS_CONV_KERNEL // 2
    y = conv1d_xla(x, params["pos_conv_w"], 1, padding=pad,
                   groups=POS_CONV_GROUPS, bias=params["pos_conv_b"])
    y = y[:, :, :-1]                                        # even kernel -> drop last
    y = gelu(y)
    return jnp.transpose(y, (0, 2, 1))                      # (B, T, C)


def wav2vec2_mistral_forward(params, audio, audio_attention_mask):
    B = audio.shape[0]

    # ------------- Wav2Vec2 feature extractor (tiny convs, XLA) -------------
    x = audio[:, None, :]                                   # (B, 1, L)
    x = conv1d_xla(x, params["conv0_w"], CONV_STRIDE[0])    # no bias
    x = group_norm_per_channel(x, params["gn_w"], params["gn_b"])
    x = gelu(x)
    x = conv1d_xla(x, params["conv1_w"], CONV_STRIDE[1])
    x = gelu(x)
    extract_features = jnp.transpose(x, (0, 2, 1))          # (B, T, conv_dim[-1])
    T = extract_features.shape[1]
    BT = B * T

    # ------------- feature-vector attention mask / lengths ------------------
    input_lengths = jnp.sum(audio_attention_mask, axis=-1)
    out_len = input_lengths
    for k, s in zip(CONV_KERNEL, CONV_STRIDE):
        out_len = (out_len - k) // s + 1
    feat_mask = jnp.arange(T)[None, :] < out_len[:, None]   # (B, T) bool
    audio_attn_length = feat_mask.sum(axis=1).astype(jnp.int32)

    mask_flat = feat_mask.reshape(BT, 1).astype(jnp.float32)            # (BT, 1)

    # ---------------- feature projection (Pallas, batch-flattened) ----------
    fp_flat = feature_projection(
        extract_features.reshape(BT, CONV_DIM[1]), mask_flat,
        params["fp_ln"], params["fp_w"], params["fp_b"])                # (BT, C)

    # --------------- positional conv embedding (XLA, tiny) ------------------
    pos = pos_conv_embed(params, fp_flat.reshape(B, T, ASR_HIDDEN))     # (B, T, C)
    pos_flat = pos.reshape(BT, ASR_HIDDEN)

    # ----- (BT, BT) additive attention bias: block-diagonal + key padding ---
    row_batch = jnp.repeat(jnp.arange(BT) // T, 1)
    same_batch = row_batch[:, None] == row_batch[None, :]
    key_valid = feat_mask.reshape(BT)
    attn_bias = jnp.where(same_batch & key_valid[None, :], 0.0,
                          NEG_INF).astype(jnp.float32)                  # (BT, BT)

    # ----- RoPE half tables (negated positions), tiled across the batch -----
    neg_pos = -jnp.arange(T, dtype=jnp.float32)
    inv_freq = 1.0 / (ROPE_THETA **
                      (jnp.arange(0, ROTARY_DIM, 2, dtype=jnp.float32) / ROTARY_DIM))
    freqs = neg_pos[:, None] * inv_freq[None, :]                        # (T, H/2)
    rope = jnp.stack([jnp.cos(freqs), jnp.sin(freqs)], axis=0)          # (2, T, H/2)
    rope = jnp.tile(rope, (1, B, 1))                                    # (2, BT, H/2)

    # ------ ONE fused Pallas call: encoder LN + layers + adapter + lm_head --
    logits_flat = encoder_and_head(
        fp_flat, pos_flat, attn_bias, params["enc_ln"],
        params["w_main"], params["w_f2"], params["vecs"],
        params["adapter_w"], params["adapter_b"], rope, params["lm_head"])

    token_logits = logits_flat.reshape(B, T, VOCAB)
    # Argmax is trivial for XLA; keeps the kernel's store path lane-dense.
    token_predictions = jnp.argmax(token_logits, axis=-1).astype(jnp.int32)
    return token_logits, token_predictions, audio_attn_length


# ============================ parameter init =================================
def init_params(key):
    keys = iter(jax.random.split(key, 64))

    def nrm(shape, scale=0.05):
        return scale * jax.random.normal(next(keys), shape, jnp.float32)

    C, F, H = ASR_HIDDEN, FFN_DIM, LLM_HIDDEN
    # NOTE: torch nn.Linear weights are (out, in); here they are stored already
    # pre-transposed to (in, out); matmul weights are pre-cast to bf16 (MXU dtype).
    p = {
        "conv0_w": nrm((CONV_DIM[0], 1, CONV_KERNEL[0]), 0.3),
        "gn_w": jnp.ones((CONV_DIM[0],), jnp.float32),
        "gn_b": jnp.zeros((CONV_DIM[0],), jnp.float32),
        "conv1_w": nrm((CONV_DIM[1], CONV_DIM[0], CONV_KERNEL[1]), 0.3),
        "fp_ln": jnp.concatenate([jnp.ones((1, CONV_DIM[1]), jnp.float32),
                                  jnp.zeros((1, CONV_DIM[1]), jnp.float32)], axis=0),
        "fp_w": nrm((CONV_DIM[1], C)).astype(jnp.bfloat16),
        "fp_b": nrm((1, C)),
        "pos_conv_w": nrm((C, C // POS_CONV_GROUPS, POS_CONV_KERNEL)),
        "pos_conv_b": nrm((C,)),
        "enc_ln": jnp.concatenate([jnp.ones((1, C), jnp.float32),
                                   jnp.zeros((1, C), jnp.float32)], axis=0),
        "adapter_w": nrm((C, H)).astype(jnp.bfloat16),
        "adapter_b": nrm((1, H)),
    }

    # Per-layer weights, packed into three stacked slabs (layer axis leading).
    scale = 1.0 / math.sqrt(HEAD_DIM)          # pre-folded into Q weights/bias
    w_main, w_f2, vecs = [], [], []
    for _ in range(NUM_LAYERS):
        wq, bq = nrm((C, C)) * scale, nrm((1, C)) * scale
        wk, bk = nrm((C, C)), nrm((1, C))
        wv, bv = nrm((C, C)), nrm((1, C))
        wo, bo = nrm((C, C)), nrm((1, C))
        wf1, bf1 = nrm((C, F)), nrm((1, F))
        wf2, bf2 = nrm((F, C)), nrm((1, C))
        ln1w, ln1b = jnp.ones((1, C), jnp.float32), jnp.zeros((1, C), jnp.float32)
        ln2w, ln2b = jnp.ones((1, C), jnp.float32), jnp.zeros((1, C), jnp.float32)
        w_main.append(jnp.concatenate([wq, wk, wv, wo, wf1], axis=1))    # (C, 1536)
        w_f2.append(wf2)                                                 # (F, C)
        vecs.append(jnp.concatenate(
            [bq, bk, bv, bo, ln1w, ln1b, bf1, bf2, ln2w, ln2b], axis=1)) # (1, 2816)
    p["w_main"] = jnp.stack(w_main, axis=0).astype(jnp.bfloat16)         # (L, C, 1536)
    p["w_f2"] = jnp.stack(w_f2, axis=0).astype(jnp.bfloat16)             # (L, F, C)
    p["vecs"] = jnp.stack(vecs, axis=0)                                  # (L, 1, 2816)

    # lm_head = normalize(embed_tokens.weight.T, dim=0)
    embed_w = jax.random.normal(next(keys), (VOCAB, LLM_HIDDEN), jnp.float32)
    w_t = embed_w.T                                                      # (H, VOCAB)
    p["lm_head"] = (w_t / jnp.linalg.norm(w_t, axis=0, keepdims=True)
                    ).astype(jnp.bfloat16)
    return p


# ================================ main =======================================
if __name__ == "__main__":
    key = jax.random.PRNGKey(0)
    pkey, akey = jax.random.split(key)
    params = init_params(pkey)

    B, L = 2, 68                                   # -> feature length T = 16
    audio = jax.random.normal(akey, (B, L), jnp.float32)
    lengths = jnp.array([68, 52], dtype=jnp.int32)
    audio_attention_mask = (jnp.arange(L)[None, :] < lengths[:, None]).astype(jnp.int32)

    fwd = jax.jit(wav2vec2_mistral_forward)
    logits, preds, attn_len = fwd(params, audio, audio_attention_mask)
    jax.block_until_ready((logits, preds, attn_len))

    assert logits.shape == (B, 16, VOCAB) and logits.dtype == jnp.float32
    assert preds.shape == (B, 16) and preds.dtype == jnp.int32
    assert attn_len.shape == (B,) and int(attn_len[0]) == 16 and int(attn_len[1]) == 12
    print("KERNEL_OK")
</pallas_src>

<mosaic_0001>
module attributes {stable_mosaic.version = 11 : i64} {
  func.func @_feature_proj_kernel(%arg0: i32, %arg1: memref<32x32xf32, #tpu.memory_space<vmem>>, %arg2: memref<32x1xf32, #tpu.memory_space<vmem>>, %arg3: memref<2x32xf32, #tpu.memory_space<vmem>>, %arg4: memref<32x256xbf16, #tpu.memory_space<vmem>>, %arg5: memref<1x256xf32, #tpu.memory_space<vmem>>, %arg6: memref<32x256xf32, #tpu.memory_space<vmem>>) attributes {dimension_semantics = [#tpu.dimension_semantics<arbitrary>], iteration_bounds = array<i64: 1>, scalar_prefetch = 0 : i64, scratch_operands = 0 : i64, tpu.core_type = #tpu.core_type<tc>, window_params = [{pipeline_mode = #tpu.pipeline_mode<synchronous>, transform_indices = @transform_0, window_bounds = array<i64: 32, 32>}, {pipeline_mode = #tpu.pipeline_mode<synchronous>, transform_indices = @transform_1, window_bounds = array<i64: 32, 1>}, {pipeline_mode = #tpu.pipeline_mode<synchronous>, transform_indices = @transform_2, window_bounds = array<i64: 2, 32>}, {pipeline_mode = #tpu.pipeline_mode<synchronous>, transform_indices = @transform_3, window_bounds = array<i64: 32, 256>}, {pipeline_mode = #tpu.pipeline_mode<synchronous>, transform_indices = @transform_4, window_bounds = array<i64: 1, 256>}, {pipeline_mode = #tpu.pipeline_mode<synchronous>, transform_indices = @transform_5, window_bounds = array<i64: 32, 256>}]} {
    %c0 = arith.constant 0 : index
    %c0_0 = arith.constant 0 : index
    %0 = vector.load %arg1[%c0, %c0_0] : memref<32x32xf32, #tpu.memory_space<vmem>>, vector<32x32xf32>
    %c0_1 = arith.constant 0 : index
    %c0_2 = arith.constant 0 : index
    %1 = vector.load %arg3[%c0_1, %c0_2] : memref<2x32xf32, #tpu.memory_space<vmem>>, vector<1x32xf32>
    %c1 = arith.constant 1 : index
    %c0_3 = arith.constant 0 : index
    %2 = vector.load %arg3[%c1, %c0_3] : memref<2x32xf32, #tpu.memory_space<vmem>>, vector<1x32xf32>
    %cst = arith.constant dense<0.000000e+00> : vector<32xf32>
    %3 = vector.multi_reduction <add>, %0, %cst [1] : vector<32x32xf32> to vector<32xf32>
    %4 = vector.shape_cast %3 : vector<32xf32> to vector<32x1xf32>
    %cst_4 = arith.constant 3.200000e+01 : f32
    %5 = vector.broadcast %cst_4 : f32 to vector<32x1xf32>
    %6 = arith.divf %4, %5 : vector<32x1xf32>
    %7 = vector.broadcast %6 : vector<32x1xf32> to vector<32x32xf32>
    %8 = arith.subf %0, %7 : vector<32x32xf32>
    %9 = arith.mulf %8, %8 : vector<32x32xf32>
    %cst_5 = arith.constant dense<0.000000e+00> : vector<32xf32>
    %10 = vector.multi_reduction <add>, %9, %cst_5 [1] : vector<32x32xf32> to vector<32xf32>
    %11 = vector.shape_cast %10 : vector<32xf32> to vector<32x1xf32>
    %cst_6 = arith.constant 3.200000e+01 : f32
    %12 = vector.broadcast %cst_6 : f32 to vector<32x1xf32>
    %13 = arith.divf %11, %12 : vector<32x1xf32>
    %14 = vector.broadcast %6 : vector<32x1xf32> to vector<32x32xf32>
    %15 = arith.subf %0, %14 : vector<32x32xf32>
    %cst_7 = arith.constant 9.99999974E-6 : f32
    %16 = vector.broadcast %cst_7 : f32 to vector<32x1xf32>
    %17 = arith.addf %13, %16 : vector<32x1xf32>
    %18 = math.rsqrt %17 : vector<32x1xf32>
    %19 = vector.broadcast %18 : vector<32x1xf32> to vector<32x32xf32>
    %20 = arith.mulf %15, %19 : vector<32x32xf32>
    %21 = vector.broadcast %1 : vector<1x32xf32> to vector<32x32xf32>
    %22 = arith.mulf %20, %21 : vector<32x32xf32>
    %23 = vector.broadcast %2 : vector<1x32xf32> to vector<32x32xf32>
    %24 = arith.addf %22, %23 : vector<32x32xf32>
    %25 = arith.truncf %24 : vector<32x32xf32> to vector<32x32xbf16>
    %c0_8 = arith.constant 0 : index
    %c0_9 = arith.constant 0 : index
    %26 = vector.load %arg4[%c0_8, %c0_9] : memref<32x256xbf16, #tpu.memory_space<vmem>>, vector<32x256xbf16>
    %cst_10 = arith.constant dense<0.000000e+00> : vector<32x256xf32>
    %27 = tpu.matmul %25, %26, %cst_10 {dimension_numbers = #tpu.dot_dimension_numbers<[1], [0], [0], [1], [0, 0, 1, 1], [], []>} : vector<32x32xbf16>, vector<32x256xbf16>, vector<32x256xf32> -> vector<32x256xf32>
    %c0_11 = arith.constant 0 : index
    %c0_12 = arith.constant 0 : index
    %28 = vector.load %arg5[%c0_11, %c0_12] : memref<1x256xf32, #tpu.memory_space<vmem>>, vector<1x256xf32>
    %29 = vector.broadcast %28 : vector<1x256xf32> to vector<32x256xf32>
    %30 = arith.addf %27, %29 : vector<32x256xf32>
    %c0_13 = arith.constant 0 : index
    %c0_14 = arith.constant 0 : index
    %31 = vector.load %arg2[%c0_13, %c0_14] : memref<32x1xf32, #tpu.memory_space<vmem>>, vector<32x1xf32>
    %32 = vector.broadcast %31 : vector<32x1xf32> to vector<32x256xf32>
    %33 = arith.mulf %30, %32 : vector<32x256xf32>
    %c0_15 = arith.constant 0 : index
    %c0_16 = arith.constant 0 : index
    %34 = vector.load %arg6[%c0_15, %c0_16] : memref<32x256xf32, #tpu.memory_space<vmem>>, vector<32x256xf32>
    tpu.vector_store %arg6[%c0_15, %c0_16], %33 {strides = array<i32>} : memref<32x256xf32, #tpu.memory_space<vmem>>, vector<32x256xf32>,
    return
  }
  func.func @transform_0(%arg0: i32) -> (i32, i32) {
    %c0_i32 = arith.constant 0 : i32
    %c0_i32_0 = arith.constant 0 : i32
    %c0_i32_1 = arith.constant 0 : i32
    return %c0_i32, %c0_i32_0 : i32, i32
  }
  func.func @transform_1(%arg0: i32) -> (i32, i32) {
    %c0_i32 = arith.constant 0 : i32
    %c0_i32_0 = arith.constant 0 : i32
    %c0_i32_1 = arith.constant 0 : i32
    return %c0_i32, %c0_i32_0 : i32, i32
  }
  func.func @transform_2(%arg0: i32) -> (i32, i32) {
    %c0_i32 = arith.constant 0 : i32
    %c0_i32_0 = arith.constant 0 : i32
    %c0_i32_1 = arith.constant 0 : i32
    return %c0_i32, %c0_i32_0 : i32, i32
  }
  func.func @transform_3(%arg0: i32) -> (i32, i32) {
    %c0_i32 = arith.constant 0 : i32
    %c0_i32_0 = arith.constant 0 : i32
    %c0_i32_1 = arith.constant 0 : i32
    return %c0_i32, %c0_i32_0 : i32, i32
  }
  func.func @transform_4(%arg0: i32) -> (i32, i32) {
    %c0_i32 = arith.constant 0 : i32
    %c0_i32_0 = arith.constant 0 : i32
    %c0_i32_1 = arith.constant 0 : i32
    return %c0_i32, %c0_i32_0 : i32, i32
  }
  func.func @transform_5(%arg0: i32) -> (i32, i32) {
    %c0_i32 = arith.constant 0 : i32
    %c0_i32_0 = arith.constant 0 : i32
    %c0_i32_1 = arith.constant 0 : i32
    return %c0_i32, %c0_i32_0 : i32, i32
  }
}

module attributes {stable_mosaic.version = 11 : i64} {
  func.func @_encoder_head_kernel(%arg0: i32, %arg1: memref<32x256xf32, #tpu.memory_space<vmem>>, %arg2: memref<32x256xf32, #tpu.memory_space<vmem>>, %arg3: memref<32x32xf32, #tpu.memory_space<vmem>>, %arg4: memref<2x256xf32, #tpu.memory_space<vmem>>, %arg5: memref<2x256x1536xbf16, #tpu.memory_space<vmem>>, %arg6: memref<2x512x256xbf16, #tpu.memory_space<vmem>>, %arg7: memref<2x1x2816xf32, #tpu.memory_space<vmem>>, %arg8: memref<256x128xbf16, #tpu.memory_space<vmem>>, %arg9: memref<1x128xf32, #tpu.memory_space<vmem>>, %arg10: memref<2x32x64xf32, #tpu.memory_space<vmem>>, %arg11: memref<128x256xbf16, #tpu.memory_space<vmem>>, %arg12: memref<32x256xf32, #tpu.memory_space<vmem>>, %arg13: memref<32x256xf32, #tpu.memory_space<vmem>>) attributes {dimension_semantics = [#tpu.dimension_semantics<arbitrary>], iteration_bounds = array<i64: 1>, scalar_prefetch = 0 : i64, scratch_operands = 1 : i64, tpu.core_type = #tpu.core_type<tc>, window_params = [{pipeline_mode = #tpu.pipeline_mode<synchronous>, transform_indices = @transform_0, window_bounds = array<i64: 32, 256>}, {pipeline_mode = #tpu.pipeline_mode<synchronous>, transform_indices = @transform_1, window_bounds = array<i64: 32, 256>}, {pipeline_mode = #tpu.pipeline_mode<synchronous>, transform_indices = @transform_2, window_bounds = array<i64: 32, 32>}, {pipeline_mode = #tpu.pipeline_mode<synchronous>, transform_indices = @transform_3, window_bounds = array<i64: 2, 256>}, {pipeline_mode = #tpu.pipeline_mode<synchronous>, transform_indices = @transform_4, window_bounds = array<i64: 2, 256, 1536>}, {pipeline_mode = #tpu.pipeline_mode<synchronous>, transform_indices = @transform_5, window_bounds = array<i64: 2, 512, 256>}, {pipeline_mode = #tpu.pipeline_mode<synchronous>, transform_indices = @transform_6, window_bounds = array<i64: 2, 1, 2816>}, {pipeline_mode = #tpu.pipeline_mode<synchronous>, transform_indices = @transform_7, window_bounds = array<i64: 256, 128>}, {pipeline_mode = #tpu.pipeline_mode<synchronous>, transform_indices = @transform_8, window_bounds = array<i64: 1, 128>}, {pipeline_mode = #tpu.pipeline_mode<synchronous>, transform_indices = @transform_9, window_bounds = array<i64: 2, 32, 64>}, {pipeline_mode = #tpu.pipeline_mode<synchronous>, transform_indices = @transform_10, window_bounds = array<i64: 128, 256>}, {pipeline_mode = #tpu.pipeline_mode<synchronous>, transform_indices = @transform_11, window_bounds = array<i64: 32, 256>}]} {
    %c0 = arith.constant 0 : index
    %c0_0 = arith.constant 0 : index
    %0 = vector.load %arg1[%c0, %c0_0] : memref<32x256xf32, #tpu.memory_space<vmem>>, vector<32x256xf32>
    %c0_1 = arith.constant 0 : index
    %c0_2 = arith.constant 0 : index
    %1 = vector.load %arg2[%c0_1, %c0_2] : memref<32x256xf32, #tpu.memory_space<vmem>>, vector<32x256xf32>
    %2 = arith.addf %0, %1 : vector<32x256xf32>
    %c0_3 = arith.constant 0 : index
    %c0_4 = arith.constant 0 : index
    %3 = vector.load %arg4[%c0_3, %c0_4] : memref<2x256xf32, #tpu.memory_space<vmem>>, vector<1x256xf32>
    %c1 = arith.constant 1 : index
    %c0_5 = arith.constant 0 : index
    %4 = vector.load %arg4[%c1, %c0_5] : memref<2x256xf32, #tpu.memory_space<vmem>>, vector<1x256xf32>
    %cst = arith.constant dense<0.000000e+00> : vector<32xf32>
    %5 = vector.multi_reduction <add>, %2, %cst [1] : vector<32x256xf32> to vector<32xf32>
    %6 = vector.shape_cast %5 : vector<32xf32> to vector<32x1xf32>
    %cst_6 = arith.constant 2.560000e+02 : f32
    %7 = vector.broadcast %cst_6 : f32 to vector<32x1xf32>
    %8 = arith.divf %6, %7 : vector<32x1xf32>
    %9 = vector.broadcast %8 : vector<32x1xf32> to vector<32x256xf32>
    %10 = arith.subf %2, %9 : vector<32x256xf32>
    %11 = arith.mulf %10, %10 : vector<32x256xf32>
    %cst_7 = arith.constant dense<0.000000e+00> : vector<32xf32>
    %12 = vector.multi_reduction <add>, %11, %cst_7 [1] : vector<32x256xf32> to vector<32xf32>
    %13 = vector.shape_cast %12 : vector<32xf32> to vector<32x1xf32>
    %cst_8 = arith.constant 2.560000e+02 : f32
    %14 = vector.broadcast %cst_8 : f32 to vector<32x1xf32>
    %15 = arith.divf %13, %14 : vector<32x1xf32>
    %16 = vector.broadcast %8 : vector<32x1xf32> to vector<32x256xf32>
    %17 = arith.subf %2, %16 : vector<32x256xf32>
    %cst_9 = arith.constant 9.99999974E-6 : f32
    %18 = vector.broadcast %cst_9 : f32 to vector<32x1xf32>
    %19 = arith.addf %15, %18 : vector<32x1xf32>
    %20 = math.rsqrt %19 : vector<32x1xf32>
    %21 = vector.broadcast %20 : vector<32x1xf32> to vector<32x256xf32>
    %22 = arith.mulf %17, %21 : vector<32x256xf32>
    %23 = vector.broadcast %3 : vector<1x256xf32> to vector<32x256xf32>
    %24 = arith.mulf %22, %23 : vector<32x256xf32>
    %25 = vector.broadcast %4 : vector<1x256xf32> to vector<32x256xf32>
    %26 = arith.addf %24, %25 : vector<32x256xf32>
    %c0_10 = arith.constant 0 : index
    %c0_11 = arith.constant 0 : index
    %27 = vector.load %arg3[%c0_10, %c0_11] : memref<32x32xf32, #tpu.memory_space<vmem>>, vector<32x32xf32>
    %28 = arith.truncf %26 : vector<32x256xf32> to vector<32x256xbf16>
    %c0_12 = arith.constant 0 : index
    %c0_13 = arith.constant 0 : index
    %c0_14 = arith.constant 0 : index
    %29 = vector.load %arg5[%c0_12, %c0_13, %c0_14] : memref<2x256x1536xbf16, #tpu.memory_space<vmem>>, vector<1x256x768xbf16>
    %30 = vector.shape_cast %29 : vector<1x256x768xbf16> to vector<256x768xbf16>
    %cst_15 = arith.constant dense<0.000000e+00> : vector<32x768xf32>
    %31 = tpu.matmul %28, %30, %cst_15 {dimension_numbers = #tpu.dot_dimension_numbers<[1], [0], [0], [1], [0, 0, 1, 1], [], []>} : vector<32x256xbf16>, vector<256x768xbf16>, vector<32x768xf32> -> vector<32x768xf32>
    %c0_16 = arith.constant 0 : index
    %c0_17 = arith.constant 0 : index
    %c0_18 = arith.constant 0 : index
    %32 = vector.load %arg7[%c0_16, %c0_17, %c0_18] : memref<2x1x2816xf32, #tpu.memory_space<vmem>>, vector<1x1x768xf32>
    %33 = vector.shape_cast %32 : vector<1x1x768xf32> to vector<1x768xf32>
    %34 = vector.broadcast %33 : vector<1x768xf32> to vector<32x768xf32>
    %35 = arith.addf %31, %34 : vector<32x768xf32>
    %36 = arith.truncf %35 : vector<32x768xf32> to vector<32x768xbf16>
    %37 = vector.extract_strided_slice %36 {offsets = [0, 0], sizes = [32, 128], strides = [1, 1]} : vector<32x768xbf16> to vector<32x128xbf16>
    %38 = vector.extract_strided_slice %36 {offsets = [0, 256], sizes = [32, 128], strides = [1, 1]} : vector<32x768xbf16> to vector<32x128xbf16>
    %39 = vector.extract_strided_slice %36 {offsets = [0, 512], sizes = [32, 128], strides = [1, 1]} : vector<32x768xbf16> to vector<32x128xbf16>
    %cst_19 = arith.constant dense<0.000000e+00> : vector<32x32xf32>
    %40 = tpu.matmul %37, %38, %cst_19 {dimension_numbers = #tpu.dot_dimension_numbers<[1], [1], [0], [0], [0, 0, 1, 0], [], []>} : vector<32x128xbf16>, vector<32x128xbf16>, vector<32x32xf32> -> vector<32x32xf32>
    %41 = arith.addf %40, %27 : vector<32x32xf32>
    %cst_20 = arith.constant dense<0xFF800000> : vector<32xf32>
    %42 = vector.multi_reduction <maximumf>, %41, %cst_20 [1] : vector<32x32xf32> to vector<32xf32>
    %43 = vector.shape_cast %42 : vector<32xf32> to vector<32x1xf32>
    %44 = vector.broadcast %43 : vector<32x1xf32> to vector<32x32xf32>
    %45 = arith.subf %41, %44 : vector<32x32xf32>
    %46 = math.exp %45 : vector<32x32xf32>
    %cst_21 = arith.constant dense<0.000000e+00> : vector<32xf32>
    %47 = vector.multi_reduction <add>, %46, %cst_21 [1] : vector<32x32xf32> to vector<32xf32>
    %48 = vector.shape_cast %47 : vector<32xf32> to vector<32x1xf32>
    %49 = tpu.reciprocal %48 {approx = true} : vector<32x1xf32> -> vector<32x1xf32>
    %50 = vector.broadcast %49 : vector<32x1xf32> to vector<32x32xf32>
    %51 = arith.mulf %46, %50 : vector<32x32xf32>
    %52 = arith.truncf %51 : vector<32x32xf32> to vector<32x32xbf16>
    %cst_22 = arith.constant dense<0.000000e+00> : vector<32x128xf32>
    %53 = tpu.matmul %52, %39, %cst_22 {dimension_numbers = #tpu.dot_dimension_numbers<[1], [0], [0], [1], [0, 0, 1, 1], [], []>} : vector<32x32xbf16>, vector<32x128xbf16>, vector<32x128xf32> -> vector<32x128xf32>
    %c0_23 = arith.constant 0 : index
    %c0_24 = arith.constant 0 : index
    %54 = vector.load %arg13[%c0_23, %c0_24] : memref<32x256xf32, #tpu.memory_space<vmem>>, vector<32x128xf32>
    tpu.vector_store %arg13[%c0_23, %c0_24], %53 {strides = array<i32>} : memref<32x256xf32, #tpu.memory_space<vmem>>, vector<32x128xf32>,
    %55 = vector.extract_strided_slice %36 {offsets = [0, 128], sizes = [32, 128], strides = [1, 1]} : vector<32x768xbf16> to vector<32x128xbf16>
    %56 = vector.extract_strided_slice %36 {offsets = [0, 384], sizes = [32, 128], strides = [1, 1]} : vector<32x768xbf16> to vector<32x128xbf16>
    %57 = vector.extract_strided_slice %36 {offsets = [0, 640], sizes = [32, 128], strides = [1, 1]} : vector<32x768xbf16> to vector<32x128xbf16>
    %cst_25 = arith.constant dense<0.000000e+00> : vector<32x32xf32>
    %58 = tpu.matmul %55, %56, %cst_25 {dimension_numbers = #tpu.dot_dimension_numbers<[1], [1], [0], [0], [0, 0, 1, 0], [], []>} : vector<32x128xbf16>, vector<32x128xbf16>, vector<32x32xf32> -> vector<32x32xf32>
    %59 = arith.addf %58, %27 : vector<32x32xf32>
    %cst_26 = arith.constant dense<0xFF800000> : vector<32xf32>
    %60 = vector.multi_reduction <maximumf>, %59, %cst_26 [1] : vector<32x32xf32> to vector<32xf32>
    %61 = vector.shape_cast %60 : vector<32xf32> to vector<32x1xf32>
    %62 = vector.broadcast %61 : vector<32x1xf32> to vector<32x32xf32>
    %63 = arith.subf %59, %62 : vector<32x32xf32>
    %64 = math.exp %63 : vector<32x32xf32>
    %cst_27 = arith.constant dense<0.000000e+00> : vector<32xf32>
    %65 = vector.multi_reduction <add>, %64, %cst_27 [1] : vector<32x32xf32> to vector<32xf32>
    %66 = vector.shape_cast %65 : vector<32xf32> to vector<32x1xf32>
    %67 = tpu.reciprocal %66 {approx = true} : vector<32x1xf32> -> vector<32x1xf32>
    %68 = vector.broadcast %67 : vector<32x1xf32> to vector<32x32xf32>
    %69 = arith.mulf %64, %68 : vector<32x32xf32>
    %70 = arith.truncf %69 : vector<32x32xf32> to vector<32x32xbf16>
    %cst_28 = arith.constant dense<0.000000e+00> : vector<32x128xf32>
    %71 = tpu.matmul %70, %57, %cst_28 {dimension_numbers = #tpu.dot_dimension_numbers<[1], [0], [0], [1], [0, 0, 1, 1], [], []>} : vector<32x32xbf16>, vector<32x128xbf16>, vector<32x128xf32> -> vector<32x128xf32>
    %c0_29 = arith.constant 0 : index
    %c128 = arith.constant 128 : index
    %72 = vector.load %arg13[%c0_29, %c128] : memref<32x256xf32, #tpu.memory_space<vmem>>, vector<32x128xf32>
    tpu.vector_store %arg13[%c0_29, %c128], %71 {strides = array<i32>} : memref<32x256xf32, #tpu.memory_space<vmem>>, vector<32x128xf32>,
    %c0_30 = arith.constant 0 : index
    %c0_31 = arith.constant 0 : index
    %73 = vector.load %arg13[%c0_30, %c0_31] : memref<32x256xf32, #tpu.memory_space<vmem>>, vector<32x256xf32>
    %74 = arith.truncf %73 : vector<32x256xf32> to vector<32x256xbf16>
    %c0_32 = arith.constant 0 : index
    %c0_33 = arith.constant 0 : index
    %c768 = arith.constant 768 : index
    %75 = vector.load %arg5[%c0_32, %c0_33, %c768] : memref<2x256x1536xbf16, #tpu.memory_space<vmem>>, vector<1x256x256xbf16>
    %76 = vector.shape_cast %75 : vector<1x256x256xbf16> to vector<256x256xbf16>
    %cst_34 = arith.constant dense<0.000000e+00> : vector<32x256xf32>
    %77 = tpu.matmul %74, %76, %cst_34 {dimension_numbers = #tpu.dot_dimension_numbers<[1], [0], [0], [1], [0, 0, 1, 1], [], []>} : vector<32x256xbf16>, vector<256x256xbf16>, vector<32x256xf32> -> vector<32x256xf32>
    %c0_35 = arith.constant 0 : index
    %c0_36 = arith.constant 0 : index
    %c768_37 = arith.constant 768 : index
    %78 = vector.load %arg7[%c0_35, %c0_36, %c768_37] : memref<2x1x2816xf32, #tpu.memory_space<vmem>>, vector<1x1x256xf32>
    %79 = vector.shape_cast %78 : vector<1x1x256xf32> to vector<1x256xf32>
    %80 = vector.broadcast %79 : vector<1x256xf32> to vector<32x256xf32>
    %81 = arith.addf %77, %80 : vector<32x256xf32>
    %82 = arith.addf %26, %81 : vector<32x256xf32>
    %c0_38 = arith.constant 0 : index
    %c0_39 = arith.constant 0 : index
    %c1024 = arith.constant 1024 : index
    %83 = vector.load %arg7[%c0_38, %c0_39, %c1024] : memref<2x1x2816xf32, #tpu.memory_space<vmem>>, vector<1x1x256xf32>
    %84 = vector.shape_cast %83 : vector<1x1x256xf32> to vector<1x256xf32>
    %c0_40 = arith.constant 0 : index
    %c0_41 = arith.constant 0 : index
    %c1280 = arith.constant 1280 : index
    %85 = vector.load %arg7[%c0_40, %c0_41, %c1280] : memref<2x1x2816xf32, #tpu.memory_space<vmem>>, vector<1x1x256xf32>
    %86 = vector.shape_cast %85 : vector<1x1x256xf32> to vector<1x256xf32>
    %cst_42 = arith.constant dense<0.000000e+00> : vector<32xf32>
    %87 = vector.multi_reduction <add>, %82, %cst_42 [1] : vector<32x256xf32> to vector<32xf32>
    %88 = vector.shape_cast %87 : vector<32xf32> to vector<32x1xf32>
    %cst_43 = arith.constant 2.560000e+02 : f32
    %89 = vector.broadcast %cst_43 : f32 to vector<32x1xf32>
    %90 = arith.divf %88, %89 : vector<32x1xf32>
    %91 = vector.broadcast %90 : vector<32x1xf32> to vector<32x256xf32>
    %92 = arith.subf %82, %91 : vector<32x256xf32>
    %93 = arith.mulf %92, %92 : vector<32x256xf32>
    %cst_44 = arith.constant dense<0.000000e+00> : vector<32xf32>
    %94 = vector.multi_reduction <add>, %93, %cst_44 [1] : vector<32x256xf32> to vector<32xf32>
    %95 = vector.shape_cast %94 : vector<32xf32> to vector<32x1xf32>
    %cst_45 = arith.constant 2.560000e+02 : f32
    %96 = vector.broadcast %cst_45 : f32 to vector<32x1xf32>
    %97 = arith.divf %95, %96 : vector<32x1xf32>
    %98 = vector.broadcast %90 : vector<32x1xf32> to vector<32x256xf32>
    %99 = arith.subf %82, %98 : vector<32x256xf32>
    %cst_46 = arith.constant 9.99999974E-6 : f32
    %100 = vector.broadcast %cst_46 : f32 to vector<32x1xf32>
    %101 = arith.addf %97, %100 : vector<32x1xf32>
    %102 = math.rsqrt %101 : vector<32x1xf32>
    %103 = vector.broadcast %102 : vector<32x1xf32> to vector<32x256xf32>
    %104 = arith.mulf %99, %103 : vector<32x256xf32>
    %105 = vector.broadcast %84 : vector<1x256xf32> to vector<32x256xf32>
    %106 = arith.mulf %104, %105 : vector<32x256xf32>
    %107 = vector.broadcast %86 : vector<1x256xf32> to vector<32x256xf32>
    %108 = arith.addf %106, %107 : vector<32x256xf32>
    %109 = arith.truncf %108 : vector<32x256xf32> to vector<32x256xbf16>
    %c0_47 = arith.constant 0 : index
    %c0_48 = arith.constant 0 : index
    %c1024_49 = arith.constant 1024 : index
    %110 = vector.load %arg5[%c0_47, %c0_48, %c1024_49] : memref<2x256x1536xbf16, #tpu.memory_space<vmem>>, vector<1x256x512xbf16>
    %111 = vector.shape_cast %110 : vector<1x256x512xbf16> to vector<256x512xbf16>
    %cst_50 = arith.constant dense<0.000000e+00> : vector<32x512xf32>
    %112 = tpu.matmul %109, %111, %cst_50 {dimension_numbers = #tpu.dot_dimension_numbers<[1], [0], [0], [1], [0, 0, 1, 1], [], []>} : vector<32x256xbf16>, vector<256x512xbf16>, vector<32x512xf32> -> vector<32x512xf32>
    %c0_51 = arith.constant 0 : index
    %c0_52 = arith.constant 0 : index
    %c1536 = arith.constant 1536 : index
    %113 = vector.load %arg7[%c0_51, %c0_52, %c1536] : memref<2x1x2816xf32, #tpu.memory_space<vmem>>, vector<1x1x512xf32>
    %114 = vector.shape_cast %113 : vector<1x1x512xf32> to vector<1x512xf32>
    %115 = vector.broadcast %114 : vector<1x512xf32> to vector<32x512xf32>
    %116 = arith.addf %112, %115 : vector<32x512xf32>
    %cst_53 = arith.constant 5.000000e-01 : f32
    %117 = vector.broadcast %cst_53 : f32 to vector<32x512xf32>
    %118 = arith.mulf %117, %116 : vector<32x512xf32>
    %cst_54 = arith.constant 0.707106769 : f32
    %119 = vector.broadcast %cst_54 : f32 to vector<32x512xf32>
    %120 = arith.mulf %116, %119 : vector<32x512xf32>
    %cst_55 = arith.constant 0.000000e+00 : f32
    %121 = vector.broadcast %cst_55 : f32 to vector<32x512xf32>
    %122 = arith.cmpf oge, %120, %121 : vector<32x512xf32>
    %cst_56 = arith.constant 1.000000e+00 : f32
    %cst_57 = arith.constant -1.000000e+00 : f32
    %123 = vector.broadcast %cst_56 : f32 to vector<32x512xf32>
    %124 = vector.broadcast %cst_57 : f32 to vector<32x512xf32>
    %125 = arith.select %122, %123, %124 : vector<32x512xi1>, vector<32x512xf32>
    %126 = math.absf %120 : vector<32x512xf32>
    %cst_58 = arith.constant 0.327591091 : f32
    %127 = vector.broadcast %cst_58 : f32 to vector<32x512xf32>
    %128 = arith.mulf %127, %126 : vector<32x512xf32>
    %cst_59 = arith.constant 1.000000e+00 : f32
    %129 = vector.broadcast %cst_59 : f32 to vector<32x512xf32>
    %130 = arith.addf %129, %128 : vector<32x512xf32>
    %cst_60 = arith.constant 1.000000e+00 : f32
    %131 = vector.broadcast %cst_60 : f32 to vector<32x512xf32>
    %132 = arith.divf %131, %130 : vector<32x512xf32>
    %cst_61 = arith.constant 1.06140542 : f32
    %133 = vector.broadcast %cst_61 : f32 to vector<32x512xf32>
    %134 = arith.mulf %133, %132 : vector<32x512xf32>
    %cst_62 = arith.constant -1.45315206 : f32
    %135 = vector.broadcast %cst_62 : f32 to vector<32x512xf32>
    %136 = arith.addf %134, %135 : vector<32x512xf32>
    %137 = arith.mulf %136, %132 : vector<32x512xf32>
    %cst_63 = arith.constant 1.42141378 : f32
    %138 = vector.broadcast %cst_63 : f32 to vector<32x512xf32>
    %139 = arith.addf %137, %138 : vector<32x512xf32>
    %140 = arith.mulf %139, %132 : vector<32x512xf32>
    %cst_64 = arith.constant -0.284496725 : f32
    %141 = vector.broadcast %cst_64 : f32 to vector<32x512xf32>
    %142 = arith.addf %140, %141 : vector<32x512xf32>
    %143 = arith.mulf %142, %132 : vector<32x512xf32>
    %cst_65 = arith.constant 0.254829586 : f32
    %144 = vector.broadcast %cst_65 : f32 to vector<32x512xf32>
    %145 = arith.addf %143, %144 : vector<32x512xf32>
    %146 = arith.mulf %145, %132 : vector<32x512xf32>
    %cst_66 = arith.constant 0.000000e+00 : f32
    %147 = vector.broadcast %cst_66 : f32 to vector<32x512xf32>
    %148 = arith.subf %147, %126 : vector<32x512xf32>
    %149 = arith.mulf %148, %126 : vector<32x512xf32>
    %150 = math.exp %149 : vector<32x512xf32>
    %151 = arith.mulf %146, %150 : vector<32x512xf32>
    %cst_67 = arith.constant 1.000000e+00 : f32
    %152 = vector.broadcast %cst_67 : f32 to vector<32x512xf32>
    %153 = arith.subf %152, %151 : vector<32x512xf32>
    %154 = arith.mulf %125, %153 : vector<32x512xf32>
    %cst_68 = arith.constant 1.000000e+00 : f32
    %155 = vector.broadcast %cst_68 : f32 to vector<32x512xf32>
    %156 = arith.addf %155, %154 : vector<32x512xf32>
    %157 = arith.mulf %118, %156 : vector<32x512xf32>
    %158 = arith.truncf %157 : vector<32x512xf32> to vector<32x512xbf16>
    %c0_69 = arith.constant 0 : index
    %c0_70 = arith.constant 0 : index
    %c0_71 = arith.constant 0 : index
    %159 = vector.load %arg6[%c0_69, %c0_70, %c0_71] : memref<2x512x256xbf16, #tpu.memory_space<vmem>>, vector<1x512x256xbf16>
    %160 = vector.shape_cast %159 : vector<1x512x256xbf16> to vector<512x256xbf16>
    %cst_72 = arith.constant dense<0.000000e+00> : vector<32x256xf32>
    %161 = tpu.matmul %158, %160, %cst_72 {dimension_numbers = #tpu.dot_dimension_numbers<[1], [0], [0], [1], [0, 0, 1, 1], [], []>} : vector<32x512xbf16>, vector<512x256xbf16>, vector<32x256xf32> -> vector<32x256xf32>
    %c0_73 = arith.constant 0 : index
    %c0_74 = arith.constant 0 : index
    %c2048 = arith.constant 2048 : index
    %162 = vector.load %arg7[%c0_73, %c0_74, %c2048] : memref<2x1x2816xf32, #tpu.memory_space<vmem>>, vector<1x1x256xf32>
    %163 = vector.shape_cast %162 : vector<1x1x256xf32> to vector<1x256xf32>
    %164 = vector.broadcast %163 : vector<1x256xf32> to vector<32x256xf32>
    %165 = arith.addf %161, %164 : vector<32x256xf32>
    %166 = arith.addf %108, %165 : vector<32x256xf32>
    %c0_75 = arith.constant 0 : index
    %c0_76 = arith.constant 0 : index
    %c2304 = arith.constant 2304 : index
    %167 = vector.load %arg7[%c0_75, %c0_76, %c2304] : memref<2x1x2816xf32, #tpu.memory_space<vmem>>, vector<1x1x256xf32>
    %168 = vector.shape_cast %167 : vector<1x1x256xf32> to vector<1x256xf32>
    %c0_77 = arith.constant 0 : index
    %c0_78 = arith.constant 0 : index
    %c2560 = arith.constant 2560 : index
    %169 = vector.load %arg7[%c0_77, %c0_78, %c2560] : memref<2x1x2816xf32, #tpu.memory_space<vmem>>, vector<1x1x256xf32>
    %170 = vector.shape_cast %169 : vector<1x1x256xf32> to vector<1x256xf32>
    %cst_79 = arith.constant dense<0.000000e+00> : vector<32xf32>
    %171 = vector.multi_reduction <add>, %166, %cst_79 [1] : vector<32x256xf32> to vector<32xf32>
    %172 = vector.shape_cast %171 : vector<32xf32> to vector<32x1xf32>
    %cst_80 = arith.constant 2.560000e+02 : f32
    %173 = vector.broadcast %cst_80 : f32 to vector<32x1xf32>
    %174 = arith.divf %172, %173 : vector<32x1xf32>
    %175 = vector.broadcast %174 : vector<32x1xf32> to vector<32x256xf32>
    %176 = arith.subf %166, %175 : vector<32x256xf32>
    %177 = arith.mulf %176, %176 : vector<32x256xf32>
    %cst_81 = arith.constant dense<0.000000e+00> : vector<32xf32>
    %178 = vector.multi_reduction <add>, %177, %cst_81 [1] : vector<32x256xf32> to vector<32xf32>
    %179 = vector.shape_cast %178 : vector<32xf32> to vector<32x1xf32>
    %cst_82 = arith.constant 2.560000e+02 : f32
    %180 = vector.broadcast %cst_82 : f32 to vector<32x1xf32>
    %181 = arith.divf %179, %180 : vector<32x1xf32>
    %182 = vector.broadcast %174 : vector<32x1xf32> to vector<32x256xf32>
    %183 = arith.subf %166, %182 : vector<32x256xf32>
    %cst_83 = arith.constant 9.99999974E-6 : f32
    %184 = vector.broadcast %cst_83 : f32 to vector<32x1xf32>
    %185 = arith.addf %181, %184 : vector<32x1xf32>
    %186 = math.rsqrt %185 : vector<32x1xf32>
    %187 = vector.broadcast %186 : vector<32x1xf32> to vector<32x256xf32>
    %188 = arith.mulf %183, %187 : vector<32x256xf32>
    %189 = vector.broadcast %168 : vector<1x256xf32> to vector<32x256xf32>
    %190 = arith.mulf %188, %189 : vector<32x256xf32>
    %191 = vector.broadcast %170 : vector<1x256xf32> to vector<32x256xf32>
    %192 = arith.addf %190, %191 : vector<32x256xf32>
    %193 = arith.truncf %192 : vector<32x256xf32> to vector<32x256xbf16>
    %c1_84 = arith.constant 1 : index
    %c0_85 = arith.constant 0 : index
    %c0_86 = arith.constant 0 : index
    %194 = vector.load %arg5[%c1_84, %c0_85, %c0_86] : memref<2x256x1536xbf16, #tpu.memory_space<vmem>>, vector<1x256x768xbf16>
    %195 = vector.shape_cast %194 : vector<1x256x768xbf16> to vector<256x768xbf16>
    %cst_87 = arith.constant dense<0.000000e+00> : vector<32x768xf32>
    %196 = tpu.matmul %193, %195, %cst_87 {dimension_numbers = #tpu.dot_dimension_numbers<[1], [0], [0], [1], [0, 0, 1, 1], [], []>} : vector<32x256xbf16>, vector<256x768xbf16>, vector<32x768xf32> -> vector<32x768xf32>
    %c1_88 = arith.constant 1 : index
    %c0_89 = arith.constant 0 : index
    %c0_90 = arith.constant 0 : index
    %197 = vector.load %arg7[%c1_88, %c0_89, %c0_90] : memref<2x1x2816xf32, #tpu.memory_space<vmem>>, vector<1x1x768xf32>
    %198 = vector.shape_cast %197 : vector<1x1x768xf32> to vector<1x768xf32>
    %199 = vector.broadcast %198 : vector<1x768xf32> to vector<32x768xf32>
    %200 = arith.addf %196, %199 : vector<32x768xf32>
    %201 = arith.truncf %200 : vector<32x768xf32> to vector<32x768xbf16>
    %202 = vector.extract_strided_slice %201 {offsets = [0, 0], sizes = [32, 128], strides = [1, 1]} : vector<32x768xbf16> to vector<32x128xbf16>
    %203 = vector.extract_strided_slice %201 {offsets = [0, 256], sizes = [32, 128], strides = [1, 1]} : vector<32x768xbf16> to vector<32x128xbf16>
    %204 = vector.extract_strided_slice %201 {offsets = [0, 512], sizes = [32, 128], strides = [1, 1]} : vector<32x768xbf16> to vector<32x128xbf16>
    %cst_91 = arith.constant dense<0.000000e+00> : vector<32x32xf32>
    %205 = tpu.matmul %202, %203, %cst_91 {dimension_numbers = #tpu.dot_dimension_numbers<[1], [1], [0], [0], [0, 0, 1, 0], [], []>} : vector<32x128xbf16>, vector<32x128xbf16>, vector<32x32xf32> -> vector<32x32xf32>
    %206 = arith.addf %205, %27 : vector<32x32xf32>
    %cst_92 = arith.constant dense<0xFF800000> : vector<32xf32>
    %207 = vector.multi_reduction <maximumf>, %206, %cst_92 [1] : vector<32x32xf32> to vector<32xf32>
    %208 = vector.shape_cast %207 : vector<32xf32> to vector<32x1xf32>
    %209 = vector.broadcast %208 : vector<32x1xf32> to vector<32x32xf32>
    %210 = arith.subf %206, %209 : vector<32x32xf32>
    %211 = math.exp %210 : vector<32x32xf32>
    %cst_93 = arith.constant dense<0.000000e+00> : vector<32xf32>
    %212 = vector.multi_reduction <add>, %211, %cst_93 [1] : vector<32x32xf32> to vector<32xf32>
    %213 = vector.shape_cast %212 : vector<32xf32> to vector<32x1xf32>
    %214 = tpu.reciprocal %213 {approx = true} : vector<32x1xf32> -> vector<32x1xf32>
    %215 = vector.broadcast %214 : vector<32x1xf32> to vector<32x32xf32>
    %216 = arith.mulf %211, %215 : vector<32x32xf32>
    %217 = arith.truncf %216 : vector<32x32xf32> to vector<32x32xbf16>
    %cst_94 = arith.constant dense<0.000000e+00> : vector<32x128xf32>
    %218 = tpu.matmul %217, %204, %cst_94 {dimension_numbers = #tpu.dot_dimension_numbers<[1], [0], [0], [1], [0, 0, 1, 1], [], []>} : vector<32x32xbf16>, vector<32x128xbf16>, vector<32x128xf32> -> vector<32x128xf32>
    %c0_95 = arith.constant 0 : index
    %c0_96 = arith.constant 0 : index
    %219 = vector.load %arg13[%c0_95, %c0_96] : memref<32x256xf32, #tpu.memory_space<vmem>>, vector<32x128xf32>
    tpu.vector_store %arg13[%c0_95, %c0_96], %218 {strides = array<i32>} : memref<32x256xf32, #tpu.memory_space<vmem>>, vector<32x128xf32>,
    %220 = vector.extract_strided_slice %201 {offsets = [0, 128], sizes = [32, 128], strides = [1, 1]} : vector<32x768xbf16> to vector<32x128xbf16>
    %221 = vector.extract_strided_slice %201 {offsets = [0, 384], sizes = [32, 128], strides = [1, 1]} : vector<32x768xbf16> to vector<32x128xbf16>
    %222 = vector.extract_strided_slice %201 {offsets = [0, 640], sizes = [32, 128], strides = [1, 1]} : vector<32x768xbf16> to vector<32x128xbf16>
    %cst_97 = arith.constant dense<0.000000e+00> : vector<32x32xf32>
    %223 = tpu.matmul %220, %221, %cst_97 {dimension_numbers = #tpu.dot_dimension_numbers<[1], [1], [0], [0], [0, 0, 1, 0], [], []>} : vector<32x128xbf16>, vector<32x128xbf16>, vector<32x32xf32> -> vector<32x32xf32>
    %224 = arith.addf %223, %27 : vector<32x32xf32>
    %cst_98 = arith.constant dense<0xFF800000> : vector<32xf32>
    %225 = vector.multi_reduction <maximumf>, %224, %cst_98 [1] : vector<32x32xf32> to vector<32xf32>
    %226 = vector.shape_cast %225 : vector<32xf32> to vector<32x1xf32>
    %227 = vector.broadcast %226 : vector<32x1xf32> to vector<32x32xf32>
    %228 = arith.subf %224, %227 : vector<32x32xf32>
    %229 = math.exp %228 : vector<32x32xf32>
    %cst_99 = arith.constant dense<0.000000e+00> : vector<32xf32>
    %230 = vector.multi_reduction <add>, %229, %cst_99 [1] : vector<32x32xf32> to vector<32xf32>
    %231 = vector.shape_cast %230 : vector<32xf32> to vector<32x1xf32>
    %232 = tpu.reciprocal %231 {approx = true} : vector<32x1xf32> -> vector<32x1xf32>
    %233 = vector.broadcast %232 : vector<32x1xf32> to vector<32x32xf32>
    %234 = arith.mulf %229, %233 : vector<32x32xf32>
    %235 = arith.truncf %234 : vector<32x32xf32> to vector<32x32xbf16>
    %cst_100 = arith.constant dense<0.000000e+00> : vector<32x128xf32>
    %236 = tpu.matmul %235, %222, %cst_100 {dimension_numbers = #tpu.dot_dimension_numbers<[1], [0], [0], [1], [0, 0, 1, 1], [], []>} : vector<32x32xbf16>, vector<32x128xbf16>, vector<32x128xf32> -> vector<32x128xf32>
    %c0_101 = arith.constant 0 : index
    %c128_102 = arith.constant 128 : index
    %237 = vector.load %arg13[%c0_101, %c128_102] : memref<32x256xf32, #tpu.memory_space<vmem>>, vector<32x128xf32>
    tpu.vector_store %arg13[%c0_101, %c128_102], %236 {strides = array<i32>} : memref<32x256xf32, #tpu.memory_space<vmem>>, vector<32x128xf32>,
    %c0_103 = arith.constant 0 : index
    %c0_104 = arith.constant 0 : index
    %238 = vector.load %arg13[%c0_103, %c0_104] : memref<32x256xf32, #tpu.memory_space<vmem>>, vector<32x256xf32>
    %239 = arith.truncf %238 : vector<32x256xf32> to vector<32x256xbf16>
    %c1_105 = arith.constant 1 : index
    %c0_106 = arith.constant 0 : index
    %c768_107 = arith.constant 768 : index
    %240 = vector.load %arg5[%c1_105, %c0_106, %c768_107] : memref<2x256x1536xbf16, #tpu.memory_space<vmem>>, vector<1x256x256xbf16>
    %241 = vector.shape_cast %240 : vector<1x256x256xbf16> to vector<256x256xbf16>
    %cst_108 = arith.constant dense<0.000000e+00> : vector<32x256xf32>
    %242 = tpu.matmul %239, %241, %cst_108 {dimension_numbers = #tpu.dot_dimension_numbers<[1], [0], [0], [1], [0, 0, 1, 1], [], []>} : vector<32x256xbf16>, vector<256x256xbf16>, vector<32x256xf32> -> vector<32x256xf32>
    %c1_109 = arith.constant 1 : index
    %c0_110 = arith.constant 0 : index
    %c768_111 = arith.constant 768 : index
    %243 = vector.load %arg7[%c1_109, %c0_110, %c768_111] : memref<2x1x2816xf32, #tpu.memory_space<vmem>>, vector<1x1x256xf32>
    %244 = vector.shape_cast %243 : vector<1x1x256xf32> to vector<1x256xf32>
    %245 = vector.broadcast %244 : vector<1x256xf32> to vector<32x256xf32>
    %246 = arith.addf %242, %245 : vector<32x256xf32>
    %247 = arith.addf %192, %246 : vector<32x256xf32>
    %c1_112 = arith.constant 1 : index
    %c0_113 = arith.constant 0 : index
    %c1024_114 = arith.constant 1024 : index
    %248 = vector.load %arg7[%c1_112, %c0_113, %c1024_114] : memref<2x1x2816xf32, #tpu.memory_space<vmem>>, vector<1x1x256xf32>
    %249 = vector.shape_cast %248 : vector<1x1x256xf32> to vector<1x256xf32>
    %c1_115 = arith.constant 1 : index
    %c0_116 = arith.constant 0 : index
    %c1280_117 = arith.constant 1280 : index
    %250 = vector.load %arg7[%c1_115, %c0_116, %c1280_117] : memref<2x1x2816xf32, #tpu.memory_space<vmem>>, vector<1x1x256xf32>
    %251 = vector.shape_cast %250 : vector<1x1x256xf32> to vector<1x256xf32>
    %cst_118 = arith.constant dense<0.000000e+00> : vector<32xf32>
    %252 = vector.multi_reduction <add>, %247, %cst_118 [1] : vector<32x256xf32> to vector<32xf32>
    %253 = vector.shape_cast %252 : vector<32xf32> to vector<32x1xf32>
    %cst_119 = arith.constant 2.560000e+02 : f32
    %254 = vector.broadcast %cst_119 : f32 to vector<32x1xf32>
    %255 = arith.divf %253, %254 : vector<32x1xf32>
    %256 = vector.broadcast %255 : vector<32x1xf32> to vector<32x256xf32>
    %257 = arith.subf %247, %256 : vector<32x256xf32>
    %258 = arith.mulf %257, %257 : vector<32x256xf32>
    %cst_120 = arith.constant dense<0.000000e+00> : vector<32xf32>
    %259 = vector.multi_reduction <add>, %258, %cst_120 [1] : vector<32x256xf32> to vector<32xf32>
    %260 = vector.shape_cast %259 : vector<32xf32> to vector<32x1xf32>
    %cst_121 = arith.constant 2.560000e+02 : f32
    %261 = vector.broadcast %cst_121 : f32 to vector<32x1xf32>
    %262 = arith.divf %260, %261 : vector<32x1xf32>
    %263 = vector.broadcast %255 : vector<32x1xf32> to vector<32x256xf32>
    %264 = arith.subf %247, %263 : vector<32x256xf32>
    %cst_122 = arith.constant 9.99999974E-6 : f32
    %265 = vector.broadcast %cst_122 : f32 to vector<32x1xf32>
    %266 = arith.addf %262, %265 : vector<32x1xf32>
    %267 = math.rsqrt %266 : vector<32x1xf32>
    %268 = vector.broadcast %267 : vector<32x1xf32> to vector<32x256xf32>
    %269 = arith.mulf %264, %268 : vector<32x256xf32>
    %270 = vector.broadcast %249 : vector<1x256xf32> to vector<32x256xf32>
    %271 = arith.mulf %269, %270 : vector<32x256xf32>
    %272 = vector.broadcast %251 : vector<1x256xf32> to vector<32x256xf32>
    %273 = arith.addf %271, %272 : vector<32x256xf32>
    %274 = arith.truncf %273 : vector<32x256xf32> to vector<32x256xbf16>
    %c1_123 = arith.constant 1 : index
    %c0_124 = arith.constant 0 : index
    %c1024_125 = arith.constant 1024 : index
    %275 = vector.load %arg5[%c1_123, %c0_124, %c1024_125] : memref<2x256x1536xbf16, #tpu.memory_space<vmem>>, vector<1x256x512xbf16>
    %276 = vector.shape_cast %275 : vector<1x256x512xbf16> to vector<256x512xbf16>
    %cst_126 = arith.constant dense<0.000000e+00> : vector<32x512xf32>
    %277 = tpu.matmul %274, %276, %cst_126 {dimension_numbers = #tpu.dot_dimension_numbers<[1], [0], [0], [1], [0, 0, 1, 1], [], []>} : vector<32x256xbf16>, vector<256x512xbf16>, vector<32x512xf32> -> vector<32x512xf32>
    %c1_127 = arith.constant 1 : index
    %c0_128 = arith.constant 0 : index
    %c1536_129 = arith.constant 1536 : index
    %278 = vector.load %arg7[%c1_127, %c0_128, %c1536_129] : memref<2x1x2816xf32, #tpu.memory_space<vmem>>, vector<1x1x512xf32>
    %279 = vector.shape_cast %278 : vector<1x1x512xf32> to vector<1x512xf32>
    %280 = vector.broadcast %279 : vector<1x512xf32> to vector<32x512xf32>
    %281 = arith.addf %277, %280 : vector<32x512xf32>
    %cst_130 = arith.constant 5.000000e-01 : f32
    %282 = vector.broadcast %cst_130 : f32 to vector<32x512xf32>
    %283 = arith.mulf %282, %281 : vector<32x512xf32>
    %cst_131 = arith.constant 0.707106769 : f32
    %284 = vector.broadcast %cst_131 : f32 to vector<32x512xf32>
    %285 = arith.mulf %281, %284 : vector<32x512xf32>
    %cst_132 = arith.constant 0.000000e+00 : f32
    %286 = vector.broadcast %cst_132 : f32 to vector<32x512xf32>
    %287 = arith.cmpf oge, %285, %286 : vector<32x512xf32>
    %cst_133 = arith.constant 1.000000e+00 : f32
    %cst_134 = arith.constant -1.000000e+00 : f32
    %288 = vector.broadcast %cst_133 : f32 to vector<32x512xf32>
    %289 = vector.broadcast %cst_134 : f32 to vector<32x512xf32>
    %290 = arith.select %287, %288, %289 : vector<32x512xi1>, vector<32x512xf32>
    %291 = math.absf %285 : vector<32x512xf32>
    %cst_135 = arith.constant 0.327591091 : f32
    %292 = vector.broadcast %cst_135 : f32 to vector<32x512xf32>
    %293 = arith.mulf %292, %291 : vector<32x512xf32>
    %cst_136 = arith.constant 1.000000e+00 : f32
    %294 = vector.broadcast %cst_136 : f32 to vector<32x512xf32>
    %295 = arith.addf %294, %293 : vector<32x512xf32>
    %cst_137 = arith.constant 1.000000e+00 : f32
    %296 = vector.broadcast %cst_137 : f32 to vector<32x512xf32>
    %297 = arith.divf %296, %295 : vector<32x512xf32>
    %cst_138 = arith.constant 1.06140542 : f32
    %298 = vector.broadcast %cst_138 : f32 to vector<32x512xf32>
    %299 = arith.mulf %298, %297 : vector<32x512xf32>
    %cst_139 = arith.constant -1.45315206 : f32
    %300 = vector.broadcast %cst_139 : f32 to vector<32x512xf32>
    %301 = arith.addf %299, %300 : vector<32x512xf32>
    %302 = arith.mulf %301, %297 : vector<32x512xf32>
    %cst_140 = arith.constant 1.42141378 : f32
    %303 = vector.broadcast %cst_140 : f32 to vector<32x512xf32>
    %304 = arith.addf %302, %303 : vector<32x512xf32>
    %305 = arith.mulf %304, %297 : vector<32x512xf32>
    %cst_141 = arith.constant -0.284496725 : f32
    %306 = vector.broadcast %cst_141 : f32 to vector<32x512xf32>
    %307 = arith.addf %305, %306 : vector<32x512xf32>
    %308 = arith.mulf %307, %297 : vector<32x512xf32>
    %cst_142 = arith.constant 0.254829586 : f32
    %309 = vector.broadcast %cst_142 : f32 to vector<32x512xf32>
    %310 = arith.addf %308, %309 : vector<32x512xf32>
    %311 = arith.mulf %310, %297 : vector<32x512xf32>
    %cst_143 = arith.constant 0.000000e+00 : f32
    %312 = vector.broadcast %cst_143 : f32 to vector<32x512xf32>
    %313 = arith.subf %312, %291 : vector<32x512xf32>
    %314 = arith.mulf %313, %291 : vector<32x512xf32>
    %315 = math.exp %314 : vector<32x512xf32>
    %316 = arith.mulf %311, %315 : vector<32x512xf32>
    %cst_144 = arith.constant 1.000000e+00 : f32
    %317 = vector.broadcast %cst_144 : f32 to vector<32x512xf32>
    %318 = arith.subf %317, %316 : vector<32x512xf32>
    %319 = arith.mulf %290, %318 : vector<32x512xf32>
    %cst_145 = arith.constant 1.000000e+00 : f32
    %320 = vector.broadcast %cst_145 : f32 to vector<32x512xf32>
    %321 = arith.addf %320, %319 : vector<32x512xf32>
    %322 = arith.mulf %283, %321 : vector<32x512xf32>
    %323 = arith.truncf %322 : vector<32x512xf32> to vector<32x512xbf16>
    %c1_146 = arith.constant 1 : index
    %c0_147 = arith.constant 0 : index
    %c0_148 = arith.constant 0 : index
    %324 = vector.load %arg6[%c1_146, %c0_147, %c0_148] : memref<2x512x256xbf16, #tpu.memory_space<vmem>>, vector<1x512x256xbf16>
    %325 = vector.shape_cast %324 : vector<1x512x256xbf16> to vector<512x256xbf16>
    %cst_149 = arith.constant dense<0.000000e+00> : vector<32x256xf32>
    %326 = tpu.matmul %323, %325, %cst_149 {dimension_numbers = #tpu.dot_dimension_numbers<[1], [0], [0], [1], [0, 0, 1, 1], [], []>} : vector<32x512xbf16>, vector<512x256xbf16>, vector<32x256xf32> -> vector<32x256xf32>
    %c1_150 = arith.constant 1 : index
    %c0_151 = arith.constant 0 : index
    %c2048_152 = arith.constant 2048 : index
    %327 = vector.load %arg7[%c1_150, %c0_151, %c2048_152] : memref<2x1x2816xf32, #tpu.memory_space<vmem>>, vector<1x1x256xf32>
    %328 = vector.shape_cast %327 : vector<1x1x256xf32> to vector<1x256xf32>
    %329 = vector.broadcast %328 : vector<1x256xf32> to vector<32x256xf32>
    %330 = arith.addf %326, %329 : vector<32x256xf32>
    %331 = arith.addf %273, %330 : vector<32x256xf32>
    %c1_153 = arith.constant 1 : index
    %c0_154 = arith.constant 0 : index
    %c2304_155 = arith.constant 2304 : index
    %332 = vector.load %arg7[%c1_153, %c0_154, %c2304_155] : memref<2x1x2816xf32, #tpu.memory_space<vmem>>, vector<1x1x256xf32>
    %333 = vector.shape_cast %332 : vector<1x1x256xf32> to vector<1x256xf32>
    %c1_156 = arith.constant 1 : index
    %c0_157 = arith.constant 0 : index
    %c2560_158 = arith.constant 2560 : index
    %334 = vector.load %arg7[%c1_156, %c0_157, %c2560_158] : memref<2x1x2816xf32, #tpu.memory_space<vmem>>, vector<1x1x256xf32>
    %335 = vector.shape_cast %334 : vector<1x1x256xf32> to vector<1x256xf32>
    %cst_159 = arith.constant dense<0.000000e+00> : vector<32xf32>
    %336 = vector.multi_reduction <add>, %331, %cst_159 [1] : vector<32x256xf32> to vector<32xf32>
    %337 = vector.shape_cast %336 : vector<32xf32> to vector<32x1xf32>
    %cst_160 = arith.constant 2.560000e+02 : f32
    %338 = vector.broadcast %cst_160 : f32 to vector<32x1xf32>
    %339 = arith.divf %337, %338 : vector<32x1xf32>
    %340 = vector.broadcast %339 : vector<32x1xf32> to vector<32x256xf32>
    %341 = arith.subf %331, %340 : vector<32x256xf32>
    %342 = arith.mulf %341, %341 : vector<32x256xf32>
    %cst_161 = arith.constant dense<0.000000e+00> : vector<32xf32>
    %343 = vector.multi_reduction <add>, %342, %cst_161 [1] : vector<32x256xf32> to vector<32xf32>
    %344 = vector.shape_cast %343 : vector<32xf32> to vector<32x1xf32>
    %cst_162 = arith.constant 2.560000e+02 : f32
    %345 = vector.broadcast %cst_162 : f32 to vector<32x1xf32>
    %346 = arith.divf %344, %345 : vector<32x1xf32>
    %347 = vector.broadcast %339 : vector<32x1xf32> to vector<32x256xf32>
    %348 = arith.subf %331, %347 : vector<32x256xf32>
    %cst_163 = arith.constant 9.99999974E-6 : f32
    %349 = vector.broadcast %cst_163 : f32 to vector<32x1xf32>
    %350 = arith.addf %346, %349 : vector<32x1xf32>
    %351 = math.rsqrt %350 : vector<32x1xf32>
    %352 = vector.broadcast %351 : vector<32x1xf32> to vector<32x256xf32>
    %353 = arith.mulf %348, %352 : vector<32x256xf32>
    %354 = vector.broadcast %333 : vector<1x256xf32> to vector<32x256xf32>
    %355 = arith.mulf %353, %354 : vector<32x256xf32>
    %356 = vector.broadcast %335 : vector<1x256xf32> to vector<32x256xf32>
    %357 = arith.addf %355, %356 : vector<32x256xf32>
    %358 = arith.truncf %357 : vector<32x256xf32> to vector<32x256xbf16>
    %c0_164 = arith.constant 0 : index
    %c0_165 = arith.constant 0 : index
    %359 = vector.load %arg8[%c0_164, %c0_165] : memref<256x128xbf16, #tpu.memory_space<vmem>>, vector<256x128xbf16>
    %cst_166 = arith.constant dense<0.000000e+00> : vector<32x128xf32>
    %360 = tpu.matmul %358, %359, %cst_166 {dimension_numbers = #tpu.dot_dimension_numbers<[1], [0], [0], [1], [0, 0, 1, 1], [], []>} : vector<32x256xbf16>, vector<256x128xbf16>, vector<32x128xf32> -> vector<32x128xf32>
    %c0_167 = arith.constant 0 : index
    %c0_168 = arith.constant 0 : index
    %361 = vector.load %arg9[%c0_167, %c0_168] : memref<1x128xf32, #tpu.memory_space<vmem>>, vector<1x128xf32>
    %362 = vector.broadcast %361 : vector<1x128xf32> to vector<32x128xf32>
    %363 = arith.addf %360, %362 : vector<32x128xf32>
    %c0_169 = arith.constant 0 : index
    %c0_170 = arith.constant 0 : index
    %c0_171 = arith.constant 0 : index
    %364 = vector.load %arg10[%c0_169, %c0_170, %c0_171] : memref<2x32x64xf32, #tpu.memory_space<vmem>>, vector<1x32x64xf32>
    %365 = vector.shape_cast %364 : vector<1x32x64xf32> to vector<32x64xf32>
    %c1_172 = arith.constant 1 : index
    %c0_173 = arith.constant 0 : index
    %c0_174 = arith.constant 0 : index
    %366 = vector.load %arg10[%c1_172, %c0_173, %c0_174] : memref<2x32x64xf32, #tpu.memory_space<vmem>>, vector<1x32x64xf32>
    %367 = vector.shape_cast %366 : vector<1x32x64xf32> to vector<32x64xf32>
    %368 = vector.extract_strided_slice %363 {offsets = [0, 0], sizes = [32, 64], strides = [1, 1]} : vector<32x128xf32> to vector<32x64xf32>
    %369 = vector.extract_strided_slice %363 {offsets = [0, 64], sizes = [32, 64], strides = [1, 1]} : vector<32x128xf32> to vector<32x64xf32>
    %370 = arith.mulf %368, %365 : vector<32x64xf32>
    %371 = arith.mulf %369, %367 : vector<32x64xf32>
    %372 = arith.subf %370, %371 : vector<32x64xf32>
    %373 = arith.mulf %369, %365 : vector<32x64xf32>
    %374 = arith.mulf %368, %367 : vector<32x64xf32>
    %375 = arith.addf %373, %374 : vector<32x64xf32>
    %376 = arith.truncf %372 : vector<32x64xf32> to vector<32x64xbf16>
    %c0_175 = arith.constant 0 : index
    %c0_176 = arith.constant 0 : index
    %377 = vector.load %arg11[%c0_175, %c0_176] : memref<128x256xbf16, #tpu.memory_space<vmem>>, vector<64x256xbf16>
    %cst_177 = arith.constant dense<0.000000e+00> : vector<32x256xf32>
    %378 = tpu.matmul %376, %377, %cst_177 {dimension_numbers = #tpu.dot_dimension_numbers<[1], [0], [0], [1], [0, 0, 1, 1], [], []>} : vector<32x64xbf16>, vector<64x256xbf16>, vector<32x256xf32> -> vector<32x256xf32>
    %379 = arith.truncf %375 : vector<32x64xf32> to vector<32x64xbf16>
    %c64 = arith.constant 64 : index
    %c0_178 = arith.constant 0 : index
    %380 = vector.load %arg11[%c64, %c0_178] : memref<128x256xbf16, #tpu.memory_space<vmem>>, vector<64x256xbf16>
    %cst_179 = arith.constant dense<0.000000e+00> : vector<32x256xf32>
    %381 = tpu.matmul %379, %380, %cst_179 {dimension_numbers = #tpu.dot_dimension_numbers<[1], [0], [0], [1], [0, 0, 1, 1], [], []>} : vector<32x64xbf16>, vector<64x256xbf16>, vector<32x256xf32> -> vector<32x256xf32>
    %382 = arith.addf %378, %381 : vector<32x256xf32>
    %c0_180 = arith.constant 0 : index
    %c0_181 = arith.constant 0 : index
    %383 = vector.load %arg12[%c0_180, %c0_181] : memref<32x256xf32, #tpu.memory_space<vmem>>, vector<32x256xf32>
    tpu.vector_store %arg12[%c0_180, %c0_181], %382 {strides = array<i32>} : memref<32x256xf32, #tpu.memory_space<vmem>>, vector<32x256xf32>,
    return
  }
  func.func @transform_0(%arg0: i32) -> (i32, i32) {
    %c0_i32 = arith.constant 0 : i32
    %c0_i32_0 = arith.constant 0 : i32
    %c0_i32_1 = arith.constant 0 : i32
    return %c0_i32, %c0_i32_0 : i32, i32
  }
  func.func @transform_1(%arg0: i32) -> (i32, i32) {
    %c0_i32 = arith.constant 0 : i32
    %c0_i32_0 = arith.constant 0 : i32
    %c0_i32_1 = arith.constant 0 : i32
    return %c0_i32, %c0_i32_0 : i32, i32
  }
  func.func @transform_2(%arg0: i32) -> (i32, i32) {
    %c0_i32 = arith.constant 0 : i32
    %c0_i32_0 = arith.constant 0 : i32
    %c0_i32_1 = arith.constant 0 : i32
    return %c0_i32, %c0_i32_0 : i32, i32
  }
  func.func @transform_3(%arg0: i32) -> (i32, i32) {
    %c0_i32 = arith.constant 0 : i32
    %c0_i32_0 = arith.constant 0 : i32
    %c0_i32_1 = arith.constant 0 : i32
    return %c0_i32, %c0_i32_0 : i32, i32
  }
  func.func @transform_4(%arg0: i32) -> (i32, i32, i32) {
    %c0_i32 = arith.constant 0 : i32
    %c0_i32_0 = arith.constant 0 : i32
    %c0_i32_1 = arith.constant 0 : i32
    %c0_i32_2 = arith.constant 0 : i32
    return %c0_i32, %c0_i32_0, %c0_i32_1 : i32, i32, i32
  }
  func.func @transform_5(%arg0: i32) -> (i32, i32, i32) {
    %c0_i32 = arith.constant 0 : i32
    %c0_i32_0 = arith.constant 0 : i32
    %c0_i32_1 = arith.constant 0 : i32
    %c0_i32_2 = arith.constant 0 : i32
    return %c0_i32, %c0_i32_0, %c0_i32_1 : i32, i32, i32
  }
  func.func @transform_6(%arg0: i32) -> (i32, i32, i32) {
    %c0_i32 = arith.constant 0 : i32
    %c0_i32_0 = arith.constant 0 : i32
    %c0_i32_1 = arith.constant 0 : i32
    %c0_i32_2 = arith.constant 0 : i32
    return %c0_i32, %c0_i32_0, %c0_i32_1 : i32, i32, i32
  }
  func.func @transform_7(%arg0: i32) -> (i32, i32) {
    %c0_i32 = arith.constant 0 : i32
    %c0_i32_0 = arith.constant 0 : i32
    %c0_i32_1 = arith.constant 0 : i32
    return %c0_i32, %c0_i32_0 : i32, i32
  }
  func.func @transform_8(%arg0: i32) -> (i32, i32) {
    %c0_i32 = arith.constant 0 : i32
    %c0_i32_0 = arith.constant 0 : i32
    %c0_i32_1 = arith.constant 0 : i32
    return %c0_i32, %c0_i32_0 : i32, i32
  }
  func.func @transform_9(%arg0: i32) -> (i32, i32, i32) {
    %c0_i32 = arith.constant 0 : i32
    %c0_i32_0 = arith.constant 0 : i32
    %c0_i32_1 = arith.constant 0 : i32
    %c0_i32_2 = arith.constant 0 : i32
    return %c0_i32, %c0_i32_0, %c0_i32_1 : i32, i32, i32
  }
  func.func @transform_10(%arg0: i32) -> (i32, i32) {
    %c0_i32 = arith.constant 0 : i32
    %c0_i32_0 = arith.constant 0 : i32
    %c0_i32_1 = arith.constant 0 : i32
    return %c0_i32, %c0_i32_0 : i32, i32
  }
  func.func @transform_11(%arg0: i32) -> (i32, i32) {
    %c0_i32 = arith.constant 0 : i32
    %c0_i32_0 = arith.constant 0 : i32
    %c0_i32_1 = arith.constant 0 : i32
    return %c0_i32, %c0_i32_0 : i32, i32
  }
}

</mosaic_0001>

<llo_original>
// kernel: wav2vec2_mistral_forward.2
$region0: #{wav2vec2_mistral_forward.2}
  #allocation0 [shape = 'u32[]', space=smem, size = 0x4, offset = 0x4, fixed_abs, tag = 'smem constant byte address 0x4 - core index']
  #allocation1 [shape = 'u32[144,128]{1,0:T(1,128)}', space=vmem, size = 0x12000, scoped, tag = 'internal scratch']
  %s0 = inlined_call_operand.vmem [shape: f32[32,32], index: 0, kind: input, shape index: {}]
  %s1 = inlined_call_operand.vmem [shape: f32[32,1], index: 1, kind: input, shape index: {}]
  %s2 = inlined_call_operand.hbm [shape: f32[2,32], index: 2, kind: input, shape index: {}]
  %s3 = inlined_call_operand.hbm [shape: bf16[32,256], index: 3, kind: input, shape index: {}]
  %s4 = inlined_call_operand.hbm [shape: f32[1,256], index: 4, kind: input, shape index: {}]
  %s5 = inlined_call_operand.vmem [shape: f32[32,256], index: 5, kind: output, shape index: {}]
  %s6 = sld [smem:[#allocation0]]
  $region42: #{wav2vec2_mistral_forward.2} parent=0
    _
  %s8 = ssub.s32 1, %s6
  %s9 = scalar_select 0, %s8, %s6
  $region1: #{wav2vec2_mistral_forward.2} parent=0
    #allocation2 [shape = 'u8[1024]{0}', space=vmem, size = 0x400, scoped, tag = 'input window, operand 2, single buffered']
    #allocation3 [shape = 's32[1]{0}', space=sflag, size = 0x4, scoped, tag = 'scoped memory for wav2vec2_mistral_forward.2']
    #allocation4 [shape = 'u8[16384]{0}', space=vmem, size = 0x4000, scoped, tag = 'input window, operand 3, single buffered']
    #allocation5 [shape = 's32[1]{0}', space=sflag, size = 0x4, scoped, tag = 'scoped memory for wav2vec2_mistral_forward.2']
    #allocation6 [shape = 'u8[1024]{0}', space=vmem, size = 0x400, scoped, tag = 'input window, operand 4, single buffered']
    %10 = vsyncpa [#allocation3], 0
    %11 = vsyncpa [#allocation5], 0
    // Predicated region
    $region2: #{wav2vec2_mistral_forward.2} parent=1 // pred_check
      _
    $region3: #{wav2vec2_mistral_forward.2} parent=1 // pred_check_branch
      %13 = sbr.rel (0) target = $region5
    $region4: #{wav2vec2_mistral_forward.2} parent=1 // pred_region
      _
    $region5: #{wav2vec2_mistral_forward.2} parent=1 // pred_fallthru
      _
    // Predicated region
    $region6: #{wav2vec2_mistral_forward.2} parent=1 // pred_check
      _
    $region7: #{wav2vec2_mistral_forward.2} parent=1 // pred_check_branch
      %15 = sbr.rel (0) target = $region9
    $region8: #{wav2vec2_mistral_forward.2} parent=1 // pred_region
      _
    $region9: #{wav2vec2_mistral_forward.2} parent=1 // pred_fallthru
      _
    // Predicated region
    $region10: #{wav2vec2_mistral_forward.2} parent=1 // pred_check
      _
    $region11: #{wav2vec2_mistral_forward.2} parent=1 // pred_check_branch
      %17 = sbr.rel (0) target = $region13
    $region12: #{wav2vec2_mistral_forward.2} parent=1 // pred_region
      %s19 = ssub.s32 32, 32
      %20 = vsyncadd [#allocation3], %s19
      %s22 = sshll.u32 [#allocation2], 4
      %s23 = int_to_ptr.vmem [resolvable:$true] %s22
      %25 = dma.hbm_to_vmem [thread:$0]  %s2, 32, %s23, [#allocation3]
    $region13: #{wav2vec2_mistral_forward.2} parent=1 // pred_fallthru
      _
    // Predicated region
    $region14: #{wav2vec2_mistral_forward.2} parent=1 // pred_check
      _
    $region15: #{wav2vec2_mistral_forward.2} parent=1 // pred_check_branch
      %27 = sbr.rel (0) target = $region17
    $region16: #{wav2vec2_mistral_forward.2} parent=1 // pred_region
      %s29 = ssub.s32 512, 512
      %30 = vsyncadd [#allocation5], %s29
      %s31 = sshll.u32 [#allocation4], 4
      %s32 = int_to_ptr.vmem [resolvable:$true] %s31
      %37 = dma.hbm_to_vmem [thread:$0]  %s3, 512, %s32, [#allocation5], 128, 128, 8
    $region17: #{wav2vec2_mistral_forward.2} parent=1 // pred_fallthru
      _
    // Predicated region
    $region18: #{wav2vec2_mistral_forward.2} parent=1 // pred_check
      _
    $region19: #{wav2vec2_mistral_forward.2} parent=1 // pred_check_branch
      %39 = sbr.rel (0) target = $region21
    $region20: #{wav2vec2_mistral_forward.2} parent=1 // pred_region
      %s41 = ssub.s32 32, 32
      %42 = vsyncadd [#allocation5], %s41
      %s44 = sshll.u32 [#allocation6], 4
      %s45 = int_to_ptr.vmem [resolvable:$true] %s44
      %47 = dma.hbm_to_vmem [thread:$0]  %s4, 32, %s45, [#allocation5]
    $region21: #{wav2vec2_mistral_forward.2} parent=1 // pred_fallthru
      _
    // Predicated region
    $region22: #{wav2vec2_mistral_forward.2} parent=1 // pred_check
      _
    $region23: #{wav2vec2_mistral_forward.2} parent=1 // pred_check_branch
      %49 = sbr.rel (0) target = $region25
    $region24: #{wav2vec2_mistral_forward.2} parent=1 // pred_region
      %50 = dma.done [#allocation3], 32
    $region25: #{wav2vec2_mistral_forward.2} parent=1 // pred_fallthru
      _
    // Predicated region
    $region26: #{wav2vec2_mistral_forward.2} parent=1 // pred_check
      _
    $region27: #{wav2vec2_mistral_forward.2} parent=1 // pred_check_branch
      %52 = sbr.rel (0) target = $region29
    $region28: #{wav2vec2_mistral_forward.2} parent=1 // pred_region
      %53 = dma.done [#allocation5], 512
    $region29: #{wav2vec2_mistral_forward.2} parent=1 // pred_fallthru
      _
    // Predicated region
    $region30: #{wav2vec2_mistral_forward.2} parent=1 // pred_check
      _
    $region31: #{wav2vec2_mistral_forward.2} parent=1 // pred_check_branch
      %55 = sbr.rel (0) target = $region33
    $region32: #{wav2vec2_mistral_forward.2} parent=1 // pred_region
      %56 = dma.done [#allocation5], 32
    $region33: #{wav2vec2_mistral_forward.2} parent=1 // pred_fallthru
      _
    %v58 = vld [vmem:[%s0] sm:$0xff]
    %v59 = vld [vmem:[%s0 + $0x8] sm:$0xff]
    %v60 = vld [vmem:[%s0 + $0x10] sm:$0xff]
    %v61 = vld [vmem:[%s0 + $0x18] sm:$0xff]
    %v62 = vld [vmem:[#allocation2] sm:$0x1]
    %v63 = vld [vmem:[#allocation2 + $0x1] sm:$0x1]
    %vm64 = vcmask 261120
    %v65 = vsel %vm64, %v58, 0.0
    %66 = vadd.xlane.f32.xlu0 %v65
    %v67 = vpop.xlane.xlu0 %66
    %v68 = vsel %vm64, %v59, 0.0
    %69 = vadd.xlane.f32.xlu0 %v68
    %v70 = vpop.xlane.xlu0 %69
    %v71 = vsel %vm64, %v60, 0.0
    %72 = vadd.xlane.f32.xlu0 %v71
    %v73 = vpop.xlane.xlu0 %72
    %v74 = vsel %vm64, %v61, 0.0
    %75 = vadd.xlane.f32.xlu0 %v74
    %v76 = vpop.xlane.xlu0 %75
    %v77 = vrcp.pop 32.0
    %v78 = vmul.f32 %v67, %v77
    %v79 = vmul.f32 %v70, %v77
    %v80 = vmul.f32 %v73, %v77
    %v81 = vmul.f32 %v76, %v77
    %v82 = vsub.f32 %v58, %v78
    %v83 = vsub.f32 %v59, %v79
    %v84 = vsub.f32 %v60, %v80
    %v85 = vsub.f32 %v61, %v81
    %v86 = vmul.f32 %v82, %v82
    %v87 = vmul.f32 %v83, %v83
    %v88 = vmul.f32 %v84, %v84
    %v89 = vmul.f32 %v85, %v85
    %v90 = vsel %vm64, %v86, 0.0
    %91 = vadd.xlane.f32.xlu0 %v90
    %v92 = vpop.xlane.xlu0 %91
    %v93 = vsel %vm64, %v87, 0.0
    %94 = vadd.xlane.f32.xlu0 %v93
    %v95 = vpop.xlane.xlu0 %94
    %v96 = vsel %vm64, %v88, 0.0
    %97 = vadd.xlane.f32.xlu0 %v96
    %v98 = vpop.xlane.xlu0 %97
    %v99 = vsel %vm64, %v89, 0.0
    %100 = vadd.xlane.f32.xlu0 %v99
    %v101 = vpop.xlane.xlu0 %100
    %v102 = vmul.f32 %v92, %v77
    %v103 = vmul.f32 %v95, %v77
    %v104 = vmul.f32 %v98, %v77
    %v105 = vmul.f32 %v101, %v77
    %v106 = vadd.f32 %v102, 1e-05
    %v107 = vadd.f32 %v103, 1e-05
    %v108 = vadd.f32 %v104, 1e-05
    %v109 = vadd.f32 %v105, 1e-05
    %v110 = vrsqrt.pop %v106
    %v111 = vrsqrt.pop %v107
    %v112 = vrsqrt.pop %v108
    %v113 = vrsqrt.pop %v109
    %v114 = vmul.f32 %v82, %v110
    %v115 = vmul.f32 %v83, %v111
    %v116 = vmul.f32 %v84, %v112
    %v117 = vmul.f32 %v85, %v113
    %v118 = vlaneseq
    %v119 = vshrl.u32 %v118, 7
    %v120 = vsub.s32 0, %v119
    %v121 = vrot.slane %v62, %v120
    %v122 = vmul.f32 %v114, %v121
    %v123 = vmul.f32 %v115, %v121
    %v124 = vmul.f32 %v116, %v121
    %v125 = vmul.f32 %v117, %v121
    %v126 = vlaneseq
    %v127 = vshrl.u32 %v126, 7
    %v128 = vsub.s32 0, %v127
    %v129 = vrot.slane %v63, %v128
    %v130 = vadd.f32 %v122, %v129
    %v131 = vadd.f32 %v123, %v129
    %v132 = vadd.f32 %v124, %v129
    %v133 = vadd.f32 %v125, %v129
    %v134 = vpack.c.bf16 %v131, %v130
    %v135 = vpack.c.bf16 %v133, %v132
    %v136 = vld [vmem:[#allocation4] sm:$0xff]
    %v137 = vld [vmem:[#allocation4 + $0x8] sm:$0xff]
    %v138 = vld [vmem:[#allocation4 + $0x10] sm:$0xff]
    %v139 = vld [vmem:[#allocation4 + $0x18] sm:$0xff]
    %v140 = vld [vmem:[#allocation6] sm:$0x3]
    %v142 = vlaneseq
    %v143 = vshrl.u32 %v142, 7
    %v144 = vsub.s32 0, %v143
    %v145 = vrot.slane %v140, %v144
    %v146 = vlaneseq
    %v147 = vshrl.u32 %v146, 7
    %v148 = vsub.s32 1, %v147
    %v149 = vrot.slane %v140, %v148
    %v156 = vunpack.c.l.b16 %v136
    %v157 = vunpack.c.h.b16 %v136
    %v158 = vunpack.c.l.b16 %v137
    %v159 = vunpack.c.h.b16 %v137
    %v160 = vunpack.c.l.b16 %v138
    %v161 = vunpack.c.h.b16 %v138
    %v162 = vunpack.c.l.b16 %v139
    %v163 = vunpack.c.h.b16 %v139
    %v164 = vpack.c.b16 %v158, %v156
    %v165 = vpack.c.b16 %v159, %v157
    %v166 = vpack.c.b16 %v162, %v160
    %v167 = vpack.c.b16 %v163, %v161
    %v173 = vsel %vm64, %v134, 0
    %v176 = vsel %vm64, %v135, 0
    %178 = vmatprep.subr.bf16.mxu0 %v165
    %179 = vmatpush1.bf16.msra.mxu0 %v164
    %180 = vmatprep.subr.bf16.mxu0 %v167
    %181 = vmatpush1.bf16.msra.mxu0 %v166
    %182 = vmatprep.subr.bf16.mxu0 0
    %183 = vmatpush1.bf16.msra.mxu0 0
    %184 = vmatprep.subr.bf16.mxu0 0
    %185 = vmatpush1.bf16.msra.mxu0 0
    %186 = vmatprep.subr.bf16.mxu0 0
    %187 = vmatpush1.bf16.msra.mxu0 0
    %188 = vmatprep.subr.bf16.mxu0 0
    %189 = vmatpush1.bf16.msra.mxu0 0
    %190 = vmatprep.subr.bf16.mxu0 0
    %191 = vmatpush1.bf16.msra.mxu0 0
    %192 = vmatprep.subr.bf16.mxu0 0
    %193 = vmatpush1.bf16.msra.mxu0 0
    %194 = vmatprep.subr.bf16.mxu0 0
    %195 = vmatpush1.bf16.msra.mxu0 0
    %196 = vmatprep.subr.bf16.mxu0 0
    %197 = vmatpush1.bf16.msra.mxu0 0
    %198 = vmatprep.subr.bf16.mxu0 0
    %199 = vmatpush1.bf16.msra.mxu0 0
    %200 = vmatprep.subr.bf16.mxu0 0
    %201 = vmatpush1.bf16.msra.mxu0 0
    %202 = vmatprep.subr.bf16.mxu0 0
    %203 = vmatpush1.bf16.msra.mxu0 0
    %204 = vmatprep.subr.bf16.mxu0 0
    %205 = vmatpush1.bf16.msra.mxu0 0
    %206 = vmatprep.subr.bf16.mxu0 0
    %207 = vmatpush1.bf16.msra.mxu0 0
    %208 = vmatprep.subr.bf16.mxu0 0
    %209 = vmatpush1.bf16.msra.mxu0 0
    %210 = vmatprep.mubr.bf16.mxu0 0
    %211 = vmatmul.mubr.bf16.gmra.mrb[0].mxu0 %v173
    %v212 = vpop.f32.mrb[0].mxu0
    %v213 = vadd.f32 %v145, %v212
    %v214 = vpop.f32.mrb[0].mxu0
    %v215 = vadd.f32 %v149, %v214
    %v216 = vpop.f32.mrb[0].mxu0
    %v217 = vadd.f32 %v145, %v216
    %v218 = vpop.f32.mrb[0].mxu0
    %v219 = vadd.f32 %v149, %v218
    %220 = vmatprep.mubr.bf16.mxu0 0
    %221 = vmatmul.mubr.bf16.gmra.mrb[0].mxu0 %v176
    %v222 = vpop.f32.mrb[0].mxu0
    %v223 = vadd.f32 %v145, %v222
    %v224 = vpop.f32.mrb[0].mxu0
    %v225 = vadd.f32 %v149, %v224
    %v226 = vpop.f32.mrb[0].mxu0
    %v227 = vadd.f32 %v145, %v226
    %v228 = vpop.f32.mrb[0].mxu0
    %v229 = vadd.f32 %v149, %v228
    %230 = vdwg.mxu0
    %v231 = vld [vmem:[%s1] sm:$0xff]
    %v232 = vld [vmem:[%s1 + $0x8] sm:$0xff]
    %v233 = vld [vmem:[%s1 + $0x10] sm:$0xff]
    %v234 = vld [vmem:[%s1 + $0x18] sm:$0xff]
    %236 = vset.pattern.permute.xlu0 0
    %237 = vperm.xlu0 %236, %v231
    %v238 = vpop.permute.xlu0 %237
    %241 = vset.pattern.permute.xlu0 0
    %242 = vperm.xlu0 %241, %v232
    %v243 = vpop.permute.xlu0 %242
    %246 = vset.pattern.permute.xlu0 0
    %247 = vperm.xlu0 %246, %v233
    %v248 = vpop.permute.xlu0 %247
    %251 = vset.pattern.permute.xlu0 0
    %252 = vperm.xlu0 %251, %v234
    %v253 = vpop.permute.xlu0 %252
    %v255 = vmul.f32 %v213, %v238
    %v256 = vmul.f32 %v215, %v238
    %v257 = vmul.f32 %v217, %v243
    %v258 = vmul.f32 %v219, %v243
    %v259 = vmul.f32 %v223, %v248
    %v260 = vmul.f32 %v225, %v248
    %v261 = vmul.f32 %v227, %v253
    %v262 = vmul.f32 %v229, %v253
    %263 = vst [vmem:[%s5] sm:$0xff] %v255
    %264 = vst [vmem:[%s5 + $0x8] sm:$0xff] %v256
    %265 = vst [vmem:[%s5 + $0x10] sm:$0xff] %v257
    %266 = vst [vmem:[%s5 + $0x18] sm:$0xff] %v258
    %267 = vst [vmem:[%s5 + $0x20] sm:$0xff] %v259
    %268 = vst [vmem:[%s5 + $0x28] sm:$0xff] %v260
    %269 = vst [vmem:[%s5 + $0x30] sm:$0xff] %v261
    %270 = vst [vmem:[%s5 + $0x38] sm:$0xff] %v262
    // Predicated region
    $region34: #{wav2vec2_mistral_forward.2} parent=1 // pred_check
      _
    $region35: #{wav2vec2_mistral_forward.2} parent=1 // pred_check_branch
      %272 = sbr.rel (0) target = $region37
    $region36: #{wav2vec2_mistral_forward.2} parent=1 // pred_region
      _
    $region37: #{wav2vec2_mistral_forward.2} parent=1 // pred_fallthru
      _
    // Predicated region
    $region38: #{wav2vec2_mistral_forward.2} parent=1 // pred_check
      _
    $region39: #{wav2vec2_mistral_forward.2} parent=1 // pred_check_branch
      %274 = sbr.rel (0) target = $region41
    $region40: #{wav2vec2_mistral_forward.2} parent=1 // pred_region
      _
    $region41: #{wav2vec2_mistral_forward.2} parent=1 // pred_fallthru
      _
    %275 = vsyncpa [#allocation3], 1
    %276 = vsyncpa [#allocation5], 1

// kernel: wav2vec2_mistral_forward.3
$region0: #{wav2vec2_mistral_forward.3}
  #allocation0 [shape = 'u32[]', space=smem, size = 0x4, offset = 0x4, fixed_abs, tag = 'smem constant byte address 0x4 - core index']
  #allocation1 [shape = 'u32[144,128]{1,0:T(1,128)}', space=vmem, size = 0x12000, scoped, tag = 'internal scratch']
  #allocation2 [shape = 'f32[32,256]{1,0:T(8,128)}', space=vmem, size = 0x8000, scoped, tag = 'scratch operand']
  %s0 = inlined_call_operand.vmem [shape: f32[32,256], index: 0, kind: input, shape index: {}]
  %s1 = inlined_call_operand.vmem [shape: f32[32,256], index: 1, kind: input, shape index: {}]
  %s2 = inlined_call_operand.vmem [shape: f32[32,32], index: 2, kind: input, shape index: {}]
  %s3 = inlined_call_operand.vmem [shape: f32[2,256], index: 3, kind: input, shape index: {}]
  %s4 = inlined_call_operand.vmem [shape: bf16[2,256,1536], index: 4, kind: input, shape index: {}]
  %s5 = inlined_call_operand.vmem [shape: bf16[2,512,256], index: 5, kind: input, shape index: {}]
  %s6 = inlined_call_operand.vmem [shape: f32[2,1,2816], index: 6, kind: input, shape index: {}]
  %s7 = inlined_call_operand.vmem [shape: bf16[256,128], index: 7, kind: input, shape index: {}]
  %s8 = inlined_call_operand.vmem [shape: f32[1,128], index: 8, kind: input, shape index: {}]
  %s9 = inlined_call_operand.vmem [shape: f32[2,32,64], index: 9, kind: input, shape index: {}]
  %s10 = inlined_call_operand.vmem [shape: bf16[128,256], index: 10, kind: input, shape index: {}]
  %s11 = inlined_call_operand.vmem [shape: f32[32,256], index: 11, kind: output, shape index: {}]
  %s12 = sld [smem:[#allocation0]]
  $region54: #{wav2vec2_mistral_forward.3} parent=0
    _
  %s14 = ssub.s32 1, %s12
  %s15 = scalar_select 0, %s14, %s12
  // Predicated region
  $region2: #{wav2vec2_mistral_forward.3} parent=0 // pred_check
    _
  $region3: #{wav2vec2_mistral_forward.3} parent=0 // pred_check_branch
    %17 = sbr.rel (0) target = $region5
  $region4: #{wav2vec2_mistral_forward.3} parent=0 // pred_region
    _
  $region5: #{wav2vec2_mistral_forward.3} parent=0 // pred_fallthru
    _
  // Predicated region
  $region6: #{wav2vec2_mistral_forward.3} parent=0 // pred_check
    _
  $region7: #{wav2vec2_mistral_forward.3} parent=0 // pred_check_branch
    %19 = sbr.rel (0) target = $region9
  $region8: #{wav2vec2_mistral_forward.3} parent=0 // pred_region
    _
  $region9: #{wav2vec2_mistral_forward.3} parent=0 // pred_fallthru
    _
  // Predicated region
  $region10: #{wav2vec2_mistral_forward.3} parent=0 // pred_check
    _
  $region11: #{wav2vec2_mistral_forward.3} parent=0 // pred_check_branch
    %21 = sbr.rel (0) target = $region13
  $region12: #{wav2vec2_mistral_forward.3} parent=0 // pred_region
    _
  $region13: #{wav2vec2_mistral_forward.3} parent=0 // pred_fallthru
    _
  // Predicated region
  $region14: #{wav2vec2_mistral_forward.3} parent=0 // pred_check
    _
  $region15: #{wav2vec2_mistral_forward.3} parent=0 // pred_check_branch
    %23 = sbr.rel (0) target = $region17
  $region16: #{wav2vec2_mistral_forward.3} parent=0 // pred_region
    _
  $region17: #{wav2vec2_mistral_forward.3} parent=0 // pred_fallthru
    _
  // Predicated region
  $region18: #{wav2vec2_mistral_forward.3} parent=0 // pred_check
    _
  $region19: #{wav2vec2_mistral_forward.3} parent=0 // pred_check_branch
    %25 = sbr.rel (0) target = $region21
  $region20: #{wav2vec2_mistral_forward.3} parent=0 // pred_region
    _
  $region21: #{wav2vec2_mistral_forward.3} parent=0 // pred_fallthru
    _
  // Predicated region
  $region22: #{wav2vec2_mistral_forward.3} parent=0 // pred_check
    _
  $region23: #{wav2vec2_mistral_forward.3} parent=0 // pred_check_branch
    %27 = sbr.rel (0) target = $region25
  $region24: #{wav2vec2_mistral_forward.3} parent=0 // pred_region
    _
  $region25: #{wav2vec2_mistral_forward.3} parent=0 // pred_fallthru
    _
  // Predicated region
  $region26: #{wav2vec2_mistral_forward.3} parent=0 // pred_check
    _
  $region27: #{wav2vec2_mistral_forward.3} parent=0 // pred_check_branch
    %29 = sbr.rel (0) target = $region29
  $region28: #{wav2vec2_mistral_forward.3} parent=0 // pred_region
    _
  $region29: #{wav2vec2_mistral_forward.3} parent=0 // pred_fallthru
    _
  // Predicated region
  $region30: #{wav2vec2_mistral_forward.3} parent=0 // pred_check
    _
  $region31: #{wav2vec2_mistral_forward.3} parent=0 // pred_check_branch
    %31 = sbr.rel (0) target = $region33
  $region32: #{wav2vec2_mistral_forward.3} parent=0 // pred_region
    _
  $region33: #{wav2vec2_mistral_forward.3} parent=0 // pred_fallthru
    _
  // Predicated region
  $region34: #{wav2vec2_mistral_forward.3} parent=0 // pred_check
    _
  $region35: #{wav2vec2_mistral_forward.3} parent=0 // pred_check_branch
    %33 = sbr.rel (0) target = $region37
  $region36: #{wav2vec2_mistral_forward.3} parent=0 // pred_region
    _
  $region37: #{wav2vec2_mistral_forward.3} parent=0 // pred_fallthru
    _
  // Predicated region
  $region38: #{wav2vec2_mistral_forward.3} parent=0 // pred_check
    _
  $region39: #{wav2vec2_mistral_forward.3} parent=0 // pred_check_branch
    %35 = sbr.rel (0) target = $region41
  $region40: #{wav2vec2_mistral_forward.3} parent=0 // pred_region
    _
  $region41: #{wav2vec2_mistral_forward.3} parent=0 // pred_fallthru
    _
  // Predicated region
  $region42: #{wav2vec2_mistral_forward.3} parent=0 // pred_check
    _
  $region43: #{wav2vec2_mistral_forward.3} parent=0 // pred_check_branch
    %37 = sbr.rel (0) target = $region45
  $region44: #{wav2vec2_mistral_forward.3} parent=0 // pred_region
    _
  $region45: #{wav2vec2_mistral_forward.3} parent=0 // pred_fallthru
    _
  %v39 = vld [vmem:[%s0] sm:$0xff]
  %v40 = vld [vmem:[%s0 + $0x8] sm:$0xff]
  %v41 = vld [vmem:[%s0 + $0x10] sm:$0xff]
  %v42 = vld [vmem:[%s0 + $0x18] sm:$0xff]
  %v43 = vld [vmem:[%s0 + $0x20] sm:$0xff]
  %v44 = vld [vmem:[%s0 + $0x28] sm:$0xff]
  %v45 = vld [vmem:[%s0 + $0x30] sm:$0xff]
  %v46 = vld [vmem:[%s0 + $0x38] sm:$0xff]
  %v47 = vld [vmem:[%s1] sm:$0xff]
  %v48 = vld [vmem:[%s1 + $0x8] sm:$0xff]
  %v49 = vld [vmem:[%s1 + $0x10] sm:$0xff]
  %v50 = vld [vmem:[%s1 + $0x18] sm:$0xff]
  %v51 = vld [vmem:[%s1 + $0x20] sm:$0xff]
  %v52 = vld [vmem:[%s1 + $0x28] sm:$0xff]
  %v53 = vld [vmem:[%s1 + $0x30] sm:$0xff]
  %v54 = vld [vmem:[%s1 + $0x38] sm:$0xff]
  %v55 = vadd.f32 %v39, %v47
  %v56 = vadd.f32 %v40, %v48
  %v57 = vadd.f32 %v41, %v49
  %v58 = vadd.f32 %v42, %v50
  %v59 = vadd.f32 %v43, %v51
  %v60 = vadd.f32 %v44, %v52
  %v61 = vadd.f32 %v45, %v53
  %v62 = vadd.f32 %v46, %v54
  %v63 = vld [vmem:[%s3] ss:$2 sm:$0x3]
  %s64 = scalar_lea.vmem %s3, 1
  %v65 = vld [vmem:[%s64] ss:$2 sm:$0x3]
  %v66 = vadd.f32 %v55, %v56
  %67 = vadd.xlane.f32.xlu0 %v66
  %v68 = vpop.xlane.xlu0 %67
  %v69 = vadd.f32 %v57, %v58
  %70 = vadd.xlane.f32.xlu0 %v69
  %v71 = vpop.xlane.xlu0 %70
  %v72 = vadd.f32 %v59, %v60
  %73 = vadd.xlane.f32.xlu0 %v72
  %v74 = vpop.xlane.xlu0 %73
  %v75 = vadd.f32 %v61, %v62
  %76 = vadd.xlane.f32.xlu0 %v75
  %v77 = vpop.xlane.xlu0 %76
  %v78 = vrcp.pop 256.0
  %v79 = vmul.f32 %v68, %v78
  %v80 = vmul.f32 %v71, %v78
  %v81 = vmul.f32 %v74, %v78
  %v82 = vmul.f32 %v77, %v78
  %v83 = vsub.f32 %v55, %v79
  %v84 = vsub.f32 %v56, %v79
  %v85 = vsub.f32 %v57, %v80
  %v86 = vsub.f32 %v58, %v80
  %v87 = vsub.f32 %v59, %v81
  %v88 = vsub.f32 %v60, %v81
  %v89 = vsub.f32 %v61, %v82
  %v90 = vsub.f32 %v62, %v82
  %v91 = vmul.f32 %v83, %v83
  %v92 = vmul.f32 %v84, %v84
  %v93 = vmul.f32 %v85, %v85
  %v94 = vmul.f32 %v86, %v86
  %v95 = vmul.f32 %v87, %v87
  %v96 = vmul.f32 %v88, %v88
  %v97 = vmul.f32 %v89, %v89
  %v98 = vmul.f32 %v90, %v90
  %v99 = vadd.f32 %v91, %v92
  %100 = vadd.xlane.f32.xlu0 %v99
  %v101 = vpop.xlane.xlu0 %100
  %v102 = vadd.f32 %v93, %v94
  %103 = vadd.xlane.f32.xlu0 %v102
  %v104 = vpop.xlane.xlu0 %103
  %v105 = vadd.f32 %v95, %v96
  %106 = vadd.xlane.f32.xlu0 %v105
  %v107 = vpop.xlane.xlu0 %106
  %v108 = vadd.f32 %v97, %v98
  %109 = vadd.xlane.f32.xlu0 %v108
  %v110 = vpop.xlane.xlu0 %109
  %v111 = vmul.f32 %v101, %v78
  %v112 = vmul.f32 %v104, %v78
  %v113 = vmul.f32 %v107, %v78
  %v114 = vmul.f32 %v110, %v78
  %v115 = vadd.f32 %v111, 1e-05
  %v116 = vadd.f32 %v112, 1e-05
  %v117 = vadd.f32 %v113, 1e-05
  %v118 = vadd.f32 %v114, 1e-05
  %v119 = vrsqrt.pop %v115
  %v120 = vrsqrt.pop %v116
  %v121 = vrsqrt.pop %v117
  %v122 = vrsqrt.pop %v118
  %v123 = vmul.f32 %v83, %v119
  %v124 = vmul.f32 %v84, %v119
  %v125 = vmul.f32 %v85, %v120
  %v126 = vmul.f32 %v86, %v120
  %v127 = vmul.f32 %v87, %v121
  %v128 = vmul.f32 %v88, %v121
  %v129 = vmul.f32 %v89, %v122
  %v130 = vmul.f32 %v90, %v122
  %v132 = vlaneseq
  %v133 = vshrl.u32 %v132, 7
  %v134 = vsub.s32 0, %v133
  %v135 = vrot.slane %v63, %v134
  %v136 = vlaneseq
  %v137 = vshrl.u32 %v136, 7
  %v138 = vsub.s32 1, %v137
  %v139 = vrot.slane %v63, %v138
  %v142 = vmul.f32 %v123, %v135
  %v143 = vmul.f32 %v124, %v139
  %v144 = vmul.f32 %v125, %v135
  %v145 = vmul.f32 %v126, %v139
  %v146 = vmul.f32 %v127, %v135
  %v147 = vmul.f32 %v128, %v139
  %v148 = vmul.f32 %v129, %v135
  %v149 = vmul.f32 %v130, %v139
  %v151 = vlaneseq
  %v152 = vshrl.u32 %v151, 7
  %v153 = vsub.s32 0, %v152
  %v154 = vrot.slane %v65, %v153
  %v155 = vlaneseq
  %v156 = vshrl.u32 %v155, 7
  %v157 = vsub.s32 1, %v156
  %v158 = vrot.slane %v65, %v157
  %v161 = vadd.f32 %v142, %v154
  %v162 = vadd.f32 %v143, %v158
  %v163 = vadd.f32 %v144, %v154
  %v164 = vadd.f32 %v145, %v158
  %v165 = vadd.f32 %v146, %v154
  %v166 = vadd.f32 %v147, %v158
  %v167 = vadd.f32 %v148, %v154
  %v168 = vadd.f32 %v149, %v158
  %v169 = vld [vmem:[%s2] sm:$0xff]
  %v170 = vld [vmem:[%s2 + $0x8] sm:$0xff]
  %v171 = vld [vmem:[%s2 + $0x10] sm:$0xff]
  %v172 = vld [vmem:[%s2 + $0x18] sm:$0xff]
  %v173 = vpack.c.bf16 %v163, %v161
  %v174 = vpack.c.bf16 %v164, %v162
  %v175 = vpack.c.bf16 %v167, %v165
  %v176 = vpack.c.bf16 %v168, %v166
  %v177 = vld [vmem:[%s4] sm:$0xff]
  %v178 = vld [vmem:[%s4 + $0x8] sm:$0xff]
  %v179 = vld [vmem:[%s4 + $0x10] sm:$0xff]
  %v180 = vld [vmem:[%s4 + $0x30] sm:$0xff]
  %v181 = vld [vmem:[%s4 + $0x38] sm:$0xff]
  %v182 = vld [vmem:[%s4 + $0x40] sm:$0xff]
  %v183 = vld [vmem:[%s4 + $0x60] sm:$0xff]
  %v184 = vld [vmem:[%s4 + $0x68] sm:$0xff]
  %v185 = vld [vmem:[%s4 + $0x70] sm:$0xff]
  %v186 = vld [vmem:[%s4 + $0x90] sm:$0xff]
  %v187 = vld [vmem:[%s4 + $0x98] sm:$0xff]
  %v188 = vld [vmem:[%s4 + $0xa0] sm:$0xff]
  %v189 = vld [vmem:[%s4 + $0xc0] sm:$0xff]
  %v190 = vld [vmem:[%s4 + $0xc8] sm:$0xff]
  %v191 = vld [vmem:[%s4 + $0xd0] sm:$0xff]
  %v192 = vld [vmem:[%s4 + $0xf0] sm:$0xff]
  %v193 = vld [vmem:[%s4 + $0xf8] sm:$0xff]
  %v194 = vld [vmem:[%s4 + $0x100] sm:$0xff]
  %v195 = vld [vmem:[%s4 + $0x120] sm:$0xff]
  %v196 = vld [vmem:[%s4 + $0x128] sm:$0xff]
  %v197 = vld [vmem:[%s4 + $0x130] sm:$0xff]
  %v198 = vld [vmem:[%s4 + $0x150] sm:$0xff]
  %v199 = vld [vmem:[%s4 + $0x158] sm:$0xff]
  %v200 = vld [vmem:[%s4 + $0x160] sm:$0xff]
  %v201 = vld [vmem:[%s4 + $0x180] sm:$0xff]
  %v202 = vld [vmem:[%s4 + $0x188] sm:$0xff]
  %v203 = vld [vmem:[%s4 + $0x190] sm:$0xff]
  %v204 = vld [vmem:[%s4 + $0x1b0] sm:$0xff]
  %v205 = vld [vmem:[%s4 + $0x1b8] sm:$0xff]
  %v206 = vld [vmem:[%s4 + $0x1c0] sm:$0xff]
  %v207 = vld [vmem:[%s4 + $0x1e0] sm:$0xff]
  %v208 = vld [vmem:[%s4 + $0x1e8] sm:$0xff]
  %v209 = vld [vmem:[%s4 + $0x1f0] sm:$0xff]
  %v210 = vld [vmem:[%s4 + $0x210] sm:$0xff]
  %v211 = vld [vmem:[%s4 + $0x218] sm:$0xff]
  %v212 = vld [vmem:[%s4 + $0x220] sm:$0xff]
  %v213 = vld [vmem:[%s4 + $0x240] sm:$0xff]
  %v214 = vld [vmem:[%s4 + $0x248] sm:$0xff]
  %v215 = vld [vmem:[%s4 + $0x250] sm:$0xff]
  %v216 = vld [vmem:[%s4 + $0x270] sm:$0xff]
  %v217 = vld [vmem:[%s4 + $0x278] sm:$0xff]
  %v218 = vld [vmem:[%s4 + $0x280] sm:$0xff]
  %v219 = vld [vmem:[%s4 + $0x2a0] sm:$0xff]
  %v220 = vld [vmem:[%s4 + $0x2a8] sm:$0xff]
  %v221 = vld [vmem:[%s4 + $0x2b0] sm:$0xff]
  %v222 = vld [vmem:[%s4 + $0x2d0] sm:$0xff]
  %v223 = vld [vmem:[%s4 + $0x2d8] sm:$0xff]
  %v224 = vld [vmem:[%s4 + $0x2e0] sm:$0xff]
  %v225 = vld [vmem:[%s4 + $0x300] sm:$0xff]
  %v226 = vld [vmem:[%s4 + $0x308] sm:$0xff]
  %v227 = vld [vmem:[%s4 + $0x310] sm:$0xff]
  %v228 = vld [vmem:[%s4 + $0x330] sm:$0xff]
  %v229 = vld [vmem:[%s4 + $0x338] sm:$0xff]
  %v230 = vld [vmem:[%s4 + $0x340] sm:$0xff]
  %v231 = vld [vmem:[%s4 + $0x360] sm:$0xff]
  %v232 = vld [vmem:[%s4 + $0x368] sm:$0xff]
  %v233 = vld [vmem:[%s4 + $0x370] sm:$0xff]
  %v234 = vld [vmem:[%s4 + $0x390] sm:$0xff]
  %v235 = vld [vmem:[%s4 + $0x398] sm:$0xff]
  %v236 = vld [vmem:[%s4 + $0x3a0] sm:$0xff]
  %v237 = vld [vmem:[%s4 + $0x3c0] sm:$0xff]
  %v238 = vld [vmem:[%s4 + $0x3c8] sm:$0xff]
  %v239 = vld [vmem:[%s4 + $0x3d0] sm:$0xff]
  %v240 = vld [vmem:[%s4 + $0x3f0] sm:$0xff]
  %v241 = vld [vmem:[%s4 + $0x3f8] sm:$0xff]
  %v242 = vld [vmem:[%s4 + $0x400] sm:$0xff]
  %v243 = vld [vmem:[%s4 + $0x420] sm:$0xff]
  %v244 = vld [vmem:[%s4 + $0x428] sm:$0xff]
  %v245 = vld [vmem:[%s4 + $0x430] sm:$0xff]
  %v246 = vld [vmem:[%s4 + $0x450] sm:$0xff]
  %v247 = vld [vmem:[%s4 + $0x458] sm:$0xff]
  %v248 = vld [vmem:[%s4 + $0x460] sm:$0xff]
  %v249 = vld [vmem:[%s4 + $0x480] sm:$0xff]
  %v250 = vld [vmem:[%s4 + $0x488] sm:$0xff]
  %v251 = vld [vmem:[%s4 + $0x490] sm:$0xff]
  %v252 = vld [vmem:[%s4 + $0x4b0] sm:$0xff]
  %v253 = vld [vmem:[%s4 + $0x4b8] sm:$0xff]
  %v254 = vld [vmem:[%s4 + $0x4c0] sm:$0xff]
  %v255 = vld [vmem:[%s4 + $0x4e0] sm:$0xff]
  %v256 = vld [vmem:[%s4 + $0x4e8] sm:$0xff]
  %v257 = vld [vmem:[%s4 + $0x4f0] sm:$0xff]
  %v258 = vld [vmem:[%s4 + $0x510] sm:$0xff]
  %v259 = vld [vmem:[%s4 + $0x518] sm:$0xff]
  %v260 = vld [vmem:[%s4 + $0x520] sm:$0xff]
  %v261 = vld [vmem:[%s4 + $0x540] sm:$0xff]
  %v262 = vld [vmem:[%s4 + $0x548] sm:$0xff]
  %v263 = vld [vmem:[%s4 + $0x550] sm:$0xff]
  %v264 = vld [vmem:[%s4 + $0x570] sm:$0xff]
  %v265 = vld [vmem:[%s4 + $0x578] sm:$0xff]
  %v266 = vld [vmem:[%s4 + $0x580] sm:$0xff]
  %v267 = vld [vmem:[%s4 + $0x5a0] sm:$0xff]
  %v268 = vld [vmem:[%s4 + $0x5a8] sm:$0xff]
  %v269 = vld [vmem:[%s4 + $0x5b0] sm:$0xff]
  %v270 = vld [vmem:[%s4 + $0x5d0] sm:$0xff]
  %v271 = vld [vmem:[%s4 + $0x5d8] sm:$0xff]
  %v272 = vld [vmem:[%s4 + $0x5e0] sm:$0xff]
  %v273 = vld [vmem:[%s6] sm:$0x3f]
  %v275 = vlaneseq
  %v276 = vshrl.u32 %v275, 7
  %v277 = vsub.s32 0, %v276
  %v278 = vrot.slane %v273, %v277
  %v279 = vlaneseq
  %v280 = vshrl.u32 %v279, 7
  %v281 = vsub.s32 1, %v280
  %v282 = vrot.slane %v273, %v281
  %v283 = vlaneseq
  %v284 = vshrl.u32 %v283, 7
  %v285 = vsub.s32 2, %v284
  %v286 = vrot.slane %v273, %v285
  %v287 = vlaneseq
  %v288 = vshrl.u32 %v287, 7
  %v289 = vsub.s32 3, %v288
  %v290 = vrot.slane %v273, %v289
  %v291 = vlaneseq
  %v292 = vshrl.u32 %v291, 7
  %v293 = vsub.s32 4, %v292
  %v294 = vrot.slane %v273, %v293
  %v295 = vlaneseq
  %v296 = vshrl.u32 %v295, 7
  %v297 = vsub.s32 5, %v296
  %v298 = vrot.slane %v273, %v297
  %v401 = vunpack.c.l.b16 %v177
  %v402 = vunpack.c.h.b16 %v177
  %v403 = vunpack.c.l.b16 %v178
  %v404 = vunpack.c.h.b16 %v178
  %v405 = vunpack.c.l.b16 %v179
  %v406 = vunpack.c.h.b16 %v179
  %v407 = vunpack.c.l.b16 %v180
  %v408 = vunpack.c.h.b16 %v180
  %v409 = vunpack.c.l.b16 %v181
  %v410 = vunpack.c.h.b16 %v181
  %v411 = vunpack.c.l.b16 %v182
  %v412 = vunpack.c.h.b16 %v182
  %v413 = vunpack.c.l.b16 %v183
  %v414 = vunpack.c.h.b16 %v183
  %v415 = vunpack.c.l.b16 %v184
  %v416 = vunpack.c.h.b16 %v184
  %v417 = vunpack.c.l.b16 %v185
  %v418 = vunpack.c.h.b16 %v185
  %v419 = vunpack.c.l.b16 %v186
  %v420 = vunpack.c.h.b16 %v186
  %v421 = vunpack.c.l.b16 %v187
  %v422 = vunpack.c.h.b16 %v187
  %v423 = vunpack.c.l.b16 %v188
  %v424 = vunpack.c.h.b16 %v188
  %v425 = vunpack.c.l.b16 %v189
  %v426 = vunpack.c.h.b16 %v189
  %v427 = vunpack.c.l.b16 %v190
  %v428 = vunpack.c.h.b16 %v190
  %v429 = vunpack.c.l.b16 %v191
  %v430 = vunpack.c.h.b16 %v191
  %v431 = vunpack.c.l.b16 %v192
  %v432 = vunpack.c.h.b16 %v192
  %v433 = vunpack.c.l.b16 %v193
  %v434 = vunpack.c.h.b16 %v193
  %v435 = vunpack.c.l.b16 %v194
  %v436 = vunpack.c.h.b16 %v194
  %v437 = vunpack.c.l.b16 %v195
  %v438 = vunpack.c.h.b16 %v195
  %v439 = vunpack.c.l.b16 %v196
  %v440 = vunpack.c.h.b16 %v196
  %v441 = vunpack.c.l.b16 %v197
  %v442 = vunpack.c.h.b16 %v197
  %v443 = vunpack.c.l.b16 %v198
  %v444 = vunpack.c.h.b16 %v198
  %v445 = vunpack.c.l.b16 %v199
  %v446 = vunpack.c.h.b16 %v199
  %v447 = vunpack.c.l.b16 %v200
  %v448 = vunpack.c.h.b16 %v200
  %v449 = vunpack.c.l.b16 %v201
  %v450 = vunpack.c.h.b16 %v201
  %v451 = vunpack.c.l.b16 %v202
  %v452 = vunpack.c.h.b16 %v202
  %v453 = vunpack.c.l.b16 %v203
  %v454 = vunpack.c.h.b16 %v203
  %v455 = vunpack.c.l.b16 %v204
  %v456 = vunpack.c.h.b16 %v204
  %v457 = vunpack.c.l.b16 %v205
  %v458 = vunpack.c.h.b16 %v205
  %v459 = vunpack.c.l.b16 %v206
  %v460 = vunpack.c.h.b16 %v206
  %v461 = vunpack.c.l.b16 %v207
  %v462 = vunpack.c.h.b16 %v207
  %v463 = vunpack.c.l.b16 %v208
  %v464 = vunpack.c.h.b16 %v208
  %v465 = vunpack.c.l.b16 %v209
  %v466 = vunpack.c.h.b16 %v209
  %v467 = vunpack.c.l.b16 %v210
  %v468 = vunpack.c.h.b16 %v210
  %v469 = vunpack.c.l.b16 %v211
  %v470 = vunpack.c.h.b16 %v211
  %v471 = vunpack.c.l.b16 %v212
  %v472 = vunpack.c.h.b16 %v212
  %v473 = vunpack.c.l.b16 %v213
  %v474 = vunpack.c.h.b16 %v213
  %v475 = vunpack.c.l.b16 %v214
  %v476 = vunpack.c.h.b16 %v214
  %v477 = vunpack.c.l.b16 %v215
  %v478 = vunpack.c.h.b16 %v215
  %v479 = vunpack.c.l.b16 %v216
  %v480 = vunpack.c.h.b16 %v216
  %v481 = vunpack.c.l.b16 %v217
  %v482 = vunpack.c.h.b16 %v217
  %v483 = vunpack.c.l.b16 %v218
  %v484 = vunpack.c.h.b16 %v218
  %v485 = vunpack.c.l.b16 %v219
  %v486 = vunpack.c.h.b16 %v219
  %v487 = vunpack.c.l.b16 %v220
  %v488 = vunpack.c.h.b16 %v220
  %v489 = vunpack.c.l.b16 %v221
  %v490 = vunpack.c.h.b16 %v221
  %v491 = vunpack.c.l.b16 %v222
  %v492 = vunpack.c.h.b16 %v222
  %v493 = vunpack.c.l.b16 %v223
  %v494 = vunpack.c.h.b16 %v223
  %v495 = vunpack.c.l.b16 %v224
  %v496 = vunpack.c.h.b16 %v224
  %v497 = vunpack.c.l.b16 %v225
  %v498 = vunpack.c.h.b16 %v225
  %v499 = vunpack.c.l.b16 %v226
  %v500 = vunpack.c.h.b16 %v226
  %v501 = vunpack.c.l.b16 %v227
  %v502 = vunpack.c.h.b16 %v227
  %v503 = vunpack.c.l.b16 %v228
  %v504 = vunpack.c.h.b16 %v228
  %v505 = vunpack.c.l.b16 %v229
  %v506 = vunpack.c.h.b16 %v229
  %v507 = vunpack.c.l.b16 %v230
  %v508 = vunpack.c.h.b16 %v230
  %v509 = vunpack.c.l.b16 %v231
  %v510 = vunpack.c.h.b16 %v231
  %v511 = vunpack.c.l.b16 %v232
  %v512 = vunpack.c.h.b16 %v232
  %v513 = vunpack.c.l.b16 %v233
  %v514 = vunpack.c.h.b16 %v233
  %v515 = vunpack.c.l.b16 %v234
  %v516 = vunpack.c.h.b16 %v234
  %v517 = vunpack.c.l.b16 %v235
  %v518 = vunpack.c.h.b16 %v235
  %v519 = vunpack.c.l.b16 %v236
  %v520 = vunpack.c.h.b16 %v236
  %v521 = vunpack.c.l.b16 %v237
  %v522 = vunpack.c.h.b16 %v237
  %v523 = vunpack.c.l.b16 %v238
  %v524 = vunpack.c.h.b16 %v238
  %v525 = vunpack.c.l.b16 %v239
  %v526 = vunpack.c.h.b16 %v239
  %v527 = vunpack.c.l.b16 %v240
  %v528 = vunpack.c.h.b16 %v240
  %v529 = vunpack.c.l.b16 %v241
  %v530 = vunpack.c.h.b16 %v241
  %v531 = vunpack.c.l.b16 %v242
  %v532 = vunpack.c.h.b16 %v242
  %v533 = vunpack.c.l.b16 %v243
  %v534 = vunpack.c.h.b16 %v243
  %v535 = vunpack.c.l.b16 %v244
  %v536 = vunpack.c.h.b16 %v244
  %v537 = vunpack.c.l.b16 %v245
  %v538 = vunpack.c.h.b16 %v245
  %v539 = vunpack.c.l.b16 %v246
  %v540 = vunpack.c.h.b16 %v246
  %v541 = vunpack.c.l.b16 %v247
  %v542 = vunpack.c.h.b16 %v247
  %v543 = vunpack.c.l.b16 %v248
  %v544 = vunpack.c.h.b16 %v248
  %v545 = vunpack.c.l.b16 %v249
  %v546 = vunpack.c.h.b16 %v249
  %v547 = vunpack.c.l.b16 %v250
  %v548 = vunpack.c.h.b16 %v250
  %v549 = vunpack.c.l.b16 %v251
  %v550 = vunpack.c.h.b16 %v251
  %v551 = vunpack.c.l.b16 %v252
  %v552 = vunpack.c.h.b16 %v252
  %v553 = vunpack.c.l.b16 %v253
  %v554 = vunpack.c.h.b16 %v253
  %v555 = vunpack.c.l.b16 %v254
  %v556 = vunpack.c.h.b16 %v254
  %v557 = vunpack.c.l.b16 %v255
  %v558 = vunpack.c.h.b16 %v255
  %v559 = vunpack.c.l.b16 %v256
  %v560 = vunpack.c.h.b16 %v256
  %v561 = vunpack.c.l.b16 %v257
  %v562 = vunpack.c.h.b16 %v257
  %v563 = vunpack.c.l.b16 %v258
  %v564 = vunpack.c.h.b16 %v258
  %v565 = vunpack.c.l.b16 %v259
  %v566 = vunpack.c.h.b16 %v259
  %v567 = vunpack.c.l.b16 %v260
  %v568 = vunpack.c.h.b16 %v260
  %v569 = vunpack.c.l.b16 %v261
  %v570 = vunpack.c.h.b16 %v261
  %v571 = vunpack.c.l.b16 %v262
  %v572 = vunpack.c.h.b16 %v262
  %v573 = vunpack.c.l.b16 %v263
  %v574 = vunpack.c.h.b16 %v263
  %v575 = vunpack.c.l.b16 %v264
  %v576 = vunpack.c.h.b16 %v264
  %v577 = vunpack.c.l.b16 %v265
  %v578 = vunpack.c.h.b16 %v265
  %v579 = vunpack.c.l.b16 %v266
  %v580 = vunpack.c.h.b16 %v266
  %v581 = vunpack.c.l.b16 %v267
  %v582 = vunpack.c.h.b16 %v267
  %v583 = vunpack.c.l.b16 %v268
  %v584 = vunpack.c.h.b16 %v268
  %v585 = vunpack.c.l.b16 %v269
  %v586 = vunpack.c.h.b16 %v269
  %v587 = vunpack.c.l.b16 %v270
  %v588 = vunpack.c.h.b16 %v270
  %v589 = vunpack.c.l.b16 %v271
  %v590 = vunpack.c.h.b16 %v271
  %v591 = vunpack.c.l.b16 %v272
  %v592 = vunpack.c.h.b16 %v272
  %v593 = vpack.c.b16 %v407, %v401
  %v594 = vpack.c.b16 %v408, %v402
  %v595 = vpack.c.b16 %v409, %v403
  %v596 = vpack.c.b16 %v410, %v404
  %v597 = vpack.c.b16 %v411, %v405
  %v598 = vpack.c.b16 %v412, %v406
  %v599 = vpack.c.b16 %v419, %v413
  %v600 = vpack.c.b16 %v420, %v414
  %v601 = vpack.c.b16 %v421, %v415
  %v602 = vpack.c.b16 %v422, %v416
  %v603 = vpack.c.b16 %v423, %v417
  %v604 = vpack.c.b16 %v424, %v418
  %v605 = vpack.c.b16 %v431, %v425
  %v606 = vpack.c.b16 %v432, %v426
  %v607 = vpack.c.b16 %v433, %v427
  %v608 = vpack.c.b16 %v434, %v428
  %v609 = vpack.c.b16 %v435, %v429
  %v610 = vpack.c.b16 %v436, %v430
  %v611 = vpack.c.b16 %v443, %v437
  %v612 = vpack.c.b16 %v444, %v438
  %v613 = vpack.c.b16 %v445, %v439
  %v614 = vpack.c.b16 %v446, %v440
  %v615 = vpack.c.b16 %v447, %v441
  %v616 = vpack.c.b16 %v448, %v442
  %v617 = vpack.c.b16 %v455, %v449
  %v618 = vpack.c.b16 %v456, %v450
  %v619 = vpack.c.b16 %v457, %v451
  %v620 = vpack.c.b16 %v458, %v452
  %v621 = vpack.c.b16 %v459, %v453
  %v622 = vpack.c.b16 %v460, %v454
  %v623 = vpack.c.b16 %v467, %v461
  %v624 = vpack.c.b16 %v468, %v462
  %v625 = vpack.c.b16 %v469, %v463
  %v626 = vpack.c.b16 %v470, %v464
  %v627 = vpack.c.b16 %v471, %v465
  %v628 = vpack.c.b16 %v472, %v466
  %v629 = vpack.c.b16 %v479, %v473
  %v630 = vpack.c.b16 %v480, %v474
  %v631 = vpack.c.b16 %v481, %v475
  %v632 = vpack.c.b16 %v482, %v476
  %v633 = vpack.c.b16 %v483, %v477
  %v634 = vpack.c.b16 %v484, %v478
  %v635 = vpack.c.b16 %v491, %v485
  %v636 = vpack.c.b16 %v492, %v486
  %v637 = vpack.c.b16 %v493, %v487
  %v638 = vpack.c.b16 %v494, %v488
  %v639 = vpack.c.b16 %v495, %v489
  %v640 = vpack.c.b16 %v496, %v490
  %v641 = vpack.c.b16 %v503, %v497
  %v642 = vpack.c.b16 %v504, %v498
  %v643 = vpack.c.b16 %v505, %v499
  %v644 = vpack.c.b16 %v506, %v500
  %v645 = vpack.c.b16 %v507, %v501
  %v646 = vpack.c.b16 %v508, %v502
  %v647 = vpack.c.b16 %v515, %v509
  %v648 = vpack.c.b16 %v516, %v510
  %v649 = vpack.c.b16 %v517, %v511
  %v650 = vpack.c.b16 %v518, %v512
  %v651 = vpack.c.b16 %v519, %v513
  %v652 = vpack.c.b16 %v520, %v514
  %v653 = vpack.c.b16 %v527, %v521
  %v654 = vpack.c.b16 %v528, %v522
  %v655 = vpack.c.b16 %v529, %v523
  %v656 = vpack.c.b16 %v530, %v524
  %v657 = vpack.c.b16 %v531, %v525
  %v658 = vpack.c.b16 %v532, %v526
  %v659 = vpack.c.b16 %v539, %v533
  %v660 = vpack.c.b16 %v540, %v534
  %v661 = vpack.c.b16 %v541, %v535
  %v662 = vpack.c.b16 %v542, %v536
  %v663 = vpack.c.b16 %v543, %v537
  %v664 = vpack.c.b16 %v544, %v538
  %v665 = vpack.c.b16 %v551, %v545
  %v666 = vpack.c.b16 %v552, %v546
  %v667 = vpack.c.b16 %v553, %v547
  %v668 = vpack.c.b16 %v554, %v548
  %v669 = vpack.c.b16 %v555, %v549
  %v670 = vpack.c.b16 %v556, %v550
  %v671 = vpack.c.b16 %v563, %v557
  %v672 = vpack.c.b16 %v564, %v558
  %v673 = vpack.c.b16 %v565, %v559
  %v674 = vpack.c.b16 %v566, %v560
  %v675 = vpack.c.b16 %v567, %v561
  %v676 = vpack.c.b16 %v568, %v562
  %v677 = vpack.c.b16 %v575, %v569
  %v678 = vpack.c.b16 %v576, %v570
  %v679 = vpack.c.b16 %v577, %v571
  %v680 = vpack.c.b16 %v578, %v572
  %v681 = vpack.c.b16 %v579, %v573
  %v682 = vpack.c.b16 %v580, %v574
  %v683 = vpack.c.b16 %v587, %v581
  %v684 = vpack.c.b16 %v588, %v582
  %v685 = vpack.c.b16 %v589, %v583
  %v686 = vpack.c.b16 %v590, %v584
  %v687 = vpack.c.b16 %v591, %v585
  %v688 = vpack.c.b16 %v592, %v586
  %785 = vmatprep.subr.bf16.mxu0 %v594
  %786 = vmatpush1.bf16.msra.mxu0 %v593
  %787 = vmatprep.subr.bf16.mxu0 %v600
  %788 = vmatpush1.bf16.msra.mxu0 %v599
  %789 = vmatprep.subr.bf16.mxu0 %v606
  %790 = vmatpush1.bf16.msra.mxu0 %v605
  %791 = vmatprep.subr.bf16.mxu0 %v612
  %792 = vmatpush1.bf16.msra.mxu0 %v611
  %793 = vmatprep.subr.bf16.mxu0 %v618
  %794 = vmatpush1.bf16.msra.mxu0 %v617
  %795 = vmatprep.subr.bf16.mxu0 %v624
  %796 = vmatpush1.bf16.msra.mxu0 %v623
  %797 = vmatprep.subr.bf16.mxu0 %v630
  %798 = vmatpush1.bf16.msra.mxu0 %v629
  %799 = vmatprep.subr.bf16.mxu0 %v636
  %800 = vmatpush1.bf16.msra.mxu0 %v635
  %801 = vmatprep.subr.bf16.mxu0 %v642
  %802 = vmatpush1.bf16.msra.mxu0 %v641
  %803 = vmatprep.subr.bf16.mxu0 %v648
  %804 = vmatpush1.bf16.msra.mxu0 %v647
  %805 = vmatprep.subr.bf16.mxu0 %v654
  %806 = vmatpush1.bf16.msra.mxu0 %v653
  %807 = vmatprep.subr.bf16.mxu0 %v660
  %808 = vmatpush1.bf16.msra.mxu0 %v659
  %809 = vmatprep.subr.bf16.mxu0 %v666
  %810 = vmatpush1.bf16.msra.mxu0 %v665
  %811 = vmatprep.subr.bf16.mxu0 %v672
  %812 = vmatpush1.bf16.msra.mxu0 %v671
  %813 = vmatprep.subr.bf16.mxu0 %v678
  %814 = vmatpush1.bf16.msra.mxu0 %v677
  %815 = vmatprep.subr.bf16.mxu0 %v684
  %816 = vmatpush1.bf16.msra.mxu0 %v683
  %817 = vmatprep.mubr.bf16.mxu0 %v174
  %818 = vmatmul.mubr.bf16.gmra.mrb[0].mxu0 %v173
  %v819 = vpop.f32.mrb[0].mxu0
  %v820 = vadd.f32 %v278, %v819
  %v821 = vpop.f32.mrb[0].mxu0
  %v822 = vadd.f32 %v282, %v821
  %v823 = vpop.f32.mrb[0].mxu0
  %v824 = vadd.f32 %v278, %v823
  %v825 = vpop.f32.mrb[0].mxu0
  %v826 = vadd.f32 %v282, %v825
  %827 = vmatprep.mubr.bf16.mxu0 %v176
  %828 = vmatmul.mubr.bf16.gmra.mrb[0].mxu0 %v175
  %v829 = vpop.f32.mrb[0].mxu0
  %v830 = vadd.f32 %v278, %v829
  %v831 = vpop.f32.mrb[0].mxu0
  %v832 = vadd.f32 %v282, %v831
  %v833 = vpop.f32.mrb[0].mxu0
  %v834 = vadd.f32 %v278, %v833
  %v835 = vpop.f32.mrb[0].mxu0
  %v836 = vadd.f32 %v282, %v835
  %837 = vdwg.mxu0
  %838 = vmatprep.subr.bf16.mxu0 %v596
  %839 = vmatpush1.bf16.msra.mxu0 %v595
  %840 = vmatprep.subr.bf16.mxu0 %v602
  %841 = vmatpush1.bf16.msra.mxu0 %v601
  %842 = vmatprep.subr.bf16.mxu0 %v608
  %843 = vmatpush1.bf16.msra.mxu0 %v607
  %844 = vmatprep.subr.bf16.mxu0 %v614
  %845 = vmatpush1.bf16.msra.mxu0 %v613
  %846 = vmatprep.subr.bf16.mxu0 %v620
  %847 = vmatpush1.bf16.msra.mxu0 %v619
  %848 = vmatprep.subr.bf16.mxu0 %v626
  %849 = vmatpush1.bf16.msra.mxu0 %v625
  %850 = vmatprep.subr.bf16.mxu0 %v632
  %851 = vmatpush1.bf16.msra.mxu0 %v631
  %852 = vmatprep.subr.bf16.mxu0 %v638
  %853 = vmatpush1.bf16.msra.mxu0 %v637
  %854 = vmatprep.subr.bf16.mxu0 %v644
  %855 = vmatpush1.bf16.msra.mxu0 %v643
  %856 = vmatprep.subr.bf16.mxu0 %v650
  %857 = vmatpush1.bf16.msra.mxu0 %v649
  %858 = vmatprep.subr.bf16.mxu0 %v656
  %859 = vmatpush1.bf16.msra.mxu0 %v655
  %860 = vmatprep.subr.bf16.mxu0 %v662
  %861 = vmatpush1.bf16.msra.mxu0 %v661
  %862 = vmatprep.subr.bf16.mxu0 %v668
  %863 = vmatpush1.bf16.msra.mxu0 %v667
  %864 = vmatprep.subr.bf16.mxu0 %v674
  %865 = vmatpush1.bf16.msra.mxu0 %v673
  %866 = vmatprep.subr.bf16.mxu0 %v680
  %867 = vmatpush1.bf16.msra.mxu0 %v679
  %868 = vmatprep.subr.bf16.mxu0 %v686
  %869 = vmatpush1.bf16.msra.mxu0 %v685
  %870 = vmatprep.mubr.bf16.mxu0 %v174
  %871 = vmatmul.mubr.bf16.gmra.mrb[0].mxu0 %v173
  %v872 = vpop.f32.mrb[0].mxu0
  %v873 = vadd.f32 %v286, %v872
  %v874 = vpop.f32.mrb[0].mxu0
  %v875 = vadd.f32 %v290, %v874
  %v876 = vpop.f32.mrb[0].mxu0
  %v877 = vadd.f32 %v286, %v876
  %v878 = vpop.f32.mrb[0].mxu0
  %v879 = vadd.f32 %v290, %v878
  %880 = vmatprep.mubr.bf16.mxu0 %v176
  %881 = vmatmul.mubr.bf16.gmra.mrb[0].mxu0 %v175
  %v882 = vpop.f32.mrb[0].mxu0
  %v883 = vadd.f32 %v286, %v882
  %v884 = vpop.f32.mrb[0].mxu0
  %v885 = vadd.f32 %v290, %v884
  %v886 = vpop.f32.mrb[0].mxu0
  %v887 = vadd.f32 %v286, %v886
  %v888 = vpop.f32.mrb[0].mxu0
  %v889 = vadd.f32 %v290, %v888
  %890 = vdwg.mxu0
  %891 = vmatprep.subr.bf16.mxu0 %v598
  %892 = vmatpush1.bf16.msra.mxu0 %v597
  %893 = vmatprep.subr.bf16.mxu0 %v604
  %894 = vmatpush1.bf16.msra.mxu0 %v603
  %895 = vmatprep.subr.bf16.mxu0 %v610
  %896 = vmatpush1.bf16.msra.mxu0 %v609
  %897 = vmatprep.subr.bf16.mxu0 %v616
  %898 = vmatpush1.bf16.msra.mxu0 %v615
  %899 = vmatprep.subr.bf16.mxu0 %v622
  %900 = vmatpush1.bf16.msra.mxu0 %v621
  %901 = vmatprep.subr.bf16.mxu0 %v628
  %902 = vmatpush1.bf16.msra.mxu0 %v627
  %903 = vmatprep.subr.bf16.mxu0 %v634
  %904 = vmatpush1.bf16.msra.mxu0 %v633
  %905 = vmatprep.subr.bf16.mxu0 %v640
  %906 = vmatpush1.bf16.msra.mxu0 %v639
  %907 = vmatprep.subr.bf16.mxu0 %v646
  %908 = vmatpush1.bf16.msra.mxu0 %v645
  %909 = vmatprep.subr.bf16.mxu0 %v652
  %910 = vmatpush1.bf16.msra.mxu0 %v651
  %911 = vmatprep.subr.bf16.mxu0 %v658
  %912 = vmatpush1.bf16.msra.mxu0 %v657
  %913 = vmatprep.subr.bf16.mxu0 %v664
  %914 = vmatpush1.bf16.msra.mxu0 %v663
  %915 = vmatprep.subr.bf16.mxu0 %v670
  %916 = vmatpush1.bf16.msra.mxu0 %v669
  %917 = vmatprep.subr.bf16.mxu0 %v676
  %918 = vmatpush1.bf16.msra.mxu0 %v675
  %919 = vmatprep.subr.bf16.mxu0 %v682
  %920 = vmatpush1.bf16.msra.mxu0 %v681
  %921 = vmatprep.subr.bf16.mxu0 %v688
  %922 = vmatpush1.bf16.msra.mxu0 %v687
  %923 = vmatprep.mubr.bf16.mxu0 %v174
  %924 = vmatmul.mubr.bf16.gmra.mrb[0].mxu0 %v173
  %v925 = vpop.f32.mrb[0].mxu0
  %v926 = vadd.f32 %v294, %v925
  %v927 = vpop.f32.mrb[0].mxu0
  %v928 = vadd.f32 %v298, %v927
  %v929 = vpop.f32.mrb[0].mxu0
  %v930 = vadd.f32 %v294, %v929
  %v931 = vpop.f32.mrb[0].mxu0
  %v932 = vadd.f32 %v298, %v931
  %933 = vmatprep.mubr.bf16.mxu0 %v176
  %934 = vmatmul.mubr.bf16.gmra.mrb[0].mxu0 %v175
  %v935 = vpop.f32.mrb[0].mxu0
  %v936 = vadd.f32 %v294, %v935
  %v937 = vpop.f32.mrb[0].mxu0
  %v938 = vadd.f32 %v298, %v937
  %v939 = vpop.f32.mrb[0].mxu0
  %v940 = vadd.f32 %v294, %v939
  %v941 = vpop.f32.mrb[0].mxu0
  %v942 = vadd.f32 %v298, %v941
  %943 = vdwg.mxu0
  %v944 = vpack.c.bf16 %v824, %v820
  %v945 = vpack.c.bf16 %v826, %v822
  %v946 = vpack.c.bf16 %v877, %v873
  %v947 = vpack.c.bf16 %v879, %v875
  %v948 = vpack.c.bf16 %v930, %v926
  %v949 = vpack.c.bf16 %v932, %v928
  %v950 = vpack.c.bf16 %v834, %v830
  %v951 = vpack.c.bf16 %v836, %v832
  %v952 = vpack.c.bf16 %v887, %v883
  %v953 = vpack.c.bf16 %v889, %v885
  %v954 = vpack.c.bf16 %v940, %v936
  %v955 = vpack.c.bf16 %v942, %v938
  %956 = vmatprep.subr.bf16.mxu0 0
  %957 = vmatpush1.bf16.xpose.msra.mxu0 %v946
  %958 = vmatprep.subr.bf16.mxu0 0
  %959 = vmatpush1.bf16.xpose.msra.mxu0 %v952
  %960 = vmatprep.subr.bf16.mxu0 0
  %961 = vmatpush1.bf16.xpose.msra.mxu0 0
  %962 = vmatprep.subr.bf16.mxu0 0
  %963 = vmatpush1.bf16.xpose.msra.mxu0 0
  %964 = vmatprep.subr.bf16.mxu0 0
  %965 = vmatpush1.bf16.xpose.msra.mxu0 0
  %966 = vmatprep.subr.bf16.mxu0 0
  %967 = vmatpush1.bf16.xpose.msra.mxu0 0
  %968 = vmatprep.subr.bf16.mxu0 0
  %969 = vmatpush1.bf16.xpose.msra.mxu0 0
  %970 = vmatprep.subr.bf16.mxu0 0
  %971 = vmatpush1.bf16.xpose.msra.mxu0 0
  %972 = vmatprep.subr.bf16.mxu0 0
  %973 = vmatpush1.bf16.xpose.msra.mxu0 0
  %974 = vmatprep.subr.bf16.mxu0 0
  %975 = vmatpush1.bf16.xpose.msra.mxu0 0
  %976 = vmatprep.subr.bf16.mxu0 0
  %977 = vmatpush1.bf16.xpose.msra.mxu0 0
  %978 = vmatprep.subr.bf16.mxu0 0
  %979 = vmatpush1.bf16.xpose.msra.mxu0 0
  %980 = vmatprep.subr.bf16.mxu0 0
  %981 = vmatpush1.bf16.xpose.msra.mxu0 0
  %982 = vmatprep.subr.bf16.mxu0 0
  %983 = vmatpush1.bf16.xpose.msra.mxu0 0
  %984 = vmatprep.subr.bf16.mxu0 0
  %985 = vmatpush1.bf16.xpose.msra.mxu0 0
  %986 = vmatprep.subr.bf16.mxu0 0
  %987 = vmatpush1.bf16.xpose.msra.mxu0 0
  %988 = vmatprep.mubr.bf16.mxu0 0
  %989 = vmatmul.mubr.bf16.gmra.mrb[0].mxu0 %v944
  %v990 = vpop.f32.mrb[0].mxu0
  %v991 = vadd.f32 %v169, %v990
  %v992 = vpop.f32.mrb[0].mxu0
  %v993 = vpop.f32.mrb[0].mxu0
  %v994 = vadd.f32 %v170, %v993
  %v995 = vpop.f32.mrb[0].mxu0
  %996 = vmatprep.mubr.bf16.mxu0 0
  %997 = vmatmul.mubr.bf16.gmra.mrb[0].mxu0 %v950
  %v998 = vpop.f32.mrb[0].mxu0
  %v999 = vadd.f32 %v171, %v998
  %v1000 = vpop.f32.mrb[0].mxu0
  %v1001 = vpop.f32.mrb[0].mxu0
  %v1002 = vadd.f32 %v172, %v1001
  %v1003 = vpop.f32.mrb[0].mxu0
  %1004 = vdwg.mxu0
  %vm1005 = vcmask 261120
  %v1006 = vsel %vm1005, %v991, -inf
  %1007 = vmax.xlane.f32.xlu0 %v1006
  %v1008 = vpop.xlane.xlu0 %1007
  %v1009 = vsel %vm1005, %v994, -inf
  %1010 = vmax.xlane.f32.xlu0 %v1009
  %v1011 = vpop.xlane.xlu0 %1010
  %v1012 = vsel %vm1005, %v999, -inf
  %1013 = vmax.xlane.f32.xlu0 %v1012
  %v1014 = vpop.xlane.xlu0 %1013
  %v1015 = vsel %vm1005, %v1002, -inf
  %1016 = vmax.xlane.f32.xlu0 %v1015
  %v1017 = vpop.xlane.xlu0 %1016
  %v1018 = vsub.f32 %v991, %v1008
  %v1019 = vsub.f32 %v994, %v1011
  %v1020 = vsub.f32 %v999, %v1014
  %v1021 = vsub.f32 %v1002, %v1017
  %v1022 = vmul.f32 %v1018, 1.442695
  %v1023 = vpow.pop %v1022
  %v1024 = vmul.f32 %v1019, 1.442695
  %v1025 = vpow.pop %v1024
  %v1026 = vmul.f32 %v1020, 1.442695
  %v1027 = vpow.pop %v1026
  %v1028 = vmul.f32 %v1021, 1.442695
  %v1029 = vpow.pop %v1028
  %v1030 = vsel %vm1005, %v1023, 0.0
  %1031 = vadd.xlane.f32.xlu0 %v1030
  %v1032 = vpop.xlane.xlu0 %1031
  %v1033 = vsel %vm1005, %v1025, 0.0
  %1034 = vadd.xlane.f32.xlu0 %v1033
  %v1035 = vpop.xlane.xlu0 %1034
  %v1036 = vsel %vm1005, %v1027, 0.0
  %1037 = vadd.xlane.f32.xlu0 %v1036
  %v1038 = vpop.xlane.xlu0 %1037
  %v1039 = vsel %vm1005, %v1029, 0.0
  %1040 = vadd.xlane.f32.xlu0 %v1039
  %v1041 = vpop.xlane.xlu0 %1040
  %v1042 = vrcp.pop %v1032
  %v1043 = vrcp.pop %v1035
  %v1044 = vrcp.pop %v1038
  %v1045 = vrcp.pop %v1041
  %v1046 = vmul.f32 %v1023, %v1042
  %v1047 = vmul.f32 %v1025, %v1043
  %v1048 = vmul.f32 %v1027, %v1044
  %v1049 = vmul.f32 %v1029, %v1045
  %v1050 = vpack.c.bf16 %v1047, %v1046
  %v1051 = vpack.c.bf16 %v1049, %v1048
  %v1053 = vsel %vm1005, %v1050, 0
  %v1056 = vsel %vm1005, %v1051, 0
  %1058 = vmatprep.subr.bf16.mxu0 0
  %1059 = vmatpush1.bf16.msra.mxu0 %v948
  %1060 = vmatprep.subr.bf16.mxu0 0
  %1061 = vmatpush1.bf16.msra.mxu0 %v954
  %1062 = vmatprep.subr.bf16.mxu0 0
  %1063 = vmatpush1.bf16.msra.mxu0 0
  %1064 = vmatprep.subr.bf16.mxu0 0
  %1065 = vmatpush1.bf16.msra.mxu0 0
  %1066 = vmatprep.subr.bf16.mxu0 0
  %1067 = vmatpush1.bf16.msra.mxu0 0
  %1068 = vmatprep.subr.bf16.mxu0 0
  %1069 = vmatpush1.bf16.msra.mxu0 0
  %1070 = vmatprep.subr.bf16.mxu0 0
  %1071 = vmatpush1.bf16.msra.mxu0 0
  %1072 = vmatprep.subr.bf16.mxu0 0
  %1073 = vmatpush1.bf16.msra.mxu0 0
  %1074 = vmatprep.subr.bf16.mxu0 0
  %1075 = vmatpush1.bf16.msra.mxu0 0
  %1076 = vmatprep.subr.bf16.mxu0 0
  %1077 = vmatpush1.bf16.msra.mxu0 0
  %1078 = vmatprep.subr.bf16.mxu0 0
  %1079 = vmatpush1.bf16.msra.mxu0 0
  %1080 = vmatprep.subr.bf16.mxu0 0
  %1081 = vmatpush1.bf16.msra.mxu0 0
  %1082 = vmatprep.subr.bf16.mxu0 0
  %1083 = vmatpush1.bf16.msra.mxu0 0
  %1084 = vmatprep.subr.bf16.mxu0 0
  %1085 = vmatpush1.bf16.msra.mxu0 0
  %1086 = vmatprep.subr.bf16.mxu0 0
  %1087 = vmatpush1.bf16.msra.mxu0 0
  %1088 = vmatprep.subr.bf16.mxu0 0
  %1089 = vmatpush1.bf16.msra.mxu0 0
  %1090 = vmatprep.mubr.bf16.mxu0 0
  %1091 = vmatmul.mubr.bf16.gmra.mrb[0].mxu0 %v1053
  %v1092 = vpop.f32.mrb[0].mxu0
  %v1093 = vadd.f32 0.0, %v1092
  %v1094 = vpop.f32.mrb[0].mxu0
  %v1095 = vpop.f32.mrb[0].mxu0
  %v1096 = vadd.f32 0.0, %v1095
  %v1097 = vpop.f32.mrb[0].mxu0
  %1098 = vmatprep.mubr.bf16.mxu0 0
  %1099 = vmatmul.mubr.bf16.gmra.mrb[0].mxu0 %v1056
  %v1100 = vpop.f32.mrb[0].mxu0
  %v1101 = vadd.f32 0.0, %v1100
  %v1102 = vpop.f32.mrb[0].mxu0
  %v1103 = vpop.f32.mrb[0].mxu0
  %v1104 = vadd.f32 0.0, %v1103
  %v1105 = vpop.f32.mrb[0].mxu0
  %1106 = vdwg.mxu0
  %1107 = vst [vmem:[#allocation2] sm:$0xff] %v1093
  %1108 = vst [vmem:[#allocation2 + $0x10] sm:$0xff] %v1096
  %1109 = vst [vmem:[#allocation2 + $0x20] sm:$0xff] %v1101
  %1110 = vst [vmem:[#allocation2 + $0x30] sm:$0xff] %v1104
  %1111 = vmatprep.subr.bf16.mxu0 0
  %1112 = vmatpush1.bf16.xpose.msra.mxu0 %v947
  %1113 = vmatprep.subr.bf16.mxu0 0
  %1114 = vmatpush1.bf16.xpose.msra.mxu0 %v953
  %1115 = vmatprep.subr.bf16.mxu0 0
  %1116 = vmatpush1.bf16.xpose.msra.mxu0 0
  %1117 = vmatprep.subr.bf16.mxu0 0
  %1118 = vmatpush1.bf16.xpose.msra.mxu0 0
  %1119 = vmatprep.subr.bf16.mxu0 0
  %1120 = vmatpush1.bf16.xpose.msra.mxu0 0
  %1121 = vmatprep.subr.bf16.mxu0 0
  %1122 = vmatpush1.bf16.xpose.msra.mxu0 0
  %1123 = vmatprep.subr.bf16.mxu0 0
  %1124 = vmatpush1.bf16.xpose.msra.mxu0 0
  %1125 = vmatprep.subr.bf16.mxu0 0
  %1126 = vmatpush1.bf16.xpose.msra.mxu0 0
  %1127 = vmatprep.subr.bf16.mxu0 0
  %1128 = vmatpush1.bf16.xpose.msra.mxu0 0
  %1129 = vmatprep.subr.bf16.mxu0 0
  %1130 = vmatpush1.bf16.xpose.msra.mxu0 0
  %1131 = vmatprep.subr.bf16.mxu0 0
  %1132 = vmatpush1.bf16.xpose.msra.mxu0 0
  %1133 = vmatprep.subr.bf16.mxu0 0
  %1134 = vmatpush1.bf16.xpose.msra.mxu0 0
  %1135 = vmatprep.subr.bf16.mxu0 0
  %1136 = vmatpush1.bf16.xpose.msra.mxu0 0
  %1137 = vmatprep.subr.bf16.mxu0 0
  %1138 = vmatpush1.bf16.xpose.msra.mxu0 0
  %1139 = vmatprep.subr.bf16.mxu0 0
  %1140 = vmatpush1.bf16.xpose.msra.mxu0 0
  %1141 = vmatprep.subr.bf16.mxu0 0
  %1142 = vmatpush1.bf16.xpose.msra.mxu0 0
  %1143 = vmatprep.mubr.bf16.mxu0 0
  %1144 = vmatmul.mubr.bf16.gmra.mrb[0].mxu0 %v945
  %v1145 = vpop.f32.mrb[0].mxu0
  %v1146 = vadd.f32 %v169, %v1145
  %v1147 = vpop.f32.mrb[0].mxu0
  %v1148 = vpop.f32.mrb[0].mxu0
  %v1149 = vadd.f32 %v170, %v1148
  %v1150 = vpop.f32.mrb[0].mxu0
  %1151 = vmatprep.mubr.bf16.mxu0 0
  %1152 = vmatmul.mubr.bf16.gmra.mrb[0].mxu0 %v951
  %v1153 = vpop.f32.mrb[0].mxu0
  %v1154 = vadd.f32 %v171, %v1153
  %v1155 = vpop.f32.mrb[0].mxu0
  %v1156 = vpop.f32.mrb[0].mxu0
  %v1157 = vadd.f32 %v172, %v1156
  %v1158 = vpop.f32.mrb[0].mxu0
  %1159 = vdwg.mxu0
  %v1160 = vsel %vm1005, %v1146, -inf
  %1161 = vmax.xlane.f32.xlu0 %v1160
  %v1162 = vpop.xlane.xlu0 %1161
  %v1163 = vsel %vm1005, %v1149, -inf
  %1164 = vmax.xlane.f32.xlu0 %v1163
  %v1165 = vpop.xlane.xlu0 %1164
  %v1166 = vsel %vm1005, %v1154, -inf
  %1167 = vmax.xlane.f32.xlu0 %v1166
  %v1168 = vpop.xlane.xlu0 %1167
  %v1169 = vsel %vm1005, %v1157, -inf
  %1170 = vmax.xlane.f32.xlu0 %v1169
  %v1171 = vpop.xlane.xlu0 %1170
  %v1172 = vsub.f32 %v1146, %v1162
  %v1173 = vsub.f32 %v1149, %v1165
  %v1174 = vsub.f32 %v1154, %v1168
  %v1175 = vsub.f32 %v1157, %v1171
  %v1176 = vmul.f32 %v1172, 1.442695
  %v1177 = vpow.pop %v1176
  %v1178 = vmul.f32 %v1173, 1.442695
  %v1179 = vpow.pop %v1178
  %v1180 = vmul.f32 %v1174, 1.442695
  %v1181 = vpow.pop %v1180
  %v1182 = vmul.f32 %v1175, 1.442695
  %v1183 = vpow.pop %v1182
  %v1184 = vsel %vm1005, %v1177, 0.0
  %1185 = vadd.xlane.f32.xlu0 %v1184
  %v1186 = vpop.xlane.xlu0 %1185
  %v1187 = vsel %vm1005, %v1179, 0.0
  %1188 = vadd.xlane.f32.xlu0 %v1187
  %v1189 = vpop.xlane.xlu0 %1188
  %v1190 = vsel %vm1005, %v1181, 0.0
  %1191 = vadd.xlane.f32.xlu0 %v1190
  %v1192 = vpop.xlane.xlu0 %1191
  %v1193 = vsel %vm1005, %v1183, 0.0
  %1194 = vadd.xlane.f32.xlu0 %v1193
  %v1195 = vpop.xlane.xlu0 %1194
  %v1196 = vrcp.pop %v1186
  %v1197 = vrcp.pop %v1189
  %v1198 = vrcp.pop %v1192
  %v1199 = vrcp.pop %v1195
  %v1200 = vmul.f32 %v1177, %v1196
  %v1201 = vmul.f32 %v1179, %v1197
  %v1202 = vmul.f32 %v1181, %v1198
  %v1203 = vmul.f32 %v1183, %v1199
  %v1204 = vpack.c.bf16 %v1201, %v1200
  %v1205 = vpack.c.bf16 %v1203, %v1202
  %v1207 = vsel %vm1005, %v1204, 0
  %v1210 = vsel %vm1005, %v1205, 0
  %1212 = vmatprep.subr.bf16.mxu0 0
  %1213 = vmatpush1.bf16.msra.mxu0 %v949
  %1214 = vmatprep.subr.bf16.mxu0 0
  %1215 = vmatpush1.bf16.msra.mxu0 %v955
  %1216 = vmatprep.subr.bf16.mxu0 0
  %1217 = vmatpush1.bf16.msra.mxu0 0
  %1218 = vmatprep.subr.bf16.mxu0 0
  %1219 = vmatpush1.bf16.msra.mxu0 0
  %1220 = vmatprep.subr.bf16.mxu0 0
  %1221 = vmatpush1.bf16.msra.mxu0 0
  %1222 = vmatprep.subr.bf16.mxu0 0
  %1223 = vmatpush1.bf16.msra.mxu0 0
  %1224 = vmatprep.subr.bf16.mxu0 0
  %1225 = vmatpush1.bf16.msra.mxu0 0
  %1226 = vmatprep.subr.bf16.mxu0 0
  %1227 = vmatpush1.bf16.msra.mxu0 0
  %1228 = vmatprep.subr.bf16.mxu0 0
  %1229 = vmatpush1.bf16.msra.mxu0 0
  %1230 = vmatprep.subr.bf16.mxu0 0
  %1231 = vmatpush1.bf16.msra.mxu0 0
  %1232 = vmatprep.subr.bf16.mxu0 0
  %1233 = vmatpush1.bf16.msra.mxu0 0
  %1234 = vmatprep.subr.bf16.mxu0 0
  %1235 = vmatpush1.bf16.msra.mxu0 0
  %1236 = vmatprep.subr.bf16.mxu0 0
  %1237 = vmatpush1.bf16.msra.mxu0 0
  %1238 = vmatprep.subr.bf16.mxu0 0
  %1239 = vmatpush1.bf16.msra.mxu0 0
  %1240 = vmatprep.subr.bf16.mxu0 0
  %1241 = vmatpush1.bf16.msra.mxu0 0
  %1242 = vmatprep.subr.bf16.mxu0 0
  %1243 = vmatpush1.bf16.msra.mxu0 0
  %1244 = vmatprep.mubr.bf16.mxu0 0
  %1245 = vmatmul.mubr.bf16.gmra.mrb[0].mxu0 %v1207
  %v1246 = vpop.f32.mrb[0].mxu0
  %v1247 = vadd.f32 0.0, %v1246
  %v1248 = vpop.f32.mrb[0].mxu0
  %v1249 = vpop.f32.mrb[0].mxu0
  %v1250 = vadd.f32 0.0, %v1249
  %v1251 = vpop.f32.mrb[0].mxu0
  %1252 = vmatprep.mubr.bf16.mxu0 0
  %1253 = vmatmul.mubr.bf16.gmra.mrb[0].mxu0 %v1210
  %v1254 = vpop.f32.mrb[0].mxu0
  %v1255 = vadd.f32 0.0, %v1254
  %v1256 = vpop.f32.mrb[0].mxu0
  %v1257 = vpop.f32.mrb[0].mxu0
  %v1258 = vadd.f32 0.0, %v1257
  %v1259 = vpop.f32.mrb[0].mxu0
  %1260 = vdwg.mxu0
  %1261 = vst [vmem:[#allocation2 + $0x8] sm:$0xff] %v1247
  %1262 = vst [vmem:[#allocation2 + $0x18] sm:$0xff] %v1250
  %1263 = vst [vmem:[#allocation2 + $0x28] sm:$0xff] %v1255
  %1264 = vst [vmem:[#allocation2 + $0x38] sm:$0xff] %v1258
  %v1265 = vld [vmem:[#allocation2] sm:$0xff]
  %v1266 = vld [vmem:[#allocation2 + $0x8] sm:$0xff]
  %v1267 = vld [vmem:[#allocation2 + $0x10] sm:$0xff]
  %v1268 = vld [vmem:[#allocation2 + $0x18] sm:$0xff]
  %v1269 = vld [vmem:[#allocation2 + $0x20] sm:$0xff]
  %v1270 = vld [vmem:[#allocation2 + $0x28] sm:$0xff]
  %v1271 = vld [vmem:[#allocation2 + $0x30] sm:$0xff]
  %v1272 = vld [vmem:[#allocation2 + $0x38] sm:$0xff]
  %v1273 = vpack.c.bf16 %v1267, %v1265
  %v1274 = vpack.c.bf16 %v1268, %v1266
  %v1275 = vpack.c.bf16 %v1271, %v1269
  %v1276 = vpack.c.bf16 %v1272, %v1270
  %v1277 = vld [vmem:[%s4 + $0x18] sm:$0xff]
  %v1278 = vld [vmem:[%s4 + $0x48] sm:$0xff]
  %v1279 = vld [vmem:[%s4 + $0x78] sm:$0xff]
  %v1280 = vld [vmem:[%s4 + $0xa8] sm:$0xff]
  %v1281 = vld [vmem:[%s4 + $0xd8] sm:$0xff]
  %v1282 = vld [vmem:[%s4 + $0x108] sm:$0xff]
  %v1283 = vld [vmem:[%s4 + $0x138] sm:$0xff]
  %v1284 = vld [vmem:[%s4 + $0x168] sm:$0xff]
  %v1285 = vld [vmem:[%s4 + $0x198] sm:$0xff]
  %v1286 = vld [vmem:[%s4 + $0x1c8] sm:$0xff]
  %v1287 = vld [vmem:[%s4 + $0x1f8] sm:$0xff]
  %v1288 = vld [vmem:[%s4 + $0x228] sm:$0xff]
  %v1289 = vld [vmem:[%s4 + $0x258] sm:$0xff]
  %v1290 = vld [vmem:[%s4 + $0x288] sm:$0xff]
  %v1291 = vld [vmem:[%s4 + $0x2b8] sm:$0xff]
  %v1292 = vld [vmem:[%s4 + $0x2e8] sm:$0xff]
  %v1293 = vld [vmem:[%s4 + $0x318] sm:$0xff]
  %v1294 = vld [vmem:[%s4 + $0x348] sm:$0xff]
  %v1295 = vld [vmem:[%s4 + $0x378] sm:$0xff]
  %v1296 = vld [vmem:[%s4 + $0x3a8] sm:$0xff]
  %v1297 = vld [vmem:[%s4 + $0x3d8] sm:$0xff]
  %v1298 = vld [vmem:[%s4 + $0x408] sm:$0xff]
  %v1299 = vld [vmem:[%s4 + $0x438] sm:$0xff]
  %v1300 = vld [vmem:[%s4 + $0x468] sm:$0xff]
  %v1301 = vld [vmem:[%s4 + $0x498] sm:$0xff]
  %v1302 = vld [vmem:[%s4 + $0x4c8] sm:$0xff]
  %v1303 = vld [vmem:[%s4 + $0x4f8] sm:$0xff]
  %v1304 = vld [vmem:[%s4 + $0x528] sm:$0xff]
  %v1305 = vld [vmem:[%s4 + $0x558] sm:$0xff]
  %v1306 = vld [vmem:[%s4 + $0x588] sm:$0xff]
  %v1307 = vld [vmem:[%s4 + $0x5b8] sm:$0xff]
  %v1308 = vld [vmem:[%s4 + $0x5e8] sm:$0xff]
  %v1309 = vld [vmem:[%s6 + $0x6] sm:$0x3]
  %v1311 = vlaneseq
  %v1312 = vshrl.u32 %v1311, 7
  %v1313 = vsub.s32 0, %v1312
  %v1314 = vrot.slane %v1309, %v1313
  %v1315 = vlaneseq
  %v1316 = vshrl.u32 %v1315, 7
  %v1317 = vsub.s32 1, %v1316
  %v1318 = vrot.slane %v1309, %v1317
  %v1353 = vunpack.c.l.b16 %v1277
  %v1354 = vunpack.c.h.b16 %v1277
  %v1355 = vunpack.c.l.b16 %v1278
  %v1356 = vunpack.c.h.b16 %v1278
  %v1357 = vunpack.c.l.b16 %v1279
  %v1358 = vunpack.c.h.b16 %v1279
  %v1359 = vunpack.c.l.b16 %v1280
  %v1360 = vunpack.c.h.b16 %v1280
  %v1361 = vunpack.c.l.b16 %v1281
  %v1362 = vunpack.c.h.b16 %v1281
  %v1363 = vunpack.c.l.b16 %v1282
  %v1364 = vunpack.c.h.b16 %v1282
  %v1365 = vunpack.c.l.b16 %v1283
  %v1366 = vunpack.c.h.b16 %v1283
  %v1367 = vunpack.c.l.b16 %v1284
  %v1368 = vunpack.c.h.b16 %v1284
  %v1369 = vunpack.c.l.b16 %v1285
  %v1370 = vunpack.c.h.b16 %v1285
  %v1371 = vunpack.c.l.b16 %v1286
  %v1372 = vunpack.c.h.b16 %v1286
  %v1373 = vunpack.c.l.b16 %v1287
  %v1374 = vunpack.c.h.b16 %v1287
  %v1375 = vunpack.c.l.b16 %v1288
  %v1376 = vunpack.c.h.b16 %v1288
  %v1377 = vunpack.c.l.b16 %v1289
  %v1378 = vunpack.c.h.b16 %v1289
  %v1379 = vunpack.c.l.b16 %v1290
  %v1380 = vunpack.c.h.b16 %v1290
  %v1381 = vunpack.c.l.b16 %v1291
  %v1382 = vunpack.c.h.b16 %v1291
  %v1383 = vunpack.c.l.b16 %v1292
  %v1384 = vunpack.c.h.b16 %v1292
  %v1385 = vunpack.c.l.b16 %v1293
  %v1386 = vunpack.c.h.b16 %v1293
  %v1387 = vunpack.c.l.b16 %v1294
  %v1388 = vunpack.c.h.b16 %v1294
  %v1389 = vunpack.c.l.b16 %v1295
  %v1390 = vunpack.c.h.b16 %v1295
  %v1391 = vunpack.c.l.b16 %v1296
  %v1392 = vunpack.c.h.b16 %v1296
  %v1393 = vunpack.c.l.b16 %v1297
  %v1394 = vunpack.c.h.b16 %v1297
  %v1395 = vunpack.c.l.b16 %v1298
  %v1396 = vunpack.c.h.b16 %v1298
  %v1397 = vunpack.c.l.b16 %v1299
  %v1398 = vunpack.c.h.b16 %v1299
  %v1399 = vunpack.c.l.b16 %v1300
  %v1400 = vunpack.c.h.b16 %v1300
  %v1401 = vunpack.c.l.b16 %v1301
  %v1402 = vunpack.c.h.b16 %v1301
  %v1403 = vunpack.c.l.b16 %v1302
  %v1404 = vunpack.c.h.b16 %v1302
  %v1405 = vunpack.c.l.b16 %v1303
  %v1406 = vunpack.c.h.b16 %v1303
  %v1407 = vunpack.c.l.b16 %v1304
  %v1408 = vunpack.c.h.b16 %v1304
  %v1409 = vunpack.c.l.b16 %v1305
  %v1410 = vunpack.c.h.b16 %v1305
  %v1411 = vunpack.c.l.b16 %v1306
  %v1412 = vunpack.c.h.b16 %v1306
  %v1413 = vunpack.c.l.b16 %v1307
  %v1414 = vunpack.c.h.b16 %v1307
  %v1415 = vunpack.c.l.b16 %v1308
  %v1416 = vunpack.c.h.b16 %v1308
  %v1417 = vpack.c.b16 %v1355, %v1353
  %v1418 = vpack.c.b16 %v1356, %v1354
  %v1419 = vpack.c.b16 %v1359, %v1357
  %v1420 = vpack.c.b16 %v1360, %v1358
  %v1421 = vpack.c.b16 %v1363, %v1361
  %v1422 = vpack.c.b16 %v1364, %v1362
  %v1423 = vpack.c.b16 %v1367, %v1365
  %v1424 = vpack.c.b16 %v1368, %v1366
  %v1425 = vpack.c.b16 %v1371, %v1369
  %v1426 = vpack.c.b16 %v1372, %v1370
  %v1427 = vpack.c.b16 %v1375, %v1373
  %v1428 = vpack.c.b16 %v1376, %v1374
  %v1429 = vpack.c.b16 %v1379, %v1377
  %v1430 = vpack.c.b16 %v1380, %v1378
  %v1431 = vpack.c.b16 %v1383, %v1381
  %v1432 = vpack.c.b16 %v1384, %v1382
  %v1433 = vpack.c.b16 %v1387, %v1385
  %v1434 = vpack.c.b16 %v1388, %v1386
  %v1435 = vpack.c.b16 %v1391, %v1389
  %v1436 = vpack.c.b16 %v1392, %v1390
  %v1437 = vpack.c.b16 %v1395, %v1393
  %v1438 = vpack.c.b16 %v1396, %v1394
  %v1439 = vpack.c.b16 %v1399, %v1397
  %v1440 = vpack.c.b16 %v1400, %v1398
  %v1441 = vpack.c.b16 %v1403, %v1401
  %v1442 = vpack.c.b16 %v1404, %v1402
  %v1443 = vpack.c.b16 %v1407, %v1405
  %v1444 = vpack.c.b16 %v1408, %v1406
  %v1445 = vpack.c.b16 %v1411, %v1409
  %v1446 = vpack.c.b16 %v1412, %v1410
  %v1447 = vpack.c.b16 %v1415, %v1413
  %v1448 = vpack.c.b16 %v1416, %v1414
  %1481 = vmatprep.subr.bf16.mxu0 %v1418
  %1482 = vmatpush1.bf16.msra.mxu0 %v1417
  %1483 = vmatprep.subr.bf16.mxu0 %v1420
  %1484 = vmatpush1.bf16.msra.mxu0 %v1419
  %1485 = vmatprep.subr.bf16.mxu0 %v1422
  %1486 = vmatpush1.bf16.msra.mxu0 %v1421
  %1487 = vmatprep.subr.bf16.mxu0 %v1424
  %1488 = vmatpush1.bf16.msra.mxu0 %v1423
  %1489 = vmatprep.subr.bf16.mxu0 %v1426
  %1490 = vmatpush1.bf16.msra.mxu0 %v1425
  %1491 = vmatprep.subr.bf16.mxu0 %v1428
  %1492 = vmatpush1.bf16.msra.mxu0 %v1427
  %1493 = vmatprep.subr.bf16.mxu0 %v1430
  %1494 = vmatpush1.bf16.msra.mxu0 %v1429
  %1495 = vmatprep.subr.bf16.mxu0 %v1432
  %1496 = vmatpush1.bf16.msra.mxu0 %v1431
  %1497 = vmatprep.subr.bf16.mxu0 %v1434
  %1498 = vmatpush1.bf16.msra.mxu0 %v1433
  %1499 = vmatprep.subr.bf16.mxu0 %v1436
  %1500 = vmatpush1.bf16.msra.mxu0 %v1435
  %1501 = vmatprep.subr.bf16.mxu0 %v1438
  %1502 = vmatpush1.bf16.msra.mxu0 %v1437
  %1503 = vmatprep.subr.bf16.mxu0 %v1440
  %1504 = vmatpush1.bf16.msra.mxu0 %v1439
  %1505 = vmatprep.subr.bf16.mxu0 %v1442
  %1506 = vmatpush1.bf16.msra.mxu0 %v1441
  %1507 = vmatprep.subr.bf16.mxu0 %v1444
  %1508 = vmatpush1.bf16.msra.mxu0 %v1443
  %1509 = vmatprep.subr.bf16.mxu0 %v1446
  %1510 = vmatpush1.bf16.msra.mxu0 %v1445
  %1511 = vmatprep.subr.bf16.mxu0 %v1448
  %1512 = vmatpush1.bf16.msra.mxu0 %v1447
  %1513 = vmatprep.mubr.bf16.mxu0 %v1274
  %1514 = vmatmul.mubr.bf16.gmra.mrb[0].mxu0 %v1273
  %v1515 = vpop.f32.mrb[0].mxu0
  %v1516 = vadd.f32 %v1314, %v1515
  %v1517 = vpop.f32.mrb[0].mxu0
  %v1518 = vadd.f32 %v1318, %v1517
  %v1519 = vpop.f32.mrb[0].mxu0
  %v1520 = vadd.f32 %v1314, %v1519
  %v1521 = vpop.f32.mrb[0].mxu0
  %v1522 = vadd.f32 %v1318, %v1521
  %1523 = vmatprep.mubr.bf16.mxu0 %v1276
  %1524 = vmatmul.mubr.bf16.gmra.mrb[0].mxu0 %v1275
  %v1525 = vpop.f32.mrb[0].mxu0
  %v1526 = vadd.f32 %v1314, %v1525
  %v1527 = vpop.f32.mrb[0].mxu0
  %v1528 = vadd.f32 %v1318, %v1527
  %v1529 = vpop.f32.mrb[0].mxu0
  %v1530 = vadd.f32 %v1314, %v1529
  %v1531 = vpop.f32.mrb[0].mxu0
  %v1532 = vadd.f32 %v1318, %v1531
  %1533 = vdwg.mxu0
  %v1534 = vadd.f32 %v161, %v1516
  %v1535 = vadd.f32 %v162, %v1518
  %v1536 = vadd.f32 %v163, %v1520
  %v1537 = vadd.f32 %v164, %v1522
  %v1538 = vadd.f32 %v165, %v1526
  %v1539 = vadd.f32 %v166, %v1528
  %v1540 = vadd.f32 %v167, %v1530
  %v1541 = vadd.f32 %v168, %v1532
  %v1542 = vld [vmem:[%s6 + $0x8] sm:$0x3]
  %v1543 = vld [vmem:[%s6 + $0xa] sm:$0x3]
  %v1544 = vadd.f32 %v1534, %v1535
  %1545 = vadd.xlane.f32.xlu0 %v1544
  %v1546 = vpop.xlane.xlu0 %1545
  %v1547 = vadd.f32 %v1536, %v1537
  %1548 = vadd.xlane.f32.xlu0 %v1547
  %v1549 = vpop.xlane.xlu0 %1548
  %v1550 = vadd.f32 %v1538, %v1539
  %1551 = vadd.xlane.f32.xlu0 %v1550
  %v1552 = vpop.xlane.xlu0 %1551
  %v1553 = vadd.f32 %v1540, %v1541
  %1554 = vadd.xlane.f32.xlu0 %v1553
  %v1555 = vpop.xlane.xlu0 %1554
  %v1556 = vmul.f32 %v1546, %v78
  %v1557 = vmul.f32 %v1549, %v78
  %v1558 = vmul.f32 %v1552, %v78
  %v1559 = vmul.f32 %v1555, %v78
  %v1560 = vsub.f32 %v1534, %v1556
  %v1561 = vsub.f32 %v1535, %v1556
  %v1562 = vsub.f32 %v1536, %v1557
  %v1563 = vsub.f32 %v1537, %v1557
  %v1564 = vsub.f32 %v1538, %v1558
  %v1565 = vsub.f32 %v1539, %v1558
  %v1566 = vsub.f32 %v1540, %v1559
  %v1567 = vsub.f32 %v1541, %v1559
  %v1568 = vmul.f32 %v1560, %v1560
  %v1569 = vmul.f32 %v1561, %v1561
  %v1570 = vmul.f32 %v1562, %v1562
  %v1571 = vmul.f32 %v1563, %v1563
  %v1572 = vmul.f32 %v1564, %v1564
  %v1573 = vmul.f32 %v1565, %v1565
  %v1574 = vmul.f32 %v1566, %v1566
  %v1575 = vmul.f32 %v1567, %v1567
  %v1576 = vadd.f32 %v1568, %v1569
  %1577 = vadd.xlane.f32.xlu0 %v1576
  %v1578 = vpop.xlane.xlu0 %1577
  %v1579 = vadd.f32 %v1570, %v1571
  %1580 = vadd.xlane.f32.xlu0 %v1579
  %v1581 = vpop.xlane.xlu0 %1580
  %v1582 = vadd.f32 %v1572, %v1573
  %1583 = vadd.xlane.f32.xlu0 %v1582
  %v1584 = vpop.xlane.xlu0 %1583
  %v1585 = vadd.f32 %v1574, %v1575
  %1586 = vadd.xlane.f32.xlu0 %v1585
  %v1587 = vpop.xlane.xlu0 %1586
  %v1588 = vmul.f32 %v1578, %v78
  %v1589 = vmul.f32 %v1581, %v78
  %v1590 = vmul.f32 %v1584, %v78
  %v1591 = vmul.f32 %v1587, %v78
  %v1592 = vadd.f32 %v1588, 1e-05
  %v1593 = vadd.f32 %v1589, 1e-05
  %v1594 = vadd.f32 %v1590, 1e-05
  %v1595 = vadd.f32 %v1591, 1e-05
  %v1596 = vrsqrt.pop %v1592
  %v1597 = vrsqrt.pop %v1593
  %v1598 = vrsqrt.pop %v1594
  %v1599 = vrsqrt.pop %v1595
  %v1600 = vmul.f32 %v1560, %v1596
  %v1601 = vmul.f32 %v1561, %v1596
  %v1602 = vmul.f32 %v1562, %v1597
  %v1603 = vmul.f32 %v1563, %v1597
  %v1604 = vmul.f32 %v1564, %v1598
  %v1605 = vmul.f32 %v1565, %v1598
  %v1606 = vmul.f32 %v1566, %v1599
  %v1607 = vmul.f32 %v1567, %v1599
  %v1609 = vlaneseq
  %v1610 = vshrl.u32 %v1609, 7
  %v1611 = vsub.s32 0, %v1610
  %v1612 = vrot.slane %v1542, %v1611
  %v1613 = vlaneseq
  %v1614 = vshrl.u32 %v1613, 7
  %v1615 = vsub.s32 1, %v1614
  %v1616 = vrot.slane %v1542, %v1615
  %v1619 = vmul.f32 %v1600, %v1612
  %v1620 = vmul.f32 %v1601, %v1616
  %v1621 = vmul.f32 %v1602, %v1612
  %v1622 = vmul.f32 %v1603, %v1616
  %v1623 = vmul.f32 %v1604, %v1612
  %v1624 = vmul.f32 %v1605, %v1616
  %v1625 = vmul.f32 %v1606, %v1612
  %v1626 = vmul.f32 %v1607, %v1616
  %v1628 = vlaneseq
  %v1629 = vshrl.u32 %v1628, 7
  %v1630 = vsub.s32 0, %v1629
  %v1631 = vrot.slane %v1543, %v1630
  %v1632 = vlaneseq
  %v1633 = vshrl.u32 %v1632, 7
  %v1634 = vsub.s32 1, %v1633
  %v1635 = vrot.slane %v1543, %v1634
  %v1638 = vadd.f32 %v1619, %v1631
  %v1639 = vadd.f32 %v1620, %v1635
  %v1640 = vadd.f32 %v1621, %v1631
  %v1641 = vadd.f32 %v1622, %v1635
  %v1642 = vadd.f32 %v1623, %v1631
  %v1643 = vadd.f32 %v1624, %v1635
  %v1644 = vadd.f32 %v1625, %v1631
  %v1645 = vadd.f32 %v1626, %v1635
  %v1646 = vpack.c.bf16 %v1640, %v1638
  %v1647 = vpack.c.bf16 %v1641, %v1639
  %v1648 = vpack.c.bf16 %v1644, %v1642
  %v1649 = vpack.c.bf16 %v1645, %v1643
  %v1650 = vld [vmem:[%s4 + $0x20] sm:$0xff]
  %v1651 = vld [vmem:[%s4 + $0x28] sm:$0xff]
  %v1652 = vld [vmem:[%s4 + $0x50] sm:$0xff]
  %v1653 = vld [vmem:[%s4 + $0x58] sm:$0xff]
  %v1654 = vld [vmem:[%s4 + $0x80] sm:$0xff]
  %v1655 = vld [vmem:[%s4 + $0x88] sm:$0xff]
  %v1656 = vld [vmem:[%s4 + $0xb0] sm:$0xff]
  %v1657 = vld [vmem:[%s4 + $0xb8] sm:$0xff]
  %v1658 = vld [vmem:[%s4 + $0xe0] sm:$0xff]
  %v1659 = vld [vmem:[%s4 + $0xe8] sm:$0xff]
  %v1660 = vld [vmem:[%s4 + $0x110] sm:$0xff]
  %v1661 = vld [vmem:[%s4 + $0x118] sm:$0xff]
  %v1662 = vld [vmem:[%s4 + $0x140] sm:$0xff]
  %v1663 = vld [vmem:[%s4 + $0x148] sm:$0xff]
  %v1664 = vld [vmem:[%s4 + $0x170] sm:$0xff]
  %v1665 = vld [vmem:[%s4 + $0x178] sm:$0xff]
  %v1666 = vld [vmem:[%s4 + $0x1a0] sm:$0xff]
  %v1667 = vld [vmem:[%s4 + $0x1a8] sm:$0xff]
  %v1668 = vld [vmem:[%s4 + $0x1d0] sm:$0xff]
  %v1669 = vld [vmem:[%s4 + $0x1d8] sm:$0xff]
  %v1670 = vld [vmem:[%s4 + $0x200] sm:$0xff]
  %v1671 = vld [vmem:[%s4 + $0x208] sm:$0xff]
  %v1672 = vld [vmem:[%s4 + $0x230] sm:$0xff]
  %v1673 = vld [vmem:[%s4 + $0x238] sm:$0xff]
  %v1674 = vld [vmem:[%s4 + $0x260] sm:$0xff]
  %v1675 = vld [vmem:[%s4 + $0x268] sm:$0xff]
  %v1676 = vld [vmem:[%s4 + $0x290] sm:$0xff]
  %v1677 = vld [vmem:[%s4 + $0x298] sm:$0xff]
  %v1678 = vld [vmem:[%s4 + $0x2c0] sm:$0xff]
  %v1679 = vld [vmem:[%s4 + $0x2c8] sm:$0xff]
  %v1680 = vld [vmem:[%s4 + $0x2f0] sm:$0xff]
  %v1681 = vld [vmem:[%s4 + $0x2f8] sm:$0xff]
  %v1682 = vld [vmem:[%s4 + $0x320] sm:$0xff]
  %v1683 = vld [vmem:[%s4 + $0x328] sm:$0xff]
  %v1684 = vld [vmem:[%s4 + $0x350] sm:$0xff]
  %v1685 = vld [vmem:[%s4 + $0x358] sm:$0xff]
  %v1686 = vld [vmem:[%s4 + $0x380] sm:$0xff]
  %v1687 = vld [vmem:[%s4 + $0x388] sm:$0xff]
  %v1688 = vld [vmem:[%s4 + $0x3b0] sm:$0xff]
  %v1689 = vld [vmem:[%s4 + $0x3b8] sm:$0xff]
  %v1690 = vld [vmem:[%s4 + $0x3e0] sm:$0xff]
  %v1691 = vld [vmem:[%s4 + $0x3e8] sm:$0xff]
  %v1692 = vld [vmem:[%s4 + $0x410] sm:$0xff]
  %v1693 = vld [vmem:[%s4 + $0x418] sm:$0xff]
  %v1694 = vld [vmem:[%s4 + $0x440] sm:$0xff]
  %v1695 = vld [vmem:[%s4 + $0x448] sm:$0xff]
  %v1696 = vld [vmem:[%s4 + $0x470] sm:$0xff]
  %v1697 = vld [vmem:[%s4 + $0x478] sm:$0xff]
  %v1698 = vld [vmem:[%s4 + $0x4a0] sm:$0xff]
  %v1699 = vld [vmem:[%s4 + $0x4a8] sm:$0xff]
  %v1700 = vld [vmem:[%s4 + $0x4d0] sm:$0xff]
  %v1701 = vld [vmem:[%s4 + $0x4d8] sm:$0xff]
  %v1702 = vld [vmem:[%s4 + $0x500] sm:$0xff]
  %v1703 = vld [vmem:[%s4 + $0x508] sm:$0xff]
  %v1704 = vld [vmem:[%s4 + $0x530] sm:$0xff]
  %v1705 = vld [vmem:[%s4 + $0x538] sm:$0xff]
  %v1706 = vld [vmem:[%s4 + $0x560] sm:$0xff]
  %v1707 = vld [vmem:[%s4 + $0x568] sm:$0xff]
  %v1708 = vld [vmem:[%s4 + $0x590] sm:$0xff]
  %v1709 = vld [vmem:[%s4 + $0x598] sm:$0xff]
  %v1710 = vld [vmem:[%s4 + $0x5c0] sm:$0xff]
  %v1711 = vld [vmem:[%s4 + $0x5c8] sm:$0xff]
  %v1712 = vld [vmem:[%s4 + $0x5f0] sm:$0xff]
  %v1713 = vld [vmem:[%s4 + $0x5f8] sm:$0xff]
  %v1714 = vld [vmem:[%s6 + $0xc] sm:$0xf]
  %v1716 = vlaneseq
  %v1717 = vshrl.u32 %v1716, 7
  %v1718 = vsub.s32 0, %v1717
  %v1719 = vrot.slane %v1714, %v1718
  %v1720 = vlaneseq
  %v1721 = vshrl.u32 %v1720, 7
  %v1722 = vsub.s32 1, %v1721
  %v1723 = vrot.slane %v1714, %v1722
  %v1724 = vlaneseq
  %v1725 = vshrl.u32 %v1724, 7
  %v1726 = vsub.s32 2, %v1725
  %v1727 = vrot.slane %v1714, %v1726
  %v1728 = vlaneseq
  %v1729 = vshrl.u32 %v1728, 7
  %v1730 = vsub.s32 3, %v1729
  %v1731 = vrot.slane %v1714, %v1730
  %v1800 = vunpack.c.l.b16 %v1650
  %v1801 = vunpack.c.h.b16 %v1650
  %v1802 = vunpack.c.l.b16 %v1651
  %v1803 = vunpack.c.h.b16 %v1651
  %v1804 = vunpack.c.l.b16 %v1652
  %v1805 = vunpack.c.h.b16 %v1652
  %v1806 = vunpack.c.l.b16 %v1653
  %v1807 = vunpack.c.h.b16 %v1653
  %v1808 = vunpack.c.l.b16 %v1654
  %v1809 = vunpack.c.h.b16 %v1654
  %v1810 = vunpack.c.l.b16 %v1655
  %v1811 = vunpack.c.h.b16 %v1655
  %v1812 = vunpack.c.l.b16 %v1656
  %v1813 = vunpack.c.h.b16 %v1656
  %v1814 = vunpack.c.l.b16 %v1657
  %v1815 = vunpack.c.h.b16 %v1657
  %v1816 = vunpack.c.l.b16 %v1658
  %v1817 = vunpack.c.h.b16 %v1658
  %v1818 = vunpack.c.l.b16 %v1659
  %v1819 = vunpack.c.h.b16 %v1659
  %v1820 = vunpack.c.l.b16 %v1660
  %v1821 = vunpack.c.h.b16 %v1660
  %v1822 = vunpack.c.l.b16 %v1661
  %v1823 = vunpack.c.h.b16 %v1661
  %v1824 = vunpack.c.l.b16 %v1662
  %v1825 = vunpack.c.h.b16 %v1662
  %v1826 = vunpack.c.l.b16 %v1663
  %v1827 = vunpack.c.h.b16 %v1663
  %v1828 = vunpack.c.l.b16 %v1664
  %v1829 = vunpack.c.h.b16 %v1664
  %v1830 = vunpack.c.l.b16 %v1665
  %v1831 = vunpack.c.h.b16 %v1665
  %v1832 = vunpack.c.l.b16 %v1666
  %v1833 = vunpack.c.h.b16 %v1666
  %v1834 = vunpack.c.l.b16 %v1667
  %v1835 = vunpack.c.h.b16 %v1667
  %v1836 = vunpack.c.l.b16 %v1668
  %v1837 = vunpack.c.h.b16 %v1668
  %v1838 = vunpack.c.l.b16 %v1669
  %v1839 = vunpack.c.h.b16 %v1669
  %v1840 = vunpack.c.l.b16 %v1670
  %v1841 = vunpack.c.h.b16 %v1670
  %v1842 = vunpack.c.l.b16 %v1671
  %v1843 = vunpack.c.h.b16 %v1671
  %v1844 = vunpack.c.l.b16 %v1672
  %v1845 = vunpack.c.h.b16 %v1672
  %v1846 = vunpack.c.l.b16 %v1673
  %v1847 = vunpack.c.h.b16 %v1673
  %v1848 = vunpack.c.l.b16 %v1674
  %v1849 = vunpack.c.h.b16 %v1674
  %v1850 = vunpack.c.l.b16 %v1675
  %v1851 = vunpack.c.h.b16 %v1675
  %v1852 = vunpack.c.l.b16 %v1676
  %v1853 = vunpack.c.h.b16 %v1676
  %v1854 = vunpack.c.l.b16 %v1677
  %v1855 = vunpack.c.h.b16 %v1677
  %v1856 = vunpack.c.l.b16 %v1678
  %v1857 = vunpack.c.h.b16 %v1678
  %v1858 = vunpack.c.l.b16 %v1679
  %v1859 = vunpack.c.h.b16 %v1679
  %v1860 = vunpack.c.l.b16 %v1680
  %v1861 = vunpack.c.h.b16 %v1680
  %v1862 = vunpack.c.l.b16 %v1681
  %v1863 = vunpack.c.h.b16 %v1681
  %v1864 = vunpack.c.l.b16 %v1682
  %v1865 = vunpack.c.h.b16 %v1682
  %v1866 = vunpack.c.l.b16 %v1683
  %v1867 = vunpack.c.h.b16 %v1683
  %v1868 = vunpack.c.l.b16 %v1684
  %v1869 = vunpack.c.h.b16 %v1684
  %v1870 = vunpack.c.l.b16 %v1685
  %v1871 = vunpack.c.h.b16 %v1685
  %v1872 = vunpack.c.l.b16 %v1686
  %v1873 = vunpack.c.h.b16 %v1686
  %v1874 = vunpack.c.l.b16 %v1687
  %v1875 = vunpack.c.h.b16 %v1687
  %v1876 = vunpack.c.l.b16 %v1688
  %v1877 = vunpack.c.h.b16 %v1688
  %v1878 = vunpack.c.l.b16 %v1689
  %v1879 = vunpack.c.h.b16 %v1689
  %v1880 = vunpack.c.l.b16 %v1690
  %v1881 = vunpack.c.h.b16 %v1690
  %v1882 = vunpack.c.l.b16 %v1691
  %v1883 = vunpack.c.h.b16 %v1691
  %v1884 = vunpack.c.l.b16 %v1692
  %v1885 = vunpack.c.h.b16 %v1692
  %v1886 = vunpack.c.l.b16 %v1693
  %v1887 = vunpack.c.h.b16 %v1693
  %v1888 = vunpack.c.l.b16 %v1694
  %v1889 = vunpack.c.h.b16 %v1694
  %v1890 = vunpack.c.l.b16 %v1695
  %v1891 = vunpack.c.h.b16 %v1695
  %v1892 = vunpack.c.l.b16 %v1696
  %v1893 = vunpack.c.h.b16 %v1696
  %v1894 = vunpack.c.l.b16 %v1697
  %v1895 = vunpack.c.h.b16 %v1697
  %v1896 = vunpack.c.l.b16 %v1698
  %v1897 = vunpack.c.h.b16 %v1698
  %v1898 = vunpack.c.l.b16 %v1699
  %v1899 = vunpack.c.h.b16 %v1699
  %v1900 = vunpack.c.l.b16 %v1700
  %v1901 = vunpack.c.h.b16 %v1700
  %v1902 = vunpack.c.l.b16 %v1701
  %v1903 = vunpack.c.h.b16 %v1701
  %v1904 = vunpack.c.l.b16 %v1702
  %v1905 = vunpack.c.h.b16 %v1702
  %v1906 = vunpack.c.l.b16 %v1703
  %v1907 = vunpack.c.h.b16 %v1703
  %v1908 = vunpack.c.l.b16 %v1704
  %v1909 = vunpack.c.h.b16 %v1704
  %v1910 = vunpack.c.l.b16 %v1705
  %v1911 = vunpack.c.h.b16 %v1705
  %v1912 = vunpack.c.l.b16 %v1706
  %v1913 = vunpack.c.h.b16 %v1706
  %v1914 = vunpack.c.l.b16 %v1707
  %v1915 = vunpack.c.h.b16 %v1707
  %v1916 = vunpack.c.l.b16 %v1708
  %v1917 = vunpack.c.h.b16 %v1708
  %v1918 = vunpack.c.l.b16 %v1709
  %v1919 = vunpack.c.h.b16 %v1709
  %v1920 = vunpack.c.l.b16 %v1710
  %v1921 = vunpack.c.h.b16 %v1710
  %v1922 = vunpack.c.l.b16 %v1711
  %v1923 = vunpack.c.h.b16 %v1711
  %v1924 = vunpack.c.l.b16 %v1712
  %v1925 = vunpack.c.h.b16 %v1712
  %v1926 = vunpack.c.l.b16 %v1713
  %v1927 = vunpack.c.h.b16 %v1713
  %v1928 = vpack.c.b16 %v1804, %v1800
  %v1929 = vpack.c.b16 %v1805, %v1801
  %v1930 = vpack.c.b16 %v1806, %v1802
  %v1931 = vpack.c.b16 %v1807, %v1803
  %v1932 = vpack.c.b16 %v1812, %v1808
  %v1933 = vpack.c.b16 %v1813, %v1809
  %v1934 = vpack.c.b16 %v1814, %v1810
  %v1935 = vpack.c.b16 %v1815, %v1811
  %v1936 = vpack.c.b16 %v1820, %v1816
  %v1937 = vpack.c.b16 %v1821, %v1817
  %v1938 = vpack.c.b16 %v1822, %v1818
  %v1939 = vpack.c.b16 %v1823, %v1819
  %v1940 = vpack.c.b16 %v1828, %v1824
  %v1941 = vpack.c.b16 %v1829, %v1825
  %v1942 = vpack.c.b16 %v1830, %v1826
  %v1943 = vpack.c.b16 %v1831, %v1827
  %v1944 = vpack.c.b16 %v1836, %v1832
  %v1945 = vpack.c.b16 %v1837, %v1833
  %v1946 = vpack.c.b16 %v1838, %v1834
  %v1947 = vpack.c.b16 %v1839, %v1835
  %v1948 = vpack.c.b16 %v1844, %v1840
  %v1949 = vpack.c.b16 %v1845, %v1841
  %v1950 = vpack.c.b16 %v1846, %v1842
  %v1951 = vpack.c.b16 %v1847, %v1843
  %v1952 = vpack.c.b16 %v1852, %v1848
  %v1953 = vpack.c.b16 %v1853, %v1849
  %v1954 = vpack.c.b16 %v1854, %v1850
  %v1955 = vpack.c.b16 %v1855, %v1851
  %v1956 = vpack.c.b16 %v1860, %v1856
  %v1957 = vpack.c.b16 %v1861, %v1857
  %v1958 = vpack.c.b16 %v1862, %v1858
  %v1959 = vpack.c.b16 %v1863, %v1859
  %v1960 = vpack.c.b16 %v1868, %v1864
  %v1961 = vpack.c.b16 %v1869, %v1865
  %v1962 = vpack.c.b16 %v1870, %v1866
  %v1963 = vpack.c.b16 %v1871, %v1867
  %v1964 = vpack.c.b16 %v1876, %v1872
  %v1965 = vpack.c.b16 %v1877, %v1873
  %v1966 = vpack.c.b16 %v1878, %v1874
  %v1967 = vpack.c.b16 %v1879, %v1875
  %v1968 = vpack.c.b16 %v1884, %v1880
  %v1969 = vpack.c.b16 %v1885, %v1881
  %v1970 = vpack.c.b16 %v1886, %v1882
  %v1971 = vpack.c.b16 %v1887, %v1883
  %v1972 = vpack.c.b16 %v1892, %v1888
  %v1973 = vpack.c.b16 %v1893, %v1889
  %v1974 = vpack.c.b16 %v1894, %v1890
  %v1975 = vpack.c.b16 %v1895, %v1891
  %v1976 = vpack.c.b16 %v1900, %v1896
  %v1977 = vpack.c.b16 %v1901, %v1897
  %v1978 = vpack.c.b16 %v1902, %v1898
  %v1979 = vpack.c.b16 %v1903, %v1899
  %v1980 = vpack.c.b16 %v1908, %v1904
  %v1981 = vpack.c.b16 %v1909, %v1905
  %v1982 = vpack.c.b16 %v1910, %v1906
  %v1983 = vpack.c.b16 %v1911, %v1907
  %v1984 = vpack.c.b16 %v1916, %v1912
  %v1985 = vpack.c.b16 %v1917, %v1913
  %v1986 = vpack.c.b16 %v1918, %v1914
  %v1987 = vpack.c.b16 %v1919, %v1915
  %v1988 = vpack.c.b16 %v1924, %v1920
  %v1989 = vpack.c.b16 %v1925, %v1921
  %v1990 = vpack.c.b16 %v1926, %v1922
  %v1991 = vpack.c.b16 %v1927, %v1923
  %2056 = vmatprep.subr.bf16.mxu0 %v1929
  %2057 = vmatpush1.bf16.msra.mxu0 %v1928
  %2058 = vmatprep.subr.bf16.mxu0 %v1933
  %2059 = vmatpush1.bf16.msra.mxu0 %v1932
  %2060 = vmatprep.subr.bf16.mxu0 %v1937
  %2061 = vmatpush1.bf16.msra.mxu0 %v1936
  %2062 = vmatprep.subr.bf16.mxu0 %v1941
  %2063 = vmatpush1.bf16.msra.mxu0 %v1940
  %2064 = vmatprep.subr.bf16.mxu0 %v1945
  %2065 = vmatpush1.bf16.msra.mxu0 %v1944
  %2066 = vmatprep.subr.bf16.mxu0 %v1949
  %2067 = vmatpush1.bf16.msra.mxu0 %v1948
  %2068 = vmatprep.subr.bf16.mxu0 %v1953
  %2069 = vmatpush1.bf16.msra.mxu0 %v1952
  %2070 = vmatprep.subr.bf16.mxu0 %v1957
  %2071 = vmatpush1.bf16.msra.mxu0 %v1956
  %2072 = vmatprep.subr.bf16.mxu0 %v1961
  %2073 = vmatpush1.bf16.msra.mxu0 %v1960
  %2074 = vmatprep.subr.bf16.mxu0 %v1965
  %2075 = vmatpush1.bf16.msra.mxu0 %v1964
  %2076 = vmatprep.subr.bf16.mxu0 %v1969
  %2077 = vmatpush1.bf16.msra.mxu0 %v1968
  %2078 = vmatprep.subr.bf16.mxu0 %v1973
  %2079 = vmatpush1.bf16.msra.mxu0 %v1972
  %2080 = vmatprep.subr.bf16.mxu0 %v1977
  %2081 = vmatpush1.bf16.msra.mxu0 %v1976
  %2082 = vmatprep.subr.bf16.mxu0 %v1981
  %2083 = vmatpush1.bf16.msra.mxu0 %v1980
  %2084 = vmatprep.subr.bf16.mxu0 %v1985
  %2085 = vmatpush1.bf16.msra.mxu0 %v1984
  %2086 = vmatprep.subr.bf16.mxu0 %v1989
  %2087 = vmatpush1.bf16.msra.mxu0 %v1988
  %2088 = vmatprep.mubr.bf16.mxu0 %v1647
  %2089 = vmatmul.mubr.bf16.gmra.mrb[0].mxu0 %v1646
  %v2090 = vpop.f32.mrb[0].mxu0
  %v2091 = vadd.f32 %v1719, %v2090
  %v2092 = vpop.f32.mrb[0].mxu0
  %v2093 = vadd.f32 %v1723, %v2092
  %v2094 = vpop.f32.mrb[0].mxu0
  %v2095 = vadd.f32 %v1719, %v2094
  %v2096 = vpop.f32.mrb[0].mxu0
  %v2097 = vadd.f32 %v1723, %v2096
  %2098 = vmatprep.mubr.bf16.mxu0 %v1649
  %2099 = vmatmul.mubr.bf16.gmra.mrb[0].mxu0 %v1648
  %v2100 = vpop.f32.mrb[0].mxu0
  %v2101 = vadd.f32 %v1719, %v2100
  %v2102 = vpop.f32.mrb[0].mxu0
  %v2103 = vadd.f32 %v1723, %v2102
  %v2104 = vpop.f32.mrb[0].mxu0
  %v2105 = vadd.f32 %v1719, %v2104
  %v2106 = vpop.f32.mrb[0].mxu0
  %v2107 = vadd.f32 %v1723, %v2106
  %2108 = vdwg.mxu0
  %2109 = vmatprep.subr.bf16.mxu0 %v1931
  %2110 = vmatpush1.bf16.msra.mxu0 %v1930
  %2111 = vmatprep.subr.bf16.mxu0 %v1935
  %2112 = vmatpush1.bf16.msra.mxu0 %v1934
  %2113 = vmatprep.subr.bf16.mxu0 %v1939
  %2114 = vmatpush1.bf16.msra.mxu0 %v1938
  %2115 = vmatprep.subr.bf16.mxu0 %v1943
  %2116 = vmatpush1.bf16.msra.mxu0 %v1942
  %2117 = vmatprep.subr.bf16.mxu0 %v1947
  %2118 = vmatpush1.bf16.msra.mxu0 %v1946
  %2119 = vmatprep.subr.bf16.mxu0 %v1951
  %2120 = vmatpush1.bf16.msra.mxu0 %v1950
  %2121 = vmatprep.subr.bf16.mxu0 %v1955
  %2122 = vmatpush1.bf16.msra.mxu0 %v1954
  %2123 = vmatprep.subr.bf16.mxu0 %v1959
  %2124 = vmatpush1.bf16.msra.mxu0 %v1958
  %2125 = vmatprep.subr.bf16.mxu0 %v1963
  %2126 = vmatpush1.bf16.msra.mxu0 %v1962
  %2127 = vmatprep.subr.bf16.mxu0 %v1967
  %2128 = vmatpush1.bf16.msra.mxu0 %v1966
  %2129 = vmatprep.subr.bf16.mxu0 %v1971
  %2130 = vmatpush1.bf16.msra.mxu0 %v1970
  %2131 = vmatprep.subr.bf16.mxu0 %v1975
  %2132 = vmatpush1.bf16.msra.mxu0 %v1974
  %2133 = vmatprep.subr.bf16.mxu0 %v1979
  %2134 = vmatpush1.bf16.msra.mxu0 %v1978
  %2135 = vmatprep.subr.bf16.mxu0 %v1983
  %2136 = vmatpush1.bf16.msra.mxu0 %v1982
  %2137 = vmatprep.subr.bf16.mxu0 %v1987
  %2138 = vmatpush1.bf16.msra.mxu0 %v1986
  %2139 = vmatprep.subr.bf16.mxu0 %v1991
  %2140 = vmatpush1.bf16.msra.mxu0 %v1990
  %2141 = vmatprep.mubr.bf16.mxu0 %v1647
  %2142 = vmatmul.mubr.bf16.gmra.mrb[0].mxu0 %v1646
  %v2143 = vpop.f32.mrb[0].mxu0
  %v2144 = vadd.f32 %v1727, %v2143
  %v2145 = vpop.f32.mrb[0].mxu0
  %v2146 = vadd.f32 %v1731, %v2145
  %v2147 = vpop.f32.mrb[0].mxu0
  %v2148 = vadd.f32 %v1727, %v2147
  %v2149 = vpop.f32.mrb[0].mxu0
  %v2150 = vadd.f32 %v1731, %v2149
  %2151 = vmatprep.mubr.bf16.mxu0 %v1649
  %2152 = vmatmul.mubr.bf16.gmra.mrb[0].mxu0 %v1648
  %v2153 = vpop.f32.mrb[0].mxu0
  %v2154 = vadd.f32 %v1727, %v2153
  %v2155 = vpop.f32.mrb[0].mxu0
  %v2156 = vadd.f32 %v1731, %v2155
  %v2157 = vpop.f32.mrb[0].mxu0
  %v2158 = vadd.f32 %v1727, %v2157
  %v2159 = vpop.f32.mrb[0].mxu0
  %v2160 = vadd.f32 %v1731, %v2159
  %2161 = vdwg.mxu0
  %v2162 = vmul.f32 %v2091, 0.5
  %v2163 = vmul.f32 %v2093, 0.5
  %v2164 = vmul.f32 %v2144, 0.5
  %v2165 = vmul.f32 %v2146, 0.5
  %v2166 = vmul.f32 %v2095, 0.5
  %v2167 = vmul.f32 %v2097, 0.5
  %v2168 = vmul.f32 %v2148, 0.5
  %v2169 = vmul.f32 %v2150, 0.5
  %v2170 = vmul.f32 %v2101, 0.5
  %v2171 = vmul.f32 %v2103, 0.5
  %v2172 = vmul.f32 %v2154, 0.5
  %v2173 = vmul.f32 %v2156, 0.5
  %v2174 = vmul.f32 %v2105, 0.5
  %v2175 = vmul.f32 %v2107, 0.5
  %v2176 = vmul.f32 %v2158, 0.5
  %v2177 = vmul.f32 %v2160, 0.5
  %v2178 = vmul.f32 %v2091, 0.70710677
  %v2179 = vmul.f32 %v2093, 0.70710677
  %v2180 = vmul.f32 %v2144, 0.70710677
  %v2181 = vmul.f32 %v2146, 0.70710677
  %v2182 = vmul.f32 %v2095, 0.70710677
  %v2183 = vmul.f32 %v2097, 0.70710677
  %v2184 = vmul.f32 %v2148, 0.70710677
  %v2185 = vmul.f32 %v2150, 0.70710677
  %v2186 = vmul.f32 %v2101, 0.70710677
  %v2187 = vmul.f32 %v2103, 0.70710677
  %v2188 = vmul.f32 %v2154, 0.70710677
  %v2189 = vmul.f32 %v2156, 0.70710677
  %v2190 = vmul.f32 %v2105, 0.70710677
  %v2191 = vmul.f32 %v2107, 0.70710677
  %v2192 = vmul.f32 %v2158, 0.70710677
  %v2193 = vmul.f32 %v2160, 0.70710677
  %vm2194 = vcmp.ge.f32.partialorder %v2178, 0.0
  %vm2195 = vcmp.ge.f32.partialorder %v2179, 0.0
  %vm2196 = vcmp.ge.f32.partialorder %v2180, 0.0
  %vm2197 = vcmp.ge.f32.partialorder %v2181, 0.0
  %vm2198 = vcmp.ge.f32.partialorder %v2182, 0.0
  %vm2199 = vcmp.ge.f32.partialorder %v2183, 0.0
  %vm2200 = vcmp.ge.f32.partialorder %v2184, 0.0
  %vm2201 = vcmp.ge.f32.partialorder %v2185, 0.0
  %vm2202 = vcmp.ge.f32.partialorder %v2186, 0.0
  %vm2203 = vcmp.ge.f32.partialorder %v2187, 0.0
  %vm2204 = vcmp.ge.f32.partialorder %v2188, 0.0
  %vm2205 = vcmp.ge.f32.partialorder %v2189, 0.0
  %vm2206 = vcmp.ge.f32.partialorder %v2190, 0.0
  %vm2207 = vcmp.ge.f32.partialorder %v2191, 0.0
  %vm2208 = vcmp.ge.f32.partialorder %v2192, 0.0
  %vm2209 = vcmp.ge.f32.partialorder %v2193, 0.0
  %v2210 = vsel %vm2194, 1.0, -1.0
  %v2211 = vsel %vm2195, 1.0, -1.0
  %v2212 = vsel %vm2196, 1.0, -1.0
  %v2213 = vsel %vm2197, 1.0, -1.0
  %v2214 = vsel %vm2198, 1.0, -1.0
  %v2215 = vsel %vm2199, 1.0, -1.0
  %v2216 = vsel %vm2200, 1.0, -1.0
  %v2217 = vsel %vm2201, 1.0, -1.0
  %v2218 = vsel %vm2202, 1.0, -1.0
  %v2219 = vsel %vm2203, 1.0, -1.0
  %v2220 = vsel %vm2204, 1.0, -1.0
  %v2221 = vsel %vm2205, 1.0, -1.0
  %v2222 = vsel %vm2206, 1.0, -1.0
  %v2223 = vsel %vm2207, 1.0, -1.0
  %v2224 = vsel %vm2208, 1.0, -1.0
  %v2225 = vsel %vm2209, 1.0, -1.0
  %v2226 = vand.u32 2147483647, %v2178
  %v2227 = vand.u32 2147483647, %v2179
  %v2228 = vand.u32 2147483647, %v2180
  %v2229 = vand.u32 2147483647, %v2181
  %v2230 = vand.u32 2147483647, %v2182
  %v2231 = vand.u32 2147483647, %v2183
  %v2232 = vand.u32 2147483647, %v2184
  %v2233 = vand.u32 2147483647, %v2185
  %v2234 = vand.u32 2147483647, %v2186
  %v2235 = vand.u32 2147483647, %v2187
  %v2236 = vand.u32 2147483647, %v2188
  %v2237 = vand.u32 2147483647, %v2189
  %v2238 = vand.u32 2147483647, %v2190
  %v2239 = vand.u32 2147483647, %v2191
  %v2240 = vand.u32 2147483647, %v2192
  %v2241 = vand.u32 2147483647, %v2193
  %v2242 = vmul.f32 %v2226, 0.3275911
  %v2243 = vmul.f32 %v2227, 0.3275911
  %v2244 = vmul.f32 %v2228, 0.3275911
  %v2245 = vmul.f32 %v2229, 0.3275911
  %v2246 = vmul.f32 %v2230, 0.3275911
  %v2247 = vmul.f32 %v2231, 0.3275911
  %v2248 = vmul.f32 %v2232, 0.3275911
  %v2249 = vmul.f32 %v2233, 0.3275911
  %v2250 = vmul.f32 %v2234, 0.3275911
  %v2251 = vmul.f32 %v2235, 0.3275911
  %v2252 = vmul.f32 %v2236, 0.3275911
  %v2253 = vmul.f32 %v2237, 0.3275911
  %v2254 = vmul.f32 %v2238, 0.3275911
  %v2255 = vmul.f32 %v2239, 0.3275911
  %v2256 = vmul.f32 %v2240, 0.3275911
  %v2257 = vmul.f32 %v2241, 0.3275911
  %v2258 = vadd.f32 %v2242, 1.0
  %v2259 = vadd.f32 %v2243, 1.0
  %v2260 = vadd.f32 %v2244, 1.0
  %v2261 = vadd.f32 %v2245, 1.0
  %v2262 = vadd.f32 %v2246, 1.0
  %v2263 = vadd.f32 %v2247, 1.0
  %v2264 = vadd.f32 %v2248, 1.0
  %v2265 = vadd.f32 %v2249, 1.0
  %v2266 = vadd.f32 %v2250, 1.0
  %v2267 = vadd.f32 %v2251, 1.0
  %v2268 = vadd.f32 %v2252, 1.0
  %v2269 = vadd.f32 %v2253, 1.0
  %v2270 = vadd.f32 %v2254, 1.0
  %v2271 = vadd.f32 %v2255, 1.0
  %v2272 = vadd.f32 %v2256, 1.0
  %v2273 = vadd.f32 %v2257, 1.0
  %v2274 = vrcp.pop %v2258
  %v2275 = vmul.f32 1.0, %v2274
  %v2276 = vrcp.pop %v2259
  %v2277 = vmul.f32 1.0, %v2276
  %v2278 = vrcp.pop %v2260
  %v2279 = vmul.f32 1.0, %v2278
  %v2280 = vrcp.pop %v2261
  %v2281 = vmul.f32 1.0, %v2280
  %v2282 = vrcp.pop %v2262
  %v2283 = vmul.f32 1.0, %v2282
  %v2284 = vrcp.pop %v2263
  %v2285 = vmul.f32 1.0, %v2284
  %v2286 = vrcp.pop %v2264
  %v2287 = vmul.f32 1.0, %v2286
  %v2288 = vrcp.pop %v2265
  %v2289 = vmul.f32 1.0, %v2288
  %v2290 = vrcp.pop %v2266
  %v2291 = vmul.f32 1.0, %v2290
  %v2292 = vrcp.pop %v2267
  %v2293 = vmul.f32 1.0, %v2292
  %v2294 = vrcp.pop %v2268
  %v2295 = vmul.f32 1.0, %v2294
  %v2296 = vrcp.pop %v2269
  %v2297 = vmul.f32 1.0, %v2296
  %v2298 = vrcp.pop %v2270
  %v2299 = vmul.f32 1.0, %v2298
  %v2300 = vrcp.pop %v2271
  %v2301 = vmul.f32 1.0, %v2300
  %v2302 = vrcp.pop %v2272
  %v2303 = vmul.f32 1.0, %v2302
  %v2304 = vrcp.pop %v2273
  %v2305 = vmul.f32 1.0, %v2304
  %v2306 = vmul.f32 %v2275, 1.0614054
  %v2307 = vmul.f32 %v2277, 1.0614054
  %v2308 = vmul.f32 %v2279, 1.0614054
  %v2309 = vmul.f32 %v2281, 1.0614054
  %v2310 = vmul.f32 %v2283, 1.0614054
  %v2311 = vmul.f32 %v2285, 1.0614054
  %v2312 = vmul.f32 %v2287, 1.0614054
  %v2313 = vmul.f32 %v2289, 1.0614054
  %v2314 = vmul.f32 %v2291, 1.0614054
  %v2315 = vmul.f32 %v2293, 1.0614054
  %v2316 = vmul.f32 %v2295, 1.0614054
  %v2317 = vmul.f32 %v2297, 1.0614054
  %v2318 = vmul.f32 %v2299, 1.0614054
  %v2319 = vmul.f32 %v2301, 1.0614054
  %v2320 = vmul.f32 %v2303, 1.0614054
  %v2321 = vmul.f32 %v2305, 1.0614054
  %v2322 = vadd.f32 %v2306, -1.4531521
  %v2323 = vadd.f32 %v2307, -1.4531521
  %v2324 = vadd.f32 %v2308, -1.4531521
  %v2325 = vadd.f32 %v2309, -1.4531521
  %v2326 = vadd.f32 %v2310, -1.4531521
  %v2327 = vadd.f32 %v2311, -1.4531521
  %v2328 = vadd.f32 %v2312, -1.4531521
  %v2329 = vadd.f32 %v2313, -1.4531521
  %v2330 = vadd.f32 %v2314, -1.4531521
  %v2331 = vadd.f32 %v2315, -1.4531521
  %v2332 = vadd.f32 %v2316, -1.4531521
  %v2333 = vadd.f32 %v2317, -1.4531521
  %v2334 = vadd.f32 %v2318, -1.4531521
  %v2335 = vadd.f32 %v2319, -1.4531521
  %v2336 = vadd.f32 %v2320, -1.4531521
  %v2337 = vadd.f32 %v2321, -1.4531521
  %v2338 = vmul.f32 %v2322, %v2275
  %v2339 = vmul.f32 %v2323, %v2277
  %v2340 = vmul.f32 %v2324, %v2279
  %v2341 = vmul.f32 %v2325, %v2281
  %v2342 = vmul.f32 %v2326, %v2283
  %v2343 = vmul.f32 %v2327, %v2285
  %v2344 = vmul.f32 %v2328, %v2287
  %v2345 = vmul.f32 %v2329, %v2289
  %v2346 = vmul.f32 %v2330, %v2291
  %v2347 = vmul.f32 %v2331, %v2293
  %v2348 = vmul.f32 %v2332, %v2295
  %v2349 = vmul.f32 %v2333, %v2297
  %v2350 = vmul.f32 %v2334, %v2299
  %v2351 = vmul.f32 %v2335, %v2301
  %v2352 = vmul.f32 %v2336, %v2303
  %v2353 = vmul.f32 %v2337, %v2305
  %v2354 = vadd.f32 %v2338, 1.4214138
  %v2355 = vadd.f32 %v2339, 1.4214138
  %v2356 = vadd.f32 %v2340, 1.4214138
  %v2357 = vadd.f32 %v2341, 1.4214138
  %v2358 = vadd.f32 %v2342, 1.4214138
  %v2359 = vadd.f32 %v2343, 1.4214138
  %v2360 = vadd.f32 %v2344, 1.4214138
  %v2361 = vadd.f32 %v2345, 1.4214138
  %v2362 = vadd.f32 %v2346, 1.4214138
  %v2363 = vadd.f32 %v2347, 1.4214138
  %v2364 = vadd.f32 %v2348, 1.4214138
  %v2365 = vadd.f32 %v2349, 1.4214138
  %v2366 = vadd.f32 %v2350, 1.4214138
  %v2367 = vadd.f32 %v2351, 1.4214138
  %v2368 = vadd.f32 %v2352, 1.4214138
  %v2369 = vadd.f32 %v2353, 1.4214138
  %v2370 = vmul.f32 %v2354, %v2275
  %v2371 = vmul.f32 %v2355, %v2277
  %v2372 = vmul.f32 %v2356, %v2279
  %v2373 = vmul.f32 %v2357, %v2281
  %v2374 = vmul.f32 %v2358, %v2283
  %v2375 = vmul.f32 %v2359, %v2285
  %v2376 = vmul.f32 %v2360, %v2287
  %v2377 = vmul.f32 %v2361, %v2289
  %v2378 = vmul.f32 %v2362, %v2291
  %v2379 = vmul.f32 %v2363, %v2293
  %v2380 = vmul.f32 %v2364, %v2295
  %v2381 = vmul.f32 %v2365, %v2297
  %v2382 = vmul.f32 %v2366, %v2299
  %v2383 = vmul.f32 %v2367, %v2301
  %v2384 = vmul.f32 %v2368, %v2303
  %v2385 = vmul.f32 %v2369, %v2305
  %v2386 = vadd.f32 %v2370, -0.28449672
  %v2387 = vadd.f32 %v2371, -0.28449672
  %v2388 = vadd.f32 %v2372, -0.28449672
  %v2389 = vadd.f32 %v2373, -0.28449672
  %v2390 = vadd.f32 %v2374, -0.28449672
  %v2391 = vadd.f32 %v2375, -0.28449672
  %v2392 = vadd.f32 %v2376, -0.28449672
  %v2393 = vadd.f32 %v2377, -0.28449672
  %v2394 = vadd.f32 %v2378, -0.28449672
  %v2395 = vadd.f32 %v2379, -0.28449672
  %v2396 = vadd.f32 %v2380, -0.28449672
  %v2397 = vadd.f32 %v2381, -0.28449672
  %v2398 = vadd.f32 %v2382, -0.28449672
  %v2399 = vadd.f32 %v2383, -0.28449672
  %v2400 = vadd.f32 %v2384, -0.28449672
  %v2401 = vadd.f32 %v2385, -0.28449672
  %v2402 = vmul.f32 %v2386, %v2275
  %v2403 = vmul.f32 %v2387, %v2277
  %v2404 = vmul.f32 %v2388, %v2279
  %v2405 = vmul.f32 %v2389, %v2281
  %v2406 = vmul.f32 %v2390, %v2283
  %v2407 = vmul.f32 %v2391, %v2285
  %v2408 = vmul.f32 %v2392, %v2287
  %v2409 = vmul.f32 %v2393, %v2289
  %v2410 = vmul.f32 %v2394, %v2291
  %v2411 = vmul.f32 %v2395, %v2293
  %v2412 = vmul.f32 %v2396, %v2295
  %v2413 = vmul.f32 %v2397, %v2297
  %v2414 = vmul.f32 %v2398, %v2299
  %v2415 = vmul.f32 %v2399, %v2301
  %v2416 = vmul.f32 %v2400, %v2303
  %v2417 = vmul.f32 %v2401, %v2305
  %v2418 = vadd.f32 %v2402, 0.2548296
  %v2419 = vadd.f32 %v2403, 0.2548296
  %v2420 = vadd.f32 %v2404, 0.2548296
  %v2421 = vadd.f32 %v2405, 0.2548296
  %v2422 = vadd.f32 %v2406, 0.2548296
  %v2423 = vadd.f32 %v2407, 0.2548296
  %v2424 = vadd.f32 %v2408, 0.2548296
  %v2425 = vadd.f32 %v2409, 0.2548296
  %v2426 = vadd.f32 %v2410, 0.2548296
  %v2427 = vadd.f32 %v2411, 0.2548296
  %v2428 = vadd.f32 %v2412, 0.2548296
  %v2429 = vadd.f32 %v2413, 0.2548296
  %v2430 = vadd.f32 %v2414, 0.2548296
  %v2431 = vadd.f32 %v2415, 0.2548296
  %v2432 = vadd.f32 %v2416, 0.2548296
  %v2433 = vadd.f32 %v2417, 0.2548296
  %v2434 = vmul.f32 %v2418, %v2275
  %v2435 = vmul.f32 %v2419, %v2277
  %v2436 = vmul.f32 %v2420, %v2279
  %v2437 = vmul.f32 %v2421, %v2281
  %v2438 = vmul.f32 %v2422, %v2283
  %v2439 = vmul.f32 %v2423, %v2285
  %v2440 = vmul.f32 %v2424, %v2287
  %v2441 = vmul.f32 %v2425, %v2289
  %v2442 = vmul.f32 %v2426, %v2291
  %v2443 = vmul.f32 %v2427, %v2293
  %v2444 = vmul.f32 %v2428, %v2295
  %v2445 = vmul.f32 %v2429, %v2297
  %v2446 = vmul.f32 %v2430, %v2299
  %v2447 = vmul.f32 %v2431, %v2301
  %v2448 = vmul.f32 %v2432, %v2303
  %v2449 = vmul.f32 %v2433, %v2305
  %v2450 = vsub.f32 0.0, %v2226
  %v2451 = vsub.f32 0.0, %v2227
  %v2452 = vsub.f32 0.0, %v2228
  %v2453 = vsub.f32 0.0, %v2229
  %v2454 = vsub.f32 0.0, %v2230
  %v2455 = vsub.f32 0.0, %v2231
  %v2456 = vsub.f32 0.0, %v2232
  %v2457 = vsub.f32 0.0, %v2233
  %v2458 = vsub.f32 0.0, %v2234
  %v2459 = vsub.f32 0.0, %v2235
  %v2460 = vsub.f32 0.0, %v2236
  %v2461 = vsub.f32 0.0, %v2237
  %v2462 = vsub.f32 0.0, %v2238
  %v2463 = vsub.f32 0.0, %v2239
  %v2464 = vsub.f32 0.0, %v2240
  %v2465 = vsub.f32 0.0, %v2241
  %v2466 = vmul.f32 %v2450, %v2226
  %v2467 = vmul.f32 %v2451, %v2227
  %v2468 = vmul.f32 %v2452, %v2228
  %v2469 = vmul.f32 %v2453, %v2229
  %v2470 = vmul.f32 %v2454, %v2230
  %v2471 = vmul.f32 %v2455, %v2231
  %v2472 = vmul.f32 %v2456, %v2232
  %v2473 = vmul.f32 %v2457, %v2233
  %v2474 = vmul.f32 %v2458, %v2234
  %v2475 = vmul.f32 %v2459, %v2235
  %v2476 = vmul.f32 %v2460, %v2236
  %v2477 = vmul.f32 %v2461, %v2237
  %v2478 = vmul.f32 %v2462, %v2238
  %v2479 = vmul.f32 %v2463, %v2239
  %v2480 = vmul.f32 %v2464, %v2240
  %v2481 = vmul.f32 %v2465, %v2241
  %v2482 = vmul.f32 %v2466, 1.442695
  %v2483 = vpow.pop %v2482
  %v2484 = vmul.f32 %v2467, 1.442695
  %v2485 = vpow.pop %v2484
  %v2486 = vmul.f32 %v2468, 1.442695
  %v2487 = vpow.pop %v2486
  %v2488 = vmul.f32 %v2469, 1.442695
  %v2489 = vpow.pop %v2488
  %v2490 = vmul.f32 %v2470, 1.442695
  %v2491 = vpow.pop %v2490
  %v2492 = vmul.f32 %v2471, 1.442695
  %v2493 = vpow.pop %v2492
  %v2494 = vmul.f32 %v2472, 1.442695
  %v2495 = vpow.pop %v2494
  %v2496 = vmul.f32 %v2473, 1.442695
  %v2497 = vpow.pop %v2496
  %v2498 = vmul.f32 %v2474, 1.442695
  %v2499 = vpow.pop %v2498
  %v2500 = vmul.f32 %v2475, 1.442695
  %v2501 = vpow.pop %v2500
  %v2502 = vmul.f32 %v2476, 1.442695
  %v2503 = vpow.pop %v2502
  %v2504 = vmul.f32 %v2477, 1.442695
  %v2505 = vpow.pop %v2504
  %v2506 = vmul.f32 %v2478, 1.442695
  %v2507 = vpow.pop %v2506
  %v2508 = vmul.f32 %v2479, 1.442695
  %v2509 = vpow.pop %v2508
  %v2510 = vmul.f32 %v2480, 1.442695
  %v2511 = vpow.pop %v2510
  %v2512 = vmul.f32 %v2481, 1.442695
  %v2513 = vpow.pop %v2512
  %v2514 = vmul.f32 %v2434, %v2483
  %v2515 = vmul.f32 %v2435, %v2485
  %v2516 = vmul.f32 %v2436, %v2487
  %v2517 = vmul.f32 %v2437, %v2489
  %v2518 = vmul.f32 %v2438, %v2491
  %v2519 = vmul.f32 %v2439, %v2493
  %v2520 = vmul.f32 %v2440, %v2495
  %v2521 = vmul.f32 %v2441, %v2497
  %v2522 = vmul.f32 %v2442, %v2499
  %v2523 = vmul.f32 %v2443, %v2501
  %v2524 = vmul.f32 %v2444, %v2503
  %v2525 = vmul.f32 %v2445, %v2505
  %v2526 = vmul.f32 %v2446, %v2507
  %v2527 = vmul.f32 %v2447, %v2509
  %v2528 = vmul.f32 %v2448, %v2511
  %v2529 = vmul.f32 %v2449, %v2513
  %v2530 = vsub.f32 1.0, %v2514
  %v2531 = vsub.f32 1.0, %v2515
  %v2532 = vsub.f32 1.0, %v2516
  %v2533 = vsub.f32 1.0, %v2517
  %v2534 = vsub.f32 1.0, %v2518
  %v2535 = vsub.f32 1.0, %v2519
  %v2536 = vsub.f32 1.0, %v2520
  %v2537 = vsub.f32 1.0, %v2521
  %v2538 = vsub.f32 1.0, %v2522
  %v2539 = vsub.f32 1.0, %v2523
  %v2540 = vsub.f32 1.0, %v2524
  %v2541 = vsub.f32 1.0, %v2525
  %v2542 = vsub.f32 1.0, %v2526
  %v2543 = vsub.f32 1.0, %v2527
  %v2544 = vsub.f32 1.0, %v2528
  %v2545 = vsub.f32 1.0, %v2529
  %v2546 = vmul.f32 %v2210, %v2530
  %v2547 = vmul.f32 %v2211, %v2531
  %v2548 = vmul.f32 %v2212, %v2532
  %v2549 = vmul.f32 %v2213, %v2533
  %v2550 = vmul.f32 %v2214, %v2534
  %v2551 = vmul.f32 %v2215, %v2535
  %v2552 = vmul.f32 %v2216, %v2536
  %v2553 = vmul.f32 %v2217, %v2537
  %v2554 = vmul.f32 %v2218, %v2538
  %v2555 = vmul.f32 %v2219, %v2539
  %v2556 = vmul.f32 %v2220, %v2540
  %v2557 = vmul.f32 %v2221, %v2541
  %v2558 = vmul.f32 %v2222, %v2542
  %v2559 = vmul.f32 %v2223, %v2543
  %v2560 = vmul.f32 %v2224, %v2544
  %v2561 = vmul.f32 %v2225, %v2545
  %v2562 = vadd.f32 %v2546, 1.0
  %v2563 = vadd.f32 %v2547, 1.0
  %v2564 = vadd.f32 %v2548, 1.0
  %v2565 = vadd.f32 %v2549, 1.0
  %v2566 = vadd.f32 %v2550, 1.0
  %v2567 = vadd.f32 %v2551, 1.0
  %v2568 = vadd.f32 %v2552, 1.0
  %v2569 = vadd.f32 %v2553, 1.0
  %v2570 = vadd.f32 %v2554, 1.0
  %v2571 = vadd.f32 %v2555, 1.0
  %v2572 = vadd.f32 %v2556, 1.0
  %v2573 = vadd.f32 %v2557, 1.0
  %v2574 = vadd.f32 %v2558, 1.0
  %v2575 = vadd.f32 %v2559, 1.0
  %v2576 = vadd.f32 %v2560, 1.0
  %v2577 = vadd.f32 %v2561, 1.0
  %v2578 = vmul.f32 %v2162, %v2562
  %v2579 = vmul.f32 %v2163, %v2563
  %v2580 = vmul.f32 %v2164, %v2564
  %v2581 = vmul.f32 %v2165, %v2565
  %v2582 = vmul.f32 %v2166, %v2566
  %v2583 = vmul.f32 %v2167, %v2567
  %v2584 = vmul.f32 %v2168, %v2568
  %v2585 = vmul.f32 %v2169, %v2569
  %v2586 = vmul.f32 %v2170, %v2570
  %v2587 = vmul.f32 %v2171, %v2571
  %v2588 = vmul.f32 %v2172, %v2572
  %v2589 = vmul.f32 %v2173, %v2573
  %v2590 = vmul.f32 %v2174, %v2574
  %v2591 = vmul.f32 %v2175, %v2575
  %v2592 = vmul.f32 %v2176, %v2576
  %v2593 = vmul.f32 %v2177, %v2577
  %v2594 = vpack.c.bf16 %v2582, %v2578
  %v2595 = vpack.c.bf16 %v2583, %v2579
  %v2596 = vpack.c.bf16 %v2584, %v2580
  %v2597 = vpack.c.bf16 %v2585, %v2581
  %v2598 = vpack.c.bf16 %v2590, %v2586
  %v2599 = vpack.c.bf16 %v2591, %v2587
  %v2600 = vpack.c.bf16 %v2592, %v2588
  %v2601 = vpack.c.bf16 %v2593, %v2589
  %v2602 = vld [vmem:[%s5] sm:$0xff]
  %v2603 = vld [vmem:[%s5 + $0x8] sm:$0xff]
  %v2604 = vld [vmem:[%s5 + $0x10] sm:$0xff]
  %v2605 = vld [vmem:[%s5 + $0x18] sm:$0xff]
  %v2606 = vld [vmem:[%s5 + $0x20] sm:$0xff]
  %v2607 = vld [vmem:[%s5 + $0x28] sm:$0xff]
  %v2608 = vld [vmem:[%s5 + $0x30] sm:$0xff]
  %v2609 = vld [vmem:[%s5 + $0x38] sm:$0xff]
  %v2610 = vld [vmem:[%s5 + $0x40] sm:$0xff]
  %v2611 = vld [vmem:[%s5 + $0x48] sm:$0xff]
  %v2612 = vld [vmem:[%s5 + $0x50] sm:$0xff]
  %v2613 = vld [vmem:[%s5 + $0x58] sm:$0xff]
  %v2614 = vld [vmem:[%s5 + $0x60] sm:$0xff]
  %v2615 = vld [vmem:[%s5 + $0x68] sm:$0xff]
  %v2616 = vld [vmem:[%s5 + $0x70] sm:$0xff]
  %v2617 = vld [vmem:[%s5 + $0x78] sm:$0xff]
  %v2618 = vld [vmem:[%s5 + $0x80] sm:$0xff]
  %v2619 = vld [vmem:[%s5 + $0x88] sm:$0xff]
  %v2620 = vld [vmem:[%s5 + $0x90] sm:$0xff]
  %v2621 = vld [vmem:[%s5 + $0x98] sm:$0xff]
  %v2622 = vld [vmem:[%s5 + $0xa0] sm:$0xff]
  %v2623 = vld [vmem:[%s5 + $0xa8] sm:$0xff]
  %v2624 = vld [vmem:[%s5 + $0xb0] sm:$0xff]
  %v2625 = vld [vmem:[%s5 + $0xb8] sm:$0xff]
  %v2626 = vld [vmem:[%s5 + $0xc0] sm:$0xff]
  %v2627 = vld [vmem:[%s5 + $0xc8] sm:$0xff]
  %v2628 = vld [vmem:[%s5 + $0xd0] sm:$0xff]
  %v2629 = vld [vmem:[%s5 + $0xd8] sm:$0xff]
  %v2630 = vld [vmem:[%s5 + $0xe0] sm:$0xff]
  %v2631 = vld [vmem:[%s5 + $0xe8] sm:$0xff]
  %v2632 = vld [vmem:[%s5 + $0xf0] sm:$0xff]
  %v2633 = vld [vmem:[%s5 + $0xf8] sm:$0xff]
  %v2634 = vld [vmem:[%s5 + $0x100] sm:$0xff]
  %v2635 = vld [vmem:[%s5 + $0x108] sm:$0xff]
  %v2636 = vld [vmem:[%s5 + $0x110] sm:$0xff]
  %v2637 = vld [vmem:[%s5 + $0x118] sm:$0xff]
  %v2638 = vld [vmem:[%s5 + $0x120] sm:$0xff]
  %v2639 = vld [vmem:[%s5 + $0x128] sm:$0xff]
  %v2640 = vld [vmem:[%s5 + $0x130] sm:$0xff]
  %v2641 = vld [vmem:[%s5 + $0x138] sm:$0xff]
  %v2642 = vld [vmem:[%s5 + $0x140] sm:$0xff]
  %v2643 = vld [vmem:[%s5 + $0x148] sm:$0xff]
  %v2644 = vld [vmem:[%s5 + $0x150] sm:$0xff]
  %v2645 = vld [vmem:[%s5 + $0x158] sm:$0xff]
  %v2646 = vld [vmem:[%s5 + $0x160] sm:$0xff]
  %v2647 = vld [vmem:[%s5 + $0x168] sm:$0xff]
  %v2648 = vld [vmem:[%s5 + $0x170] sm:$0xff]
  %v2649 = vld [vmem:[%s5 + $0x178] sm:$0xff]
  %v2650 = vld [vmem:[%s5 + $0x180] sm:$0xff]
  %v2651 = vld [vmem:[%s5 + $0x188] sm:$0xff]
  %v2652 = vld [vmem:[%s5 + $0x190] sm:$0xff]
  %v2653 = vld [vmem:[%s5 + $0x198] sm:$0xff]
  %v2654 = vld [vmem:[%s5 + $0x1a0] sm:$0xff]
  %v2655 = vld [vmem:[%s5 + $0x1a8] sm:$0xff]
  %v2656 = vld [vmem:[%s5 + $0x1b0] sm:$0xff]
  %v2657 = vld [vmem:[%s5 + $0x1b8] sm:$0xff]
  %v2658 = vld [vmem:[%s5 + $0x1c0] sm:$0xff]
  %v2659 = vld [vmem:[%s5 + $0x1c8] sm:$0xff]
  %v2660 = vld [vmem:[%s5 + $0x1d0] sm:$0xff]
  %v2661 = vld [vmem:[%s5 + $0x1d8] sm:$0xff]
  %v2662 = vld [vmem:[%s5 + $0x1e0] sm:$0xff]
  %v2663 = vld [vmem:[%s5 + $0x1e8] sm:$0xff]
  %v2664 = vld [vmem:[%s5 + $0x1f0] sm:$0xff]
  %v2665 = vld [vmem:[%s5 + $0x1f8] sm:$0xff]
  %v2666 = vld [vmem:[%s6 + $0x10] sm:$0x3]
  %v2668 = vlaneseq
  %v2669 = vshrl.u32 %v2668, 7
  %v2670 = vsub.s32 0, %v2669
  %v2671 = vrot.slane %v2666, %v2670
  %v2672 = vlaneseq
  %v2673 = vshrl.u32 %v2672, 7
  %v2674 = vsub.s32 1, %v2673
  %v2675 = vrot.slane %v2666, %v2674
  %v2742 = vunpack.c.l.b16 %v2602
  %v2743 = vunpack.c.h.b16 %v2602
  %v2744 = vunpack.c.l.b16 %v2603
  %v2745 = vunpack.c.h.b16 %v2603
  %v2746 = vunpack.c.l.b16 %v2604
  %v2747 = vunpack.c.h.b16 %v2604
  %v2748 = vunpack.c.l.b16 %v2605
  %v2749 = vunpack.c.h.b16 %v2605
  %v2750 = vunpack.c.l.b16 %v2606
  %v2751 = vunpack.c.h.b16 %v2606
  %v2752 = vunpack.c.l.b16 %v2607
  %v2753 = vunpack.c.h.b16 %v2607
  %v2754 = vunpack.c.l.b16 %v2608
  %v2755 = vunpack.c.h.b16 %v2608
  %v2756 = vunpack.c.l.b16 %v2609
  %v2757 = vunpack.c.h.b16 %v2609
  %v2758 = vunpack.c.l.b16 %v2610
  %v2759 = vunpack.c.h.b16 %v2610
  %v2760 = vunpack.c.l.b16 %v2611
  %v2761 = vunpack.c.h.b16 %v2611
  %v2762 = vunpack.c.l.b16 %v2612
  %v2763 = vunpack.c.h.b16 %v2612
  %v2764 = vunpack.c.l.b16 %v2613
  %v2765 = vunpack.c.h.b16 %v2613
  %v2766 = vunpack.c.l.b16 %v2614
  %v2767 = vunpack.c.h.b16 %v2614
  %v2768 = vunpack.c.l.b16 %v2615
  %v2769 = vunpack.c.h.b16 %v2615
  %v2770 = vunpack.c.l.b16 %v2616
  %v2771 = vunpack.c.h.b16 %v2616
  %v2772 = vunpack.c.l.b16 %v2617
  %v2773 = vunpack.c.h.b16 %v2617
  %v2774 = vunpack.c.l.b16 %v2618
  %v2775 = vunpack.c.h.b16 %v2618
  %v2776 = vunpack.c.l.b16 %v2619
  %v2777 = vunpack.c.h.b16 %v2619
  %v2778 = vunpack.c.l.b16 %v2620
  %v2779 = vunpack.c.h.b16 %v2620
  %v2780 = vunpack.c.l.b16 %v2621
  %v2781 = vunpack.c.h.b16 %v2621
  %v2782 = vunpack.c.l.b16 %v2622
  %v2783 = vunpack.c.h.b16 %v2622
  %v2784 = vunpack.c.l.b16 %v2623
  %v2785 = vunpack.c.h.b16 %v2623
  %v2786 = vunpack.c.l.b16 %v2624
  %v2787 = vunpack.c.h.b16 %v2624
  %v2788 = vunpack.c.l.b16 %v2625
  %v2789 = vunpack.c.h.b16 %v2625
  %v2790 = vunpack.c.l.b16 %v2626
  %v2791 = vunpack.c.h.b16 %v2626
  %v2792 = vunpack.c.l.b16 %v2627
  %v2793 = vunpack.c.h.b16 %v2627
  %v2794 = vunpack.c.l.b16 %v2628
  %v2795 = vunpack.c.h.b16 %v2628
  %v2796 = vunpack.c.l.b16 %v2629
  %v2797 = vunpack.c.h.b16 %v2629
  %v2798 = vunpack.c.l.b16 %v2630
  %v2799 = vunpack.c.h.b16 %v2630
  %v2800 = vunpack.c.l.b16 %v2631
  %v2801 = vunpack.c.h.b16 %v2631
  %v2802 = vunpack.c.l.b16 %v2632
  %v2803 = vunpack.c.h.b16 %v2632
  %v2804 = vunpack.c.l.b16 %v2633
  %v2805 = vunpack.c.h.b16 %v2633
  %v2806 = vunpack.c.l.b16 %v2634
  %v2807 = vunpack.c.h.b16 %v2634
  %v2808 = vunpack.c.l.b16 %v2635
  %v2809 = vunpack.c.h.b16 %v2635
  %v2810 = vunpack.c.l.b16 %v2636
  %v2811 = vunpack.c.h.b16 %v2636
  %v2812 = vunpack.c.l.b16 %v2637
  %v2813 = vunpack.c.h.b16 %v2637
  %v2814 = vunpack.c.l.b16 %v2638
  %v2815 = vunpack.c.h.b16 %v2638
  %v2816 = vunpack.c.l.b16 %v2639
  %v2817 = vunpack.c.h.b16 %v2639
  %v2818 = vunpack.c.l.b16 %v2640
  %v2819 = vunpack.c.h.b16 %v2640
  %v2820 = vunpack.c.l.b16 %v2641
  %v2821 = vunpack.c.h.b16 %v2641
  %v2822 = vunpack.c.l.b16 %v2642
  %v2823 = vunpack.c.h.b16 %v2642
  %v2824 = vunpack.c.l.b16 %v2643
  %v2825 = vunpack.c.h.b16 %v2643
  %v2826 = vunpack.c.l.b16 %v2644
  %v2827 = vunpack.c.h.b16 %v2644
  %v2828 = vunpack.c.l.b16 %v2645
  %v2829 = vunpack.c.h.b16 %v2645
  %v2830 = vunpack.c.l.b16 %v2646
  %v2831 = vunpack.c.h.b16 %v2646
  %v2832 = vunpack.c.l.b16 %v2647
  %v2833 = vunpack.c.h.b16 %v2647
  %v2834 = vunpack.c.l.b16 %v2648
  %v2835 = vunpack.c.h.b16 %v2648
  %v2836 = vunpack.c.l.b16 %v2649
  %v2837 = vunpack.c.h.b16 %v2649
  %v2838 = vunpack.c.l.b16 %v2650
  %v2839 = vunpack.c.h.b16 %v2650
  %v2840 = vunpack.c.l.b16 %v2651
  %v2841 = vunpack.c.h.b16 %v2651
  %v2842 = vunpack.c.l.b16 %v2652
  %v2843 = vunpack.c.h.b16 %v2652
  %v2844 = vunpack.c.l.b16 %v2653
  %v2845 = vunpack.c.h.b16 %v2653
  %v2846 = vunpack.c.l.b16 %v2654
  %v2847 = vunpack.c.h.b16 %v2654
  %v2848 = vunpack.c.l.b16 %v2655
  %v2849 = vunpack.c.h.b16 %v2655
  %v2850 = vunpack.c.l.b16 %v2656
  %v2851 = vunpack.c.h.b16 %v2656
  %v2852 = vunpack.c.l.b16 %v2657
  %v2853 = vunpack.c.h.b16 %v2657
  %v2854 = vunpack.c.l.b16 %v2658
  %v2855 = vunpack.c.h.b16 %v2658
  %v2856 = vunpack.c.l.b16 %v2659
  %v2857 = vunpack.c.h.b16 %v2659
  %v2858 = vunpack.c.l.b16 %v2660
  %v2859 = vunpack.c.h.b16 %v2660
  %v2860 = vunpack.c.l.b16 %v2661
  %v2861 = vunpack.c.h.b16 %v2661
  %v2862 = vunpack.c.l.b16 %v2662
  %v2863 = vunpack.c.h.b16 %v2662
  %v2864 = vunpack.c.l.b16 %v2663
  %v2865 = vunpack.c.h.b16 %v2663
  %v2866 = vunpack.c.l.b16 %v2664
  %v2867 = vunpack.c.h.b16 %v2664
  %v2868 = vunpack.c.l.b16 %v2665
  %v2869 = vunpack.c.h.b16 %v2665
  %v2870 = vpack.c.b16 %v2744, %v2742
  %v2871 = vpack.c.b16 %v2745, %v2743
  %v2872 = vpack.c.b16 %v2748, %v2746
  %v2873 = vpack.c.b16 %v2749, %v2747
  %v2874 = vpack.c.b16 %v2752, %v2750
  %v2875 = vpack.c.b16 %v2753, %v2751
  %v2876 = vpack.c.b16 %v2756, %v2754
  %v2877 = vpack.c.b16 %v2757, %v2755
  %v2878 = vpack.c.b16 %v2760, %v2758
  %v2879 = vpack.c.b16 %v2761, %v2759
  %v2880 = vpack.c.b16 %v2764, %v2762
  %v2881 = vpack.c.b16 %v2765, %v2763
  %v2882 = vpack.c.b16 %v2768, %v2766
  %v2883 = vpack.c.b16 %v2769, %v2767
  %v2884 = vpack.c.b16 %v2772, %v2770
  %v2885 = vpack.c.b16 %v2773, %v2771
  %v2886 = vpack.c.b16 %v2776, %v2774
  %v2887 = vpack.c.b16 %v2777, %v2775
  %v2888 = vpack.c.b16 %v2780, %v2778
  %v2889 = vpack.c.b16 %v2781, %v2779
  %v2890 = vpack.c.b16 %v2784, %v2782
  %v2891 = vpack.c.b16 %v2785, %v2783
  %v2892 = vpack.c.b16 %v2788, %v2786
  %v2893 = vpack.c.b16 %v2789, %v2787
  %v2894 = vpack.c.b16 %v2792, %v2790
  %v2895 = vpack.c.b16 %v2793, %v2791
  %v2896 = vpack.c.b16 %v2796, %v2794
  %v2897 = vpack.c.b16 %v2797, %v2795
  %v2898 = vpack.c.b16 %v2800, %v2798
  %v2899 = vpack.c.b16 %v2801, %v2799
  %v2900 = vpack.c.b16 %v2804, %v2802
  %v2901 = vpack.c.b16 %v2805, %v2803
  %v2902 = vpack.c.b16 %v2808, %v2806
  %v2903 = vpack.c.b16 %v2809, %v2807
  %v2904 = vpack.c.b16 %v2812, %v2810
  %v2905 = vpack.c.b16 %v2813, %v2811
  %v2906 = vpack.c.b16 %v2816, %v2814
  %v2907 = vpack.c.b16 %v2817, %v2815
  %v2908 = vpack.c.b16 %v2820, %v2818
  %v2909 = vpack.c.b16 %v2821, %v2819
  %v2910 = vpack.c.b16 %v2824, %v2822
  %v2911 = vpack.c.b16 %v2825, %v2823
  %v2912 = vpack.c.b16 %v2828, %v2826
  %v2913 = vpack.c.b16 %v2829, %v2827
  %v2914 = vpack.c.b16 %v2832, %v2830
  %v2915 = vpack.c.b16 %v2833, %v2831
  %v2916 = vpack.c.b16 %v2836, %v2834
  %v2917 = vpack.c.b16 %v2837, %v2835
  %v2918 = vpack.c.b16 %v2840, %v2838
  %v2919 = vpack.c.b16 %v2841, %v2839
  %v2920 = vpack.c.b16 %v2844, %v2842
  %v2921 = vpack.c.b16 %v2845, %v2843
  %v2922 = vpack.c.b16 %v2848, %v2846
  %v2923 = vpack.c.b16 %v2849, %v2847
  %v2924 = vpack.c.b16 %v2852, %v2850
  %v2925 = vpack.c.b16 %v2853, %v2851
  %v2926 = vpack.c.b16 %v2856, %v2854
  %v2927 = vpack.c.b16 %v2857, %v2855
  %v2928 = vpack.c.b16 %v2860, %v2858
  %v2929 = vpack.c.b16 %v2861, %v2859
  %v2930 = vpack.c.b16 %v2864, %v2862
  %v2931 = vpack.c.b16 %v2865, %v2863
  %v2932 = vpack.c.b16 %v2868, %v2866
  %v2933 = vpack.c.b16 %v2869, %v2867
  %2998 = vmatprep.subr.bf16.mxu0 %v2871
  %2999 = vmatpush1.bf16.msra.mxu0 %v2870
  %3000 = vmatprep.subr.bf16.mxu0 %v2873
  %3001 = vmatpush1.bf16.msra.mxu0 %v2872
  %3002 = vmatprep.subr.bf16.mxu0 %v2875
  %3003 = vmatpush1.bf16.msra.mxu0 %v2874
  %3004 = vmatprep.subr.bf16.mxu0 %v2877
  %3005 = vmatpush1.bf16.msra.mxu0 %v2876
  %3006 = vmatprep.subr.bf16.mxu0 %v2879
  %3007 = vmatpush1.bf16.msra.mxu0 %v2878
  %3008 = vmatprep.subr.bf16.mxu0 %v2881
  %3009 = vmatpush1.bf16.msra.mxu0 %v2880
  %3010 = vmatprep.subr.bf16.mxu0 %v2883
  %3011 = vmatpush1.bf16.msra.mxu0 %v2882
  %3012 = vmatprep.subr.bf16.mxu0 %v2885
  %3013 = vmatpush1.bf16.msra.mxu0 %v2884
  %3014 = vmatprep.subr.bf16.mxu0 %v2887
  %3015 = vmatpush1.bf16.msra.mxu0 %v2886
  %3016 = vmatprep.subr.bf16.mxu0 %v2889
  %3017 = vmatpush1.bf16.msra.mxu0 %v2888
  %3018 = vmatprep.subr.bf16.mxu0 %v2891
  %3019 = vmatpush1.bf16.msra.mxu0 %v2890
  %3020 = vmatprep.subr.bf16.mxu0 %v2893
  %3021 = vmatpush1.bf16.msra.mxu0 %v2892
  %3022 = vmatprep.subr.bf16.mxu0 %v2895
  %3023 = vmatpush1.bf16.msra.mxu0 %v2894
  %3024 = vmatprep.subr.bf16.mxu0 %v2897
  %3025 = vmatpush1.bf16.msra.mxu0 %v2896
  %3026 = vmatprep.subr.bf16.mxu0 %v2899
  %3027 = vmatpush1.bf16.msra.mxu0 %v2898
  %3028 = vmatprep.subr.bf16.mxu0 %v2901
  %3029 = vmatpush1.bf16.msra.mxu0 %v2900
  %3030 = vmatprep.mubr.bf16.mxu0 %v2595
  %3031 = vmatmul.mubr.bf16.gmra.mrb[0].mxu0 %v2594
  %v3032 = vpop.f32.mrb[0].mxu0
  %v3033 = vadd.f32 %v2671, %v3032
  %v3034 = vpop.f32.mrb[0].mxu0
  %v3035 = vadd.f32 %v2675, %v3034
  %v3036 = vpop.f32.mrb[0].mxu0
  %v3037 = vadd.f32 %v2671, %v3036
  %v3038 = vpop.f32.mrb[0].mxu0
  %v3039 = vadd.f32 %v2675, %v3038
  %3040 = vmatprep.mubr.bf16.mxu0 %v2599
  %3041 = vmatmul.mubr.bf16.gmra.mrb[0].mxu0 %v2598
  %v3042 = vpop.f32.mrb[0].mxu0
  %v3043 = vadd.f32 %v2671, %v3042
  %v3044 = vpop.f32.mrb[0].mxu0
  %v3045 = vadd.f32 %v2675, %v3044
  %v3046 = vpop.f32.mrb[0].mxu0
  %v3047 = vadd.f32 %v2671, %v3046
  %v3048 = vpop.f32.mrb[0].mxu0
  %v3049 = vadd.f32 %v2675, %v3048
  %3050 = vdwg.mxu0
  %3051 = vmatprep.subr.bf16.mxu0 %v2903
  %3052 = vmatpush1.bf16.msra.mxu0 %v2902
  %3053 = vmatprep.subr.bf16.mxu0 %v2905
  %3054 = vmatpush1.bf16.msra.mxu0 %v2904
  %3055 = vmatprep.subr.bf16.mxu0 %v2907
  %3056 = vmatpush1.bf16.msra.mxu0 %v2906
  %3057 = vmatprep.subr.bf16.mxu0 %v2909
  %3058 = vmatpush1.bf16.msra.mxu0 %v2908
  %3059 = vmatprep.subr.bf16.mxu0 %v2911
  %3060 = vmatpush1.bf16.msra.mxu0 %v2910
  %3061 = vmatprep.subr.bf16.mxu0 %v2913
  %3062 = vmatpush1.bf16.msra.mxu0 %v2912
  %3063 = vmatprep.subr.bf16.mxu0 %v2915
  %3064 = vmatpush1.bf16.msra.mxu0 %v2914
  %3065 = vmatprep.subr.bf16.mxu0 %v2917
  %3066 = vmatpush1.bf16.msra.mxu0 %v2916
  %3067 = vmatprep.subr.bf16.mxu0 %v2919
  %3068 = vmatpush1.bf16.msra.mxu0 %v2918
  %3069 = vmatprep.subr.bf16.mxu0 %v2921
  %3070 = vmatpush1.bf16.msra.mxu0 %v2920
  %3071 = vmatprep.subr.bf16.mxu0 %v2923
  %3072 = vmatpush1.bf16.msra.mxu0 %v2922
  %3073 = vmatprep.subr.bf16.mxu0 %v2925
  %3074 = vmatpush1.bf16.msra.mxu0 %v2924
  %3075 = vmatprep.subr.bf16.mxu0 %v2927
  %3076 = vmatpush1.bf16.msra.mxu0 %v2926
  %3077 = vmatprep.subr.bf16.mxu0 %v2929
  %3078 = vmatpush1.bf16.msra.mxu0 %v2928
  %3079 = vmatprep.subr.bf16.mxu0 %v2931
  %3080 = vmatpush1.bf16.msra.mxu0 %v2930
  %3081 = vmatprep.subr.bf16.mxu0 %v2933
  %3082 = vmatpush1.bf16.msra.mxu0 %v2932
  %3083 = vmatprep.mubr.bf16.mxu0 %v2597
  %3084 = vmatmul.mubr.bf16.gmra.mrb[0].mxu0 %v2596
  %v3085 = vpop.f32.mrb[0].mxu0
  %v3086 = vadd.f32 %v3033, %v3085
  %v3087 = vpop.f32.mrb[0].mxu0
  %v3088 = vadd.f32 %v3035, %v3087
  %v3089 = vpop.f32.mrb[0].mxu0
  %v3090 = vadd.f32 %v3037, %v3089
  %v3091 = vpop.f32.mrb[0].mxu0
  %v3092 = vadd.f32 %v3039, %v3091
  %3093 = vmatprep.mubr.bf16.mxu0 %v2601
  %3094 = vmatmul.mubr.bf16.gmra.mrb[0].mxu0 %v2600
  %v3095 = vpop.f32.mrb[0].mxu0
  %v3096 = vadd.f32 %v3043, %v3095
  %v3097 = vpop.f32.mrb[0].mxu0
  %v3098 = vadd.f32 %v3045, %v3097
  %v3099 = vpop.f32.mrb[0].mxu0
  %v3100 = vadd.f32 %v3047, %v3099
  %v3101 = vpop.f32.mrb[0].mxu0
  %v3102 = vadd.f32 %v3049, %v3101
  %3103 = vdwg.mxu0
  %v3104 = vadd.f32 %v1638, %v3086
  %v3105 = vadd.f32 %v1639, %v3088
  %v3106 = vadd.f32 %v1640, %v3090
  %v3107 = vadd.f32 %v1641, %v3092
  %v3108 = vadd.f32 %v1642, %v3096
  %v3109 = vadd.f32 %v1643, %v3098
  %v3110 = vadd.f32 %v1644, %v3100
  %v3111 = vadd.f32 %v1645, %v3102
  %v3112 = vld [vmem:[%s6 + $0x12] sm:$0x3]
  %v3113 = vld [vmem:[%s6 + $0x14] sm:$0x3]
  %v3114 = vadd.f32 %v3104, %v3105
  %3115 = vadd.xlane.f32.xlu0 %v3114
  %v3116 = vpop.xlane.xlu0 %3115
  %v3117 = vadd.f32 %v3106, %v3107
  %3118 = vadd.xlane.f32.xlu0 %v3117
  %v3119 = vpop.xlane.xlu0 %3118
  %v3120 = vadd.f32 %v3108, %v3109
  %3121 = vadd.xlane.f32.xlu0 %v3120
  %v3122 = vpop.xlane.xlu0 %3121
  %v3123 = vadd.f32 %v3110, %v3111
  %3124 = vadd.xlane.f32.xlu0 %v3123
  %v3125 = vpop.xlane.xlu0 %3124
  %v3126 = vmul.f32 %v3116, %v78
  %v3127 = vmul.f32 %v3119, %v78
  %v3128 = vmul.f32 %v3122, %v78
  %v3129 = vmul.f32 %v3125, %v78
  %v3130 = vsub.f32 %v3104, %v3126
  %v3131 = vsub.f32 %v3105, %v3126
  %v3132 = vsub.f32 %v3106, %v3127
  %v3133 = vsub.f32 %v3107, %v3127
  %v3134 = vsub.f32 %v3108, %v3128
  %v3135 = vsub.f32 %v3109, %v3128
  %v3136 = vsub.f32 %v3110, %v3129
  %v3137 = vsub.f32 %v3111, %v3129
  %v3138 = vmul.f32 %v3130, %v3130
  %v3139 = vmul.f32 %v3131, %v3131
  %v3140 = vmul.f32 %v3132, %v3132
  %v3141 = vmul.f32 %v3133, %v3133
  %v3142 = vmul.f32 %v3134, %v3134
  %v3143 = vmul.f32 %v3135, %v3135
  %v3144 = vmul.f32 %v3136, %v3136
  %v3145 = vmul.f32 %v3137, %v3137
  %v3146 = vadd.f32 %v3138, %v3139
  %3147 = vadd.xlane.f32.xlu0 %v3146
  %v3148 = vpop.xlane.xlu0 %3147
  %v3149 = vadd.f32 %v3140, %v3141
  %3150 = vadd.xlane.f32.xlu0 %v3149
  %v3151 = vpop.xlane.xlu0 %3150
  %v3152 = vadd.f32 %v3142, %v3143
  %3153 = vadd.xlane.f32.xlu0 %v3152
  %v3154 = vpop.xlane.xlu0 %3153
  %v3155 = vadd.f32 %v3144, %v3145
  %3156 = vadd.xlane.f32.xlu0 %v3155
  %v3157 = vpop.xlane.xlu0 %3156
  %v3158 = vmul.f32 %v3148, %v78
  %v3159 = vmul.f32 %v3151, %v78
  %v3160 = vmul.f32 %v3154, %v78
  %v3161 = vmul.f32 %v3157, %v78
  %v3162 = vadd.f32 %v3158, 1e-05
  %v3163 = vadd.f32 %v3159, 1e-05
  %v3164 = vadd.f32 %v3160, 1e-05
  %v3165 = vadd.f32 %v3161, 1e-05
  %v3166 = vrsqrt.pop %v3162
  %v3167 = vrsqrt.pop %v3163
  %v3168 = vrsqrt.pop %v3164
  %v3169 = vrsqrt.pop %v3165
  %v3170 = vmul.f32 %v3130, %v3166
  %v3171 = vmul.f32 %v3131, %v3166
  %v3172 = vmul.f32 %v3132, %v3167
  %v3173 = vmul.f32 %v3133, %v3167
  %v3174 = vmul.f32 %v3134, %v3168
  %v3175 = vmul.f32 %v3135, %v3168
  %v3176 = vmul.f32 %v3136, %v3169
  %v3177 = vmul.f32 %v3137, %v3169
  %v3179 = vlaneseq
  %v3180 = vshrl.u32 %v3179, 7
  %v3181 = vsub.s32 0, %v3180
  %v3182 = vrot.slane %v3112, %v3181
  %v3183 = vlaneseq
  %v3184 = vshrl.u32 %v3183, 7
  %v3185 = vsub.s32 1, %v3184
  %v3186 = vrot.slane %v3112, %v3185
  %v3189 = vmul.f32 %v3170, %v3182
  %v3190 = vmul.f32 %v3171, %v3186
  %v3191 = vmul.f32 %v3172, %v3182
  %v3192 = vmul.f32 %v3173, %v3186
  %v3193 = vmul.f32 %v3174, %v3182
  %v3194 = vmul.f32 %v3175, %v3186
  %v3195 = vmul.f32 %v3176, %v3182
  %v3196 = vmul.f32 %v3177, %v3186
  %v3198 = vlaneseq
  %v3199 = vshrl.u32 %v3198, 7
  %v3200 = vsub.s32 0, %v3199
  %v3201 = vrot.slane %v3113, %v3200
  %v3202 = vlaneseq
  %v3203 = vshrl.u32 %v3202, 7
  %v3204 = vsub.s32 1, %v3203
  %v3205 = vrot.slane %v3113, %v3204
  %v3208 = vadd.f32 %v3189, %v3201
  %v3209 = vadd.f32 %v3190, %v3205
  %v3210 = vadd.f32 %v3191, %v3201
  %v3211 = vadd.f32 %v3192, %v3205
  %v3212 = vadd.f32 %v3193, %v3201
  %v3213 = vadd.f32 %v3194, %v3205
  %v3214 = vadd.f32 %v3195, %v3201
  %v3215 = vadd.f32 %v3196, %v3205
  %v3216 = vpack.c.bf16 %v3210, %v3208
  %v3217 = vpack.c.bf16 %v3211, %v3209
  %v3218 = vpack.c.bf16 %v3214, %v3212
  %v3219 = vpack.c.bf16 %v3215, %v3213
  %s3220 = scalar_lea.vmem %s4, 1536
  %v3221 = vld [vmem:[%s3220] sm:$0xff]
  %v3222 = vld [vmem:[%s3220 + $0x8] sm:$0xff]
  %v3223 = vld [vmem:[%s3220 + $0x10] sm:$0xff]
  %v3224 = vld [vmem:[%s3220 + $0x30] sm:$0xff]
  %v3225 = vld [vmem:[%s3220 + $0x38] sm:$0xff]
  %v3226 = vld [vmem:[%s3220 + $0x40] sm:$0xff]
  %v3227 = vld [vmem:[%s3220 + $0x60] sm:$0xff]
  %v3228 = vld [vmem:[%s3220 + $0x68] sm:$0xff]
  %v3229 = vld [vmem:[%s3220 + $0x70] sm:$0xff]
  %v3230 = vld [vmem:[%s3220 + $0x90] sm:$0xff]
  %v3231 = vld [vmem:[%s3220 + $0x98] sm:$0xff]
  %v3232 = vld [vmem:[%s3220 + $0xa0] sm:$0xff]
  %v3233 = vld [vmem:[%s3220 + $0xc0] sm:$0xff]
  %v3234 = vld [vmem:[%s3220 + $0xc8] sm:$0xff]
  %v3235 = vld [vmem:[%s3220 + $0xd0] sm:$0xff]
  %v3236 = vld [vmem:[%s3220 + $0xf0] sm:$0xff]
  %v3237 = vld [vmem:[%s3220 + $0xf8] sm:$0xff]
  %v3238 = vld [vmem:[%s3220 + $0x100] sm:$0xff]
  %v3239 = vld [vmem:[%s3220 + $0x120] sm:$0xff]
  %v3240 = vld [vmem:[%s3220 + $0x128] sm:$0xff]
  %v3241 = vld [vmem:[%s3220 + $0x130] sm:$0xff]
  %v3242 = vld [vmem:[%s3220 + $0x150] sm:$0xff]
  %v3243 = vld [vmem:[%s3220 + $0x158] sm:$0xff]
  %v3244 = vld [vmem:[%s3220 + $0x160] sm:$0xff]
  %v3245 = vld [vmem:[%s3220 + $0x180] sm:$0xff]
  %v3246 = vld [vmem:[%s3220 + $0x188] sm:$0xff]
  %v3247 = vld [vmem:[%s3220 + $0x190] sm:$0xff]
  %v3248 = vld [vmem:[%s3220 + $0x1b0] sm:$0xff]
  %v3249 = vld [vmem:[%s3220 + $0x1b8] sm:$0xff]
  %v3250 = vld [vmem:[%s3220 + $0x1c0] sm:$0xff]
  %v3251 = vld [vmem:[%s3220 + $0x1e0] sm:$0xff]
  %v3252 = vld [vmem:[%s3220 + $0x1e8] sm:$0xff]
  %v3253 = vld [vmem:[%s3220 + $0x1f0] sm:$0xff]
  %v3254 = vld [vmem:[%s3220 + $0x210] sm:$0xff]
  %v3255 = vld [vmem:[%s3220 + $0x218] sm:$0xff]
  %v3256 = vld [vmem:[%s3220 + $0x220] sm:$0xff]
  %v3257 = vld [vmem:[%s3220 + $0x240] sm:$0xff]
  %v3258 = vld [vmem:[%s3220 + $0x248] sm:$0xff]
  %v3259 = vld [vmem:[%s3220 + $0x250] sm:$0xff]
  %v3260 = vld [vmem:[%s3220 + $0x270] sm:$0xff]
  %v3261 = vld [vmem:[%s3220 + $0x278] sm:$0xff]
  %v3262 = vld [vmem:[%s3220 + $0x280] sm:$0xff]
  %v3263 = vld [vmem:[%s3220 + $0x2a0] sm:$0xff]
  %v3264 = vld [vmem:[%s3220 + $0x2a8] sm:$0xff]
  %v3265 = vld [vmem:[%s3220 + $0x2b0] sm:$0xff]
  %v3266 = vld [vmem:[%s3220 + $0x2d0] sm:$0xff]
  %v3267 = vld [vmem:[%s3220 + $0x2d8] sm:$0xff]
  %v3268 = vld [vmem:[%s3220 + $0x2e0] sm:$0xff]
  %v3269 = vld [vmem:[%s3220 + $0x300] sm:$0xff]
  %v3270 = vld [vmem:[%s3220 + $0x308] sm:$0xff]
  %v3271 = vld [vmem:[%s3220 + $0x310] sm:$0xff]
  %v3272 = vld [vmem:[%s3220 + $0x330] sm:$0xff]
  %v3273 = vld [vmem:[%s3220 + $0x338] sm:$0xff]
  %v3274 = vld [vmem:[%s3220 + $0x340] sm:$0xff]
  %v3275 = vld [vmem:[%s3220 + $0x360] sm:$0xff]
  %v3276 = vld [vmem:[%s3220 + $0x368] sm:$0xff]
  %v3277 = vld [vmem:[%s3220 + $0x370] sm:$0xff]
  %v3278 = vld [vmem:[%s3220 + $0x390] sm:$0xff]
  %v3279 = vld [vmem:[%s3220 + $0x398] sm:$0xff]
  %v3280 = vld [vmem:[%s3220 + $0x3a0] sm:$0xff]
  %v3281 = vld [vmem:[%s3220 + $0x3c0] sm:$0xff]
  %v3282 = vld [vmem:[%s3220 + $0x3c8] sm:$0xff]
  %v3283 = vld [vmem:[%s3220 + $0x3d0] sm:$0xff]
  %v3284 = vld [vmem:[%s3220 + $0x3f0] sm:$0xff]
  %v3285 = vld [vmem:[%s3220 + $0x3f8] sm:$0xff]
  %v3286 = vld [vmem:[%s3220 + $0x400] sm:$0xff]
  %v3287 = vld [vmem:[%s3220 + $0x420] sm:$0xff]
  %v3288 = vld [vmem:[%s3220 + $0x428] sm:$0xff]
  %v3289 = vld [vmem:[%s3220 + $0x430] sm:$0xff]
  %v3290 = vld [vmem:[%s3220 + $0x450] sm:$0xff]
  %v3291 = vld [vmem:[%s3220 + $0x458] sm:$0xff]
  %v3292 = vld [vmem:[%s3220 + $0x460] sm:$0xff]
  %v3293 = vld [vmem:[%s3220 + $0x480] sm:$0xff]
  %v3294 = vld [vmem:[%s3220 + $0x488] sm:$0xff]
  %v3295 = vld [vmem:[%s3220 + $0x490] sm:$0xff]
  %v3296 = vld [vmem:[%s3220 + $0x4b0] sm:$0xff]
  %v3297 = vld [vmem:[%s3220 + $0x4b8] sm:$0xff]
  %v3298 = vld [vmem:[%s3220 + $0x4c0] sm:$0xff]
  %v3299 = vld [vmem:[%s3220 + $0x4e0] sm:$0xff]
  %v3300 = vld [vmem:[%s3220 + $0x4e8] sm:$0xff]
  %v3301 = vld [vmem:[%s3220 + $0x4f0] sm:$0xff]
  %v3302 = vld [vmem:[%s3220 + $0x510] sm:$0xff]
  %v3303 = vld [vmem:[%s3220 + $0x518] sm:$0xff]
  %v3304 = vld [vmem:[%s3220 + $0x520] sm:$0xff]
  %v3305 = vld [vmem:[%s3220 + $0x540] sm:$0xff]
  %v3306 = vld [vmem:[%s3220 + $0x548] sm:$0xff]
  %v3307 = vld [vmem:[%s3220 + $0x550] sm:$0xff]
  %v3308 = vld [vmem:[%s3220 + $0x570] sm:$0xff]
  %v3309 = vld [vmem:[%s3220 + $0x578] sm:$0xff]
  %v3310 = vld [vmem:[%s3220 + $0x580] sm:$0xff]
  %v3311 = vld [vmem:[%s3220 + $0x5a0] sm:$0xff]
  %v3312 = vld [vmem:[%s3220 + $0x5a8] sm:$0xff]
  %v3313 = vld [vmem:[%s3220 + $0x5b0] sm:$0xff]
  %v3314 = vld [vmem:[%s3220 + $0x5d0] sm:$0xff]
  %v3315 = vld [vmem:[%s3220 + $0x5d8] sm:$0xff]
  %v3316 = vld [vmem:[%s3220 + $0x5e0] sm:$0xff]
  %s3317 = scalar_lea.vmem %s6, 22
  %v3318 = vld [vmem:[%s3317] sm:$0x3f]
  %v3320 = vlaneseq
  %v3321 = vshrl.u32 %v3320, 7
  %v3322 = vsub.s32 0, %v3321
  %v3323 = vrot.slane %v3318, %v3322
  %v3324 = vlaneseq
  %v3325 = vshrl.u32 %v3324, 7
  %v3326 = vsub.s32 1, %v3325
  %v3327 = vrot.slane %v3318, %v3326
  %v3328 = vlaneseq
  %v3329 = vshrl.u32 %v3328, 7
  %v3330 = vsub.s32 2, %v3329
  %v3331 = vrot.slane %v3318, %v3330
  %v3332 = vlaneseq
  %v3333 = vshrl.u32 %v3332, 7
  %v3334 = vsub.s32 3, %v3333
  %v3335 = vrot.slane %v3318, %v3334
  %v3336 = vlaneseq
  %v3337 = vshrl.u32 %v3336, 7
  %v3338 = vsub.s32 4, %v3337
  %v3339 = vrot.slane %v3318, %v3338
  %v3340 = vlaneseq
  %v3341 = vshrl.u32 %v3340, 7
  %v3342 = vsub.s32 5, %v3341
  %v3343 = vrot.slane %v3318, %v3342
  %v3446 = vunpack.c.l.b16 %v3221
  %v3447 = vunpack.c.h.b16 %v3221
  %v3448 = vunpack.c.l.b16 %v3222
  %v3449 = vunpack.c.h.b16 %v3222
  %v3450 = vunpack.c.l.b16 %v3223
  %v3451 = vunpack.c.h.b16 %v3223
  %v3452 = vunpack.c.l.b16 %v3224
  %v3453 = vunpack.c.h.b16 %v3224
  %v3454 = vunpack.c.l.b16 %v3225
  %v3455 = vunpack.c.h.b16 %v3225
  %v3456 = vunpack.c.l.b16 %v3226
  %v3457 = vunpack.c.h.b16 %v3226
  %v3458 = vunpack.c.l.b16 %v3227
  %v3459 = vunpack.c.h.b16 %v3227
  %v3460 = vunpack.c.l.b16 %v3228
  %v3461 = vunpack.c.h.b16 %v3228
  %v3462 = vunpack.c.l.b16 %v3229
  %v3463 = vunpack.c.h.b16 %v3229
  %v3464 = vunpack.c.l.b16 %v3230
  %v3465 = vunpack.c.h.b16 %v3230
  %v3466 = vunpack.c.l.b16 %v3231
  %v3467 = vunpack.c.h.b16 %v3231
  %v3468 = vunpack.c.l.b16 %v3232
  %v3469 = vunpack.c.h.b16 %v3232
  %v3470 = vunpack.c.l.b16 %v3233
  %v3471 = vunpack.c.h.b16 %v3233
  %v3472 = vunpack.c.l.b16 %v3234
  %v3473 = vunpack.c.h.b16 %v3234
  %v3474 = vunpack.c.l.b16 %v3235
  %v3475 = vunpack.c.h.b16 %v3235
  %v3476 = vunpack.c.l.b16 %v3236
  %v3477 = vunpack.c.h.b16 %v3236
  %v3478 = vunpack.c.l.b16 %v3237
  %v3479 = vunpack.c.h.b16 %v3237
  %v3480 = vunpack.c.l.b16 %v3238
  %v3481 = vunpack.c.h.b16 %v3238
  %v3482 = vunpack.c.l.b16 %v3239
  %v3483 = vunpack.c.h.b16 %v3239
  %v3484 = vunpack.c.l.b16 %v3240
  %v3485 = vunpack.c.h.b16 %v3240
  %v3486 = vunpack.c.l.b16 %v3241
  %v3487 = vunpack.c.h.b16 %v3241
  %v3488 = vunpack.c.l.b16 %v3242
  %v3489 = vunpack.c.h.b16 %v3242
  %v3490 = vunpack.c.l.b16 %v3243
  %v3491 = vunpack.c.h.b16 %v3243
  %v3492 = vunpack.c.l.b16 %v3244
  %v3493 = vunpack.c.h.b16 %v3244
  %v3494 = vunpack.c.l.b16 %v3245
  %v3495 = vunpack.c.h.b16 %v3245
  %v3496 = vunpack.c.l.b16 %v3246
  %v3497 = vunpack.c.h.b16 %v3246
  %v3498 = vunpack.c.l.b16 %v3247
  %v3499 = vunpack.c.h.b16 %v3247
  %v3500 = vunpack.c.l.b16 %v3248
  %v3501 = vunpack.c.h.b16 %v3248
  %v3502 = vunpack.c.l.b16 %v3249
  %v3503 = vunpack.c.h.b16 %v3249
  %v3504 = vunpack.c.l.b16 %v3250
  %v3505 = vunpack.c.h.b16 %v3250
  %v3506 = vunpack.c.l.b16 %v3251
  %v3507 = vunpack.c.h.b16 %v3251
  %v3508 = vunpack.c.l.b16 %v3252
  %v3509 = vunpack.c.h.b16 %v3252
  %v3510 = vunpack.c.l.b16 %v3253
  %v3511 = vunpack.c.h.b16 %v3253
  %v3512 = vunpack.c.l.b16 %v3254
  %v3513 = vunpack.c.h.b16 %v3254
  %v3514 = vunpack.c.l.b16 %v3255
  %v3515 = vunpack.c.h.b16 %v3255
  %v3516 = vunpack.c.l.b16 %v3256
  %v3517 = vunpack.c.h.b16 %v3256
  %v3518 = vunpack.c.l.b16 %v3257
  %v3519 = vunpack.c.h.b16 %v3257
  %v3520 = vunpack.c.l.b16 %v3258
  %v3521 = vunpack.c.h.b16 %v3258
  %v3522 = vunpack.c.l.b16 %v3259
  %v3523 = vunpack.c.h.b16 %v3259
  %v3524 = vunpack.c.l.b16 %v3260
  %v3525 = vunpack.c.h.b16 %v3260
  %v3526 = vunpack.c.l.b16 %v3261
  %v3527 = vunpack.c.h.b16 %v3261
  %v3528 = vunpack.c.l.b16 %v3262
  %v3529 = vunpack.c.h.b16 %v3262
  %v3530 = vunpack.c.l.b16 %v3263
  %v3531 = vunpack.c.h.b16 %v3263
  %v3532 = vunpack.c.l.b16 %v3264
  %v3533 = vunpack.c.h.b16 %v3264
  %v3534 = vunpack.c.l.b16 %v3265
  %v3535 = vunpack.c.h.b16 %v3265
  %v3536 = vunpack.c.l.b16 %v3266
  %v3537 = vunpack.c.h.b16 %v3266
  %v3538 = vunpack.c.l.b16 %v3267
  %v3539 = vunpack.c.h.b16 %v3267
  %v3540 = vunpack.c.l.b16 %v3268
  %v3541 = vunpack.c.h.b16 %v3268
  %v3542 = vunpack.c.l.b16 %v3269
  %v3543 = vunpack.c.h.b16 %v3269
  %v3544 = vunpack.c.l.b16 %v3270
  %v3545 = vunpack.c.h.b16 %v3270
  %v3546 = vunpack.c.l.b16 %v3271
  %v3547 = vunpack.c.h.b16 %v3271
  %v3548 = vunpack.c.l.b16 %v3272
  %v3549 = vunpack.c.h.b16 %v3272
  %v3550 = vunpack.c.l.b16 %v3273
  %v3551 = vunpack.c.h.b16 %v3273
  %v3552 = vunpack.c.l.b16 %v3274
  %v3553 = vunpack.c.h.b16 %v3274
  %v3554 = vunpack.c.l.b16 %v3275
  %v3555 = vunpack.c.h.b16 %v3275
  %v3556 = vunpack.c.l.b16 %v3276
  %v3557 = vunpack.c.h.b16 %v3276
  %v3558 = vunpack.c.l.b16 %v3277
  %v3559 = vunpack.c.h.b16 %v3277
  %v3560 = vunpack.c.l.b16 %v3278
  %v3561 = vunpack.c.h.b16 %v3278
  %v3562 = vunpack.c.l.b16 %v3279
  %v3563 = vunpack.c.h.b16 %v3279
  %v3564 = vunpack.c.l.b16 %v3280
  %v3565 = vunpack.c.h.b16 %v3280
  %v3566 = vunpack.c.l.b16 %v3281
  %v3567 = vunpack.c.h.b16 %v3281
  %v3568 = vunpack.c.l.b16 %v3282
  %v3569 = vunpack.c.h.b16 %v3282
  %v3570 = vunpack.c.l.b16 %v3283
  %v3571 = vunpack.c.h.b16 %v3283
  %v3572 = vunpack.c.l.b16 %v3284
  %v3573 = vunpack.c.h.b16 %v3284
  %v3574 = vunpack.c.l.b16 %v3285
  %v3575 = vunpack.c.h.b16 %v3285
  %v3576 = vunpack.c.l.b16 %v3286
  %v3577 = vunpack.c.h.b16 %v3286
  %v3578 = vunpack.c.l.b16 %v3287
  %v3579 = vunpack.c.h.b16 %v3287
  %v3580 = vunpack.c.l.b16 %v3288
  %v3581 = vunpack.c.h.b16 %v3288
  %v3582 = vunpack.c.l.b16 %v3289
  %v3583 = vunpack.c.h.b16 %v3289
  %v3584 = vunpack.c.l.b16 %v3290
  %v3585 = vunpack.c.h.b16 %v3290
  %v3586 = vunpack.c.l.b16 %v3291
  %v3587 = vunpack.c.h.b16 %v3291
  %v3588 = vunpack.c.l.b16 %v3292
  %v3589 = vunpack.c.h.b16 %v3292
  %v3590 = vunpack.c.l.b16 %v3293
  %v3591 = vunpack.c.h.b16 %v3293
  %v3592 = vunpack.c.l.b16 %v3294
  %v3593 = vunpack.c.h.b16 %v3294
  %v3594 = vunpack.c.l.b16 %v3295
  %v3595 = vunpack.c.h.b16 %v3295
  %v3596 = vunpack.c.l.b16 %v3296
  %v3597 = vunpack.c.h.b16 %v3296
  %v3598 = vunpack.c.l.b16 %v3297
  %v3599 = vunpack.c.h.b16 %v3297
  %v3600 = vunpack.c.l.b16 %v3298
  %v3601 = vunpack.c.h.b16 %v3298
  %v3602 = vunpack.c.l.b16 %v3299
  %v3603 = vunpack.c.h.b16 %v3299
  %v3604 = vunpack.c.l.b16 %v3300
  %v3605 = vunpack.c.h.b16 %v3300
  %v3606 = vunpack.c.l.b16 %v3301
  %v3607 = vunpack.c.h.b16 %v3301
  %v3608 = vunpack.c.l.b16 %v3302
  %v3609 = vunpack.c.h.b16 %v3302
  %v3610 = vunpack.c.l.b16 %v3303
  %v3611 = vunpack.c.h.b16 %v3303
  %v3612 = vunpack.c.l.b16 %v3304
  %v3613 = vunpack.c.h.b16 %v3304
  %v3614 = vunpack.c.l.b16 %v3305
  %v3615 = vunpack.c.h.b16 %v3305
  %v3616 = vunpack.c.l.b16 %v3306
  %v3617 = vunpack.c.h.b16 %v3306
  %v3618 = vunpack.c.l.b16 %v3307
  %v3619 = vunpack.c.h.b16 %v3307
  %v3620 = vunpack.c.l.b16 %v3308
  %v3621 = vunpack.c.h.b16 %v3308
  %v3622 = vunpack.c.l.b16 %v3309
  %v3623 = vunpack.c.h.b16 %v3309
  %v3624 = vunpack.c.l.b16 %v3310
  %v3625 = vunpack.c.h.b16 %v3310
  %v3626 = vunpack.c.l.b16 %v3311
  %v3627 = vunpack.c.h.b16 %v3311
  %v3628 = vunpack.c.l.b16 %v3312
  %v3629 = vunpack.c.h.b16 %v3312
  %v3630 = vunpack.c.l.b16 %v3313
  %v3631 = vunpack.c.h.b16 %v3313
  %v3632 = vunpack.c.l.b16 %v3314
  %v3633 = vunpack.c.h.b16 %v3314
  %v3634 = vunpack.c.l.b16 %v3315
  %v3635 = vunpack.c.h.b16 %v3315
  %v3636 = vunpack.c.l.b16 %v3316
  %v3637 = vunpack.c.h.b16 %v3316
  %v3638 = vpack.c.b16 %v3452, %v3446
  %v3639 = vpack.c.b16 %v3453, %v3447
  %v3640 = vpack.c.b16 %v3454, %v3448
  %v3641 = vpack.c.b16 %v3455, %v3449
  %v3642 = vpack.c.b16 %v3456, %v3450
  %v3643 = vpack.c.b16 %v3457, %v3451
  %v3644 = vpack.c.b16 %v3464, %v3458
  %v3645 = vpack.c.b16 %v3465, %v3459
  %v3646 = vpack.c.b16 %v3466, %v3460
  %v3647 = vpack.c.b16 %v3467, %v3461
  %v3648 = vpack.c.b16 %v3468, %v3462
  %v3649 = vpack.c.b16 %v3469, %v3463
  %v3650 = vpack.c.b16 %v3476, %v3470
  %v3651 = vpack.c.b16 %v3477, %v3471
  %v3652 = vpack.c.b16 %v3478, %v3472
  %v3653 = vpack.c.b16 %v3479, %v3473
  %v3654 = vpack.c.b16 %v3480, %v3474
  %v3655 = vpack.c.b16 %v3481, %v3475
  %v3656 = vpack.c.b16 %v3488, %v3482
  %v3657 = vpack.c.b16 %v3489, %v3483
  %v3658 = vpack.c.b16 %v3490, %v3484
  %v3659 = vpack.c.b16 %v3491, %v3485
  %v3660 = vpack.c.b16 %v3492, %v3486
  %v3661 = vpack.c.b16 %v3493, %v3487
  %v3662 = vpack.c.b16 %v3500, %v3494
  %v3663 = vpack.c.b16 %v3501, %v3495
  %v3664 = vpack.c.b16 %v3502, %v3496
  %v3665 = vpack.c.b16 %v3503, %v3497
  %v3666 = vpack.c.b16 %v3504, %v3498
  %v3667 = vpack.c.b16 %v3505, %v3499
  %v3668 = vpack.c.b16 %v3512, %v3506
  %v3669 = vpack.c.b16 %v3513, %v3507
  %v3670 = vpack.c.b16 %v3514, %v3508
  %v3671 = vpack.c.b16 %v3515, %v3509
  %v3672 = vpack.c.b16 %v3516, %v3510
  %v3673 = vpack.c.b16 %v3517, %v3511
  %v3674 = vpack.c.b16 %v3524, %v3518
  %v3675 = vpack.c.b16 %v3525, %v3519
  %v3676 = vpack.c.b16 %v3526, %v3520
  %v3677 = vpack.c.b16 %v3527, %v3521
  %v3678 = vpack.c.b16 %v3528, %v3522
  %v3679 = vpack.c.b16 %v3529, %v3523
  %v3680 = vpack.c.b16 %v3536, %v3530
  %v3681 = vpack.c.b16 %v3537, %v3531
  %v3682 = vpack.c.b16 %v3538, %v3532
  %v3683 = vpack.c.b16 %v3539, %v3533
  %v3684 = vpack.c.b16 %v3540, %v3534
  %v3685 = vpack.c.b16 %v3541, %v3535
  %v3686 = vpack.c.b16 %v3548, %v3542
  %v3687 = vpack.c.b16 %v3549, %v3543
  %v3688 = vpack.c.b16 %v3550, %v3544
  %v3689 = vpack.c.b16 %v3551, %v3545
  %v3690 = vpack.c.b16 %v3552, %v3546
  %v3691 = vpack.c.b16 %v3553, %v3547
  %v3692 = vpack.c.b16 %v3560, %v3554
  %v3693 = vpack.c.b16 %v3561, %v3555
  %v3694 = vpack.c.b16 %v3562, %v3556
  %v3695 = vpack.c.b16 %v3563, %v3557
  %v3696 = vpack.c.b16 %v3564, %v3558
  %v3697 = vpack.c.b16 %v3565, %v3559
  %v3698 = vpack.c.b16 %v3572, %v3566
  %v3699 = vpack.c.b16 %v3573, %v3567
  %v3700 = vpack.c.b16 %v3574, %v3568
  %v3701 = vpack.c.b16 %v3575, %v3569
  %v3702 = vpack.c.b16 %v3576, %v3570
  %v3703 = vpack.c.b16 %v3577, %v3571
  %v3704 = vpack.c.b16 %v3584, %v3578
  %v3705 = vpack.c.b16 %v3585, %v3579
  %v3706 = vpack.c.b16 %v3586, %v3580
  %v3707 = vpack.c.b16 %v3587, %v3581
  %v3708 = vpack.c.b16 %v3588, %v3582
  %v3709 = vpack.c.b16 %v3589, %v3583
  %v3710 = vpack.c.b16 %v3596, %v3590
  %v3711 = vpack.c.b16 %v3597, %v3591
  %v3712 = vpack.c.b16 %v3598, %v3592
  %v3713 = vpack.c.b16 %v3599, %v3593
  %v3714 = vpack.c.b16 %v3600, %v3594
  %v3715 = vpack.c.b16 %v3601, %v3595
  %v3716 = vpack.c.b16 %v3608, %v3602
  %v3717 = vpack.c.b16 %v3609, %v3603
  %v3718 = vpack.c.b16 %v3610, %v3604
  %v3719 = vpack.c.b16 %v3611, %v3605
  %v3720 = vpack.c.b16 %v3612, %v3606
  %v3721 = vpack.c.b16 %v3613, %v3607
  %v3722 = vpack.c.b16 %v3620, %v3614
  %v3723 = vpack.c.b16 %v3621, %v3615
  %v3724 = vpack.c.b16 %v3622, %v3616
  %v3725 = vpack.c.b16 %v3623, %v3617
  %v3726 = vpack.c.b16 %v3624, %v3618
  %v3727 = vpack.c.b16 %v3625, %v3619
  %v3728 = vpack.c.b16 %v3632, %v3626
  %v3729 = vpack.c.b16 %v3633, %v3627
  %v3730 = vpack.c.b16 %v3634, %v3628
  %v3731 = vpack.c.b16 %v3635, %v3629
  %v3732 = vpack.c.b16 %v3636, %v3630
  %v3733 = vpack.c.b16 %v3637, %v3631
  %3830 = vmatprep.subr.bf16.mxu0 %v3639
  %3831 = vmatpush1.bf16.msra.mxu0 %v3638
  %3832 = vmatprep.subr.bf16.mxu0 %v3645
  %3833 = vmatpush1.bf16.msra.mxu0 %v3644
  %3834 = vmatprep.subr.bf16.mxu0 %v3651
  %3835 = vmatpush1.bf16.msra.mxu0 %v3650
  %3836 = vmatprep.subr.bf16.mxu0 %v3657
  %3837 = vmatpush1.bf16.msra.mxu0 %v3656
  %3838 = vmatprep.subr.bf16.mxu0 %v3663
  %3839 = vmatpush1.bf16.msra.mxu0 %v3662
  %3840 = vmatprep.subr.bf16.mxu0 %v3669
  %3841 = vmatpush1.bf16.msra.mxu0 %v3668
  %3842 = vmatprep.subr.bf16.mxu0 %v3675
  %3843 = vmatpush1.bf16.msra.mxu0 %v3674
  %3844 = vmatprep.subr.bf16.mxu0 %v3681
  %3845 = vmatpush1.bf16.msra.mxu0 %v3680
  %3846 = vmatprep.subr.bf16.mxu0 %v3687
  %3847 = vmatpush1.bf16.msra.mxu0 %v3686
  %3848 = vmatprep.subr.bf16.mxu0 %v3693
  %3849 = vmatpush1.bf16.msra.mxu0 %v3692
  %3850 = vmatprep.subr.bf16.mxu0 %v3699
  %3851 = vmatpush1.bf16.msra.mxu0 %v3698
  %3852 = vmatprep.subr.bf16.mxu0 %v3705
  %3853 = vmatpush1.bf16.msra.mxu0 %v3704
  %3854 = vmatprep.subr.bf16.mxu0 %v3711
  %3855 = vmatpush1.bf16.msra.mxu0 %v3710
  %3856 = vmatprep.subr.bf16.mxu0 %v3717
  %3857 = vmatpush1.bf16.msra.mxu0 %v3716
  %3858 = vmatprep.subr.bf16.mxu0 %v3723
  %3859 = vmatpush1.bf16.msra.mxu0 %v3722
  %3860 = vmatprep.subr.bf16.mxu0 %v3729
  %3861 = vmatpush1.bf16.msra.mxu0 %v3728
  %3862 = vmatprep.mubr.bf16.mxu0 %v3217
  %3863 = vmatmul.mubr.bf16.gmra.mrb[0].mxu0 %v3216
  %v3864 = vpop.f32.mrb[0].mxu0
  %v3865 = vadd.f32 %v3323, %v3864
  %v3866 = vpop.f32.mrb[0].mxu0
  %v3867 = vadd.f32 %v3327, %v3866
  %v3868 = vpop.f32.mrb[0].mxu0
  %v3869 = vadd.f32 %v3323, %v3868
  %v3870 = vpop.f32.mrb[0].mxu0
  %v3871 = vadd.f32 %v3327, %v3870
  %3872 = vmatprep.mubr.bf16.mxu0 %v3219
  %3873 = vmatmul.mubr.bf16.gmra.mrb[0].mxu0 %v3218
  %v3874 = vpop.f32.mrb[0].mxu0
  %v3875 = vadd.f32 %v3323, %v3874
  %v3876 = vpop.f32.mrb[0].mxu0
  %v3877 = vadd.f32 %v3327, %v3876
  %v3878 = vpop.f32.mrb[0].mxu0
  %v3879 = vadd.f32 %v3323, %v3878
  %v3880 = vpop.f32.mrb[0].mxu0
  %v3881 = vadd.f32 %v3327, %v3880
  %3882 = vdwg.mxu0
  %3883 = vmatprep.subr.bf16.mxu0 %v3641
  %3884 = vmatpush1.bf16.msra.mxu0 %v3640
  %3885 = vmatprep.subr.bf16.mxu0 %v3647
  %3886 = vmatpush1.bf16.msra.mxu0 %v3646
  %3887 = vmatprep.subr.bf16.mxu0 %v3653
  %3888 = vmatpush1.bf16.msra.mxu0 %v3652
  %3889 = vmatprep.subr.bf16.mxu0 %v3659
  %3890 = vmatpush1.bf16.msra.mxu0 %v3658
  %3891 = vmatprep.subr.bf16.mxu0 %v3665
  %3892 = vmatpush1.bf16.msra.mxu0 %v3664
  %3893 = vmatprep.subr.bf16.mxu0 %v3671
  %3894 = vmatpush1.bf16.msra.mxu0 %v3670
  %3895 = vmatprep.subr.bf16.mxu0 %v3677
  %3896 = vmatpush1.bf16.msra.mxu0 %v3676
  %3897 = vmatprep.subr.bf16.mxu0 %v3683
  %3898 = vmatpush1.bf16.msra.mxu0 %v3682
  %3899 = vmatprep.subr.bf16.mxu0 %v3689
  %3900 = vmatpush1.bf16.msra.mxu0 %v3688
  %3901 = vmatprep.subr.bf16.mxu0 %v3695
  %3902 = vmatpush1.bf16.msra.mxu0 %v3694
  %3903 = vmatprep.subr.bf16.mxu0 %v3701
  %3904 = vmatpush1.bf16.msra.mxu0 %v3700
  %3905 = vmatprep.subr.bf16.mxu0 %v3707
  %3906 = vmatpush1.bf16.msra.mxu0 %v3706
  %3907 = vmatprep.subr.bf16.mxu0 %v3713
  %3908 = vmatpush1.bf16.msra.mxu0 %v3712
  %3909 = vmatprep.subr.bf16.mxu0 %v3719
  %3910 = vmatpush1.bf16.msra.mxu0 %v3718
  %3911 = vmatprep.subr.bf16.mxu0 %v3725
  %3912 = vmatpush1.bf16.msra.mxu0 %v3724
  %3913 = vmatprep.subr.bf16.mxu0 %v3731
  %3914 = vmatpush1.bf16.msra.mxu0 %v3730
  %3915 = vmatprep.mubr.bf16.mxu0 %v3217
  %3916 = vmatmul.mubr.bf16.gmra.mrb[0].mxu0 %v3216
  %v3917 = vpop.f32.mrb[0].mxu0
  %v3918 = vadd.f32 %v3331, %v3917
  %v3919 = vpop.f32.mrb[0].mxu0
  %v3920 = vadd.f32 %v3335, %v3919
  %v3921 = vpop.f32.mrb[0].mxu0
  %v3922 = vadd.f32 %v3331, %v3921
  %v3923 = vpop.f32.mrb[0].mxu0
  %v3924 = vadd.f32 %v3335, %v3923
  %3925 = vmatprep.mubr.bf16.mxu0 %v3219
  %3926 = vmatmul.mubr.bf16.gmra.mrb[0].mxu0 %v3218
  %v3927 = vpop.f32.mrb[0].mxu0
  %v3928 = vadd.f32 %v3331, %v3927
  %v3929 = vpop.f32.mrb[0].mxu0
  %v3930 = vadd.f32 %v3335, %v3929
  %v3931 = vpop.f32.mrb[0].mxu0
  %v3932 = vadd.f32 %v3331, %v3931
  %v3933 = vpop.f32.mrb[0].mxu0
  %v3934 = vadd.f32 %v3335, %v3933
  %3935 = vdwg.mxu0
  %3936 = vmatprep.subr.bf16.mxu0 %v3643
  %3937 = vmatpush1.bf16.msra.mxu0 %v3642
  %3938 = vmatprep.subr.bf16.mxu0 %v3649
  %3939 = vmatpush1.bf16.msra.mxu0 %v3648
  %3940 = vmatprep.subr.bf16.mxu0 %v3655
  %3941 = vmatpush1.bf16.msra.mxu0 %v3654
  %3942 = vmatprep.subr.bf16.mxu0 %v3661
  %3943 = vmatpush1.bf16.msra.mxu0 %v3660
  %3944 = vmatprep.subr.bf16.mxu0 %v3667
  %3945 = vmatpush1.bf16.msra.mxu0 %v3666
  %3946 = vmatprep.subr.bf16.mxu0 %v3673
  %3947 = vmatpush1.bf16.msra.mxu0 %v3672
  %3948 = vmatprep.subr.bf16.mxu0 %v3679
  %3949 = vmatpush1.bf16.msra.mxu0 %v3678
  %3950 = vmatprep.subr.bf16.mxu0 %v3685
  %3951 = vmatpush1.bf16.msra.mxu0 %v3684
  %3952 = vmatprep.subr.bf16.mxu0 %v3691
  %3953 = vmatpush1.bf16.msra.mxu0 %v3690
  %3954 = vmatprep.subr.bf16.mxu0 %v3697
  %3955 = vmatpush1.bf16.msra.mxu0 %v3696
  %3956 = vmatprep.subr.bf16.mxu0 %v3703
  %3957 = vmatpush1.bf16.msra.mxu0 %v3702
  %3958 = vmatprep.subr.bf16.mxu0 %v3709
  %3959 = vmatpush1.bf16.msra.mxu0 %v3708
  %3960 = vmatprep.subr.bf16.mxu0 %v3715
  %3961 = vmatpush1.bf16.msra.mxu0 %v3714
  %3962 = vmatprep.subr.bf16.mxu0 %v3721
  %3963 = vmatpush1.bf16.msra.mxu0 %v3720
  %3964 = vmatprep.subr.bf16.mxu0 %v3727
  %3965 = vmatpush1.bf16.msra.mxu0 %v3726
  %3966 = vmatprep.subr.bf16.mxu0 %v3733
  %3967 = vmatpush1.bf16.msra.mxu0 %v3732
  %3968 = vmatprep.mubr.bf16.mxu0 %v3217
  %3969 = vmatmul.mubr.bf16.gmra.mrb[0].mxu0 %v3216
  %v3970 = vpop.f32.mrb[0].mxu0
  %v3971 = vadd.f32 %v3339, %v3970
  %v3972 = vpop.f32.mrb[0].mxu0
  %v3973 = vadd.f32 %v3343, %v3972
  %v3974 = vpop.f32.mrb[0].mxu0
  %v3975 = vadd.f32 %v3339, %v3974
  %v3976 = vpop.f32.mrb[0].mxu0
  %v3977 = vadd.f32 %v3343, %v3976
  %3978 = vmatprep.mubr.bf16.mxu0 %v3219
  %3979 = vmatmul.mubr.bf16.gmra.mrb[0].mxu0 %v3218
  %v3980 = vpop.f32.mrb[0].mxu0
  %v3981 = vadd.f32 %v3339, %v3980
  %v3982 = vpop.f32.mrb[0].mxu0
  %v3983 = vadd.f32 %v3343, %v3982
  %v3984 = vpop.f32.mrb[0].mxu0
  %v3985 = vadd.f32 %v3339, %v3984
  %v3986 = vpop.f32.mrb[0].mxu0
  %v3987 = vadd.f32 %v3343, %v3986
  %3988 = vdwg.mxu0
  %v3989 = vpack.c.bf16 %v3869, %v3865
  %v3990 = vpack.c.bf16 %v3871, %v3867
  %v3991 = vpack.c.bf16 %v3922, %v3918
  %v3992 = vpack.c.bf16 %v3924, %v3920
  %v3993 = vpack.c.bf16 %v3975, %v3971
  %v3994 = vpack.c.bf16 %v3977, %v3973
  %v3995 = vpack.c.bf16 %v3879, %v3875
  %v3996 = vpack.c.bf16 %v3881, %v3877
  %v3997 = vpack.c.bf16 %v3932, %v3928
  %v3998 = vpack.c.bf16 %v3934, %v3930
  %v3999 = vpack.c.bf16 %v3985, %v3981
  %v4000 = vpack.c.bf16 %v3987, %v3983
  %4001 = vmatprep.subr.bf16.mxu0 0
  %4002 = vmatpush1.bf16.xpose.msra.mxu0 %v3991
  %4003 = vmatprep.subr.bf16.mxu0 0
  %4004 = vmatpush1.bf16.xpose.msra.mxu0 %v3997
  %4005 = vmatprep.subr.bf16.mxu0 0
  %4006 = vmatpush1.bf16.xpose.msra.mxu0 0
  %4007 = vmatprep.subr.bf16.mxu0 0
  %4008 = vmatpush1.bf16.xpose.msra.mxu0 0
  %4009 = vmatprep.subr.bf16.mxu0 0
  %4010 = vmatpush1.bf16.xpose.msra.mxu0 0
  %4011 = vmatprep.subr.bf16.mxu0 0
  %4012 = vmatpush1.bf16.xpose.msra.mxu0 0
  %4013 = vmatprep.subr.bf16.mxu0 0
  %4014 = vmatpush1.bf16.xpose.msra.mxu0 0
  %4015 = vmatprep.subr.bf16.mxu0 0
  %4016 = vmatpush1.bf16.xpose.msra.mxu0 0
  %4017 = vmatprep.subr.bf16.mxu0 0
  %4018 = vmatpush1.bf16.xpose.msra.mxu0 0
  %4019 = vmatprep.subr.bf16.mxu0 0
  %4020 = vmatpush1.bf16.xpose.msra.mxu0 0
  %4021 = vmatprep.subr.bf16.mxu0 0
  %4022 = vmatpush1.bf16.xpose.msra.mxu0 0
  %4023 = vmatprep.subr.bf16.mxu0 0
  %4024 = vmatpush1.bf16.xpose.msra.mxu0 0
  %4025 = vmatprep.subr.bf16.mxu0 0
  %4026 = vmatpush1.bf16.xpose.msra.mxu0 0
  %4027 = vmatprep.subr.bf16.mxu0 0
  %4028 = vmatpush1.bf16.xpose.msra.mxu0 0
  %4029 = vmatprep.subr.bf16.mxu0 0
  %4030 = vmatpush1.bf16.xpose.msra.mxu0 0
  %4031 = vmatprep.subr.bf16.mxu0 0
  %4032 = vmatpush1.bf16.xpose.msra.mxu0 0
  %4033 = vmatprep.mubr.bf16.mxu0 0
  %4034 = vmatmul.mubr.bf16.gmra.mrb[0].mxu0 %v3989
  %v4035 = vpop.f32.mrb[0].mxu0
  %v4036 = vadd.f32 %v169, %v4035
  %v4037 = vpop.f32.mrb[0].mxu0
  %v4038 = vpop.f32.mrb[0].mxu0
  %v4039 = vadd.f32 %v170, %v4038
  %v4040 = vpop.f32.mrb[0].mxu0
  %4041 = vmatprep.mubr.bf16.mxu0 0
  %4042 = vmatmul.mubr.bf16.gmra.mrb[0].mxu0 %v3995
  %v4043 = vpop.f32.mrb[0].mxu0
  %v4044 = vadd.f32 %v171, %v4043
  %v4045 = vpop.f32.mrb[0].mxu0
  %v4046 = vpop.f32.mrb[0].mxu0
  %v4047 = vadd.f32 %v172, %v4046
  %v4048 = vpop.f32.mrb[0].mxu0
  %4049 = vdwg.mxu0
  %v4050 = vsel %vm1005, %v4036, -inf
  %4051 = vmax.xlane.f32.xlu0 %v4050
  %v4052 = vpop.xlane.xlu0 %4051
  %v4053 = vsel %vm1005, %v4039, -inf
  %4054 = vmax.xlane.f32.xlu0 %v4053
  %v4055 = vpop.xlane.xlu0 %4054
  %v4056 = vsel %vm1005, %v4044, -inf
  %4057 = vmax.xlane.f32.xlu0 %v4056
  %v4058 = vpop.xlane.xlu0 %4057
  %v4059 = vsel %vm1005, %v4047, -inf
  %4060 = vmax.xlane.f32.xlu0 %v4059
  %v4061 = vpop.xlane.xlu0 %4060
  %v4062 = vsub.f32 %v4036, %v4052
  %v4063 = vsub.f32 %v4039, %v4055
  %v4064 = vsub.f32 %v4044, %v4058
  %v4065 = vsub.f32 %v4047, %v4061
  %v4066 = vmul.f32 %v4062, 1.442695
  %v4067 = vpow.pop %v4066
  %v4068 = vmul.f32 %v4063, 1.442695
  %v4069 = vpow.pop %v4068
  %v4070 = vmul.f32 %v4064, 1.442695
  %v4071 = vpow.pop %v4070
  %v4072 = vmul.f32 %v4065, 1.442695
  %v4073 = vpow.pop %v4072
  %v4074 = vsel %vm1005, %v4067, 0.0
  %4075 = vadd.xlane.f32.xlu0 %v4074
  %v4076 = vpop.xlane.xlu0 %4075
  %v4077 = vsel %vm1005, %v4069, 0.0
  %4078 = vadd.xlane.f32.xlu0 %v4077
  %v4079 = vpop.xlane.xlu0 %4078
  %v4080 = vsel %vm1005, %v4071, 0.0
  %4081 = vadd.xlane.f32.xlu0 %v4080
  %v4082 = vpop.xlane.xlu0 %4081
  %v4083 = vsel %vm1005, %v4073, 0.0
  %4084 = vadd.xlane.f32.xlu0 %v4083
  %v4085 = vpop.xlane.xlu0 %4084
  %v4086 = vrcp.pop %v4076
  %v4087 = vrcp.pop %v4079
  %v4088 = vrcp.pop %v4082
  %v4089 = vrcp.pop %v4085
  %v4090 = vmul.f32 %v4067, %v4086
  %v4091 = vmul.f32 %v4069, %v4087
  %v4092 = vmul.f32 %v4071, %v4088
  %v4093 = vmul.f32 %v4073, %v4089
  %v4094 = vpack.c.bf16 %v4091, %v4090
  %v4095 = vpack.c.bf16 %v4093, %v4092
  %v4097 = vsel %vm1005, %v4094, 0
  %v4100 = vsel %vm1005, %v4095, 0
  %4102 = vmatprep.subr.bf16.mxu0 0
  %4103 = vmatpush1.bf16.msra.mxu0 %v3993
  %4104 = vmatprep.subr.bf16.mxu0 0
  %4105 = vmatpush1.bf16.msra.mxu0 %v3999
  %4106 = vmatprep.subr.bf16.mxu0 0
  %4107 = vmatpush1.bf16.msra.mxu0 0
  %4108 = vmatprep.subr.bf16.mxu0 0
  %4109 = vmatpush1.bf16.msra.mxu0 0
  %4110 = vmatprep.subr.bf16.mxu0 0
  %4111 = vmatpush1.bf16.msra.mxu0 0
  %4112 = vmatprep.subr.bf16.mxu0 0
  %4113 = vmatpush1.bf16.msra.mxu0 0
  %4114 = vmatprep.subr.bf16.mxu0 0
  %4115 = vmatpush1.bf16.msra.mxu0 0
  %4116 = vmatprep.subr.bf16.mxu0 0
  %4117 = vmatpush1.bf16.msra.mxu0 0
  %4118 = vmatprep.subr.bf16.mxu0 0
  %4119 = vmatpush1.bf16.msra.mxu0 0
  %4120 = vmatprep.subr.bf16.mxu0 0
  %4121 = vmatpush1.bf16.msra.mxu0 0
  %4122 = vmatprep.subr.bf16.mxu0 0
  %4123 = vmatpush1.bf16.msra.mxu0 0
  %4124 = vmatprep.subr.bf16.mxu0 0
  %4125 = vmatpush1.bf16.msra.mxu0 0
  %4126 = vmatprep.subr.bf16.mxu0 0
  %4127 = vmatpush1.bf16.msra.mxu0 0
  %4128 = vmatprep.subr.bf16.mxu0 0
  %4129 = vmatpush1.bf16.msra.mxu0 0
  %4130 = vmatprep.subr.bf16.mxu0 0
  %4131 = vmatpush1.bf16.msra.mxu0 0
  %4132 = vmatprep.subr.bf16.mxu0 0
  %4133 = vmatpush1.bf16.msra.mxu0 0
  %4134 = vmatprep.mubr.bf16.mxu0 0
  %4135 = vmatmul.mubr.bf16.gmra.mrb[0].mxu0 %v4097
  %v4136 = vpop.f32.mrb[0].mxu0
  %v4137 = vadd.f32 0.0, %v4136
  %v4138 = vpop.f32.mrb[0].mxu0
  %v4139 = vpop.f32.mrb[0].mxu0
  %v4140 = vadd.f32 0.0, %v4139
  %v4141 = vpop.f32.mrb[0].mxu0
  %4142 = vmatprep.mubr.bf16.mxu0 0
  %4143 = vmatmul.mubr.bf16.gmra.mrb[0].mxu0 %v4100
  %v4144 = vpop.f32.mrb[0].mxu0
  %v4145 = vadd.f32 0.0, %v4144
  %v4146 = vpop.f32.mrb[0].mxu0
  %v4147 = vpop.f32.mrb[0].mxu0
  %v4148 = vadd.f32 0.0, %v4147
  %v4149 = vpop.f32.mrb[0].mxu0
  %4150 = vdwg.mxu0
  %4151 = vst [vmem:[#allocation2] sm:$0xff] %v4137
  %4152 = vst [vmem:[#allocation2 + $0x10] sm:$0xff] %v4140
  %4153 = vst [vmem:[#allocation2 + $0x20] sm:$0xff] %v4145
  %4154 = vst [vmem:[#allocation2 + $0x30] sm:$0xff] %v4148
  %4155 = vmatprep.subr.bf16.mxu0 0
  %4156 = vmatpush1.bf16.xpose.msra.mxu0 %v3992
  %4157 = vmatprep.subr.bf16.mxu0 0
  %4158 = vmatpush1.bf16.xpose.msra.mxu0 %v3998
  %4159 = vmatprep.subr.bf16.mxu0 0
  %4160 = vmatpush1.bf16.xpose.msra.mxu0 0
  %4161 = vmatprep.subr.bf16.mxu0 0
  %4162 = vmatpush1.bf16.xpose.msra.mxu0 0
  %4163 = vmatprep.subr.bf16.mxu0 0
  %4164 = vmatpush1.bf16.xpose.msra.mxu0 0
  %4165 = vmatprep.subr.bf16.mxu0 0
  %4166 = vmatpush1.bf16.xpose.msra.mxu0 0
  %4167 = vmatprep.subr.bf16.mxu0 0
  %4168 = vmatpush1.bf16.xpose.msra.mxu0 0
  %4169 = vmatprep.subr.bf16.mxu0 0
  %4170 = vmatpush1.bf16.xpose.msra.mxu0 0
  %4171 = vmatprep.subr.bf16.mxu0 0
  %4172 = vmatpush1.bf16.xpose.msra.mxu0 0
  %4173 = vmatprep.subr.bf16.mxu0 0
  %4174 = vmatpush1.bf16.xpose.msra.mxu0 0
  %4175 = vmatprep.subr.bf16.mxu0 0
  %4176 = vmatpush1.bf16.xpose.msra.mxu0 0
  %4177 = vmatprep.subr.bf16.mxu0 0
  %4178 = vmatpush1.bf16.xpose.msra.mxu0 0
  %4179 = vmatprep.subr.bf16.mxu0 0
  %4180 = vmatpush1.bf16.xpose.msra.mxu0 0
  %4181 = vmatprep.subr.bf16.mxu0 0
  %4182 = vmatpush1.bf16.xpose.msra.mxu0 0
  %4183 = vmatprep.subr.bf16.mxu0 0
  %4184 = vmatpush1.bf16.xpose.msra.mxu0 0
  %4185 = vmatprep.subr.bf16.mxu0 0
  %4186 = vmatpush1.bf16.xpose.msra.mxu0 0
  %4187 = vmatprep.mubr.bf16.mxu0 0
  %4188 = vmatmul.mubr.bf16.gmra.mrb[0].mxu0 %v3990
  %v4189 = vpop.f32.mrb[0].mxu0
  %v4190 = vadd.f32 %v169, %v4189
  %v4191 = vpop.f32.mrb[0].mxu0
  %v4192 = vpop.f32.mrb[0].mxu0
  %v4193 = vadd.f32 %v170, %v4192
  %v4194 = vpop.f32.mrb[0].mxu0
  %4195 = vmatprep.mubr.bf16.mxu0 0
  %4196 = vmatmul.mubr.bf16.gmra.mrb[0].mxu0 %v3996
  %v4197 = vpop.f32.mrb[0].mxu0
  %v4198 = vadd.f32 %v171, %v4197
  %v4199 = vpop.f32.mrb[0].mxu0
  %v4200 = vpop.f32.mrb[0].mxu0
  %v4201 = vadd.f32 %v172, %v4200
  %v4202 = vpop.f32.mrb[0].mxu0
  %4203 = vdwg.mxu0
  %v4204 = vsel %vm1005, %v4190, -inf
  %4205 = vmax.xlane.f32.xlu0 %v4204
  %v4206 = vpop.xlane.xlu0 %4205
  %v4207 = vsel %vm1005, %v4193, -inf
  %4208 = vmax.xlane.f32.xlu0 %v4207
  %v4209 = vpop.xlane.xlu0 %4208
  %v4210 = vsel %vm1005, %v4198, -inf
  %4211 = vmax.xlane.f32.xlu0 %v4210
  %v4212 = vpop.xlane.xlu0 %4211
  %v4213 = vsel %vm1005, %v4201, -inf
  %4214 = vmax.xlane.f32.xlu0 %v4213
  %v4215 = vpop.xlane.xlu0 %4214
  %v4216 = vsub.f32 %v4190, %v4206
  %v4217 = vsub.f32 %v4193, %v4209
  %v4218 = vsub.f32 %v4198, %v4212
  %v4219 = vsub.f32 %v4201, %v4215
  %v4220 = vmul.f32 %v4216, 1.442695
  %v4221 = vpow.pop %v4220
  %v4222 = vmul.f32 %v4217, 1.442695
  %v4223 = vpow.pop %v4222
  %v4224 = vmul.f32 %v4218, 1.442695
  %v4225 = vpow.pop %v4224
  %v4226 = vmul.f32 %v4219, 1.442695
  %v4227 = vpow.pop %v4226
  %v4228 = vsel %vm1005, %v4221, 0.0
  %4229 = vadd.xlane.f32.xlu0 %v4228
  %v4230 = vpop.xlane.xlu0 %4229
  %v4231 = vsel %vm1005, %v4223, 0.0
  %4232 = vadd.xlane.f32.xlu0 %v4231
  %v4233 = vpop.xlane.xlu0 %4232
  %v4234 = vsel %vm1005, %v4225, 0.0
  %4235 = vadd.xlane.f32.xlu0 %v4234
  %v4236 = vpop.xlane.xlu0 %4235
  %v4237 = vsel %vm1005, %v4227, 0.0
  %4238 = vadd.xlane.f32.xlu0 %v4237
  %v4239 = vpop.xlane.xlu0 %4238
  %v4240 = vrcp.pop %v4230
  %v4241 = vrcp.pop %v4233
  %v4242 = vrcp.pop %v4236
  %v4243 = vrcp.pop %v4239
  %v4244 = vmul.f32 %v4221, %v4240
  %v4245 = vmul.f32 %v4223, %v4241
  %v4246 = vmul.f32 %v4225, %v4242
  %v4247 = vmul.f32 %v4227, %v4243
  %v4248 = vpack.c.bf16 %v4245, %v4244
  %v4249 = vpack.c.bf16 %v4247, %v4246
  %v4251 = vsel %vm1005, %v4248, 0
  %v4254 = vsel %vm1005, %v4249, 0
  %4256 = vmatprep.subr.bf16.mxu0 0
  %4257 = vmatpush1.bf16.msra.mxu0 %v3994
  %4258 = vmatprep.subr.bf16.mxu0 0
  %4259 = vmatpush1.bf16.msra.mxu0 %v4000
  %4260 = vmatprep.subr.bf16.mxu0 0
  %4261 = vmatpush1.bf16.msra.mxu0 0
  %4262 = vmatprep.subr.bf16.mxu0 0
  %4263 = vmatpush1.bf16.msra.mxu0 0
  %4264 = vmatprep.subr.bf16.mxu0 0
  %4265 = vmatpush1.bf16.msra.mxu0 0
  %4266 = vmatprep.subr.bf16.mxu0 0
  %4267 = vmatpush1.bf16.msra.mxu0 0
  %4268 = vmatprep.subr.bf16.mxu0 0
  %4269 = vmatpush1.bf16.msra.mxu0 0
  %4270 = vmatprep.subr.bf16.mxu0 0
  %4271 = vmatpush1.bf16.msra.mxu0 0
  %4272 = vmatprep.subr.bf16.mxu0 0
  %4273 = vmatpush1.bf16.msra.mxu0 0
  %4274 = vmatprep.subr.bf16.mxu0 0
  %4275 = vmatpush1.bf16.msra.mxu0 0
  %4276 = vmatprep.subr.bf16.mxu0 0
  %4277 = vmatpush1.bf16.msra.mxu0 0
  %4278 = vmatprep.subr.bf16.mxu0 0
  %4279 = vmatpush1.bf16.msra.mxu0 0
  %4280 = vmatprep.subr.bf16.mxu0 0
  %4281 = vmatpush1.bf16.msra.mxu0 0
  %4282 = vmatprep.subr.bf16.mxu0 0
  %4283 = vmatpush1.bf16.msra.mxu0 0
  %4284 = vmatprep.subr.bf16.mxu0 0
  %4285 = vmatpush1.bf16.msra.mxu0 0
  %4286 = vmatprep.subr.bf16.mxu0 0
  %4287 = vmatpush1.bf16.msra.mxu0 0
  %4288 = vmatprep.mubr.bf16.mxu0 0
  %4289 = vmatmul.mubr.bf16.gmra.mrb[0].mxu0 %v4251
  %v4290 = vpop.f32.mrb[0].mxu0
  %v4291 = vadd.f32 0.0, %v4290
  %v4292 = vpop.f32.mrb[0].mxu0
  %v4293 = vpop.f32.mrb[0].mxu0
  %v4294 = vadd.f32 0.0, %v4293
  %v4295 = vpop.f32.mrb[0].mxu0
  %4296 = vmatprep.mubr.bf16.mxu0 0
  %4297 = vmatmul.mubr.bf16.gmra.mrb[0].mxu0 %v4254
  %v4298 = vpop.f32.mrb[0].mxu0
  %v4299 = vadd.f32 0.0, %v4298
  %v4300 = vpop.f32.mrb[0].mxu0
  %v4301 = vpop.f32.mrb[0].mxu0
  %v4302 = vadd.f32 0.0, %v4301
  %v4303 = vpop.f32.mrb[0].mxu0
  %4304 = vdwg.mxu0
  %4305 = vst [vmem:[#allocation2 + $0x8] sm:$0xff] %v4291
  %4306 = vst [vmem:[#allocation2 + $0x18] sm:$0xff] %v4294
  %4307 = vst [vmem:[#allocation2 + $0x28] sm:$0xff] %v4299
  %4308 = vst [vmem:[#allocation2 + $0x38] sm:$0xff] %v4302
  %v4309 = vld [vmem:[#allocation2] sm:$0xff]
  %v4310 = vld [vmem:[#allocation2 + $0x8] sm:$0xff]
  %v4311 = vld [vmem:[#allocation2 + $0x10] sm:$0xff]
  %v4312 = vld [vmem:[#allocation2 + $0x18] sm:$0xff]
  %v4313 = vld [vmem:[#allocation2 + $0x20] sm:$0xff]
  %v4314 = vld [vmem:[#allocation2 + $0x28] sm:$0xff]
  %v4315 = vld [vmem:[#allocation2 + $0x30] sm:$0xff]
  %v4316 = vld [vmem:[#allocation2 + $0x38] sm:$0xff]
  %v4317 = vpack.c.bf16 %v4311, %v4309
  %v4318 = vpack.c.bf16 %v4312, %v4310
  %v4319 = vpack.c.bf16 %v4315, %v4313
  %v4320 = vpack.c.bf16 %v4316, %v4314
  %v4321 = vld [vmem:[%s3220 + $0x18] sm:$0xff]
  %v4322 = vld [vmem:[%s3220 + $0x48] sm:$0xff]
  %v4323 = vld [vmem:[%s3220 + $0x78] sm:$0xff]
  %v4324 = vld [vmem:[%s3220 + $0xa8] sm:$0xff]
  %v4325 = vld [vmem:[%s3220 + $0xd8] sm:$0xff]
  %v4326 = vld [vmem:[%s3220 + $0x108] sm:$0xff]
  %v4327 = vld [vmem:[%s3220 + $0x138] sm:$0xff]
  %v4328 = vld [vmem:[%s3220 + $0x168] sm:$0xff]
  %v4329 = vld [vmem:[%s3220 + $0x198] sm:$0xff]
  %v4330 = vld [vmem:[%s3220 + $0x1c8] sm:$0xff]
  %v4331 = vld [vmem:[%s3220 + $0x1f8] sm:$0xff]
  %v4332 = vld [vmem:[%s3220 + $0x228] sm:$0xff]
  %v4333 = vld [vmem:[%s3220 + $0x258] sm:$0xff]
  %v4334 = vld [vmem:[%s3220 + $0x288] sm:$0xff]
  %v4335 = vld [vmem:[%s3220 + $0x2b8] sm:$0xff]
  %v4336 = vld [vmem:[%s3220 + $0x2e8] sm:$0xff]
  %v4337 = vld [vmem:[%s3220 + $0x318] sm:$0xff]
  %v4338 = vld [vmem:[%s3220 + $0x348] sm:$0xff]
  %v4339 = vld [vmem:[%s3220 + $0x378] sm:$0xff]
  %v4340 = vld [vmem:[%s3220 + $0x3a8] sm:$0xff]
  %v4341 = vld [vmem:[%s3220 + $0x3d8] sm:$0xff]
  %v4342 = vld [vmem:[%s3220 + $0x408] sm:$0xff]
  %v4343 = vld [vmem:[%s3220 + $0x438] sm:$0xff]
  %v4344 = vld [vmem:[%s3220 + $0x468] sm:$0xff]
  %v4345 = vld [vmem:[%s3220 + $0x498] sm:$0xff]
  %v4346 = vld [vmem:[%s3220 + $0x4c8] sm:$0xff]
  %v4347 = vld [vmem:[%s3220 + $0x4f8] sm:$0xff]
  %v4348 = vld [vmem:[%s3220 + $0x528] sm:$0xff]
  %v4349 = vld [vmem:[%s3220 + $0x558] sm:$0xff]
  %v4350 = vld [vmem:[%s3220 + $0x588] sm:$0xff]
  %v4351 = vld [vmem:[%s3220 + $0x5b8] sm:$0xff]
  %v4352 = vld [vmem:[%s3220 + $0x5e8] sm:$0xff]
  %v4353 = vld [vmem:[%s3317 + $0x6] sm:$0x3]
  %v4355 = vlaneseq
  %v4356 = vshrl.u32 %v4355, 7
  %v4357 = vsub.s32 0, %v4356
  %v4358 = vrot.slane %v4353, %v4357
  %v4359 = vlaneseq
  %v4360 = vshrl.u32 %v4359, 7
  %v4361 = vsub.s32 1, %v4360
  %v4362 = vrot.slane %v4353, %v4361
  %v4397 = vunpack.c.l.b16 %v4321
  %v4398 = vunpack.c.h.b16 %v4321
  %v4399 = vunpack.c.l.b16 %v4322
  %v4400 = vunpack.c.h.b16 %v4322
  %v4401 = vunpack.c.l.b16 %v4323
  %v4402 = vunpack.c.h.b16 %v4323
  %v4403 = vunpack.c.l.b16 %v4324
  %v4404 = vunpack.c.h.b16 %v4324
  %v4405 = vunpack.c.l.b16 %v4325
  %v4406 = vunpack.c.h.b16 %v4325
  %v4407 = vunpack.c.l.b16 %v4326
  %v4408 = vunpack.c.h.b16 %v4326
  %v4409 = vunpack.c.l.b16 %v4327
  %v4410 = vunpack.c.h.b16 %v4327
  %v4411 = vunpack.c.l.b16 %v4328
  %v4412 = vunpack.c.h.b16 %v4328
  %v4413 = vunpack.c.l.b16 %v4329
  %v4414 = vunpack.c.h.b16 %v4329
  %v4415 = vunpack.c.l.b16 %v4330
  %v4416 = vunpack.c.h.b16 %v4330
  %v4417 = vunpack.c.l.b16 %v4331
  %v4418 = vunpack.c.h.b16 %v4331
  %v4419 = vunpack.c.l.b16 %v4332
  %v4420 = vunpack.c.h.b16 %v4332
  %v4421 = vunpack.c.l.b16 %v4333
  %v4422 = vunpack.c.h.b16 %v4333
  %v4423 = vunpack.c.l.b16 %v4334
  %v4424 = vunpack.c.h.b16 %v4334
  %v4425 = vunpack.c.l.b16 %v4335
  %v4426 = vunpack.c.h.b16 %v4335
  %v4427 = vunpack.c.l.b16 %v4336
  %v4428 = vunpack.c.h.b16 %v4336
  %v4429 = vunpack.c.l.b16 %v4337
  %v4430 = vunpack.c.h.b16 %v4337
  %v4431 = vunpack.c.l.b16 %v4338
  %v4432 = vunpack.c.h.b16 %v4338
  %v4433 = vunpack.c.l.b16 %v4339
  %v4434 = vunpack.c.h.b16 %v4339
  %v4435 = vunpack.c.l.b16 %v4340
  %v4436 = vunpack.c.h.b16 %v4340
  %v4437 = vunpack.c.l.b16 %v4341
  %v4438 = vunpack.c.h.b16 %v4341
  %v4439 = vunpack.c.l.b16 %v4342
  %v4440 = vunpack.c.h.b16 %v4342
  %v4441 = vunpack.c.l.b16 %v4343
  %v4442 = vunpack.c.h.b16 %v4343
  %v4443 = vunpack.c.l.b16 %v4344
  %v4444 = vunpack.c.h.b16 %v4344
  %v4445 = vunpack.c.l.b16 %v4345
  %v4446 = vunpack.c.h.b16 %v4345
  %v4447 = vunpack.c.l.b16 %v4346
  %v4448 = vunpack.c.h.b16 %v4346
  %v4449 = vunpack.c.l.b16 %v4347
  %v4450 = vunpack.c.h.b16 %v4347
  %v4451 = vunpack.c.l.b16 %v4348
  %v4452 = vunpack.c.h.b16 %v4348
  %v4453 = vunpack.c.l.b16 %v4349
  %v4454 = vunpack.c.h.b16 %v4349
  %v4455 = vunpack.c.l.b16 %v4350
  %v4456 = vunpack.c.h.b16 %v4350
  %v4457 = vunpack.c.l.b16 %v4351
  %v4458 = vunpack.c.h.b16 %v4351
  %v4459 = vunpack.c.l.b16 %v4352
  %v4460 = vunpack.c.h.b16 %v4352
  %v4461 = vpack.c.b16 %v4399, %v4397
  %v4462 = vpack.c.b16 %v4400, %v4398
  %v4463 = vpack.c.b16 %v4403, %v4401
  %v4464 = vpack.c.b16 %v4404, %v4402
  %v4465 = vpack.c.b16 %v4407, %v4405
  %v4466 = vpack.c.b16 %v4408, %v4406
  %v4467 = vpack.c.b16 %v4411, %v4409
  %v4468 = vpack.c.b16 %v4412, %v4410
  %v4469 = vpack.c.b16 %v4415, %v4413
  %v4470 = vpack.c.b16 %v4416, %v4414
  %v4471 = vpack.c.b16 %v4419, %v4417
  %v4472 = vpack.c.b16 %v4420, %v4418
  %v4473 = vpack.c.b16 %v4423, %v4421
  %v4474 = vpack.c.b16 %v4424, %v4422
  %v4475 = vpack.c.b16 %v4427, %v4425
  %v4476 = vpack.c.b16 %v4428, %v4426
  %v4477 = vpack.c.b16 %v4431, %v4429
  %v4478 = vpack.c.b16 %v4432, %v4430
  %v4479 = vpack.c.b16 %v4435, %v4433
  %v4480 = vpack.c.b16 %v4436, %v4434
  %v4481 = vpack.c.b16 %v4439, %v4437
  %v4482 = vpack.c.b16 %v4440, %v4438
  %v4483 = vpack.c.b16 %v4443, %v4441
  %v4484 = vpack.c.b16 %v4444, %v4442
  %v4485 = vpack.c.b16 %v4447, %v4445
  %v4486 = vpack.c.b16 %v4448, %v4446
  %v4487 = vpack.c.b16 %v4451, %v4449
  %v4488 = vpack.c.b16 %v4452, %v4450
  %v4489 = vpack.c.b16 %v4455, %v4453
  %v4490 = vpack.c.b16 %v4456, %v4454
  %v4491 = vpack.c.b16 %v4459, %v4457
  %v4492 = vpack.c.b16 %v4460, %v4458
  %4525 = vmatprep.subr.bf16.mxu0 %v4462
  %4526 = vmatpush1.bf16.msra.mxu0 %v4461
  %4527 = vmatprep.subr.bf16.mxu0 %v4464
  %4528 = vmatpush1.bf16.msra.mxu0 %v4463
  %4529 = vmatprep.subr.bf16.mxu0 %v4466
  %4530 = vmatpush1.bf16.msra.mxu0 %v4465
  %4531 = vmatprep.subr.bf16.mxu0 %v4468
  %4532 = vmatpush1.bf16.msra.mxu0 %v4467
  %4533 = vmatprep.subr.bf16.mxu0 %v4470
  %4534 = vmatpush1.bf16.msra.mxu0 %v4469
  %4535 = vmatprep.subr.bf16.mxu0 %v4472
  %4536 = vmatpush1.bf16.msra.mxu0 %v4471
  %4537 = vmatprep.subr.bf16.mxu0 %v4474
  %4538 = vmatpush1.bf16.msra.mxu0 %v4473
  %4539 = vmatprep.subr.bf16.mxu0 %v4476
  %4540 = vmatpush1.bf16.msra.mxu0 %v4475
  %4541 = vmatprep.subr.bf16.mxu0 %v4478
  %4542 = vmatpush1.bf16.msra.mxu0 %v4477
  %4543 = vmatprep.subr.bf16.mxu0 %v4480
  %4544 = vmatpush1.bf16.msra.mxu0 %v4479
  %4545 = vmatprep.subr.bf16.mxu0 %v4482
  %4546 = vmatpush1.bf16.msra.mxu0 %v4481
  %4547 = vmatprep.subr.bf16.mxu0 %v4484
  %4548 = vmatpush1.bf16.msra.mxu0 %v4483
  %4549 = vmatprep.subr.bf16.mxu0 %v4486
  %4550 = vmatpush1.bf16.msra.mxu0 %v4485
  %4551 = vmatprep.subr.bf16.mxu0 %v4488
  %4552 = vmatpush1.bf16.msra.mxu0 %v4487
  %4553 = vmatprep.subr.bf16.mxu0 %v4490
  %4554 = vmatpush1.bf16.msra.mxu0 %v4489
  %4555 = vmatprep.subr.bf16.mxu0 %v4492
  %4556 = vmatpush1.bf16.msra.mxu0 %v4491
  %4557 = vmatprep.mubr.bf16.mxu0 %v4318
  %4558 = vmatmul.mubr.bf16.gmra.mrb[0].mxu0 %v4317
  %v4559 = vpop.f32.mrb[0].mxu0
  %v4560 = vadd.f32 %v4358, %v4559
  %v4561 = vpop.f32.mrb[0].mxu0
  %v4562 = vadd.f32 %v4362, %v4561
  %v4563 = vpop.f32.mrb[0].mxu0
  %v4564 = vadd.f32 %v4358, %v4563
  %v4565 = vpop.f32.mrb[0].mxu0
  %v4566 = vadd.f32 %v4362, %v4565
  %4567 = vmatprep.mubr.bf16.mxu0 %v4320
  %4568 = vmatmul.mubr.bf16.gmra.mrb[0].mxu0 %v4319
  %v4569 = vpop.f32.mrb[0].mxu0
  %v4570 = vadd.f32 %v4358, %v4569
  %v4571 = vpop.f32.mrb[0].mxu0
  %v4572 = vadd.f32 %v4362, %v4571
  %v4573 = vpop.f32.mrb[0].mxu0
  %v4574 = vadd.f32 %v4358, %v4573
  %v4575 = vpop.f32.mrb[0].mxu0
  %v4576 = vadd.f32 %v4362, %v4575
  %4577 = vdwg.mxu0
  %v4578 = vadd.f32 %v3208, %v4560
  %v4579 = vadd.f32 %v3209, %v4562
  %v4580 = vadd.f32 %v3210, %v4564
  %v4581 = vadd.f32 %v3211, %v4566
  %v4582 = vadd.f32 %v3212, %v4570
  %v4583 = vadd.f32 %v3213, %v4572
  %v4584 = vadd.f32 %v3214, %v4574
  %v4585 = vadd.f32 %v3215, %v4576
  %v4586 = vld [vmem:[%s3317 + $0x8] sm:$0x3]
  %v4587 = vld [vmem:[%s3317 + $0xa] sm:$0x3]
  %v4588 = vadd.f32 %v4578, %v4579
  %4589 = vadd.xlane.f32.xlu0 %v4588
  %v4590 = vpop.xlane.xlu0 %4589
  %v4591 = vadd.f32 %v4580, %v4581
  %4592 = vadd.xlane.f32.xlu0 %v4591
  %v4593 = vpop.xlane.xlu0 %4592
  %v4594 = vadd.f32 %v4582, %v4583
  %4595 = vadd.xlane.f32.xlu0 %v4594
  %v4596 = vpop.xlane.xlu0 %4595
  %v4597 = vadd.f32 %v4584, %v4585
  %4598 = vadd.xlane.f32.xlu0 %v4597
  %v4599 = vpop.xlane.xlu0 %4598
  %v4600 = vmul.f32 %v4590, %v78
  %v4601 = vmul.f32 %v4593, %v78
  %v4602 = vmul.f32 %v4596, %v78
  %v4603 = vmul.f32 %v4599, %v78
  %v4604 = vsub.f32 %v4578, %v4600
  %v4605 = vsub.f32 %v4579, %v4600
  %v4606 = vsub.f32 %v4580, %v4601
  %v4607 = vsub.f32 %v4581, %v4601
  %v4608 = vsub.f32 %v4582, %v4602
  %v4609 = vsub.f32 %v4583, %v4602
  %v4610 = vsub.f32 %v4584, %v4603
  %v4611 = vsub.f32 %v4585, %v4603
  %v4612 = vmul.f32 %v4604, %v4604
  %v4613 = vmul.f32 %v4605, %v4605
  %v4614 = vmul.f32 %v4606, %v4606
  %v4615 = vmul.f32 %v4607, %v4607
  %v4616 = vmul.f32 %v4608, %v4608
  %v4617 = vmul.f32 %v4609, %v4609
  %v4618 = vmul.f32 %v4610, %v4610
  %v4619 = vmul.f32 %v4611, %v4611
  %v4620 = vadd.f32 %v4612, %v4613
  %4621 = vadd.xlane.f32.xlu0 %v4620
  %v4622 = vpop.xlane.xlu0 %4621
  %v4623 = vadd.f32 %v4614, %v4615
  %4624 = vadd.xlane.f32.xlu0 %v4623
  %v4625 = vpop.xlane.xlu0 %4624
  %v4626 = vadd.f32 %v4616, %v4617
  %4627 = vadd.xlane.f32.xlu0 %v4626
  %v4628 = vpop.xlane.xlu0 %4627
  %v4629 = vadd.f32 %v4618, %v4619
  %4630 = vadd.xlane.f32.xlu0 %v4629
  %v4631 = vpop.xlane.xlu0 %4630
  %v4632 = vmul.f32 %v4622, %v78
  %v4633 = vmul.f32 %v4625, %v78
  %v4634 = vmul.f32 %v4628, %v78
  %v4635 = vmul.f32 %v4631, %v78
  %v4636 = vadd.f32 %v4632, 1e-05
  %v4637 = vadd.f32 %v4633, 1e-05
  %v4638 = vadd.f32 %v4634, 1e-05
  %v4639 = vadd.f32 %v4635, 1e-05
  %v4640 = vrsqrt.pop %v4636
  %v4641 = vrsqrt.pop %v4637
  %v4642 = vrsqrt.pop %v4638
  %v4643 = vrsqrt.pop %v4639
  %v4644 = vmul.f32 %v4604, %v4640
  %v4645 = vmul.f32 %v4605, %v4640
  %v4646 = vmul.f32 %v4606, %v4641
  %v4647 = vmul.f32 %v4607, %v4641
  %v4648 = vmul.f32 %v4608, %v4642
  %v4649 = vmul.f32 %v4609, %v4642
  %v4650 = vmul.f32 %v4610, %v4643
  %v4651 = vmul.f32 %v4611, %v4643
  %v4653 = vlaneseq
  %v4654 = vshrl.u32 %v4653, 7
  %v4655 = vsub.s32 0, %v4654
  %v4656 = vrot.slane %v4586, %v4655
  %v4657 = vlaneseq
  %v4658 = vshrl.u32 %v4657, 7
  %v4659 = vsub.s32 1, %v4658
  %v4660 = vrot.slane %v4586, %v4659
  %v4663 = vmul.f32 %v4644, %v4656
  %v4664 = vmul.f32 %v4645, %v4660
  %v4665 = vmul.f32 %v4646, %v4656
  %v4666 = vmul.f32 %v4647, %v4660
  %v4667 = vmul.f32 %v4648, %v4656
  %v4668 = vmul.f32 %v4649, %v4660
  %v4669 = vmul.f32 %v4650, %v4656
  %v4670 = vmul.f32 %v4651, %v4660
  %v4672 = vlaneseq
  %v4673 = vshrl.u32 %v4672, 7
  %v4674 = vsub.s32 0, %v4673
  %v4675 = vrot.slane %v4587, %v4674
  %v4676 = vlaneseq
  %v4677 = vshrl.u32 %v4676, 7
  %v4678 = vsub.s32 1, %v4677
  %v4679 = vrot.slane %v4587, %v4678
  %v4682 = vadd.f32 %v4663, %v4675
  %v4683 = vadd.f32 %v4664, %v4679
  %v4684 = vadd.f32 %v4665, %v4675
  %v4685 = vadd.f32 %v4666, %v4679
  %v4686 = vadd.f32 %v4667, %v4675
  %v4687 = vadd.f32 %v4668, %v4679
  %v4688 = vadd.f32 %v4669, %v4675
  %v4689 = vadd.f32 %v4670, %v4679
  %v4690 = vpack.c.bf16 %v4684, %v4682
  %v4691 = vpack.c.bf16 %v4685, %v4683
  %v4692 = vpack.c.bf16 %v4688, %v4686
  %v4693 = vpack.c.bf16 %v4689, %v4687
  %v4694 = vld [vmem:[%s3220 + $0x20] sm:$0xff]
  %v4695 = vld [vmem:[%s3220 + $0x28] sm:$0xff]
  %v4696 = vld [vmem:[%s3220 + $0x50] sm:$0xff]
  %v4697 = vld [vmem:[%s3220 + $0x58] sm:$0xff]
  %v4698 = vld [vmem:[%s3220 + $0x80] sm:$0xff]
  %v4699 = vld [vmem:[%s3220 + $0x88] sm:$0xff]
  %v4700 = vld [vmem:[%s3220 + $0xb0] sm:$0xff]
  %v4701 = vld [vmem:[%s3220 + $0xb8] sm:$0xff]
  %v4702 = vld [vmem:[%s3220 + $0xe0] sm:$0xff]
  %v4703 = vld [vmem:[%s3220 + $0xe8] sm:$0xff]
  %v4704 = vld [vmem:[%s3220 + $0x110] sm:$0xff]
  %v4705 = vld [vmem:[%s3220 + $0x118] sm:$0xff]
  %v4706 = vld [vmem:[%s3220 + $0x140] sm:$0xff]
  %v4707 = vld [vmem:[%s3220 + $0x148] sm:$0xff]
  %v4708 = vld [vmem:[%s3220 + $0x170] sm:$0xff]
  %v4709 = vld [vmem:[%s3220 + $0x178] sm:$0xff]
  %v4710 = vld [vmem:[%s3220 + $0x1a0] sm:$0xff]
  %v4711 = vld [vmem:[%s3220 + $0x1a8] sm:$0xff]
  %v4712 = vld [vmem:[%s3220 + $0x1d0] sm:$0xff]
  %v4713 = vld [vmem:[%s3220 + $0x1d8] sm:$0xff]
  %v4714 = vld [vmem:[%s3220 + $0x200] sm:$0xff]
  %v4715 = vld [vmem:[%s3220 + $0x208] sm:$0xff]
  %v4716 = vld [vmem:[%s3220 + $0x230] sm:$0xff]
  %v4717 = vld [vmem:[%s3220 + $0x238] sm:$0xff]
  %v4718 = vld [vmem:[%s3220 + $0x260] sm:$0xff]
  %v4719 = vld [vmem:[%s3220 + $0x268] sm:$0xff]
  %v4720 = vld [vmem:[%s3220 + $0x290] sm:$0xff]
  %v4721 = vld [vmem:[%s3220 + $0x298] sm:$0xff]
  %v4722 = vld [vmem:[%s3220 + $0x2c0] sm:$0xff]
  %v4723 = vld [vmem:[%s3220 + $0x2c8] sm:$0xff]
  %v4724 = vld [vmem:[%s3220 + $0x2f0] sm:$0xff]
  %v4725 = vld [vmem:[%s3220 + $0x2f8] sm:$0xff]
  %v4726 = vld [vmem:[%s3220 + $0x320] sm:$0xff]
  %v4727 = vld [vmem:[%s3220 + $0x328] sm:$0xff]
  %v4728 = vld [vmem:[%s3220 + $0x350] sm:$0xff]
  %v4729 = vld [vmem:[%s3220 + $0x358] sm:$0xff]
  %v4730 = vld [vmem:[%s3220 + $0x380] sm:$0xff]
  %v4731 = vld [vmem:[%s3220 + $0x388] sm:$0xff]
  %v4732 = vld [vmem:[%s3220 + $0x3b0] sm:$0xff]
  %v4733 = vld [vmem:[%s3220 + $0x3b8] sm:$0xff]
  %v4734 = vld [vmem:[%s3220 + $0x3e0] sm:$0xff]
  %v4735 = vld [vmem:[%s3220 + $0x3e8] sm:$0xff]
  %v4736 = vld [vmem:[%s3220 + $0x410] sm:$0xff]
  %v4737 = vld [vmem:[%s3220 + $0x418] sm:$0xff]
  %v4738 = vld [vmem:[%s3220 + $0x440] sm:$0xff]
  %v4739 = vld [vmem:[%s3220 + $0x448] sm:$0xff]
  %v4740 = vld [vmem:[%s3220 + $0x470] sm:$0xff]
  %v4741 = vld [vmem:[%s3220 + $0x478] sm:$0xff]
  %v4742 = vld [vmem:[%s3220 + $0x4a0] sm:$0xff]
  %v4743 = vld [vmem:[%s3220 + $0x4a8] sm:$0xff]
  %v4744 = vld [vmem:[%s3220 + $0x4d0] sm:$0xff]
  %v4745 = vld [vmem:[%s3220 + $0x4d8] sm:$0xff]
  %v4746 = vld [vmem:[%s3220 + $0x500] sm:$0xff]
  %v4747 = vld [vmem:[%s3220 + $0x508] sm:$0xff]
  %v4748 = vld [vmem:[%s3220 + $0x530] sm:$0xff]
  %v4749 = vld [vmem:[%s3220 + $0x538] sm:$0xff]
  %v4750 = vld [vmem:[%s3220 + $0x560] sm:$0xff]
  %v4751 = vld [vmem:[%s3220 + $0x568] sm:$0xff]
  %v4752 = vld [vmem:[%s3220 + $0x590] sm:$0xff]
  %v4753 = vld [vmem:[%s3220 + $0x598] sm:$0xff]
  %v4754 = vld [vmem:[%s3220 + $0x5c0] sm:$0xff]
  %v4755 = vld [vmem:[%s3220 + $0x5c8] sm:$0xff]
  %v4756 = vld [vmem:[%s3220 + $0x5f0] sm:$0xff]
  %v4757 = vld [vmem:[%s3220 + $0x5f8] sm:$0xff]
  %v4758 = vld [vmem:[%s3317 + $0xc] sm:$0xf]
  %v4760 = vlaneseq
  %v4761 = vshrl.u32 %v4760, 7
  %v4762 = vsub.s32 0, %v4761
  %v4763 = vrot.slane %v4758, %v4762
  %v4764 = vlaneseq
  %v4765 = vshrl.u32 %v4764, 7
  %v4766 = vsub.s32 1, %v4765
  %v4767 = vrot.slane %v4758, %v4766
  %v4768 = vlaneseq
  %v4769 = vshrl.u32 %v4768, 7
  %v4770 = vsub.s32 2, %v4769
  %v4771 = vrot.slane %v4758, %v4770
  %v4772 = vlaneseq
  %v4773 = vshrl.u32 %v4772, 7
  %v4774 = vsub.s32 3, %v4773
  %v4775 = vrot.slane %v4758, %v4774
  %v4844 = vunpack.c.l.b16 %v4694
  %v4845 = vunpack.c.h.b16 %v4694
  %v4846 = vunpack.c.l.b16 %v4695
  %v4847 = vunpack.c.h.b16 %v4695
  %v4848 = vunpack.c.l.b16 %v4696
  %v4849 = vunpack.c.h.b16 %v4696
  %v4850 = vunpack.c.l.b16 %v4697
  %v4851 = vunpack.c.h.b16 %v4697
  %v4852 = vunpack.c.l.b16 %v4698
  %v4853 = vunpack.c.h.b16 %v4698
  %v4854 = vunpack.c.l.b16 %v4699
  %v4855 = vunpack.c.h.b16 %v4699
  %v4856 = vunpack.c.l.b16 %v4700
  %v4857 = vunpack.c.h.b16 %v4700
  %v4858 = vunpack.c.l.b16 %v4701
  %v4859 = vunpack.c.h.b16 %v4701
  %v4860 = vunpack.c.l.b16 %v4702
  %v4861 = vunpack.c.h.b16 %v4702
  %v4862 = vunpack.c.l.b16 %v4703
  %v4863 = vunpack.c.h.b16 %v4703
  %v4864 = vunpack.c.l.b16 %v4704
  %v4865 = vunpack.c.h.b16 %v4704
  %v4866 = vunpack.c.l.b16 %v4705
  %v4867 = vunpack.c.h.b16 %v4705
  %v4868 = vunpack.c.l.b16 %v4706
  %v4869 = vunpack.c.h.b16 %v4706
  %v4870 = vunpack.c.l.b16 %v4707
  %v4871 = vunpack.c.h.b16 %v4707
  %v4872 = vunpack.c.l.b16 %v4708
  %v4873 = vunpack.c.h.b16 %v4708
  %v4874 = vunpack.c.l.b16 %v4709
  %v4875 = vunpack.c.h.b16 %v4709
  %v4876 = vunpack.c.l.b16 %v4710
  %v4877 = vunpack.c.h.b16 %v4710
  %v4878 = vunpack.c.l.b16 %v4711
  %v4879 = vunpack.c.h.b16 %v4711
  %v4880 = vunpack.c.l.b16 %v4712
  %v4881 = vunpack.c.h.b16 %v4712
  %v4882 = vunpack.c.l.b16 %v4713
  %v4883 = vunpack.c.h.b16 %v4713
  %v4884 = vunpack.c.l.b16 %v4714
  %v4885 = vunpack.c.h.b16 %v4714
  %v4886 = vunpack.c.l.b16 %v4715
  %v4887 = vunpack.c.h.b16 %v4715
  %v4888 = vunpack.c.l.b16 %v4716
  %v4889 = vunpack.c.h.b16 %v4716
  %v4890 = vunpack.c.l.b16 %v4717
  %v4891 = vunpack.c.h.b16 %v4717
  %v4892 = vunpack.c.l.b16 %v4718
  %v4893 = vunpack.c.h.b16 %v4718
  %v4894 = vunpack.c.l.b16 %v4719
  %v4895 = vunpack.c.h.b16 %v4719
  %v4896 = vunpack.c.l.b16 %v4720
  %v4897 = vunpack.c.h.b16 %v4720
  %v4898 = vunpack.c.l.b16 %v4721
  %v4899 = vunpack.c.h.b16 %v4721
  %v4900 = vunpack.c.l.b16 %v4722
  %v4901 = vunpack.c.h.b16 %v4722
  %v4902 = vunpack.c.l.b16 %v4723
  %v4903 = vunpack.c.h.b16 %v4723
  %v4904 = vunpack.c.l.b16 %v4724
  %v4905 = vunpack.c.h.b16 %v4724
  %v4906 = vunpack.c.l.b16 %v4725
  %v4907 = vunpack.c.h.b16 %v4725
  %v4908 = vunpack.c.l.b16 %v4726
  %v4909 = vunpack.c.h.b16 %v4726
  %v4910 = vunpack.c.l.b16 %v4727
  %v4911 = vunpack.c.h.b16 %v4727
  %v4912 = vunpack.c.l.b16 %v4728
  %v4913 = vunpack.c.h.b16 %v4728
  %v4914 = vunpack.c.l.b16 %v4729
  %v4915 = vunpack.c.h.b16 %v4729
  %v4916 = vunpack.c.l.b16 %v4730
  %v4917 = vunpack.c.h.b16 %v4730
  %v4918 = vunpack.c.l.b16 %v4731
  %v4919 = vunpack.c.h.b16 %v4731
  %v4920 = vunpack.c.l.b16 %v4732
  %v4921 = vunpack.c.h.b16 %v4732
  %v4922 = vunpack.c.l.b16 %v4733
  %v4923 = vunpack.c.h.b16 %v4733
  %v4924 = vunpack.c.l.b16 %v4734
  %v4925 = vunpack.c.h.b16 %v4734
  %v4926 = vunpack.c.l.b16 %v4735
  %v4927 = vunpack.c.h.b16 %v4735
  %v4928 = vunpack.c.l.b16 %v4736
  %v4929 = vunpack.c.h.b16 %v4736
  %v4930 = vunpack.c.l.b16 %v4737
  %v4931 = vunpack.c.h.b16 %v4737
  %v4932 = vunpack.c.l.b16 %v4738
  %v4933 = vunpack.c.h.b16 %v4738
  %v4934 = vunpack.c.l.b16 %v4739
  %v4935 = vunpack.c.h.b16 %v4739
  %v4936 = vunpack.c.l.b16 %v4740
  %v4937 = vunpack.c.h.b16 %v4740
  %v4938 = vunpack.c.l.b16 %v4741
  %v4939 = vunpack.c.h.b16 %v4741
  %v4940 = vunpack.c.l.b16 %v4742
  %v4941 = vunpack.c.h.b16 %v4742
  %v4942 = vunpack.c.l.b16 %v4743
  %v4943 = vunpack.c.h.b16 %v4743
  %v4944 = vunpack.c.l.b16 %v4744
  %v4945 = vunpack.c.h.b16 %v4744
  %v4946 = vunpack.c.l.b16 %v4745
  %v4947 = vunpack.c.h.b16 %v4745
  %v4948 = vunpack.c.l.b16 %v4746
  %v4949 = vunpack.c.h.b16 %v4746
  %v4950 = vunpack.c.l.b16 %v4747
  %v4951 = vunpack.c.h.b16 %v4747
  %v4952 = vunpack.c.l.b16 %v4748
  %v4953 = vunpack.c.h.b16 %v4748
  %v4954 = vunpack.c.l.b16 %v4749
  %v4955 = vunpack.c.h.b16 %v4749
  %v4956 = vunpack.c.l.b16 %v4750
  %v4957 = vunpack.c.h.b16 %v4750
  %v4958 = vunpack.c.l.b16 %v4751
  %v4959 = vunpack.c.h.b16 %v4751
  %v4960 = vunpack.c.l.b16 %v4752
  %v4961 = vunpack.c.h.b16 %v4752
  %v4962 = vunpack.c.l.b16 %v4753
  %v4963 = vunpack.c.h.b16 %v4753
  %v4964 = vunpack.c.l.b16 %v4754
  %v4965 = vunpack.c.h.b16 %v4754
  %v4966 = vunpack.c.l.b16 %v4755
  %v4967 = vunpack.c.h.b16 %v4755
  %v4968 = vunpack.c.l.b16 %v4756
  %v4969 = vunpack.c.h.b16 %v4756
  %v4970 = vunpack.c.l.b16 %v4757
  %v4971 = vunpack.c.h.b16 %v4757
  %v4972 = vpack.c.b16 %v4848, %v4844
  %v4973 = vpack.c.b16 %v4849, %v4845
  %v4974 = vpack.c.b16 %v4850, %v4846
  %v4975 = vpack.c.b16 %v4851, %v4847
  %v4976 = vpack.c.b16 %v4856, %v4852
  %v4977 = vpack.c.b16 %v4857, %v4853
  %v4978 = vpack.c.b16 %v4858, %v4854
  %v4979 = vpack.c.b16 %v4859, %v4855
  %v4980 = vpack.c.b16 %v4864, %v4860
  %v4981 = vpack.c.b16 %v4865, %v4861
  %v4982 = vpack.c.b16 %v4866, %v4862
  %v4983 = vpack.c.b16 %v4867, %v4863
  %v4984 = vpack.c.b16 %v4872, %v4868
  %v4985 = vpack.c.b16 %v4873, %v4869
  %v4986 = vpack.c.b16 %v4874, %v4870
  %v4987 = vpack.c.b16 %v4875, %v4871
  %v4988 = vpack.c.b16 %v4880, %v4876
  %v4989 = vpack.c.b16 %v4881, %v4877
  %v4990 = vpack.c.b16 %v4882, %v4878
  %v4991 = vpack.c.b16 %v4883, %v4879
  %v4992 = vpack.c.b16 %v4888, %v4884
  %v4993 = vpack.c.b16 %v4889, %v4885
  %v4994 = vpack.c.b16 %v4890, %v4886
  %v4995 = vpack.c.b16 %v4891, %v4887
  %v4996 = vpack.c.b16 %v4896, %v4892
  %v4997 = vpack.c.b16 %v4897, %v4893
  %v4998 = vpack.c.b16 %v4898, %v4894
  %v4999 = vpack.c.b16 %v4899, %v4895
  %v5000 = vpack.c.b16 %v4904, %v4900
  %v5001 = vpack.c.b16 %v4905, %v4901
  %v5002 = vpack.c.b16 %v4906, %v4902
  %v5003 = vpack.c.b16 %v4907, %v4903
  %v5004 = vpack.c.b16 %v4912, %v4908
  %v5005 = vpack.c.b16 %v4913, %v4909
  %v5006 = vpack.c.b16 %v4914, %v4910
  %v5007 = vpack.c.b16 %v4915, %v4911
  %v5008 = vpack.c.b16 %v4920, %v4916
  %v5009 = vpack.c.b16 %v4921, %v4917
  %v5010 = vpack.c.b16 %v4922, %v4918
  %v5011 = vpack.c.b16 %v4923, %v4919
  %v5012 = vpack.c.b16 %v4928, %v4924
  %v5013 = vpack.c.b16 %v4929, %v4925
  %v5014 = vpack.c.b16 %v4930, %v4926
  %v5015 = vpack.c.b16 %v4931, %v4927
  %v5016 = vpack.c.b16 %v4936, %v4932
  %v5017 = vpack.c.b16 %v4937, %v4933
  %v5018 = vpack.c.b16 %v4938, %v4934
  %v5019 = vpack.c.b16 %v4939, %v4935
  %v5020 = vpack.c.b16 %v4944, %v4940
  %v5021 = vpack.c.b16 %v4945, %v4941
  %v5022 = vpack.c.b16 %v4946, %v4942
  %v5023 = vpack.c.b16 %v4947, %v4943
  %v5024 = vpack.c.b16 %v4952, %v4948
  %v5025 = vpack.c.b16 %v4953, %v4949
  %v5026 = vpack.c.b16 %v4954, %v4950
  %v5027 = vpack.c.b16 %v4955, %v4951
  %v5028 = vpack.c.b16 %v4960, %v4956
  %v5029 = vpack.c.b16 %v4961, %v4957
  %v5030 = vpack.c.b16 %v4962, %v4958
  %v5031 = vpack.c.b16 %v4963, %v4959
  %v5032 = vpack.c.b16 %v4968, %v4964
  %v5033 = vpack.c.b16 %v4969, %v4965
  %v5034 = vpack.c.b16 %v4970, %v4966
  %v5035 = vpack.c.b16 %v4971, %v4967
  %5100 = vmatprep.subr.bf16.mxu0 %v4973
  %5101 = vmatpush1.bf16.msra.mxu0 %v4972
  %5102 = vmatprep.subr.bf16.mxu0 %v4977
  %5103 = vmatpush1.bf16.msra.mxu0 %v4976
  %5104 = vmatprep.subr.bf16.mxu0 %v4981
  %5105 = vmatpush1.bf16.msra.mxu0 %v4980
  %5106 = vmatprep.subr.bf16.mxu0 %v4985
  %5107 = vmatpush1.bf16.msra.mxu0 %v4984
  %5108 = vmatprep.subr.bf16.mxu0 %v4989
  %5109 = vmatpush1.bf16.msra.mxu0 %v4988
  %5110 = vmatprep.subr.bf16.mxu0 %v4993
  %5111 = vmatpush1.bf16.msra.mxu0 %v4992
  %5112 = vmatprep.subr.bf16.mxu0 %v4997
  %5113 = vmatpush1.bf16.msra.mxu0 %v4996
  %5114 = vmatprep.subr.bf16.mxu0 %v5001
  %5115 = vmatpush1.bf16.msra.mxu0 %v5000
  %5116 = vmatprep.subr.bf16.mxu0 %v5005
  %5117 = vmatpush1.bf16.msra.mxu0 %v5004
  %5118 = vmatprep.subr.bf16.mxu0 %v5009
  %5119 = vmatpush1.bf16.msra.mxu0 %v5008
  %5120 = vmatprep.subr.bf16.mxu0 %v5013
  %5121 = vmatpush1.bf16.msra.mxu0 %v5012
  %5122 = vmatprep.subr.bf16.mxu0 %v5017
  %5123 = vmatpush1.bf16.msra.mxu0 %v5016
  %5124 = vmatprep.subr.bf16.mxu0 %v5021
  %5125 = vmatpush1.bf16.msra.mxu0 %v5020
  %5126 = vmatprep.subr.bf16.mxu0 %v5025
  %5127 = vmatpush1.bf16.msra.mxu0 %v5024
  %5128 = vmatprep.subr.bf16.mxu0 %v5029
  %5129 = vmatpush1.bf16.msra.mxu0 %v5028
  %5130 = vmatprep.subr.bf16.mxu0 %v5033
  %5131 = vmatpush1.bf16.msra.mxu0 %v5032
  %5132 = vmatprep.mubr.bf16.mxu0 %v4691
  %5133 = vmatmul.mubr.bf16.gmra.mrb[0].mxu0 %v4690
  %v5134 = vpop.f32.mrb[0].mxu0
  %v5135 = vadd.f32 %v4763, %v5134
  %v5136 = vpop.f32.mrb[0].mxu0
  %v5137 = vadd.f32 %v4767, %v5136
  %v5138 = vpop.f32.mrb[0].mxu0
  %v5139 = vadd.f32 %v4763, %v5138
  %v5140 = vpop.f32.mrb[0].mxu0
  %v5141 = vadd.f32 %v4767, %v5140
  %5142 = vmatprep.mubr.bf16.mxu0 %v4693
  %5143 = vmatmul.mubr.bf16.gmra.mrb[0].mxu0 %v4692
  %v5144 = vpop.f32.mrb[0].mxu0
  %v5145 = vadd.f32 %v4763, %v5144
  %v5146 = vpop.f32.mrb[0].mxu0
  %v5147 = vadd.f32 %v4767, %v5146
  %v5148 = vpop.f32.mrb[0].mxu0
  %v5149 = vadd.f32 %v4763, %v5148
  %v5150 = vpop.f32.mrb[0].mxu0
  %v5151 = vadd.f32 %v4767, %v5150
  %5152 = vdwg.mxu0
  %5153 = vmatprep.subr.bf16.mxu0 %v4975
  %5154 = vmatpush1.bf16.msra.mxu0 %v4974
  %5155 = vmatprep.subr.bf16.mxu0 %v4979
  %5156 = vmatpush1.bf16.msra.mxu0 %v4978
  %5157 = vmatprep.subr.bf16.mxu0 %v4983
  %5158 = vmatpush1.bf16.msra.mxu0 %v4982
  %5159 = vmatprep.subr.bf16.mxu0 %v4987
  %5160 = vmatpush1.bf16.msra.mxu0 %v4986
  %5161 = vmatprep.subr.bf16.mxu0 %v4991
  %5162 = vmatpush1.bf16.msra.mxu0 %v4990
  %5163 = vmatprep.subr.bf16.mxu0 %v4995
  %5164 = vmatpush1.bf16.msra.mxu0 %v4994
  %5165 = vmatprep.subr.bf16.mxu0 %v4999
  %5166 = vmatpush1.bf16.msra.mxu0 %v4998
  %5167 = vmatprep.subr.bf16.mxu0 %v5003
  %5168 = vmatpush1.bf16.msra.mxu0 %v5002
  %5169 = vmatprep.subr.bf16.mxu0 %v5007
  %5170 = vmatpush1.bf16.msra.mxu0 %v5006
  %5171 = vmatprep.subr.bf16.mxu0 %v5011
  %5172 = vmatpush1.bf16.msra.mxu0 %v5010
  %5173 = vmatprep.subr.bf16.mxu0 %v5015
  %5174 = vmatpush1.bf16.msra.mxu0 %v5014
  %5175 = vmatprep.subr.bf16.mxu0 %v5019
  %5176 = vmatpush1.bf16.msra.mxu0 %v5018
  %5177 = vmatprep.subr.bf16.mxu0 %v5023
  %5178 = vmatpush1.bf16.msra.mxu0 %v5022
  %5179 = vmatprep.subr.bf16.mxu0 %v5027
  %5180 = vmatpush1.bf16.msra.mxu0 %v5026
  %5181 = vmatprep.subr.bf16.mxu0 %v5031
  %5182 = vmatpush1.bf16.msra.mxu0 %v5030
  %5183 = vmatprep.subr.bf16.mxu0 %v5035
  %5184 = vmatpush1.bf16.msra.mxu0 %v5034
  %5185 = vmatprep.mubr.bf16.mxu0 %v4691
  %5186 = vmatmul.mubr.bf16.gmra.mrb[0].mxu0 %v4690
  %v5187 = vpop.f32.mrb[0].mxu0
  %v5188 = vadd.f32 %v4771, %v5187
  %v5189 = vpop.f32.mrb[0].mxu0
  %v5190 = vadd.f32 %v4775, %v5189
  %v5191 = vpop.f32.mrb[0].mxu0
  %v5192 = vadd.f32 %v4771, %v5191
  %v5193 = vpop.f32.mrb[0].mxu0
  %v5194 = vadd.f32 %v4775, %v5193
  %5195 = vmatprep.mubr.bf16.mxu0 %v4693
  %5196 = vmatmul.mubr.bf16.gmra.mrb[0].mxu0 %v4692
  %v5197 = vpop.f32.mrb[0].mxu0
  %v5198 = vadd.f32 %v4771, %v5197
  %v5199 = vpop.f32.mrb[0].mxu0
  %v5200 = vadd.f32 %v4775, %v5199
  %v5201 = vpop.f32.mrb[0].mxu0
  %v5202 = vadd.f32 %v4771, %v5201
  %v5203 = vpop.f32.mrb[0].mxu0
  %v5204 = vadd.f32 %v4775, %v5203
  %5205 = vdwg.mxu0
  %v5206 = vmul.f32 %v5135, 0.5
  %v5207 = vmul.f32 %v5137, 0.5
  %v5208 = vmul.f32 %v5188, 0.5
  %v5209 = vmul.f32 %v5190, 0.5
  %v5210 = vmul.f32 %v5139, 0.5
  %v5211 = vmul.f32 %v5141, 0.5
  %v5212 = vmul.f32 %v5192, 0.5
  %v5213 = vmul.f32 %v5194, 0.5
  %v5214 = vmul.f32 %v5145, 0.5
  %v5215 = vmul.f32 %v5147, 0.5
  %v5216 = vmul.f32 %v5198, 0.5
  %v5217 = vmul.f32 %v5200, 0.5
  %v5218 = vmul.f32 %v5149, 0.5
  %v5219 = vmul.f32 %v5151, 0.5
  %v5220 = vmul.f32 %v5202, 0.5
  %v5221 = vmul.f32 %v5204, 0.5
  %v5222 = vmul.f32 %v5135, 0.70710677
  %v5223 = vmul.f32 %v5137, 0.70710677
  %v5224 = vmul.f32 %v5188, 0.70710677
  %v5225 = vmul.f32 %v5190, 0.70710677
  %v5226 = vmul.f32 %v5139, 0.70710677
  %v5227 = vmul.f32 %v5141, 0.70710677
  %v5228 = vmul.f32 %v5192, 0.70710677
  %v5229 = vmul.f32 %v5194, 0.70710677
  %v5230 = vmul.f32 %v5145, 0.70710677
  %v5231 = vmul.f32 %v5147, 0.70710677
  %v5232 = vmul.f32 %v5198, 0.70710677
  %v5233 = vmul.f32 %v5200, 0.70710677
  %v5234 = vmul.f32 %v5149, 0.70710677
  %v5235 = vmul.f32 %v5151, 0.70710677
  %v5236 = vmul.f32 %v5202, 0.70710677
  %v5237 = vmul.f32 %v5204, 0.70710677
  %vm5238 = vcmp.ge.f32.partialorder %v5222, 0.0
  %vm5239 = vcmp.ge.f32.partialorder %v5223, 0.0
  %vm5240 = vcmp.ge.f32.partialorder %v5224, 0.0
  %vm5241 = vcmp.ge.f32.partialorder %v5225, 0.0
  %vm5242 = vcmp.ge.f32.partialorder %v5226, 0.0
  %vm5243 = vcmp.ge.f32.partialorder %v5227, 0.0
  %vm5244 = vcmp.ge.f32.partialorder %v5228, 0.0
  %vm5245 = vcmp.ge.f32.partialorder %v5229, 0.0
  %vm5246 = vcmp.ge.f32.partialorder %v5230, 0.0
  %vm5247 = vcmp.ge.f32.partialorder %v5231, 0.0
  %vm5248 = vcmp.ge.f32.partialorder %v5232, 0.0
  %vm5249 = vcmp.ge.f32.partialorder %v5233, 0.0
  %vm5250 = vcmp.ge.f32.partialorder %v5234, 0.0
  %vm5251 = vcmp.ge.f32.partialorder %v5235, 0.0
  %vm5252 = vcmp.ge.f32.partialorder %v5236, 0.0
  %vm5253 = vcmp.ge.f32.partialorder %v5237, 0.0
  %v5254 = vsel %vm5238, 1.0, -1.0
  %v5255 = vsel %vm5239, 1.0, -1.0
  %v5256 = vsel %vm5240, 1.0, -1.0
  %v5257 = vsel %vm5241, 1.0, -1.0
  %v5258 = vsel %vm5242, 1.0, -1.0
  %v5259 = vsel %vm5243, 1.0, -1.0
  %v5260 = vsel %vm5244, 1.0, -1.0
  %v5261 = vsel %vm5245, 1.0, -1.0
  %v5262 = vsel %vm5246, 1.0, -1.0
  %v5263 = vsel %vm5247, 1.0, -1.0
  %v5264 = vsel %vm5248, 1.0, -1.0
  %v5265 = vsel %vm5249, 1.0, -1.0
  %v5266 = vsel %vm5250, 1.0, -1.0
  %v5267 = vsel %vm5251, 1.0, -1.0
  %v5268 = vsel %vm5252, 1.0, -1.0
  %v5269 = vsel %vm5253, 1.0, -1.0
  %v5270 = vand.u32 2147483647, %v5222
  %v5271 = vand.u32 2147483647, %v5223
  %v5272 = vand.u32 2147483647, %v5224
  %v5273 = vand.u32 2147483647, %v5225
  %v5274 = vand.u32 2147483647, %v5226
  %v5275 = vand.u32 2147483647, %v5227
  %v5276 = vand.u32 2147483647, %v5228
  %v5277 = vand.u32 2147483647, %v5229
  %v5278 = vand.u32 2147483647, %v5230
  %v5279 = vand.u32 2147483647, %v5231
  %v5280 = vand.u32 2147483647, %v5232
  %v5281 = vand.u32 2147483647, %v5233
  %v5282 = vand.u32 2147483647, %v5234
  %v5283 = vand.u32 2147483647, %v5235
  %v5284 = vand.u32 2147483647, %v5236
  %v5285 = vand.u32 2147483647, %v5237
  %v5286 = vmul.f32 %v5270, 0.3275911
  %v5287 = vmul.f32 %v5271, 0.3275911
  %v5288 = vmul.f32 %v5272, 0.3275911
  %v5289 = vmul.f32 %v5273, 0.3275911
  %v5290 = vmul.f32 %v5274, 0.3275911
  %v5291 = vmul.f32 %v5275, 0.3275911
  %v5292 = vmul.f32 %v5276, 0.3275911
  %v5293 = vmul.f32 %v5277, 0.3275911
  %v5294 = vmul.f32 %v5278, 0.3275911
  %v5295 = vmul.f32 %v5279, 0.3275911
  %v5296 = vmul.f32 %v5280, 0.3275911
  %v5297 = vmul.f32 %v5281, 0.3275911
  %v5298 = vmul.f32 %v5282, 0.3275911
  %v5299 = vmul.f32 %v5283, 0.3275911
  %v5300 = vmul.f32 %v5284, 0.3275911
  %v5301 = vmul.f32 %v5285, 0.3275911
  %v5302 = vadd.f32 %v5286, 1.0
  %v5303 = vadd.f32 %v5287, 1.0
  %v5304 = vadd.f32 %v5288, 1.0
  %v5305 = vadd.f32 %v5289, 1.0
  %v5306 = vadd.f32 %v5290, 1.0
  %v5307 = vadd.f32 %v5291, 1.0
  %v5308 = vadd.f32 %v5292, 1.0
  %v5309 = vadd.f32 %v5293, 1.0
  %v5310 = vadd.f32 %v5294, 1.0
  %v5311 = vadd.f32 %v5295, 1.0
  %v5312 = vadd.f32 %v5296, 1.0
  %v5313 = vadd.f32 %v5297, 1.0
  %v5314 = vadd.f32 %v5298, 1.0
  %v5315 = vadd.f32 %v5299, 1.0
  %v5316 = vadd.f32 %v5300, 1.0
  %v5317 = vadd.f32 %v5301, 1.0
  %v5318 = vrcp.pop %v5302
  %v5319 = vmul.f32 1.0, %v5318
  %v5320 = vrcp.pop %v5303
  %v5321 = vmul.f32 1.0, %v5320
  %v5322 = vrcp.pop %v5304
  %v5323 = vmul.f32 1.0, %v5322
  %v5324 = vrcp.pop %v5305
  %v5325 = vmul.f32 1.0, %v5324
  %v5326 = vrcp.pop %v5306
  %v5327 = vmul.f32 1.0, %v5326
  %v5328 = vrcp.pop %v5307
  %v5329 = vmul.f32 1.0, %v5328
  %v5330 = vrcp.pop %v5308
  %v5331 = vmul.f32 1.0, %v5330
  %v5332 = vrcp.pop %v5309
  %v5333 = vmul.f32 1.0, %v5332
  %v5334 = vrcp.pop %v5310
  %v5335 = vmul.f32 1.0, %v5334
  %v5336 = vrcp.pop %v5311
  %v5337 = vmul.f32 1.0, %v5336
  %v5338 = vrcp.pop %v5312
  %v5339 = vmul.f32 1.0, %v5338
  %v5340 = vrcp.pop %v5313
  %v5341 = vmul.f32 1.0, %v5340
  %v5342 = vrcp.pop %v5314
  %v5343 = vmul.f32 1.0, %v5342
  %v5344 = vrcp.pop %v5315
  %v5345 = vmul.f32 1.0, %v5344
  %v5346 = vrcp.pop %v5316
  %v5347 = vmul.f32 1.0, %v5346
  %v5348 = vrcp.pop %v5317
  %v5349 = vmul.f32 1.0, %v5348
  %v5350 = vmul.f32 %v5319, 1.0614054
  %v5351 = vmul.f32 %v5321, 1.0614054
  %v5352 = vmul.f32 %v5323, 1.0614054
  %v5353 = vmul.f32 %v5325, 1.0614054
  %v5354 = vmul.f32 %v5327, 1.0614054
  %v5355 = vmul.f32 %v5329, 1.0614054
  %v5356 = vmul.f32 %v5331, 1.0614054
  %v5357 = vmul.f32 %v5333, 1.0614054
  %v5358 = vmul.f32 %v5335, 1.0614054
  %v5359 = vmul.f32 %v5337, 1.0614054
  %v5360 = vmul.f32 %v5339, 1.0614054
  %v5361 = vmul.f32 %v5341, 1.0614054
  %v5362 = vmul.f32 %v5343, 1.0614054
  %v5363 = vmul.f32 %v5345, 1.0614054
  %v5364 = vmul.f32 %v5347, 1.0614054
  %v5365 = vmul.f32 %v5349, 1.0614054
  %v5366 = vadd.f32 %v5350, -1.4531521
  %v5367 = vadd.f32 %v5351, -1.4531521
  %v5368 = vadd.f32 %v5352, -1.4531521
  %v5369 = vadd.f32 %v5353, -1.4531521
  %v5370 = vadd.f32 %v5354, -1.4531521
  %v5371 = vadd.f32 %v5355, -1.4531521
  %v5372 = vadd.f32 %v5356, -1.4531521
  %v5373 = vadd.f32 %v5357, -1.4531521
  %v5374 = vadd.f32 %v5358, -1.4531521
  %v5375 = vadd.f32 %v5359, -1.4531521
  %v5376 = vadd.f32 %v5360, -1.4531521
  %v5377 = vadd.f32 %v5361, -1.4531521
  %v5378 = vadd.f32 %v5362, -1.4531521
  %v5379 = vadd.f32 %v5363, -1.4531521
  %v5380 = vadd.f32 %v5364, -1.4531521
  %v5381 = vadd.f32 %v5365, -1.4531521
  %v5382 = vmul.f32 %v5366, %v5319
  %v5383 = vmul.f32 %v5367, %v5321
  %v5384 = vmul.f32 %v5368, %v5323
  %v5385 = vmul.f32 %v5369, %v5325
  %v5386 = vmul.f32 %v5370, %v5327
  %v5387 = vmul.f32 %v5371, %v5329
  %v5388 = vmul.f32 %v5372, %v5331
  %v5389 = vmul.f32 %v5373, %v5333
  %v5390 = vmul.f32 %v5374, %v5335
  %v5391 = vmul.f32 %v5375, %v5337
  %v5392 = vmul.f32 %v5376, %v5339
  %v5393 = vmul.f32 %v5377, %v5341
  %v5394 = vmul.f32 %v5378, %v5343
  %v5395 = vmul.f32 %v5379, %v5345
  %v5396 = vmul.f32 %v5380, %v5347
  %v5397 = vmul.f32 %v5381, %v5349
  %v5398 = vadd.f32 %v5382, 1.4214138
  %v5399 = vadd.f32 %v5383, 1.4214138
  %v5400 = vadd.f32 %v5384, 1.4214138
  %v5401 = vadd.f32 %v5385, 1.4214138
  %v5402 = vadd.f32 %v5386, 1.4214138
  %v5403 = vadd.f32 %v5387, 1.4214138
  %v5404 = vadd.f32 %v5388, 1.4214138
  %v5405 = vadd.f32 %v5389, 1.4214138
  %v5406 = vadd.f32 %v5390, 1.4214138
  %v5407 = vadd.f32 %v5391, 1.4214138
  %v5408 = vadd.f32 %v5392, 1.4214138
  %v5409 = vadd.f32 %v5393, 1.4214138
  %v5410 = vadd.f32 %v5394, 1.4214138
  %v5411 = vadd.f32 %v5395, 1.4214138
  %v5412 = vadd.f32 %v5396, 1.4214138
  %v5413 = vadd.f32 %v5397, 1.4214138
  %v5414 = vmul.f32 %v5398, %v5319
  %v5415 = vmul.f32 %v5399, %v5321
  %v5416 = vmul.f32 %v5400, %v5323
  %v5417 = vmul.f32 %v5401, %v5325
  %v5418 = vmul.f32 %v5402, %v5327
  %v5419 = vmul.f32 %v5403, %v5329
  %v5420 = vmul.f32 %v5404, %v5331
  %v5421 = vmul.f32 %v5405, %v5333
  %v5422 = vmul.f32 %v5406, %v5335
  %v5423 = vmul.f32 %v5407, %v5337
  %v5424 = vmul.f32 %v5408, %v5339
  %v5425 = vmul.f32 %v5409, %v5341
  %v5426 = vmul.f32 %v5410, %v5343
  %v5427 = vmul.f32 %v5411, %v5345
  %v5428 = vmul.f32 %v5412, %v5347
  %v5429 = vmul.f32 %v5413, %v5349
  %v5430 = vadd.f32 %v5414, -0.28449672
  %v5431 = vadd.f32 %v5415, -0.28449672
  %v5432 = vadd.f32 %v5416, -0.28449672
  %v5433 = vadd.f32 %v5417, -0.28449672
  %v5434 = vadd.f32 %v5418, -0.28449672
  %v5435 = vadd.f32 %v5419, -0.28449672
  %v5436 = vadd.f32 %v5420, -0.28449672
  %v5437 = vadd.f32 %v5421, -0.28449672
  %v5438 = vadd.f32 %v5422, -0.28449672
  %v5439 = vadd.f32 %v5423, -0.28449672
  %v5440 = vadd.f32 %v5424, -0.28449672
  %v5441 = vadd.f32 %v5425, -0.28449672
  %v5442 = vadd.f32 %v5426, -0.28449672
  %v5443 = vadd.f32 %v5427, -0.28449672
  %v5444 = vadd.f32 %v5428, -0.28449672
  %v5445 = vadd.f32 %v5429, -0.28449672
  %v5446 = vmul.f32 %v5430, %v5319
  %v5447 = vmul.f32 %v5431, %v5321
  %v5448 = vmul.f32 %v5432, %v5323
  %v5449 = vmul.f32 %v5433, %v5325
  %v5450 = vmul.f32 %v5434, %v5327
  %v5451 = vmul.f32 %v5435, %v5329
  %v5452 = vmul.f32 %v5436, %v5331
  %v5453 = vmul.f32 %v5437, %v5333
  %v5454 = vmul.f32 %v5438, %v5335
  %v5455 = vmul.f32 %v5439, %v5337
  %v5456 = vmul.f32 %v5440, %v5339
  %v5457 = vmul.f32 %v5441, %v5341
  %v5458 = vmul.f32 %v5442, %v5343
  %v5459 = vmul.f32 %v5443, %v5345
  %v5460 = vmul.f32 %v5444, %v5347
  %v5461 = vmul.f32 %v5445, %v5349
  %v5462 = vadd.f32 %v5446, 0.2548296
  %v5463 = vadd.f32 %v5447, 0.2548296
  %v5464 = vadd.f32 %v5448, 0.2548296
  %v5465 = vadd.f32 %v5449, 0.2548296
  %v5466 = vadd.f32 %v5450, 0.2548296
  %v5467 = vadd.f32 %v5451, 0.2548296
  %v5468 = vadd.f32 %v5452, 0.2548296
  %v5469 = vadd.f32 %v5453, 0.2548296
  %v5470 = vadd.f32 %v5454, 0.2548296
  %v5471 = vadd.f32 %v5455, 0.2548296
  %v5472 = vadd.f32 %v5456, 0.2548296
  %v5473 = vadd.f32 %v5457, 0.2548296
  %v5474 = vadd.f32 %v5458, 0.2548296
  %v5475 = vadd.f32 %v5459, 0.2548296
  %v5476 = vadd.f32 %v5460, 0.2548296
  %v5477 = vadd.f32 %v5461, 0.2548296
  %v5478 = vmul.f32 %v5462, %v5319
  %v5479 = vmul.f32 %v5463, %v5321
  %v5480 = vmul.f32 %v5464, %v5323
  %v5481 = vmul.f32 %v5465, %v5325
  %v5482 = vmul.f32 %v5466, %v5327
  %v5483 = vmul.f32 %v5467, %v5329
  %v5484 = vmul.f32 %v5468, %v5331
  %v5485 = vmul.f32 %v5469, %v5333
  %v5486 = vmul.f32 %v5470, %v5335
  %v5487 = vmul.f32 %v5471, %v5337
  %v5488 = vmul.f32 %v5472, %v5339
  %v5489 = vmul.f32 %v5473, %v5341
  %v5490 = vmul.f32 %v5474, %v5343
  %v5491 = vmul.f32 %v5475, %v5345
  %v5492 = vmul.f32 %v5476, %v5347
  %v5493 = vmul.f32 %v5477, %v5349
  %v5494 = vsub.f32 0.0, %v5270
  %v5495 = vsub.f32 0.0, %v5271
  %v5496 = vsub.f32 0.0, %v5272
  %v5497 = vsub.f32 0.0, %v5273
  %v5498 = vsub.f32 0.0, %v5274
  %v5499 = vsub.f32 0.0, %v5275
  %v5500 = vsub.f32 0.0, %v5276
  %v5501 = vsub.f32 0.0, %v5277
  %v5502 = vsub.f32 0.0, %v5278
  %v5503 = vsub.f32 0.0, %v5279
  %v5504 = vsub.f32 0.0, %v5280
  %v5505 = vsub.f32 0.0, %v5281
  %v5506 = vsub.f32 0.0, %v5282
  %v5507 = vsub.f32 0.0, %v5283
  %v5508 = vsub.f32 0.0, %v5284
  %v5509 = vsub.f32 0.0, %v5285
  %v5510 = vmul.f32 %v5494, %v5270
  %v5511 = vmul.f32 %v5495, %v5271
  %v5512 = vmul.f32 %v5496, %v5272
  %v5513 = vmul.f32 %v5497, %v5273
  %v5514 = vmul.f32 %v5498, %v5274
  %v5515 = vmul.f32 %v5499, %v5275
  %v5516 = vmul.f32 %v5500, %v5276
  %v5517 = vmul.f32 %v5501, %v5277
  %v5518 = vmul.f32 %v5502, %v5278
  %v5519 = vmul.f32 %v5503, %v5279
  %v5520 = vmul.f32 %v5504, %v5280
  %v5521 = vmul.f32 %v5505, %v5281
  %v5522 = vmul.f32 %v5506, %v5282
  %v5523 = vmul.f32 %v5507, %v5283
  %v5524 = vmul.f32 %v5508, %v5284
  %v5525 = vmul.f32 %v5509, %v5285
  %v5526 = vmul.f32 %v5510, 1.442695
  %v5527 = vpow.pop %v5526
  %v5528 = vmul.f32 %v5511, 1.442695
  %v5529 = vpow.pop %v5528
  %v5530 = vmul.f32 %v5512, 1.442695
  %v5531 = vpow.pop %v5530
  %v5532 = vmul.f32 %v5513, 1.442695
  %v5533 = vpow.pop %v5532
  %v5534 = vmul.f32 %v5514, 1.442695
  %v5535 = vpow.pop %v5534
  %v5536 = vmul.f32 %v5515, 1.442695
  %v5537 = vpow.pop %v5536
  %v5538 = vmul.f32 %v5516, 1.442695
  %v5539 = vpow.pop %v5538
  %v5540 = vmul.f32 %v5517, 1.442695
  %v5541 = vpow.pop %v5540
  %v5542 = vmul.f32 %v5518, 1.442695
  %v5543 = vpow.pop %v5542
  %v5544 = vmul.f32 %v5519, 1.442695
  %v5545 = vpow.pop %v5544
  %v5546 = vmul.f32 %v5520, 1.442695
  %v5547 = vpow.pop %v5546
  %v5548 = vmul.f32 %v5521, 1.442695
  %v5549 = vpow.pop %v5548
  %v5550 = vmul.f32 %v5522, 1.442695
  %v5551 = vpow.pop %v5550
  %v5552 = vmul.f32 %v5523, 1.442695
  %v5553 = vpow.pop %v5552
  %v5554 = vmul.f32 %v5524, 1.442695
  %v5555 = vpow.pop %v5554
  %v5556 = vmul.f32 %v5525, 1.442695
  %v5557 = vpow.pop %v5556
  %v5558 = vmul.f32 %v5478, %v5527
  %v5559 = vmul.f32 %v5479, %v5529
  %v5560 = vmul.f32 %v5480, %v5531
  %v5561 = vmul.f32 %v5481, %v5533
  %v5562 = vmul.f32 %v5482, %v5535
  %v5563 = vmul.f32 %v5483, %v5537
  %v5564 = vmul.f32 %v5484, %v5539
  %v5565 = vmul.f32 %v5485, %v5541
  %v5566 = vmul.f32 %v5486, %v5543
  %v5567 = vmul.f32 %v5487, %v5545
  %v5568 = vmul.f32 %v5488, %v5547
  %v5569 = vmul.f32 %v5489, %v5549
  %v5570 = vmul.f32 %v5490, %v5551
  %v5571 = vmul.f32 %v5491, %v5553
  %v5572 = vmul.f32 %v5492, %v5555
  %v5573 = vmul.f32 %v5493, %v5557
  %v5574 = vsub.f32 1.0, %v5558
  %v5575 = vsub.f32 1.0, %v5559
  %v5576 = vsub.f32 1.0, %v5560
  %v5577 = vsub.f32 1.0, %v5561
  %v5578 = vsub.f32 1.0, %v5562
  %v5579 = vsub.f32 1.0, %v5563
  %v5580 = vsub.f32 1.0, %v5564
  %v5581 = vsub.f32 1.0, %v5565
  %v5582 = vsub.f32 1.0, %v5566
  %v5583 = vsub.f32 1.0, %v5567
  %v5584 = vsub.f32 1.0, %v5568
  %v5585 = vsub.f32 1.0, %v5569
  %v5586 = vsub.f32 1.0, %v5570
  %v5587 = vsub.f32 1.0, %v5571
  %v5588 = vsub.f32 1.0, %v5572
  %v5589 = vsub.f32 1.0, %v5573
  %v5590 = vmul.f32 %v5254, %v5574
  %v5591 = vmul.f32 %v5255, %v5575
  %v5592 = vmul.f32 %v5256, %v5576
  %v5593 = vmul.f32 %v5257, %v5577
  %v5594 = vmul.f32 %v5258, %v5578
  %v5595 = vmul.f32 %v5259, %v5579
  %v5596 = vmul.f32 %v5260, %v5580
  %v5597 = vmul.f32 %v5261, %v5581
  %v5598 = vmul.f32 %v5262, %v5582
  %v5599 = vmul.f32 %v5263, %v5583
  %v5600 = vmul.f32 %v5264, %v5584
  %v5601 = vmul.f32 %v5265, %v5585
  %v5602 = vmul.f32 %v5266, %v5586
  %v5603 = vmul.f32 %v5267, %v5587
  %v5604 = vmul.f32 %v5268, %v5588
  %v5605 = vmul.f32 %v5269, %v5589
  %v5606 = vadd.f32 %v5590, 1.0
  %v5607 = vadd.f32 %v5591, 1.0
  %v5608 = vadd.f32 %v5592, 1.0
  %v5609 = vadd.f32 %v5593, 1.0
  %v5610 = vadd.f32 %v5594, 1.0
  %v5611 = vadd.f32 %v5595, 1.0
  %v5612 = vadd.f32 %v5596, 1.0
  %v5613 = vadd.f32 %v5597, 1.0
  %v5614 = vadd.f32 %v5598, 1.0
  %v5615 = vadd.f32 %v5599, 1.0
  %v5616 = vadd.f32 %v5600, 1.0
  %v5617 = vadd.f32 %v5601, 1.0
  %v5618 = vadd.f32 %v5602, 1.0
  %v5619 = vadd.f32 %v5603, 1.0
  %v5620 = vadd.f32 %v5604, 1.0
  %v5621 = vadd.f32 %v5605, 1.0
  %v5622 = vmul.f32 %v5206, %v5606
  %v5623 = vmul.f32 %v5207, %v5607
  %v5624 = vmul.f32 %v5208, %v5608
  %v5625 = vmul.f32 %v5209, %v5609
  %v5626 = vmul.f32 %v5210, %v5610
  %v5627 = vmul.f32 %v5211, %v5611
  %v5628 = vmul.f32 %v5212, %v5612
  %v5629 = vmul.f32 %v5213, %v5613
  %v5630 = vmul.f32 %v5214, %v5614
  %v5631 = vmul.f32 %v5215, %v5615
  %v5632 = vmul.f32 %v5216, %v5616
  %v5633 = vmul.f32 %v5217, %v5617
  %v5634 = vmul.f32 %v5218, %v5618
  %v5635 = vmul.f32 %v5219, %v5619
  %v5636 = vmul.f32 %v5220, %v5620
  %v5637 = vmul.f32 %v5221, %v5621
  %v5638 = vpack.c.bf16 %v5626, %v5622
  %v5639 = vpack.c.bf16 %v5627, %v5623
  %v5640 = vpack.c.bf16 %v5628, %v5624
  %v5641 = vpack.c.bf16 %v5629, %v5625
  %v5642 = vpack.c.bf16 %v5634, %v5630
  %v5643 = vpack.c.bf16 %v5635, %v5631
  %v5644 = vpack.c.bf16 %v5636, %v5632
  %v5645 = vpack.c.bf16 %v5637, %v5633
  %s5646 = scalar_lea.vmem %s5, 512
  %v5647 = vld [vmem:[%s5646] sm:$0xff]
  %v5648 = vld [vmem:[%s5646 + $0x8] sm:$0xff]
  %v5649 = vld [vmem:[%s5646 + $0x10] sm:$0xff]
  %v5650 = vld [vmem:[%s5646 + $0x18] sm:$0xff]
  %v5651 = vld [vmem:[%s5646 + $0x20] sm:$0xff]
  %v5652 = vld [vmem:[%s5646 + $0x28] sm:$0xff]
  %v5653 = vld [vmem:[%s5646 + $0x30] sm:$0xff]
  %v5654 = vld [vmem:[%s5646 + $0x38] sm:$0xff]
  %v5655 = vld [vmem:[%s5646 + $0x40] sm:$0xff]
  %v5656 = vld [vmem:[%s5646 + $0x48] sm:$0xff]
  %v5657 = vld [vmem:[%s5646 + $0x50] sm:$0xff]
  %v5658 = vld [vmem:[%s5646 + $0x58] sm:$0xff]
  %v5659 = vld [vmem:[%s5646 + $0x60] sm:$0xff]
  %v5660 = vld [vmem:[%s5646 + $0x68] sm:$0xff]
  %v5661 = vld [vmem:[%s5646 + $0x70] sm:$0xff]
  %v5662 = vld [vmem:[%s5646 + $0x78] sm:$0xff]
  %v5663 = vld [vmem:[%s5646 + $0x80] sm:$0xff]
  %v5664 = vld [vmem:[%s5646 + $0x88] sm:$0xff]
  %v5665 = vld [vmem:[%s5646 + $0x90] sm:$0xff]
  %v5666 = vld [vmem:[%s5646 + $0x98] sm:$0xff]
  %v5667 = vld [vmem:[%s5646 + $0xa0] sm:$0xff]
  %v5668 = vld [vmem:[%s5646 + $0xa8] sm:$0xff]
  %v5669 = vld [vmem:[%s5646 + $0xb0] sm:$0xff]
  %v5670 = vld [vmem:[%s5646 + $0xb8] sm:$0xff]
  %v5671 = vld [vmem:[%s5646 + $0xc0] sm:$0xff]
  %v5672 = vld [vmem:[%s5646 + $0xc8] sm:$0xff]
  %v5673 = vld [vmem:[%s5646 + $0xd0] sm:$0xff]
  %v5674 = vld [vmem:[%s5646 + $0xd8] sm:$0xff]
  %v5675 = vld [vmem:[%s5646 + $0xe0] sm:$0xff]
  %v5676 = vld [vmem:[%s5646 + $0xe8] sm:$0xff]
  %v5677 = vld [vmem:[%s5646 + $0xf0] sm:$0xff]
  %v5678 = vld [vmem:[%s5646 + $0xf8] sm:$0xff]
  %v5679 = vld [vmem:[%s5646 + $0x100] sm:$0xff]
  %v5680 = vld [vmem:[%s5646 + $0x108] sm:$0xff]
  %v5681 = vld [vmem:[%s5646 + $0x110] sm:$0xff]
  %v5682 = vld [vmem:[%s5646 + $0x118] sm:$0xff]
  %v5683 = vld [vmem:[%s5646 + $0x120] sm:$0xff]
  %v5684 = vld [vmem:[%s5646 + $0x128] sm:$0xff]
  %v5685 = vld [vmem:[%s5646 + $0x130] sm:$0xff]
  %v5686 = vld [vmem:[%s5646 + $0x138] sm:$0xff]
  %v5687 = vld [vmem:[%s5646 + $0x140] sm:$0xff]
  %v5688 = vld [vmem:[%s5646 + $0x148] sm:$0xff]
  %v5689 = vld [vmem:[%s5646 + $0x150] sm:$0xff]
  %v5690 = vld [vmem:[%s5646 + $0x158] sm:$0xff]
  %v5691 = vld [vmem:[%s5646 + $0x160] sm:$0xff]
  %v5692 = vld [vmem:[%s5646 + $0x168] sm:$0xff]
  %v5693 = vld [vmem:[%s5646 + $0x170] sm:$0xff]
  %v5694 = vld [vmem:[%s5646 + $0x178] sm:$0xff]
  %v5695 = vld [vmem:[%s5646 + $0x180] sm:$0xff]
  %v5696 = vld [vmem:[%s5646 + $0x188] sm:$0xff]
  %v5697 = vld [vmem:[%s5646 + $0x190] sm:$0xff]
  %v5698 = vld [vmem:[%s5646 + $0x198] sm:$0xff]
  %v5699 = vld [vmem:[%s5646 + $0x1a0] sm:$0xff]
  %v5700 = vld [vmem:[%s5646 + $0x1a8] sm:$0xff]
  %v5701 = vld [vmem:[%s5646 + $0x1b0] sm:$0xff]
  %v5702 = vld [vmem:[%s5646 + $0x1b8] sm:$0xff]
  %v5703 = vld [vmem:[%s5646 + $0x1c0] sm:$0xff]
  %v5704 = vld [vmem:[%s5646 + $0x1c8] sm:$0xff]
  %v5705 = vld [vmem:[%s5646 + $0x1d0] sm:$0xff]
  %v5706 = vld [vmem:[%s5646 + $0x1d8] sm:$0xff]
  %v5707 = vld [vmem:[%s5646 + $0x1e0] sm:$0xff]
  %v5708 = vld [vmem:[%s5646 + $0x1e8] sm:$0xff]
  %v5709 = vld [vmem:[%s5646 + $0x1f0] sm:$0xff]
  %v5710 = vld [vmem:[%s5646 + $0x1f8] sm:$0xff]
  %v5711 = vld [vmem:[%s3317 + $0x10] sm:$0x3]
  %v5713 = vlaneseq
  %v5714 = vshrl.u32 %v5713, 7
  %v5715 = vsub.s32 0, %v5714
  %v5716 = vrot.slane %v5711, %v5715
  %v5717 = vlaneseq
  %v5718 = vshrl.u32 %v5717, 7
  %v5719 = vsub.s32 1, %v5718
  %v5720 = vrot.slane %v5711, %v5719
  %v5787 = vunpack.c.l.b16 %v5647
  %v5788 = vunpack.c.h.b16 %v5647
  %v5789 = vunpack.c.l.b16 %v5648
  %v5790 = vunpack.c.h.b16 %v5648
  %v5791 = vunpack.c.l.b16 %v5649
  %v5792 = vunpack.c.h.b16 %v5649
  %v5793 = vunpack.c.l.b16 %v5650
  %v5794 = vunpack.c.h.b16 %v5650
  %v5795 = vunpack.c.l.b16 %v5651
  %v5796 = vunpack.c.h.b16 %v5651
  %v5797 = vunpack.c.l.b16 %v5652
  %v5798 = vunpack.c.h.b16 %v5652
  %v5799 = vunpack.c.l.b16 %v5653
  %v5800 = vunpack.c.h.b16 %v5653
  %v5801 = vunpack.c.l.b16 %v5654
  %v5802 = vunpack.c.h.b16 %v5654
  %v5803 = vunpack.c.l.b16 %v5655
  %v5804 = vunpack.c.h.b16 %v5655
  %v5805 = vunpack.c.l.b16 %v5656
  %v5806 = vunpack.c.h.b16 %v5656
  %v5807 = vunpack.c.l.b16 %v5657
  %v5808 = vunpack.c.h.b16 %v5657
  %v5809 = vunpack.c.l.b16 %v5658
  %v5810 = vunpack.c.h.b16 %v5658
  %v5811 = vunpack.c.l.b16 %v5659
  %v5812 = vunpack.c.h.b16 %v5659
  %v5813 = vunpack.c.l.b16 %v5660
  %v5814 = vunpack.c.h.b16 %v5660
  %v5815 = vunpack.c.l.b16 %v5661
  %v5816 = vunpack.c.h.b16 %v5661
  %v5817 = vunpack.c.l.b16 %v5662
  %v5818 = vunpack.c.h.b16 %v5662
  %v5819 = vunpack.c.l.b16 %v5663
  %v5820 = vunpack.c.h.b16 %v5663
  %v5821 = vunpack.c.l.b16 %v5664
  %v5822 = vunpack.c.h.b16 %v5664
  %v5823 = vunpack.c.l.b16 %v5665
  %v5824 = vunpack.c.h.b16 %v5665
  %v5825 = vunpack.c.l.b16 %v5666
  %v5826 = vunpack.c.h.b16 %v5666
  %v5827 = vunpack.c.l.b16 %v5667
  %v5828 = vunpack.c.h.b16 %v5667
  %v5829 = vunpack.c.l.b16 %v5668
  %v5830 = vunpack.c.h.b16 %v5668
  %v5831 = vunpack.c.l.b16 %v5669
  %v5832 = vunpack.c.h.b16 %v5669
  %v5833 = vunpack.c.l.b16 %v5670
  %v5834 = vunpack.c.h.b16 %v5670
  %v5835 = vunpack.c.l.b16 %v5671
  %v5836 = vunpack.c.h.b16 %v5671
  %v5837 = vunpack.c.l.b16 %v5672
  %v5838 = vunpack.c.h.b16 %v5672
  %v5839 = vunpack.c.l.b16 %v5673
  %v5840 = vunpack.c.h.b16 %v5673
  %v5841 = vunpack.c.l.b16 %v5674
  %v5842 = vunpack.c.h.b16 %v5674
  %v5843 = vunpack.c.l.b16 %v5675
  %v5844 = vunpack.c.h.b16 %v5675
  %v5845 = vunpack.c.l.b16 %v5676
  %v5846 = vunpack.c.h.b16 %v5676
  %v5847 = vunpack.c.l.b16 %v5677
  %v5848 = vunpack.c.h.b16 %v5677
  %v5849 = vunpack.c.l.b16 %v5678
  %v5850 = vunpack.c.h.b16 %v5678
  %v5851 = vunpack.c.l.b16 %v5679
  %v5852 = vunpack.c.h.b16 %v5679
  %v5853 = vunpack.c.l.b16 %v5680
  %v5854 = vunpack.c.h.b16 %v5680
  %v5855 = vunpack.c.l.b16 %v5681
  %v5856 = vunpack.c.h.b16 %v5681
  %v5857 = vunpack.c.l.b16 %v5682
  %v5858 = vunpack.c.h.b16 %v5682
  %v5859 = vunpack.c.l.b16 %v5683
  %v5860 = vunpack.c.h.b16 %v5683
  %v5861 = vunpack.c.l.b16 %v5684
  %v5862 = vunpack.c.h.b16 %v5684
  %v5863 = vunpack.c.l.b16 %v5685
  %v5864 = vunpack.c.h.b16 %v5685
  %v5865 = vunpack.c.l.b16 %v5686
  %v5866 = vunpack.c.h.b16 %v5686
  %v5867 = vunpack.c.l.b16 %v5687
  %v5868 = vunpack.c.h.b16 %v5687
  %v5869 = vunpack.c.l.b16 %v5688
  %v5870 = vunpack.c.h.b16 %v5688
  %v5871 = vunpack.c.l.b16 %v5689
  %v5872 = vunpack.c.h.b16 %v5689
  %v5873 = vunpack.c.l.b16 %v5690
  %v5874 = vunpack.c.h.b16 %v5690
  %v5875 = vunpack.c.l.b16 %v5691
  %v5876 = vunpack.c.h.b16 %v5691
  %v5877 = vunpack.c.l.b16 %v5692
  %v5878 = vunpack.c.h.b16 %v5692
  %v5879 = vunpack.c.l.b16 %v5693
  %v5880 = vunpack.c.h.b16 %v5693
  %v5881 = vunpack.c.l.b16 %v5694
  %v5882 = vunpack.c.h.b16 %v5694
  %v5883 = vunpack.c.l.b16 %v5695
  %v5884 = vunpack.c.h.b16 %v5695
  %v5885 = vunpack.c.l.b16 %v5696
  %v5886 = vunpack.c.h.b16 %v5696
  %v5887 = vunpack.c.l.b16 %v5697
  %v5888 = vunpack.c.h.b16 %v5697
  %v5889 = vunpack.c.l.b16 %v5698
  %v5890 = vunpack.c.h.b16 %v5698
  %v5891 = vunpack.c.l.b16 %v5699
  %v5892 = vunpack.c.h.b16 %v5699
  %v5893 = vunpack.c.l.b16 %v5700
  %v5894 = vunpack.c.h.b16 %v5700
  %v5895 = vunpack.c.l.b16 %v5701
  %v5896 = vunpack.c.h.b16 %v5701
  %v5897 = vunpack.c.l.b16 %v5702
  %v5898 = vunpack.c.h.b16 %v5702
  %v5899 = vunpack.c.l.b16 %v5703
  %v5900 = vunpack.c.h.b16 %v5703
  %v5901 = vunpack.c.l.b16 %v5704
  %v5902 = vunpack.c.h.b16 %v5704
  %v5903 = vunpack.c.l.b16 %v5705
  %v5904 = vunpack.c.h.b16 %v5705
  %v5905 = vunpack.c.l.b16 %v5706
  %v5906 = vunpack.c.h.b16 %v5706
  %v5907 = vunpack.c.l.b16 %v5707
  %v5908 = vunpack.c.h.b16 %v5707
  %v5909 = vunpack.c.l.b16 %v5708
  %v5910 = vunpack.c.h.b16 %v5708
  %v5911 = vunpack.c.l.b16 %v5709
  %v5912 = vunpack.c.h.b16 %v5709
  %v5913 = vunpack.c.l.b16 %v5710
  %v5914 = vunpack.c.h.b16 %v5710
  %v5915 = vpack.c.b16 %v5789, %v5787
  %v5916 = vpack.c.b16 %v5790, %v5788
  %v5917 = vpack.c.b16 %v5793, %v5791
  %v5918 = vpack.c.b16 %v5794, %v5792
  %v5919 = vpack.c.b16 %v5797, %v5795
  %v5920 = vpack.c.b16 %v5798, %v5796
  %v5921 = vpack.c.b16 %v5801, %v5799
  %v5922 = vpack.c.b16 %v5802, %v5800
  %v5923 = vpack.c.b16 %v5805, %v5803
  %v5924 = vpack.c.b16 %v5806, %v5804
  %v5925 = vpack.c.b16 %v5809, %v5807
  %v5926 = vpack.c.b16 %v5810, %v5808
  %v5927 = vpack.c.b16 %v5813, %v5811
  %v5928 = vpack.c.b16 %v5814, %v5812
  %v5929 = vpack.c.b16 %v5817, %v5815
  %v5930 = vpack.c.b16 %v5818, %v5816
  %v5931 = vpack.c.b16 %v5821, %v5819
  %v5932 = vpack.c.b16 %v5822, %v5820
  %v5933 = vpack.c.b16 %v5825, %v5823
  %v5934 = vpack.c.b16 %v5826, %v5824
  %v5935 = vpack.c.b16 %v5829, %v5827
  %v5936 = vpack.c.b16 %v5830, %v5828
  %v5937 = vpack.c.b16 %v5833, %v5831
  %v5938 = vpack.c.b16 %v5834, %v5832
  %v5939 = vpack.c.b16 %v5837, %v5835
  %v5940 = vpack.c.b16 %v5838, %v5836
  %v5941 = vpack.c.b16 %v5841, %v5839
  %v5942 = vpack.c.b16 %v5842, %v5840
  %v5943 = vpack.c.b16 %v5845, %v5843
  %v5944 = vpack.c.b16 %v5846, %v5844
  %v5945 = vpack.c.b16 %v5849, %v5847
  %v5946 = vpack.c.b16 %v5850, %v5848
  %v5947 = vpack.c.b16 %v5853, %v5851
  %v5948 = vpack.c.b16 %v5854, %v5852
  %v5949 = vpack.c.b16 %v5857, %v5855
  %v5950 = vpack.c.b16 %v5858, %v5856
  %v5951 = vpack.c.b16 %v5861, %v5859
  %v5952 = vpack.c.b16 %v5862, %v5860
  %v5953 = vpack.c.b16 %v5865, %v5863
  %v5954 = vpack.c.b16 %v5866, %v5864
  %v5955 = vpack.c.b16 %v5869, %v5867
  %v5956 = vpack.c.b16 %v5870, %v5868
  %v5957 = vpack.c.b16 %v5873, %v5871
  %v5958 = vpack.c.b16 %v5874, %v5872
  %v5959 = vpack.c.b16 %v5877, %v5875
  %v5960 = vpack.c.b16 %v5878, %v5876
  %v5961 = vpack.c.b16 %v5881, %v5879
  %v5962 = vpack.c.b16 %v5882, %v5880
  %v5963 = vpack.c.b16 %v5885, %v5883
  %v5964 = vpack.c.b16 %v5886, %v5884
  %v5965 = vpack.c.b16 %v5889, %v5887
  %v5966 = vpack.c.b16 %v5890, %v5888
  %v5967 = vpack.c.b16 %v5893, %v5891
  %v5968 = vpack.c.b16 %v5894, %v5892
  %v5969 = vpack.c.b16 %v5897, %v5895
  %v5970 = vpack.c.b16 %v5898, %v5896
  %v5971 = vpack.c.b16 %v5901, %v5899
  %v5972 = vpack.c.b16 %v5902, %v5900
  %v5973 = vpack.c.b16 %v5905, %v5903
  %v5974 = vpack.c.b16 %v5906, %v5904
  %v5975 = vpack.c.b16 %v5909, %v5907
  %v5976 = vpack.c.b16 %v5910, %v5908
  %v5977 = vpack.c.b16 %v5913, %v5911
  %v5978 = vpack.c.b16 %v5914, %v5912
  %6043 = vmatprep.subr.bf16.mxu0 %v5916
  %6044 = vmatpush1.bf16.msra.mxu0 %v5915
  %6045 = vmatprep.subr.bf16.mxu0 %v5918
  %6046 = vmatpush1.bf16.msra.mxu0 %v5917
  %6047 = vmatprep.subr.bf16.mxu0 %v5920
  %6048 = vmatpush1.bf16.msra.mxu0 %v5919
  %6049 = vmatprep.subr.bf16.mxu0 %v5922
  %6050 = vmatpush1.bf16.msra.mxu0 %v5921
  %6051 = vmatprep.subr.bf16.mxu0 %v5924
  %6052 = vmatpush1.bf16.msra.mxu0 %v5923
  %6053 = vmatprep.subr.bf16.mxu0 %v5926
  %6054 = vmatpush1.bf16.msra.mxu0 %v5925
  %6055 = vmatprep.subr.bf16.mxu0 %v5928
  %6056 = vmatpush1.bf16.msra.mxu0 %v5927
  %6057 = vmatprep.subr.bf16.mxu0 %v5930
  %6058 = vmatpush1.bf16.msra.mxu0 %v5929
  %6059 = vmatprep.subr.bf16.mxu0 %v5932
  %6060 = vmatpush1.bf16.msra.mxu0 %v5931
  %6061 = vmatprep.subr.bf16.mxu0 %v5934
  %6062 = vmatpush1.bf16.msra.mxu0 %v5933
  %6063 = vmatprep.subr.bf16.mxu0 %v5936
  %6064 = vmatpush1.bf16.msra.mxu0 %v5935
  %6065 = vmatprep.subr.bf16.mxu0 %v5938
  %6066 = vmatpush1.bf16.msra.mxu0 %v5937
  %6067 = vmatprep.subr.bf16.mxu0 %v5940
  %6068 = vmatpush1.bf16.msra.mxu0 %v5939
  %6069 = vmatprep.subr.bf16.mxu0 %v5942
  %6070 = vmatpush1.bf16.msra.mxu0 %v5941
  %6071 = vmatprep.subr.bf16.mxu0 %v5944
  %6072 = vmatpush1.bf16.msra.mxu0 %v5943
  %6073 = vmatprep.subr.bf16.mxu0 %v5946
  %6074 = vmatpush1.bf16.msra.mxu0 %v5945
  %6075 = vmatprep.mubr.bf16.mxu0 %v5639
  %6076 = vmatmul.mubr.bf16.gmra.mrb[0].mxu0 %v5638
  %v6077 = vpop.f32.mrb[0].mxu0
  %v6078 = vadd.f32 %v5716, %v6077
  %v6079 = vpop.f32.mrb[0].mxu0
  %v6080 = vadd.f32 %v5720, %v6079
  %v6081 = vpop.f32.mrb[0].mxu0
  %v6082 = vadd.f32 %v5716, %v6081
  %v6083 = vpop.f32.mrb[0].mxu0
  %v6084 = vadd.f32 %v5720, %v6083
  %6085 = vmatprep.mubr.bf16.mxu0 %v5643
  %6086 = vmatmul.mubr.bf16.gmra.mrb[0].mxu0 %v5642
  %v6087 = vpop.f32.mrb[0].mxu0
  %v6088 = vadd.f32 %v5716, %v6087
  %v6089 = vpop.f32.mrb[0].mxu0
  %v6090 = vadd.f32 %v5720, %v6089
  %v6091 = vpop.f32.mrb[0].mxu0
  %v6092 = vadd.f32 %v5716, %v6091
  %v6093 = vpop.f32.mrb[0].mxu0
  %v6094 = vadd.f32 %v5720, %v6093
  %6095 = vdwg.mxu0
  %6096 = vmatprep.subr.bf16.mxu0 %v5948
  %6097 = vmatpush1.bf16.msra.mxu0 %v5947
  %6098 = vmatprep.subr.bf16.mxu0 %v5950
  %6099 = vmatpush1.bf16.msra.mxu0 %v5949
  %6100 = vmatprep.subr.bf16.mxu0 %v5952
  %6101 = vmatpush1.bf16.msra.mxu0 %v5951
  %6102 = vmatprep.subr.bf16.mxu0 %v5954
  %6103 = vmatpush1.bf16.msra.mxu0 %v5953
  %6104 = vmatprep.subr.bf16.mxu0 %v5956
  %6105 = vmatpush1.bf16.msra.mxu0 %v5955
  %6106 = vmatprep.subr.bf16.mxu0 %v5958
  %6107 = vmatpush1.bf16.msra.mxu0 %v5957
  %6108 = vmatprep.subr.bf16.mxu0 %v5960
  %6109 = vmatpush1.bf16.msra.mxu0 %v5959
  %6110 = vmatprep.subr.bf16.mxu0 %v5962
  %6111 = vmatpush1.bf16.msra.mxu0 %v5961
  %6112 = vmatprep.subr.bf16.mxu0 %v5964
  %6113 = vmatpush1.bf16.msra.mxu0 %v5963
  %6114 = vmatprep.subr.bf16.mxu0 %v5966
  %6115 = vmatpush1.bf16.msra.mxu0 %v5965
  %6116 = vmatprep.subr.bf16.mxu0 %v5968
  %6117 = vmatpush1.bf16.msra.mxu0 %v5967
  %6118 = vmatprep.subr.bf16.mxu0 %v5970
  %6119 = vmatpush1.bf16.msra.mxu0 %v5969
  %6120 = vmatprep.subr.bf16.mxu0 %v5972
  %6121 = vmatpush1.bf16.msra.mxu0 %v5971
  %6122 = vmatprep.subr.bf16.mxu0 %v5974
  %6123 = vmatpush1.bf16.msra.mxu0 %v5973
  %6124 = vmatprep.subr.bf16.mxu0 %v5976
  %6125 = vmatpush1.bf16.msra.mxu0 %v5975
  %6126 = vmatprep.subr.bf16.mxu0 %v5978
  %6127 = vmatpush1.bf16.msra.mxu0 %v5977
  %6128 = vmatprep.mubr.bf16.mxu0 %v5641
  %6129 = vmatmul.mubr.bf16.gmra.mrb[0].mxu0 %v5640
  %v6130 = vpop.f32.mrb[0].mxu0
  %v6131 = vadd.f32 %v6078, %v6130
  %v6132 = vpop.f32.mrb[0].mxu0
  %v6133 = vadd.f32 %v6080, %v6132
  %v6134 = vpop.f32.mrb[0].mxu0
  %v6135 = vadd.f32 %v6082, %v6134
  %v6136 = vpop.f32.mrb[0].mxu0
  %v6137 = vadd.f32 %v6084, %v6136
  %6138 = vmatprep.mubr.bf16.mxu0 %v5645
  %6139 = vmatmul.mubr.bf16.gmra.mrb[0].mxu0 %v5644
  %v6140 = vpop.f32.mrb[0].mxu0
  %v6141 = vadd.f32 %v6088, %v6140
  %v6142 = vpop.f32.mrb[0].mxu0
  %v6143 = vadd.f32 %v6090, %v6142
  %v6144 = vpop.f32.mrb[0].mxu0
  %v6145 = vadd.f32 %v6092, %v6144
  %v6146 = vpop.f32.mrb[0].mxu0
  %v6147 = vadd.f32 %v6094, %v6146
  %6148 = vdwg.mxu0
  %v6149 = vadd.f32 %v4682, %v6131
  %v6150 = vadd.f32 %v4683, %v6133
  %v6151 = vadd.f32 %v4684, %v6135
  %v6152 = vadd.f32 %v4685, %v6137
  %v6153 = vadd.f32 %v4686, %v6141
  %v6154 = vadd.f32 %v4687, %v6143
  %v6155 = vadd.f32 %v4688, %v6145
  %v6156 = vadd.f32 %v4689, %v6147
  %v6157 = vld [vmem:[%s3317 + $0x12] sm:$0x3]
  %v6158 = vld [vmem:[%s3317 + $0x14] sm:$0x3]
  %v6159 = vadd.f32 %v6149, %v6150
  %6160 = vadd.xlane.f32.xlu0 %v6159
  %v6161 = vpop.xlane.xlu0 %6160
  %v6162 = vadd.f32 %v6151, %v6152
  %6163 = vadd.xlane.f32.xlu0 %v6162
  %v6164 = vpop.xlane.xlu0 %6163
  %v6165 = vadd.f32 %v6153, %v6154
  %6166 = vadd.xlane.f32.xlu0 %v6165
  %v6167 = vpop.xlane.xlu0 %6166
  %v6168 = vadd.f32 %v6155, %v6156
  %6169 = vadd.xlane.f32.xlu0 %v6168
  %v6170 = vpop.xlane.xlu0 %6169
  %v6171 = vmul.f32 %v6161, %v78
  %v6172 = vmul.f32 %v6164, %v78
  %v6173 = vmul.f32 %v6167, %v78
  %v6174 = vmul.f32 %v6170, %v78
  %v6175 = vsub.f32 %v6149, %v6171
  %v6176 = vsub.f32 %v6150, %v6171
  %v6177 = vsub.f32 %v6151, %v6172
  %v6178 = vsub.f32 %v6152, %v6172
  %v6179 = vsub.f32 %v6153, %v6173
  %v6180 = vsub.f32 %v6154, %v6173
  %v6181 = vsub.f32 %v6155, %v6174
  %v6182 = vsub.f32 %v6156, %v6174
  %v6183 = vmul.f32 %v6175, %v6175
  %v6184 = vmul.f32 %v6176, %v6176
  %v6185 = vmul.f32 %v6177, %v6177
  %v6186 = vmul.f32 %v6178, %v6178
  %v6187 = vmul.f32 %v6179, %v6179
  %v6188 = vmul.f32 %v6180, %v6180
  %v6189 = vmul.f32 %v6181, %v6181
  %v6190 = vmul.f32 %v6182, %v6182
  %v6191 = vadd.f32 %v6183, %v6184
  %6192 = vadd.xlane.f32.xlu0 %v6191
  %v6193 = vpop.xlane.xlu0 %6192
  %v6194 = vadd.f32 %v6185, %v6186
  %6195 = vadd.xlane.f32.xlu0 %v6194
  %v6196 = vpop.xlane.xlu0 %6195
  %v6197 = vadd.f32 %v6187, %v6188
  %6198 = vadd.xlane.f32.xlu0 %v6197
  %v6199 = vpop.xlane.xlu0 %6198
  %v6200 = vadd.f32 %v6189, %v6190
  %6201 = vadd.xlane.f32.xlu0 %v6200
  %v6202 = vpop.xlane.xlu0 %6201
  %v6203 = vmul.f32 %v6193, %v78
  %v6204 = vmul.f32 %v6196, %v78
  %v6205 = vmul.f32 %v6199, %v78
  %v6206 = vmul.f32 %v6202, %v78
  %v6207 = vadd.f32 %v6203, 1e-05
  %v6208 = vadd.f32 %v6204, 1e-05
  %v6209 = vadd.f32 %v6205, 1e-05
  %v6210 = vadd.f32 %v6206, 1e-05
  %v6211 = vrsqrt.pop %v6207
  %v6212 = vrsqrt.pop %v6208
  %v6213 = vrsqrt.pop %v6209
  %v6214 = vrsqrt.pop %v6210
  %v6215 = vmul.f32 %v6175, %v6211
  %v6216 = vmul.f32 %v6176, %v6211
  %v6217 = vmul.f32 %v6177, %v6212
  %v6218 = vmul.f32 %v6178, %v6212
  %v6219 = vmul.f32 %v6179, %v6213
  %v6220 = vmul.f32 %v6180, %v6213
  %v6221 = vmul.f32 %v6181, %v6214
  %v6222 = vmul.f32 %v6182, %v6214
  %v6224 = vlaneseq
  %v6225 = vshrl.u32 %v6224, 7
  %v6226 = vsub.s32 0, %v6225
  %v6227 = vrot.slane %v6157, %v6226
  %v6228 = vlaneseq
  %v6229 = vshrl.u32 %v6228, 7
  %v6230 = vsub.s32 1, %v6229
  %v6231 = vrot.slane %v6157, %v6230
  %v6234 = vmul.f32 %v6215, %v6227
  %v6235 = vmul.f32 %v6216, %v6231
  %v6236 = vmul.f32 %v6217, %v6227
  %v6237 = vmul.f32 %v6218, %v6231
  %v6238 = vmul.f32 %v6219, %v6227
  %v6239 = vmul.f32 %v6220, %v6231
  %v6240 = vmul.f32 %v6221, %v6227
  %v6241 = vmul.f32 %v6222, %v6231
  %v6243 = vlaneseq
  %v6244 = vshrl.u32 %v6243, 7
  %v6245 = vsub.s32 0, %v6244
  %v6246 = vrot.slane %v6158, %v6245
  %v6247 = vlaneseq
  %v6248 = vshrl.u32 %v6247, 7
  %v6249 = vsub.s32 1, %v6248
  %v6250 = vrot.slane %v6158, %v6249
  %v6253 = vadd.f32 %v6234, %v6246
  %v6254 = vadd.f32 %v6235, %v6250
  %v6255 = vadd.f32 %v6236, %v6246
  %v6256 = vadd.f32 %v6237, %v6250
  %v6257 = vadd.f32 %v6238, %v6246
  %v6258 = vadd.f32 %v6239, %v6250
  %v6259 = vadd.f32 %v6240, %v6246
  %v6260 = vadd.f32 %v6241, %v6250
  %v6261 = vpack.c.bf16 %v6255, %v6253
  %v6262 = vpack.c.bf16 %v6256, %v6254
  %v6263 = vpack.c.bf16 %v6259, %v6257
  %v6264 = vpack.c.bf16 %v6260, %v6258
  %v6265 = vld [vmem:[%s7] sm:$0xf]
  %v6266 = vld [vmem:[%s7 + $0x4] sm:$0xf]
  %v6267 = vld [vmem:[%s7 + $0x8] sm:$0xf]
  %v6268 = vld [vmem:[%s7 + $0xc] sm:$0xf]
  %v6269 = vld [vmem:[%s7 + $0x10] sm:$0xf]
  %v6270 = vld [vmem:[%s7 + $0x14] sm:$0xf]
  %v6271 = vld [vmem:[%s7 + $0x18] sm:$0xf]
  %v6272 = vld [vmem:[%s7 + $0x1c] sm:$0xf]
  %v6273 = vld [vmem:[%s7 + $0x20] sm:$0xf]
  %v6274 = vld [vmem:[%s7 + $0x24] sm:$0xf]
  %v6275 = vld [vmem:[%s7 + $0x28] sm:$0xf]
  %v6276 = vld [vmem:[%s7 + $0x2c] sm:$0xf]
  %v6277 = vld [vmem:[%s7 + $0x30] sm:$0xf]
  %v6278 = vld [vmem:[%s7 + $0x34] sm:$0xf]
  %v6279 = vld [vmem:[%s7 + $0x38] sm:$0xf]
  %v6280 = vld [vmem:[%s7 + $0x3c] sm:$0xf]
  %v6281 = vld [vmem:[%s7 + $0x40] sm:$0xf]
  %v6282 = vld [vmem:[%s7 + $0x44] sm:$0xf]
  %v6283 = vld [vmem:[%s7 + $0x48] sm:$0xf]
  %v6284 = vld [vmem:[%s7 + $0x4c] sm:$0xf]
  %v6285 = vld [vmem:[%s7 + $0x50] sm:$0xf]
  %v6286 = vld [vmem:[%s7 + $0x54] sm:$0xf]
  %v6287 = vld [vmem:[%s7 + $0x58] sm:$0xf]
  %v6288 = vld [vmem:[%s7 + $0x5c] sm:$0xf]
  %v6289 = vld [vmem:[%s7 + $0x60] sm:$0xf]
  %v6290 = vld [vmem:[%s7 + $0x64] sm:$0xf]
  %v6291 = vld [vmem:[%s7 + $0x68] sm:$0xf]
  %v6292 = vld [vmem:[%s7 + $0x6c] sm:$0xf]
  %v6293 = vld [vmem:[%s7 + $0x70] sm:$0xf]
  %v6294 = vld [vmem:[%s7 + $0x74] sm:$0xf]
  %v6295 = vld [vmem:[%s7 + $0x78] sm:$0xf]
  %v6296 = vld [vmem:[%s7 + $0x7c] sm:$0xf]
  %v6297 = vld [vmem:[%s8] sm:$0x1]
  %v6299 = vlaneseq
  %v6300 = vshrl.u32 %v6299, 7
  %v6301 = vsub.s32 0, %v6300
  %v6302 = vrot.slane %v6297, %v6301
  %v6336 = vunpack.c.l.b16 %v6265
  %v6337 = vunpack.c.l.b16 %v6266
  %v6338 = vunpack.c.l.b16 %v6267
  %v6339 = vunpack.c.l.b16 %v6268
  %v6340 = vunpack.c.l.b16 %v6269
  %v6341 = vunpack.c.l.b16 %v6270
  %v6342 = vunpack.c.l.b16 %v6271
  %v6343 = vunpack.c.l.b16 %v6272
  %v6344 = vunpack.c.l.b16 %v6273
  %v6345 = vunpack.c.l.b16 %v6274
  %v6346 = vunpack.c.l.b16 %v6275
  %v6347 = vunpack.c.l.b16 %v6276
  %v6348 = vunpack.c.l.b16 %v6277
  %v6349 = vunpack.c.l.b16 %v6278
  %v6350 = vunpack.c.l.b16 %v6279
  %v6351 = vunpack.c.l.b16 %v6280
  %v6352 = vunpack.c.l.b16 %v6281
  %v6353 = vunpack.c.l.b16 %v6282
  %v6354 = vunpack.c.l.b16 %v6283
  %v6355 = vunpack.c.l.b16 %v6284
  %v6356 = vunpack.c.l.b16 %v6285
  %v6357 = vunpack.c.l.b16 %v6286
  %v6358 = vunpack.c.l.b16 %v6287
  %v6359 = vunpack.c.l.b16 %v6288
  %v6360 = vunpack.c.l.b16 %v6289
  %v6361 = vunpack.c.l.b16 %v6290
  %v6362 = vunpack.c.l.b16 %v6291
  %v6363 = vunpack.c.l.b16 %v6292
  %v6364 = vunpack.c.l.b16 %v6293
  %v6365 = vunpack.c.l.b16 %v6294
  %v6366 = vunpack.c.l.b16 %v6295
  %v6367 = vunpack.c.l.b16 %v6296
  %v6368 = vpack.c.b16 %v6337, %v6336
  %v6369 = vpack.c.b16 %v6339, %v6338
  %v6370 = vpack.c.b16 %v6341, %v6340
  %v6371 = vpack.c.b16 %v6343, %v6342
  %v6372 = vpack.c.b16 %v6345, %v6344
  %v6373 = vpack.c.b16 %v6347, %v6346
  %v6374 = vpack.c.b16 %v6349, %v6348
  %v6375 = vpack.c.b16 %v6351, %v6350
  %v6376 = vpack.c.b16 %v6353, %v6352
  %v6377 = vpack.c.b16 %v6355, %v6354
  %v6378 = vpack.c.b16 %v6357, %v6356
  %v6379 = vpack.c.b16 %v6359, %v6358
  %v6380 = vpack.c.b16 %v6361, %v6360
  %v6381 = vpack.c.b16 %v6363, %v6362
  %v6382 = vpack.c.b16 %v6365, %v6364
  %v6383 = vpack.c.b16 %v6367, %v6366
  %6400 = vmatprep.subr.bf16.mxu0 0
  %6401 = vmatpush1.bf16.msra.mxu0 %v6368
  %6402 = vmatprep.subr.bf16.mxu0 0
  %6403 = vmatpush1.bf16.msra.mxu0 %v6369
  %6404 = vmatprep.subr.bf16.mxu0 0
  %6405 = vmatpush1.bf16.msra.mxu0 %v6370
  %6406 = vmatprep.subr.bf16.mxu0 0
  %6407 = vmatpush1.bf16.msra.mxu0 %v6371
  %6408 = vmatprep.subr.bf16.mxu0 0
  %6409 = vmatpush1.bf16.msra.mxu0 %v6372
  %6410 = vmatprep.subr.bf16.mxu0 0
  %6411 = vmatpush1.bf16.msra.mxu0 %v6373
  %6412 = vmatprep.subr.bf16.mxu0 0
  %6413 = vmatpush1.bf16.msra.mxu0 %v6374
  %6414 = vmatprep.subr.bf16.mxu0 0
  %6415 = vmatpush1.bf16.msra.mxu0 %v6375
  %6416 = vmatprep.subr.bf16.mxu0 0
  %6417 = vmatpush1.bf16.msra.mxu0 %v6376
  %6418 = vmatprep.subr.bf16.mxu0 0
  %6419 = vmatpush1.bf16.msra.mxu0 %v6377
  %6420 = vmatprep.subr.bf16.mxu0 0
  %6421 = vmatpush1.bf16.msra.mxu0 %v6378
  %6422 = vmatprep.subr.bf16.mxu0 0
  %6423 = vmatpush1.bf16.msra.mxu0 %v6379
  %6424 = vmatprep.subr.bf16.mxu0 0
  %6425 = vmatpush1.bf16.msra.mxu0 %v6380
  %6426 = vmatprep.subr.bf16.mxu0 0
  %6427 = vmatpush1.bf16.msra.mxu0 %v6381
  %6428 = vmatprep.subr.bf16.mxu0 0
  %6429 = vmatpush1.bf16.msra.mxu0 %v6382
  %6430 = vmatprep.subr.bf16.mxu0 0
  %6431 = vmatpush1.bf16.msra.mxu0 %v6383
  %6432 = vmatprep.mubr.bf16.mxu0 %v6262
  %6433 = vmatmul.mubr.bf16.gmra.mrb[0].mxu0 %v6261
  %v6434 = vpop.f32.mrb[0].mxu0
  %v6435 = vadd.f32 %v6302, %v6434
  %v6436 = vpop.f32.mrb[0].mxu0
  %v6437 = vpop.f32.mrb[0].mxu0
  %v6438 = vadd.f32 %v6302, %v6437
  %v6439 = vpop.f32.mrb[0].mxu0
  %6440 = vmatprep.mubr.bf16.mxu0 %v6264
  %6441 = vmatmul.mubr.bf16.gmra.mrb[0].mxu0 %v6263
  %v6442 = vpop.f32.mrb[0].mxu0
  %v6443 = vadd.f32 %v6302, %v6442
  %v6444 = vpop.f32.mrb[0].mxu0
  %v6445 = vpop.f32.mrb[0].mxu0
  %v6446 = vadd.f32 %v6302, %v6445
  %v6447 = vpop.f32.mrb[0].mxu0
  %6448 = vdwg.mxu0
  %v6449 = vld [vmem:[%s9] sm:$0xff]
  %v6450 = vld [vmem:[%s9 + $0x8] sm:$0xff]
  %v6451 = vld [vmem:[%s9 + $0x10] sm:$0xff]
  %v6452 = vld [vmem:[%s9 + $0x18] sm:$0xff]
  %s6453 = scalar_lea.vmem %s9, 32
  %v6454 = vld [vmem:[%s6453] sm:$0xff]
  %v6455 = vld [vmem:[%s6453 + $0x8] sm:$0xff]
  %v6456 = vld [vmem:[%s6453 + $0x10] sm:$0xff]
  %v6457 = vld [vmem:[%s6453 + $0x18] sm:$0xff]
  %v6458 = vmul.f32 %v6435, %v6449
  %v6459 = vmul.f32 %v6438, %v6450
  %v6460 = vmul.f32 %v6443, %v6451
  %v6461 = vmul.f32 %v6446, %v6452
  %6466 = vrot.lane.b32.xlu0 %v6454, 64
  %v6467 = vpop.permute.xlu0 %6466
  %6468 = vrot.lane.b32.xlu0 %v6455, 64
  %v6469 = vpop.permute.xlu0 %6468
  %6470 = vrot.lane.b32.xlu0 %v6456, 64
  %v6471 = vpop.permute.xlu0 %6470
  %6472 = vrot.lane.b32.xlu0 %v6457, 64
  %v6473 = vpop.permute.xlu0 %6472
  %v6478 = vmul.f32 %v6435, %v6467
  %v6479 = vmul.f32 %v6438, %v6469
  %v6480 = vmul.f32 %v6443, %v6471
  %v6481 = vmul.f32 %v6446, %v6473
  %6486 = vrot.lane.b32.xlu0 %v6478, 64
  %v6487 = vpop.permute.xlu0 %6486
  %6488 = vrot.lane.b32.xlu0 %v6479, 64
  %v6489 = vpop.permute.xlu0 %6488
  %6490 = vrot.lane.b32.xlu0 %v6480, 64
  %v6491 = vpop.permute.xlu0 %6490
  %6492 = vrot.lane.b32.xlu0 %v6481, 64
  %v6493 = vpop.permute.xlu0 %6492
  %v6498 = vsub.f32 %v6458, %v6487
  %v6499 = vsub.f32 %v6459, %v6489
  %v6500 = vsub.f32 %v6460, %v6491
  %v6501 = vsub.f32 %v6461, %v6493
  %6506 = vrot.lane.b32.xlu0 %v6449, 64
  %v6507 = vpop.permute.xlu0 %6506
  %6508 = vrot.lane.b32.xlu0 %v6450, 64
  %v6509 = vpop.permute.xlu0 %6508
  %6510 = vrot.lane.b32.xlu0 %v6451, 64
  %v6511 = vpop.permute.xlu0 %6510
  %6512 = vrot.lane.b32.xlu0 %v6452, 64
  %v6513 = vpop.permute.xlu0 %6512
  %v6518 = vmul.f32 %v6435, %v6507
  %v6519 = vmul.f32 %v6438, %v6509
  %v6520 = vmul.f32 %v6443, %v6511
  %v6521 = vmul.f32 %v6446, %v6513
  %v6522 = vmul.f32 %v6435, %v6454
  %v6523 = vmul.f32 %v6438, %v6455
  %v6524 = vmul.f32 %v6443, %v6456
  %v6525 = vmul.f32 %v6446, %v6457
  %6530 = vrot.lane.b32.xlu0 %v6522, 64
  %v6531 = vpop.permute.xlu0 %6530
  %6532 = vrot.lane.b32.xlu0 %v6523, 64
  %v6533 = vpop.permute.xlu0 %6532
  %6534 = vrot.lane.b32.xlu0 %v6524, 64
  %v6535 = vpop.permute.xlu0 %6534
  %6536 = vrot.lane.b32.xlu0 %v6525, 64
  %v6537 = vpop.permute.xlu0 %6536
  %v6542 = vadd.f32 %v6518, %v6531
  %v6543 = vadd.f32 %v6519, %v6533
  %v6544 = vadd.f32 %v6520, %v6535
  %v6545 = vadd.f32 %v6521, %v6537
  %v6546 = vpack.c.bf16 %v6499, %v6498
  %v6547 = vpack.c.bf16 %v6501, %v6500
  %v6548 = vld [vmem:[%s10] sm:$0xff]
  %v6549 = vld [vmem:[%s10 + $0x8] sm:$0xff]
  %v6550 = vld [vmem:[%s10 + $0x10] sm:$0xff]
  %v6551 = vld [vmem:[%s10 + $0x18] sm:$0xff]
  %v6552 = vld [vmem:[%s10 + $0x20] sm:$0xff]
  %v6553 = vld [vmem:[%s10 + $0x28] sm:$0xff]
  %v6554 = vld [vmem:[%s10 + $0x30] sm:$0xff]
  %v6555 = vld [vmem:[%s10 + $0x38] sm:$0xff]
  %v6556 = vpack.c.bf16 %v6543, %v6542
  %v6557 = vpack.c.bf16 %v6545, %v6544
  %v6558 = vld [vmem:[%s10 + $0x40] sm:$0xff]
  %v6559 = vld [vmem:[%s10 + $0x48] sm:$0xff]
  %v6560 = vld [vmem:[%s10 + $0x50] sm:$0xff]
  %v6561 = vld [vmem:[%s10 + $0x58] sm:$0xff]
  %v6562 = vld [vmem:[%s10 + $0x60] sm:$0xff]
  %v6563 = vld [vmem:[%s10 + $0x68] sm:$0xff]
  %v6564 = vld [vmem:[%s10 + $0x70] sm:$0xff]
  %v6565 = vld [vmem:[%s10 + $0x78] sm:$0xff]
  %6568 = vrot.lane.b32.xlu0 %v6556, 64
  %v6569 = vpop.permute.xlu0 %6568
  %6570 = vrot.lane.b32.xlu0 %v6557, 64
  %v6571 = vpop.permute.xlu0 %6570
  %v6580 = vunpack.c.l.b16 %v6558
  %v6581 = vunpack.c.h.b16 %v6558
  %v6582 = vunpack.c.l.b16 %v6559
  %v6583 = vunpack.c.h.b16 %v6559
  %v6584 = vunpack.c.l.b16 %v6560
  %v6585 = vunpack.c.h.b16 %v6560
  %v6586 = vunpack.c.l.b16 %v6561
  %v6587 = vunpack.c.h.b16 %v6561
  %v6588 = vunpack.c.l.b16 %v6562
  %v6589 = vunpack.c.h.b16 %v6562
  %v6590 = vunpack.c.l.b16 %v6563
  %v6591 = vunpack.c.h.b16 %v6563
  %v6592 = vunpack.c.l.b16 %v6564
  %v6593 = vunpack.c.h.b16 %v6564
  %v6594 = vunpack.c.l.b16 %v6565
  %v6595 = vunpack.c.h.b16 %v6565
  %v6596 = vpack.c.b16 %v6582, %v6580
  %v6597 = vpack.c.b16 %v6583, %v6581
  %v6598 = vpack.c.b16 %v6586, %v6584
  %v6599 = vpack.c.b16 %v6587, %v6585
  %v6600 = vpack.c.b16 %v6590, %v6588
  %v6601 = vpack.c.b16 %v6591, %v6589
  %v6602 = vpack.c.b16 %v6594, %v6592
  %v6603 = vpack.c.b16 %v6595, %v6593
  %vm6612 = vcmask 523264
  %v6614 = vsel %vm6612, %v6569, 0
  %v6617 = vsel %vm6612, %v6571, 0
  %6619 = vmatprep.subr.bf16.mxu0 %v6597
  %6620 = vmatpush1.bf16.msra.mxu0 %v6596
  %6621 = vmatprep.subr.bf16.mxu0 %v6599
  %6622 = vmatpush1.bf16.msra.mxu0 %v6598
  %6623 = vmatprep.subr.bf16.mxu0 %v6601
  %6624 = vmatpush1.bf16.msra.mxu0 %v6600
  %6625 = vmatprep.subr.bf16.mxu0 %v6603
  %6626 = vmatpush1.bf16.msra.mxu0 %v6602
  %6627 = vmatprep.subr.bf16.mxu0 0
  %6628 = vmatpush1.bf16.msra.mxu0 0
  %6629 = vmatprep.subr.bf16.mxu0 0
  %6630 = vmatpush1.bf16.msra.mxu0 0
  %6631 = vmatprep.subr.bf16.mxu0 0
  %6632 = vmatpush1.bf16.msra.mxu0 0
  %6633 = vmatprep.subr.bf16.mxu0 0
  %6634 = vmatpush1.bf16.msra.mxu0 0
  %6635 = vmatprep.subr.bf16.mxu0 0
  %6636 = vmatpush1.bf16.msra.mxu0 0
  %6637 = vmatprep.subr.bf16.mxu0 0
  %6638 = vmatpush1.bf16.msra.mxu0 0
  %6639 = vmatprep.subr.bf16.mxu0 0
  %6640 = vmatpush1.bf16.msra.mxu0 0
  %6641 = vmatprep.subr.bf16.mxu0 0
  %6642 = vmatpush1.bf16.msra.mxu0 0
  %6643 = vmatprep.subr.bf16.mxu0 0
  %6644 = vmatpush1.bf16.msra.mxu0 0
  %6645 = vmatprep.subr.bf16.mxu0 0
  %6646 = vmatpush1.bf16.msra.mxu0 0
  %6647 = vmatprep.subr.bf16.mxu0 0
  %6648 = vmatpush1.bf16.msra.mxu0 0
  %6649 = vmatprep.subr.bf16.mxu0 0
  %6650 = vmatpush1.bf16.msra.mxu0 0
  %6651 = vmatprep.mubr.bf16.mxu0 0
  %6652 = vmatmul.mubr.bf16.gmra.mrb[0].mxu0 %v6614
  %v6653 = vpop.f32.mrb[0].mxu0
  %v6654 = vadd.f32 0.0, %v6653
  %v6655 = vpop.f32.mrb[0].mxu0
  %v6656 = vadd.f32 0.0, %v6655
  %v6657 = vpop.f32.mrb[0].mxu0
  %v6658 = vadd.f32 0.0, %v6657
  %v6659 = vpop.f32.mrb[0].mxu0
  %v6660 = vadd.f32 0.0, %v6659
  %6661 = vmatprep.mubr.bf16.mxu0 0
  %6662 = vmatmul.mubr.bf16.gmra.mrb[0].mxu0 %v6617
  %v6663 = vpop.f32.mrb[0].mxu0
  %v6664 = vadd.f32 0.0, %v6663
  %v6665 = vpop.f32.mrb[0].mxu0
  %v6666 = vadd.f32 0.0, %v6665
  %v6667 = vpop.f32.mrb[0].mxu0
  %v6668 = vadd.f32 0.0, %v6667
  %v6669 = vpop.f32.mrb[0].mxu0
  %v6670 = vadd.f32 0.0, %v6669
  %6671 = vdwg.mxu0
  %v6680 = vunpack.c.l.b16 %v6548
  %v6681 = vunpack.c.h.b16 %v6548
  %v6682 = vunpack.c.l.b16 %v6549
  %v6683 = vunpack.c.h.b16 %v6549
  %v6684 = vunpack.c.l.b16 %v6550
  %v6685 = vunpack.c.h.b16 %v6550
  %v6686 = vunpack.c.l.b16 %v6551
  %v6687 = vunpack.c.h.b16 %v6551
  %v6688 = vunpack.c.l.b16 %v6552
  %v6689 = vunpack.c.h.b16 %v6552
  %v6690 = vunpack.c.l.b16 %v6553
  %v6691 = vunpack.c.h.b16 %v6553
  %v6692 = vunpack.c.l.b16 %v6554
  %v6693 = vunpack.c.h.b16 %v6554
  %v6694 = vunpack.c.l.b16 %v6555
  %v6695 = vunpack.c.h.b16 %v6555
  %v6696 = vpack.c.b16 %v6682, %v6680
  %v6697 = vpack.c.b16 %v6683, %v6681
  %v6698 = vpack.c.b16 %v6686, %v6684
  %v6699 = vpack.c.b16 %v6687, %v6685
  %v6700 = vpack.c.b16 %v6690, %v6688
  %v6701 = vpack.c.b16 %v6691, %v6689
  %v6702 = vpack.c.b16 %v6694, %v6692
  %v6703 = vpack.c.b16 %v6695, %v6693
  %v6713 = vsel %vm6612, %v6546, 0
  %v6716 = vsel %vm6612, %v6547, 0
  %6718 = vmatprep.subr.bf16.mxu0 %v6697
  %6719 = vmatpush1.bf16.msra.mxu0 %v6696
  %6720 = vmatprep.subr.bf16.mxu0 %v6699
  %6721 = vmatpush1.bf16.msra.mxu0 %v6698
  %6722 = vmatprep.subr.bf16.mxu0 %v6701
  %6723 = vmatpush1.bf16.msra.mxu0 %v6700
  %6724 = vmatprep.subr.bf16.mxu0 %v6703
  %6725 = vmatpush1.bf16.msra.mxu0 %v6702
  %6726 = vmatprep.subr.bf16.mxu0 0
  %6727 = vmatpush1.bf16.msra.mxu0 0
  %6728 = vmatprep.subr.bf16.mxu0 0
  %6729 = vmatpush1.bf16.msra.mxu0 0
  %6730 = vmatprep.subr.bf16.mxu0 0
  %6731 = vmatpush1.bf16.msra.mxu0 0
  %6732 = vmatprep.subr.bf16.mxu0 0
  %6733 = vmatpush1.bf16.msra.mxu0 0
  %6734 = vmatprep.subr.bf16.mxu0 0
  %6735 = vmatpush1.bf16.msra.mxu0 0
  %6736 = vmatprep.subr.bf16.mxu0 0
  %6737 = vmatpush1.bf16.msra.mxu0 0
  %6738 = vmatprep.subr.bf16.mxu0 0
  %6739 = vmatpush1.bf16.msra.mxu0 0
  %6740 = vmatprep.subr.bf16.mxu0 0
  %6741 = vmatpush1.bf16.msra.mxu0 0
  %6742 = vmatprep.subr.bf16.mxu0 0
  %6743 = vmatpush1.bf16.msra.mxu0 0
  %6744 = vmatprep.subr.bf16.mxu0 0
  %6745 = vmatpush1.bf16.msra.mxu0 0
  %6746 = vmatprep.subr.bf16.mxu0 0
  %6747 = vmatpush1.bf16.msra.mxu0 0
  %6748 = vmatprep.subr.bf16.mxu0 0
  %6749 = vmatpush1.bf16.msra.mxu0 0
  %6750 = vmatprep.mubr.bf16.mxu0 0
  %6751 = vmatmul.mubr.bf16.gmra.mrb[0].mxu0 %v6713
  %v6752 = vpop.f32.mrb[0].mxu0
  %v6753 = vadd.f32 %v6654, %v6752
  %v6754 = vpop.f32.mrb[0].mxu0
  %v6755 = vadd.f32 %v6656, %v6754
  %v6756 = vpop.f32.mrb[0].mxu0
  %v6757 = vadd.f32 %v6658, %v6756
  %v6758 = vpop.f32.mrb[0].mxu0
  %v6759 = vadd.f32 %v6660, %v6758
  %6760 = vmatprep.mubr.bf16.mxu0 0
  %6761 = vmatmul.mubr.bf16.gmra.mrb[0].mxu0 %v6716
  %v6762 = vpop.f32.mrb[0].mxu0
  %v6763 = vadd.f32 %v6664, %v6762
  %v6764 = vpop.f32.mrb[0].mxu0
  %v6765 = vadd.f32 %v6666, %v6764
  %v6766 = vpop.f32.mrb[0].mxu0
  %v6767 = vadd.f32 %v6668, %v6766
  %v6768 = vpop.f32.mrb[0].mxu0
  %v6769 = vadd.f32 %v6670, %v6768
  %6770 = vdwg.mxu0
  %6771 = vst [vmem:[%s11] sm:$0xff] %v6753
  %6772 = vst [vmem:[%s11 + $0x8] sm:$0xff] %v6755
  %6773 = vst [vmem:[%s11 + $0x10] sm:$0xff] %v6757
  %6774 = vst [vmem:[%s11 + $0x18] sm:$0xff] %v6759
  %6775 = vst [vmem:[%s11 + $0x20] sm:$0xff] %v6763
  %6776 = vst [vmem:[%s11 + $0x28] sm:$0xff] %v6765
  %6777 = vst [vmem:[%s11 + $0x30] sm:$0xff] %v6767
  %6778 = vst [vmem:[%s11 + $0x38] sm:$0xff] %v6769
  // Predicated region
  $region46: #{wav2vec2_mistral_forward.3} parent=0 // pred_check
    _
  $region47: #{wav2vec2_mistral_forward.3} parent=0 // pred_check_branch
    %6780 = sbr.rel (0) target = $region49
  $region48: #{wav2vec2_mistral_forward.3} parent=0 // pred_region
    _
  $region49: #{wav2vec2_mistral_forward.3} parent=0 // pred_fallthru
    _
  // Predicated region
  $region50: #{wav2vec2_mistral_forward.3} parent=0 // pred_check
    _
  $region51: #{wav2vec2_mistral_forward.3} parent=0 // pred_check_branch
    %6782 = sbr.rel (0) target = $region53
  $region52: #{wav2vec2_mistral_forward.3} parent=0 // pred_region
    _
  $region53: #{wav2vec2_mistral_forward.3} parent=0 // pred_fallthru
    _

</llo_original>
